<compile_context>
chip_gen: v7x
topology: tpu7x:2x2x1
jax: 0.10.0
libtpu: 0.0.40
codegen_flags: <defaults>
</compile_context>

<pallas_src>
import functools

import jax
import jax.numpy as jnp
from jax import lax
from jax.experimental import pallas as pl
from jax.experimental.pallas import tpu as pltpu

BN_EPS = 1e-5
LANE = 128
# f32 keeps exact module semantics. Flip to jnp.bfloat16 on v6e/v7x for full-rate MXU
# (weights are pre-cast host-side, the padded-band scratch follows this dtype, and
# accumulation stays f32 via preferred_element_type); tolerance vs f32 then ~1e-2.
MATMUL_DTYPE = jnp.float32


def _ceil_to(x, m):
    return (x + m - 1) // m * m


def _compiler_params(dim_sem):
    return pltpu.CompilerParams(dimension_semantics=dim_sem,
                                vmem_limit_bytes=32 * 1024 * 1024)


# --------------------------------------------------------------------------- #
# Kernels
# --------------------------------------------------------------------------- #
def _conv_pass_kernel(*refs, pre_bn, H, W, Cin_p):
    """(optional fused BN+ReLU of previous layer) -> 3x3 same-conv -> per-item stats.

    pre_bn=False refs: x, w, y_out, stats_out, xpad
    pre_bn=True  refs: x, scale_shift, w, y_out, stats_out, xpad

    x           : (1, H*W, Cin_p)     one batch item, channels-last, lane-padded
    scale_shift : (2, Cin_p)          previous layer's precomputed BN scale / shift
    w           : (9, Cin_p, Cout_p)  per-tap conv weight (taps = kh*3 + kw)
    y_out       : (1, H*W, Cout_p)    raw conv output (pre-BN)
    stats_out   : (1, 2, Cout_p)      this item's [sum ; sum-of-squares]
    xpad        : (H+2, Wp, Cin_p)    persistent VMEM scratch, zero-padded band
    """
    if pre_bn:
        x_ref, ss_ref, w_ref, y_ref, stats_ref, xpad_ref = refs
    else:
        x_ref, w_ref, y_ref, stats_ref, xpad_ref = refs

    # Zero the halo / alignment padding ONCE. The scratch persists across grid steps
    # and only the interior is rewritten below, so the halo stays zero. Valid because
    # the batch grid axis is marked "arbitrary" (sequential, in-order, single core).
    @pl.when(pl.program_id(0) == 0)
    def _():
        xpad_ref[...] = jnp.zeros_like(xpad_ref)

    x2d = x_ref[0]                                                 # (H*W, Cin_p)
    if pre_bn:
        # Fused BatchNorm(train) + ReLU of the previous layer (scale/shift hoisted
        # to a tiny XLA op between passes, so no per-step global reduction here).
        x2d = jnp.maximum(x2d * ss_ref[0:1, :] + ss_ref[1:2, :], 0.0)

    xpad_ref[1:H + 1, 1:W + 1, :] = x2d.reshape(H, W, Cin_p).astype(xpad_ref.dtype)

    # 3x3 "same" conv as 9 accumulating matmuls (one per tap). Same MAC count as an
    # im2col formulation, but no (H*W, 9*Cin_p) materialized lhs / concat copies.
    acc = None
    for t in range(9):
        kh, kw = t // 3, t % 3
        tap = xpad_ref[kh:kh + H, kw:kw + W, :].reshape(H * W, Cin_p)
        part = jnp.dot(tap, w_ref[t], preferred_element_type=jnp.float32)
        acc = part if acc is None else acc + part
    # NOTE: conv bias omitted -- cancelled exactly by training-mode BN mean subtraction.

    y_ref[0] = acc.astype(y_ref.dtype)

    # Per-item BN partial statistics via XLU sublane reductions (no lane concat,
    # no extra MXU matmul, no coefficient constant).
    s = jnp.sum(acc, axis=0, keepdims=True)                        # (1, Cout_p)
    sq = jnp.sum(acc * acc, axis=0, keepdims=True)                 # (1, Cout_p)
    stats_ref[0] = jnp.concatenate([s, sq], axis=0)                # (2, Cout_p)


def _bn_relu_kernel(x_ref, ss_ref, o_ref):
    """Final BatchNorm(train) + ReLU using precomputed per-channel scale/shift."""
    o_ref[0] = jnp.maximum(x_ref[0] * ss_ref[0:1, :] + ss_ref[1:2, :], 0.0
                           ).astype(o_ref.dtype)


# --------------------------------------------------------------------------- #
# pallas_call wrappers
# --------------------------------------------------------------------------- #
def _conv_pass(x, w, scale_shift=None, *, H, W):
    """One conv layer (optionally fused with the previous layer's BN+ReLU)."""
    N, HW, Cin_p = x.shape
    Cout_p = w.shape[2]
    pre_bn = scale_shift is not None
    Wp = _ceil_to(W + 2, 8)      # sublane-aligned padded-band width

    kernel = functools.partial(_conv_pass_kernel, pre_bn=pre_bn,
                               H=H, W=W, Cin_p=Cin_p)

    # TODO(synk): mark the constant-index inputs (w, scale_shift) with
    # pipeline_mode=pl.Buffered(1) when VMEM headroom is needed (large C / v7x).
    in_specs = [pl.BlockSpec((1, HW, Cin_p), lambda i: (i, 0, 0))]
    args = [x]
    if pre_bn:
        in_specs.append(pl.BlockSpec((2, Cin_p), lambda i: (0, 0)))
        args.append(scale_shift)
    in_specs.append(pl.BlockSpec((9, Cin_p, Cout_p), lambda i: (0, 0, 0)))
    args.append(w)

    y, stats = pl.pallas_call(
        kernel,
        grid=(N,),
        in_specs=in_specs,
        out_specs=(pl.BlockSpec((1, HW, Cout_p), lambda i: (i, 0, 0)),
                   pl.BlockSpec((1, 2, Cout_p), lambda i: (i, 0, 0))),
        out_shape=(jax.ShapeDtypeStruct((N, HW, Cout_p), jnp.float32),
                   jax.ShapeDtypeStruct((N, 2, Cout_p), jnp.float32)),
        scratch_shapes=[pltpu.VMEM((H + 2, Wp, Cin_p), MATMUL_DTYPE)],
        # "arbitrary": the persistent xpad halo is zeroed only at step 0, which needs
        # in-order execution of the batch axis on one core.
        # TODO(synk): add a spatial row-band grid axis (1-row halo) for v7x dual-TC
        # utilization and to bound per-step VMEM at large H*W.
        compiler_params=_compiler_params(("arbitrary",)),
    )(*args)
    return y, stats


def _bn_relu(x, scale_shift):
    N, HW, C_p = x.shape
    return pl.pallas_call(
        _bn_relu_kernel,
        grid=(N,),
        in_specs=[pl.BlockSpec((1, HW, C_p), lambda i: (i, 0, 0)),
                  pl.BlockSpec((2, C_p), lambda i: (0, 0))],
        out_specs=pl.BlockSpec((1, HW, C_p), lambda i: (i, 0, 0)),
        out_shape=jax.ShapeDtypeStruct((N, HW, C_p), jnp.float32),
        compiler_params=_compiler_params(("parallel",)),
    )(x, scale_shift)


# --------------------------------------------------------------------------- #
# Parameter prep / public forward
# --------------------------------------------------------------------------- #
def _prep_weight(w_oihw, cin_p, cout_p):
    """PyTorch OIHW conv weight -> lane-padded per-tap weight (9, cin_p, cout_p)."""
    w = jnp.transpose(w_oihw, (2, 3, 1, 0))                        # HWIO
    _, _, cin, cout = w.shape
    w = jnp.pad(w, ((0, 0), (0, 0), (0, cin_p - cin), (0, cout_p - cout)))
    return w.reshape(9, cin_p, cout_p).astype(MATMUL_DTYPE)


def _bn_scale_shift(stats, gamma, beta, count, c_p):
    """Fold globally-summed stats into per-channel scale/shift.

    Tiny O(N*C) XLA op, hoisted out of the kernels so it is not recomputed on
    every grid step. Padded channels (gamma/beta padded with zeros) map to
    scale = shift = 0, so they stay exactly zero downstream.
    """
    s = jnp.sum(stats, axis=0)                                     # (2, C_p)
    mean = s[0] / count
    var = jnp.maximum(s[1] / count - mean * mean, 0.0)
    g = jnp.pad(gamma.astype(jnp.float32), (0, c_p - gamma.shape[0]))
    b = jnp.pad(beta.astype(jnp.float32), (0, c_p - beta.shape[0]))
    scale = g * lax.rsqrt(var + BN_EPS)
    shift = b - mean * scale
    return jnp.stack([scale, shift])                               # (2, C_p)


def init_conv_block_params(key, in_c, out_c):
    """Parameters matching the PyTorch module. Conv biases omitted: with BN in
    training mode a per-channel conv bias is cancelled exactly by mean subtraction."""
    k1, k2 = jax.random.split(key, 2)
    return {
        "w1": jax.random.normal(k1, (out_c, in_c, 3, 3), jnp.float32) * 0.1,
        "w2": jax.random.normal(k2, (out_c, out_c, 3, 3), jnp.float32) * 0.1,
        "g1": jnp.ones((out_c,), jnp.float32),
        "be1": jnp.zeros((out_c,), jnp.float32),
        "g2": jnp.ones((out_c,), jnp.float32),
        "be2": jnp.zeros((out_c,), jnp.float32),
    }


@jax.jit
def conv_block_forward(x_nchw, params):
    """conv_block.forward: NCHW in -> NCHW out (matches the PyTorch module)."""
    N, in_c, H, W = x_nchw.shape
    out_c = params["g1"].shape[0]
    cin_p = _ceil_to(in_c, LANE)
    cout_p = _ceil_to(out_c, LANE)
    count = N * H * W

    # TODO(synk): keep the surrounding model NHWC (and lane-padded) end-to-end to
    # drop these transposes/pads and the trailing slice -- each is an HBM round trip.
    # TODO(synk): for tiny channel counts (in_c=4/out_c=8) pack the im2col K once
    # (9*in_c -> 128) instead of padding every tap's Cin to 128, and store narrower
    # intermediates; the current layout moves/multiplies mostly zeros.
    x = jnp.transpose(x_nchw, (0, 2, 3, 1)).reshape(N, H * W, in_c)
    x = jnp.pad(x, ((0, 0), (0, 0), (0, cin_p - in_c))).astype(jnp.float32)

    w1 = _prep_weight(params["w1"], cin_p, cout_p)
    w2 = _prep_weight(params["w2"], cout_p, cout_p)

    y1, stats1 = _conv_pass(x, w1, H=H, W=W)                 # conv1 (+ stats1)
    ss1 = _bn_scale_shift(stats1, params["g1"], params["be1"], count, cout_p)
    y2, stats2 = _conv_pass(y1, w2, ss1, H=H, W=W)           # bn1+relu fused w/ conv2
    ss2 = _bn_scale_shift(stats2, params["g2"], params["be2"], count, cout_p)
    y3 = _bn_relu(y2, ss2)                                   # bn2 + relu

    out = y3[:, :, :out_c].reshape(N, H, W, out_c)
    return jnp.transpose(out, (0, 3, 1, 2))


# --------------------------------------------------------------------------- #
# Pure-XLA reference (the PyTorch module, training-mode BN) and test harness
# --------------------------------------------------------------------------- #
def _reference_forward(x, params):
    def conv(h, w):
        return lax.conv_general_dilated(h, w, window_strides=(1, 1),
                                        padding=((1, 1), (1, 1)),
                                        dimension_numbers=("NCHW", "OIHW", "NCHW"))

    def bn_relu(h, g, b):
        mean = jnp.mean(h, axis=(0, 2, 3), keepdims=True)
        var = jnp.mean(jnp.square(h - mean), axis=(0, 2, 3), keepdims=True)
        h = (h - mean) * lax.rsqrt(var + BN_EPS)
        h = h * g.reshape(1, -1, 1, 1) + b.reshape(1, -1, 1, 1)
        return jnp.maximum(h, 0.0)

    h = bn_relu(conv(x, params["w1"]), params["g1"], params["be1"])
    h = bn_relu(conv(h, params["w2"]), params["g2"], params["be2"])
    return h


if __name__ == "__main__":
    key = jax.random.PRNGKey(0)
    kx, kp = jax.random.split(key)

    # Small shapes consistent with the module: batch=2, in_c=4, out_c=8, spatial=16.
    N, in_c, out_c, H, W = 2, 4, 8, 16, 16
    x = jax.random.normal(kx, (N, in_c, H, W), jnp.float32)
    params = init_conv_block_params(kp, in_c, out_c)

    out = jax.block_until_ready(conv_block_forward(x, params))

    assert out.shape == (N, out_c, H, W), out.shape
    assert out.dtype == jnp.float32
    assert bool(jnp.isfinite(out).all())

    ref = jax.block_until_ready(_reference_forward(x, params))
    max_err = float(jnp.max(jnp.abs(out - ref)))
    assert bool(jnp.allclose(out, ref, atol=5e-2, rtol=5e-2)), max_err

    print("KERNEL_OK")
</pallas_src>

<mosaic_0001>
module attributes {stable_mosaic.version = 11 : i64} {
  func.func @_conv_pass_kernel(%arg0: i32, %arg1: memref<1x256x128xf32, #tpu.memory_space<vmem>>, %arg2: memref<9x128x128xf32, #tpu.memory_space<vmem>>, %arg3: memref<1x256x128xf32, #tpu.memory_space<vmem>>, %arg4: memref<1x2x128xf32, #tpu.memory_space<vmem>>, %arg5: memref<18x24x128xf32, #tpu.memory_space<vmem>>) attributes {dimension_semantics = [#tpu.dimension_semantics<arbitrary>], iteration_bounds = array<i64: 2>, scalar_prefetch = 0 : i64, scratch_operands = 1 : i64, tpu.core_type = #tpu.core_type<tc>, window_params = [{transform_indices = @transform_0, window_bounds = array<i64: 1, 256, 128>}, {pipeline_mode = #tpu.pipeline_mode<synchronous>, transform_indices = @transform_1, window_bounds = array<i64: 9, 128, 128>}, {transform_indices = @transform_2, window_bounds = array<i64: 1, 256, 128>}, {transform_indices = @transform_3, window_bounds = array<i64: 1, 2, 128>}]} {
    %c0_i32 = arith.constant 0 : i32
    %0 = arith.cmpi eq, %arg0, %c0_i32 : i32
    %1 = arith.extui %0 : i1 to i32
    %c0_i32_0 = arith.constant 0 : i32
    %2 = arith.cmpi ne, %1, %c0_i32_0 : i32
    scf.if %2 {
      %cst_68 = arith.constant 0.000000e+00 : f32
      %72 = vector.broadcast %cst_68 : f32 to vector<18x24x128xf32>
      %c0_69 = arith.constant 0 : index
      %c0_70 = arith.constant 0 : index
      %c0_71 = arith.constant 0 : index
      %73 = vector.load %arg5[%c0_69, %c0_70, %c0_71] : memref<18x24x128xf32, #tpu.memory_space<vmem>>, vector<18x24x128xf32>
      tpu.vector_store %arg5[%c0_69, %c0_70, %c0_71], %72 {strides = array<i32>} : memref<18x24x128xf32, #tpu.memory_space<vmem>>, vector<18x24x128xf32>,
    } else {
    }
    %c0 = arith.constant 0 : index
    %c0_1 = arith.constant 0 : index
    %c0_2 = arith.constant 0 : index
    %3 = vector.load %arg1[%c0, %c0_1, %c0_2] : memref<1x256x128xf32, #tpu.memory_space<vmem>>, vector<1x256x128xf32>
    %4 = vector.shape_cast %3 : vector<1x256x128xf32> to vector<256x128xf32>
    %5 = vector.shape_cast %4 : vector<256x128xf32> to vector<16x16x128xf32>
    %c1 = arith.constant 1 : index
    %c1_3 = arith.constant 1 : index
    %c0_4 = arith.constant 0 : index
    %6 = vector.load %arg5[%c1, %c1_3, %c0_4] : memref<18x24x128xf32, #tpu.memory_space<vmem>>, vector<16x16x128xf32>
    tpu.vector_store %arg5[%c1, %c1_3, %c0_4], %5 {strides = array<i32>} : memref<18x24x128xf32, #tpu.memory_space<vmem>>, vector<16x16x128xf32>,
    %c0_5 = arith.constant 0 : index
    %c0_6 = arith.constant 0 : index
    %c0_7 = arith.constant 0 : index
    %7 = vector.load %arg5[%c0_5, %c0_6, %c0_7] : memref<18x24x128xf32, #tpu.memory_space<vmem>>, vector<16x16x128xf32>
    %8 = vector.shape_cast %7 : vector<16x16x128xf32> to vector<256x128xf32>
    %c0_8 = arith.constant 0 : index
    %c0_9 = arith.constant 0 : index
    %c0_10 = arith.constant 0 : index
    %9 = vector.load %arg2[%c0_8, %c0_9, %c0_10] : memref<9x128x128xf32, #tpu.memory_space<vmem>>, vector<1x128x128xf32>
    %10 = vector.shape_cast %9 : vector<1x128x128xf32> to vector<128x128xf32>
    %cst = arith.constant dense<0.000000e+00> : vector<256x128xf32>
    %11 = tpu.matmul %8, %10, %cst {dimension_numbers = #tpu.dot_dimension_numbers<[1], [0], [0], [1], [0, 0, 1, 1], [], []>} : vector<256x128xf32>, vector<128x128xf32>, vector<256x128xf32> -> vector<256x128xf32>
    %c0_11 = arith.constant 0 : index
    %c1_12 = arith.constant 1 : index
    %c0_13 = arith.constant 0 : index
    %12 = vector.load %arg5[%c0_11, %c1_12, %c0_13] : memref<18x24x128xf32, #tpu.memory_space<vmem>>, vector<16x16x128xf32>
    %13 = vector.shape_cast %12 : vector<16x16x128xf32> to vector<256x128xf32>
    %c1_14 = arith.constant 1 : index
    %c0_15 = arith.constant 0 : index
    %c0_16 = arith.constant 0 : index
    %14 = vector.load %arg2[%c1_14, %c0_15, %c0_16] : memref<9x128x128xf32, #tpu.memory_space<vmem>>, vector<1x128x128xf32>
    %15 = vector.shape_cast %14 : vector<1x128x128xf32> to vector<128x128xf32>
    %cst_17 = arith.constant dense<0.000000e+00> : vector<256x128xf32>
    %16 = tpu.matmul %13, %15, %cst_17 {dimension_numbers = #tpu.dot_dimension_numbers<[1], [0], [0], [1], [0, 0, 1, 1], [], []>} : vector<256x128xf32>, vector<128x128xf32>, vector<256x128xf32> -> vector<256x128xf32>
    %17 = arith.addf %11, %16 : vector<256x128xf32>
    %c0_18 = arith.constant 0 : index
    %c2 = arith.constant 2 : index
    %c0_19 = arith.constant 0 : index
    %18 = vector.load %arg5[%c0_18, %c2, %c0_19] : memref<18x24x128xf32, #tpu.memory_space<vmem>>, vector<16x16x128xf32>
    %19 = vector.shape_cast %18 : vector<16x16x128xf32> to vector<256x128xf32>
    %c2_20 = arith.constant 2 : index
    %c0_21 = arith.constant 0 : index
    %c0_22 = arith.constant 0 : index
    %20 = vector.load %arg2[%c2_20, %c0_21, %c0_22] : memref<9x128x128xf32, #tpu.memory_space<vmem>>, vector<1x128x128xf32>
    %21 = vector.shape_cast %20 : vector<1x128x128xf32> to vector<128x128xf32>
    %cst_23 = arith.constant dense<0.000000e+00> : vector<256x128xf32>
    %22 = tpu.matmul %19, %21, %cst_23 {dimension_numbers = #tpu.dot_dimension_numbers<[1], [0], [0], [1], [0, 0, 1, 1], [], []>} : vector<256x128xf32>, vector<128x128xf32>, vector<256x128xf32> -> vector<256x128xf32>
    %23 = arith.addf %17, %22 : vector<256x128xf32>
    %c1_24 = arith.constant 1 : index
    %c0_25 = arith.constant 0 : index
    %c0_26 = arith.constant 0 : index
    %24 = vector.load %arg5[%c1_24, %c0_25, %c0_26] : memref<18x24x128xf32, #tpu.memory_space<vmem>>, vector<16x16x128xf32>
    %25 = vector.shape_cast %24 : vector<16x16x128xf32> to vector<256x128xf32>
    %c3 = arith.constant 3 : index
    %c0_27 = arith.constant 0 : index
    %c0_28 = arith.constant 0 : index
    %26 = vector.load %arg2[%c3, %c0_27, %c0_28] : memref<9x128x128xf32, #tpu.memory_space<vmem>>, vector<1x128x128xf32>
    %27 = vector.shape_cast %26 : vector<1x128x128xf32> to vector<128x128xf32>
    %cst_29 = arith.constant dense<0.000000e+00> : vector<256x128xf32>
    %28 = tpu.matmul %25, %27, %cst_29 {dimension_numbers = #tpu.dot_dimension_numbers<[1], [0], [0], [1], [0, 0, 1, 1], [], []>} : vector<256x128xf32>, vector<128x128xf32>, vector<256x128xf32> -> vector<256x128xf32>
    %29 = arith.addf %23, %28 : vector<256x128xf32>
    %c1_30 = arith.constant 1 : index
    %c1_31 = arith.constant 1 : index
    %c0_32 = arith.constant 0 : index
    %30 = vector.load %arg5[%c1_30, %c1_31, %c0_32] : memref<18x24x128xf32, #tpu.memory_space<vmem>>, vector<16x16x128xf32>
    %31 = vector.shape_cast %30 : vector<16x16x128xf32> to vector<256x128xf32>
    %c4 = arith.constant 4 : index
    %c0_33 = arith.constant 0 : index
    %c0_34 = arith.constant 0 : index
    %32 = vector.load %arg2[%c4, %c0_33, %c0_34] : memref<9x128x128xf32, #tpu.memory_space<vmem>>, vector<1x128x128xf32>
    %33 = vector.shape_cast %32 : vector<1x128x128xf32> to vector<128x128xf32>
    %cst_35 = arith.constant dense<0.000000e+00> : vector<256x128xf32>
    %34 = tpu.matmul %31, %33, %cst_35 {dimension_numbers = #tpu.dot_dimension_numbers<[1], [0], [0], [1], [0, 0, 1, 1], [], []>} : vector<256x128xf32>, vector<128x128xf32>, vector<256x128xf32> -> vector<256x128xf32>
    %35 = arith.addf %29, %34 : vector<256x128xf32>
    %c1_36 = arith.constant 1 : index
    %c2_37 = arith.constant 2 : index
    %c0_38 = arith.constant 0 : index
    %36 = vector.load %arg5[%c1_36, %c2_37, %c0_38] : memref<18x24x128xf32, #tpu.memory_space<vmem>>, vector<16x16x128xf32>
    %37 = vector.shape_cast %36 : vector<16x16x128xf32> to vector<256x128xf32>
    %c5 = arith.constant 5 : index
    %c0_39 = arith.constant 0 : index
    %c0_40 = arith.constant 0 : index
    %38 = vector.load %arg2[%c5, %c0_39, %c0_40] : memref<9x128x128xf32, #tpu.memory_space<vmem>>, vector<1x128x128xf32>
    %39 = vector.shape_cast %38 : vector<1x128x128xf32> to vector<128x128xf32>
    %cst_41 = arith.constant dense<0.000000e+00> : vector<256x128xf32>
    %40 = tpu.matmul %37, %39, %cst_41 {dimension_numbers = #tpu.dot_dimension_numbers<[1], [0], [0], [1], [0, 0, 1, 1], [], []>} : vector<256x128xf32>, vector<128x128xf32>, vector<256x128xf32> -> vector<256x128xf32>
    %41 = arith.addf %35, %40 : vector<256x128xf32>
    %c2_42 = arith.constant 2 : index
    %c0_43 = arith.constant 0 : index
    %c0_44 = arith.constant 0 : index
    %42 = vector.load %arg5[%c2_42, %c0_43, %c0_44] : memref<18x24x128xf32, #tpu.memory_space<vmem>>, vector<16x16x128xf32>
    %43 = vector.shape_cast %42 : vector<16x16x128xf32> to vector<256x128xf32>
    %c6 = arith.constant 6 : index
    %c0_45 = arith.constant 0 : index
    %c0_46 = arith.constant 0 : index
    %44 = vector.load %arg2[%c6, %c0_45, %c0_46] : memref<9x128x128xf32, #tpu.memory_space<vmem>>, vector<1x128x128xf32>
    %45 = vector.shape_cast %44 : vector<1x128x128xf32> to vector<128x128xf32>
    %cst_47 = arith.constant dense<0.000000e+00> : vector<256x128xf32>
    %46 = tpu.matmul %43, %45, %cst_47 {dimension_numbers = #tpu.dot_dimension_numbers<[1], [0], [0], [1], [0, 0, 1, 1], [], []>} : vector<256x128xf32>, vector<128x128xf32>, vector<256x128xf32> -> vector<256x128xf32>
    %47 = arith.addf %41, %46 : vector<256x128xf32>
    %c2_48 = arith.constant 2 : index
    %c1_49 = arith.constant 1 : index
    %c0_50 = arith.constant 0 : index
    %48 = vector.load %arg5[%c2_48, %c1_49, %c0_50] : memref<18x24x128xf32, #tpu.memory_space<vmem>>, vector<16x16x128xf32>
    %49 = vector.shape_cast %48 : vector<16x16x128xf32> to vector<256x128xf32>
    %c7 = arith.constant 7 : index
    %c0_51 = arith.constant 0 : index
    %c0_52 = arith.constant 0 : index
    %50 = vector.load %arg2[%c7, %c0_51, %c0_52] : memref<9x128x128xf32, #tpu.memory_space<vmem>>, vector<1x128x128xf32>
    %51 = vector.shape_cast %50 : vector<1x128x128xf32> to vector<128x128xf32>
    %cst_53 = arith.constant dense<0.000000e+00> : vector<256x128xf32>
    %52 = tpu.matmul %49, %51, %cst_53 {dimension_numbers = #tpu.dot_dimension_numbers<[1], [0], [0], [1], [0, 0, 1, 1], [], []>} : vector<256x128xf32>, vector<128x128xf32>, vector<256x128xf32> -> vector<256x128xf32>
    %53 = arith.addf %47, %52 : vector<256x128xf32>
    %c2_54 = arith.constant 2 : index
    %c2_55 = arith.constant 2 : index
    %c0_56 = arith.constant 0 : index
    %54 = vector.load %arg5[%c2_54, %c2_55, %c0_56] : memref<18x24x128xf32, #tpu.memory_space<vmem>>, vector<16x16x128xf32>
    %55 = vector.shape_cast %54 : vector<16x16x128xf32> to vector<256x128xf32>
    %c8 = arith.constant 8 : index
    %c0_57 = arith.constant 0 : index
    %c0_58 = arith.constant 0 : index
    %56 = vector.load %arg2[%c8, %c0_57, %c0_58] : memref<9x128x128xf32, #tpu.memory_space<vmem>>, vector<1x128x128xf32>
    %57 = vector.shape_cast %56 : vector<1x128x128xf32> to vector<128x128xf32>
    %cst_59 = arith.constant dense<0.000000e+00> : vector<256x128xf32>
    %58 = tpu.matmul %55, %57, %cst_59 {dimension_numbers = #tpu.dot_dimension_numbers<[1], [0], [0], [1], [0, 0, 1, 1], [], []>} : vector<256x128xf32>, vector<128x128xf32>, vector<256x128xf32> -> vector<256x128xf32>
    %59 = arith.addf %53, %58 : vector<256x128xf32>
    %c0_60 = arith.constant 0 : index
    %c0_61 = arith.constant 0 : index
    %c0_62 = arith.constant 0 : index
    %60 = vector.load %arg3[%c0_60, %c0_61, %c0_62] : memref<1x256x128xf32, #tpu.memory_space<vmem>>, vector<1x256x128xf32>
    %61 = vector.shape_cast %60 : vector<1x256x128xf32> to vector<256x128xf32>
    %62 = vector.shape_cast %59 : vector<256x128xf32> to vector<1x256x128xf32>
    tpu.vector_store %arg3[%c0_60, %c0_61, %c0_62], %62 {strides = array<i32>} : memref<1x256x128xf32, #tpu.memory_space<vmem>>, vector<1x256x128xf32>,
    %cst_63 = arith.constant dense<0.000000e+00> : vector<128xf32>
    %63 = vector.multi_reduction <add>, %59, %cst_63 [0] : vector<256x128xf32> to vector<128xf32>
    %64 = vector.shape_cast %63 : vector<128xf32> to vector<1x128xf32>
    %65 = arith.mulf %59, %59 : vector<256x128xf32>
    %cst_64 = arith.constant dense<0.000000e+00> : vector<128xf32>
    %66 = vector.multi_reduction <add>, %65, %cst_64 [0] : vector<256x128xf32> to vector<128xf32>
    %67 = vector.shape_cast %66 : vector<128xf32> to vector<1x128xf32>
    %68 = tpu.concatenate %64, %67 in 0 : vector<1x128xf32>, vector<1x128xf32> -> vector<2x128xf32>
    %c0_65 = arith.constant 0 : index
    %c0_66 = arith.constant 0 : index
    %c0_67 = arith.constant 0 : index
    %69 = vector.load %arg4[%c0_65, %c0_66, %c0_67] : memref<1x2x128xf32, #tpu.memory_space<vmem>>, vector<1x2x128xf32>
    %70 = vector.shape_cast %69 : vector<1x2x128xf32> to vector<2x128xf32>
    %71 = vector.shape_cast %68 : vector<2x128xf32> to vector<1x2x128xf32>
    tpu.vector_store %arg4[%c0_65, %c0_66, %c0_67], %71 {strides = array<i32>} : memref<1x2x128xf32, #tpu.memory_space<vmem>>, vector<1x2x128xf32>,
    return
  }
  func.func @transform_0(%arg0: i32) -> (i32, i32, i32) {
    %c0_i32 = arith.constant 0 : i32
    %c0_i32_0 = arith.constant 0 : i32
    %c0_i32_1 = arith.constant 0 : i32
    return %arg0, %c0_i32, %c0_i32_0 : i32, i32, i32
  }
  func.func @transform_1(%arg0: i32) -> (i32, i32, i32) {
    %c0_i32 = arith.constant 0 : i32
    %c0_i32_0 = arith.constant 0 : i32
    %c0_i32_1 = arith.constant 0 : i32
    %c0_i32_2 = arith.constant 0 : i32
    return %c0_i32, %c0_i32_0, %c0_i32_1 : i32, i32, i32
  }
  func.func @transform_2(%arg0: i32) -> (i32, i32, i32) {
    %c0_i32 = arith.constant 0 : i32
    %c0_i32_0 = arith.constant 0 : i32
    %c0_i32_1 = arith.constant 0 : i32
    return %arg0, %c0_i32, %c0_i32_0 : i32, i32, i32
  }
  func.func @transform_3(%arg0: i32) -> (i32, i32, i32) {
    %c0_i32 = arith.constant 0 : i32
    %c0_i32_0 = arith.constant 0 : i32
    %c0_i32_1 = arith.constant 0 : i32
    return %arg0, %c0_i32, %c0_i32_0 : i32, i32, i32
  }
}

module attributes {stable_mosaic.version = 11 : i64} {
  func.func @_conv_pass_kernel(%arg0: i32, %arg1: memref<1x256x128xf32, #tpu.memory_space<vmem>>, %arg2: memref<2x128xf32, #tpu.memory_space<vmem>>, %arg3: memref<9x128x128xf32, #tpu.memory_space<vmem>>, %arg4: memref<1x256x128xf32, #tpu.memory_space<vmem>>, %arg5: memref<1x2x128xf32, #tpu.memory_space<vmem>>, %arg6: memref<18x24x128xf32, #tpu.memory_space<vmem>>) attributes {dimension_semantics = [#tpu.dimension_semantics<arbitrary>], iteration_bounds = array<i64: 2>, scalar_prefetch = 0 : i64, scratch_operands = 1 : i64, tpu.core_type = #tpu.core_type<tc>, window_params = [{transform_indices = @transform_0, window_bounds = array<i64: 1, 256, 128>}, {pipeline_mode = #tpu.pipeline_mode<synchronous>, transform_indices = @transform_1, window_bounds = array<i64: 2, 128>}, {pipeline_mode = #tpu.pipeline_mode<synchronous>, transform_indices = @transform_2, window_bounds = array<i64: 9, 128, 128>}, {transform_indices = @transform_3, window_bounds = array<i64: 1, 256, 128>}, {transform_indices = @transform_4, window_bounds = array<i64: 1, 2, 128>}]} {
    %c0_i32 = arith.constant 0 : i32
    %0 = arith.cmpi eq, %arg0, %c0_i32 : i32
    %1 = arith.extui %0 : i1 to i32
    %c0_i32_0 = arith.constant 0 : i32
    %2 = arith.cmpi ne, %1, %c0_i32_0 : i32
    scf.if %2 {
      %cst_73 = arith.constant 0.000000e+00 : f32
      %80 = vector.broadcast %cst_73 : f32 to vector<18x24x128xf32>
      %c0_74 = arith.constant 0 : index
      %c0_75 = arith.constant 0 : index
      %c0_76 = arith.constant 0 : index
      %81 = vector.load %arg6[%c0_74, %c0_75, %c0_76] : memref<18x24x128xf32, #tpu.memory_space<vmem>>, vector<18x24x128xf32>
      tpu.vector_store %arg6[%c0_74, %c0_75, %c0_76], %80 {strides = array<i32>} : memref<18x24x128xf32, #tpu.memory_space<vmem>>, vector<18x24x128xf32>,
    } else {
    }
    %c0 = arith.constant 0 : index
    %c0_1 = arith.constant 0 : index
    %c0_2 = arith.constant 0 : index
    %3 = vector.load %arg1[%c0, %c0_1, %c0_2] : memref<1x256x128xf32, #tpu.memory_space<vmem>>, vector<1x256x128xf32>
    %4 = vector.shape_cast %3 : vector<1x256x128xf32> to vector<256x128xf32>
    %c0_3 = arith.constant 0 : index
    %c0_4 = arith.constant 0 : index
    %5 = vector.load %arg2[%c0_3, %c0_4] : memref<2x128xf32, #tpu.memory_space<vmem>>, vector<1x128xf32>
    %6 = vector.broadcast %5 : vector<1x128xf32> to vector<256x128xf32>
    %7 = arith.mulf %4, %6 : vector<256x128xf32>
    %c1 = arith.constant 1 : index
    %c0_5 = arith.constant 0 : index
    %8 = vector.load %arg2[%c1, %c0_5] : memref<2x128xf32, #tpu.memory_space<vmem>>, vector<1x128xf32>
    %9 = vector.broadcast %8 : vector<1x128xf32> to vector<256x128xf32>
    %10 = arith.addf %7, %9 : vector<256x128xf32>
    %cst = arith.constant 0.000000e+00 : f32
    %11 = vector.broadcast %cst : f32 to vector<256x128xf32>
    %12 = arith.maximumf %10, %11 : vector<256x128xf32>
    %13 = vector.shape_cast %12 : vector<256x128xf32> to vector<16x16x128xf32>
    %c1_6 = arith.constant 1 : index
    %c1_7 = arith.constant 1 : index
    %c0_8 = arith.constant 0 : index
    %14 = vector.load %arg6[%c1_6, %c1_7, %c0_8] : memref<18x24x128xf32, #tpu.memory_space<vmem>>, vector<16x16x128xf32>
    tpu.vector_store %arg6[%c1_6, %c1_7, %c0_8], %13 {strides = array<i32>} : memref<18x24x128xf32, #tpu.memory_space<vmem>>, vector<16x16x128xf32>,
    %c0_9 = arith.constant 0 : index
    %c0_10 = arith.constant 0 : index
    %c0_11 = arith.constant 0 : index
    %15 = vector.load %arg6[%c0_9, %c0_10, %c0_11] : memref<18x24x128xf32, #tpu.memory_space<vmem>>, vector<16x16x128xf32>
    %16 = vector.shape_cast %15 : vector<16x16x128xf32> to vector<256x128xf32>
    %c0_12 = arith.constant 0 : index
    %c0_13 = arith.constant 0 : index
    %c0_14 = arith.constant 0 : index
    %17 = vector.load %arg3[%c0_12, %c0_13, %c0_14] : memref<9x128x128xf32, #tpu.memory_space<vmem>>, vector<1x128x128xf32>
    %18 = vector.shape_cast %17 : vector<1x128x128xf32> to vector<128x128xf32>
    %cst_15 = arith.constant dense<0.000000e+00> : vector<256x128xf32>
    %19 = tpu.matmul %16, %18, %cst_15 {dimension_numbers = #tpu.dot_dimension_numbers<[1], [0], [0], [1], [0, 0, 1, 1], [], []>} : vector<256x128xf32>, vector<128x128xf32>, vector<256x128xf32> -> vector<256x128xf32>
    %c0_16 = arith.constant 0 : index
    %c1_17 = arith.constant 1 : index
    %c0_18 = arith.constant 0 : index
    %20 = vector.load %arg6[%c0_16, %c1_17, %c0_18] : memref<18x24x128xf32, #tpu.memory_space<vmem>>, vector<16x16x128xf32>
    %21 = vector.shape_cast %20 : vector<16x16x128xf32> to vector<256x128xf32>
    %c1_19 = arith.constant 1 : index
    %c0_20 = arith.constant 0 : index
    %c0_21 = arith.constant 0 : index
    %22 = vector.load %arg3[%c1_19, %c0_20, %c0_21] : memref<9x128x128xf32, #tpu.memory_space<vmem>>, vector<1x128x128xf32>
    %23 = vector.shape_cast %22 : vector<1x128x128xf32> to vector<128x128xf32>
    %cst_22 = arith.constant dense<0.000000e+00> : vector<256x128xf32>
    %24 = tpu.matmul %21, %23, %cst_22 {dimension_numbers = #tpu.dot_dimension_numbers<[1], [0], [0], [1], [0, 0, 1, 1], [], []>} : vector<256x128xf32>, vector<128x128xf32>, vector<256x128xf32> -> vector<256x128xf32>
    %25 = arith.addf %19, %24 : vector<256x128xf32>
    %c0_23 = arith.constant 0 : index
    %c2 = arith.constant 2 : index
    %c0_24 = arith.constant 0 : index
    %26 = vector.load %arg6[%c0_23, %c2, %c0_24] : memref<18x24x128xf32, #tpu.memory_space<vmem>>, vector<16x16x128xf32>
    %27 = vector.shape_cast %26 : vector<16x16x128xf32> to vector<256x128xf32>
    %c2_25 = arith.constant 2 : index
    %c0_26 = arith.constant 0 : index
    %c0_27 = arith.constant 0 : index
    %28 = vector.load %arg3[%c2_25, %c0_26, %c0_27] : memref<9x128x128xf32, #tpu.memory_space<vmem>>, vector<1x128x128xf32>
    %29 = vector.shape_cast %28 : vector<1x128x128xf32> to vector<128x128xf32>
    %cst_28 = arith.constant dense<0.000000e+00> : vector<256x128xf32>
    %30 = tpu.matmul %27, %29, %cst_28 {dimension_numbers = #tpu.dot_dimension_numbers<[1], [0], [0], [1], [0, 0, 1, 1], [], []>} : vector<256x128xf32>, vector<128x128xf32>, vector<256x128xf32> -> vector<256x128xf32>
    %31 = arith.addf %25, %30 : vector<256x128xf32>
    %c1_29 = arith.constant 1 : index
    %c0_30 = arith.constant 0 : index
    %c0_31 = arith.constant 0 : index
    %32 = vector.load %arg6[%c1_29, %c0_30, %c0_31] : memref<18x24x128xf32, #tpu.memory_space<vmem>>, vector<16x16x128xf32>
    %33 = vector.shape_cast %32 : vector<16x16x128xf32> to vector<256x128xf32>
    %c3 = arith.constant 3 : index
    %c0_32 = arith.constant 0 : index
    %c0_33 = arith.constant 0 : index
    %34 = vector.load %arg3[%c3, %c0_32, %c0_33] : memref<9x128x128xf32, #tpu.memory_space<vmem>>, vector<1x128x128xf32>
    %35 = vector.shape_cast %34 : vector<1x128x128xf32> to vector<128x128xf32>
    %cst_34 = arith.constant dense<0.000000e+00> : vector<256x128xf32>
    %36 = tpu.matmul %33, %35, %cst_34 {dimension_numbers = #tpu.dot_dimension_numbers<[1], [0], [0], [1], [0, 0, 1, 1], [], []>} : vector<256x128xf32>, vector<128x128xf32>, vector<256x128xf32> -> vector<256x128xf32>
    %37 = arith.addf %31, %36 : vector<256x128xf32>
    %c1_35 = arith.constant 1 : index
    %c1_36 = arith.constant 1 : index
    %c0_37 = arith.constant 0 : index
    %38 = vector.load %arg6[%c1_35, %c1_36, %c0_37] : memref<18x24x128xf32, #tpu.memory_space<vmem>>, vector<16x16x128xf32>
    %39 = vector.shape_cast %38 : vector<16x16x128xf32> to vector<256x128xf32>
    %c4 = arith.constant 4 : index
    %c0_38 = arith.constant 0 : index
    %c0_39 = arith.constant 0 : index
    %40 = vector.load %arg3[%c4, %c0_38, %c0_39] : memref<9x128x128xf32, #tpu.memory_space<vmem>>, vector<1x128x128xf32>
    %41 = vector.shape_cast %40 : vector<1x128x128xf32> to vector<128x128xf32>
    %cst_40 = arith.constant dense<0.000000e+00> : vector<256x128xf32>
    %42 = tpu.matmul %39, %41, %cst_40 {dimension_numbers = #tpu.dot_dimension_numbers<[1], [0], [0], [1], [0, 0, 1, 1], [], []>} : vector<256x128xf32>, vector<128x128xf32>, vector<256x128xf32> -> vector<256x128xf32>
    %43 = arith.addf %37, %42 : vector<256x128xf32>
    %c1_41 = arith.constant 1 : index
    %c2_42 = arith.constant 2 : index
    %c0_43 = arith.constant 0 : index
    %44 = vector.load %arg6[%c1_41, %c2_42, %c0_43] : memref<18x24x128xf32, #tpu.memory_space<vmem>>, vector<16x16x128xf32>
    %45 = vector.shape_cast %44 : vector<16x16x128xf32> to vector<256x128xf32>
    %c5 = arith.constant 5 : index
    %c0_44 = arith.constant 0 : index
    %c0_45 = arith.constant 0 : index
    %46 = vector.load %arg3[%c5, %c0_44, %c0_45] : memref<9x128x128xf32, #tpu.memory_space<vmem>>, vector<1x128x128xf32>
    %47 = vector.shape_cast %46 : vector<1x128x128xf32> to vector<128x128xf32>
    %cst_46 = arith.constant dense<0.000000e+00> : vector<256x128xf32>
    %48 = tpu.matmul %45, %47, %cst_46 {dimension_numbers = #tpu.dot_dimension_numbers<[1], [0], [0], [1], [0, 0, 1, 1], [], []>} : vector<256x128xf32>, vector<128x128xf32>, vector<256x128xf32> -> vector<256x128xf32>
    %49 = arith.addf %43, %48 : vector<256x128xf32>
    %c2_47 = arith.constant 2 : index
    %c0_48 = arith.constant 0 : index
    %c0_49 = arith.constant 0 : index
    %50 = vector.load %arg6[%c2_47, %c0_48, %c0_49] : memref<18x24x128xf32, #tpu.memory_space<vmem>>, vector<16x16x128xf32>
    %51 = vector.shape_cast %50 : vector<16x16x128xf32> to vector<256x128xf32>
    %c6 = arith.constant 6 : index
    %c0_50 = arith.constant 0 : index
    %c0_51 = arith.constant 0 : index
    %52 = vector.load %arg3[%c6, %c0_50, %c0_51] : memref<9x128x128xf32, #tpu.memory_space<vmem>>, vector<1x128x128xf32>
    %53 = vector.shape_cast %52 : vector<1x128x128xf32> to vector<128x128xf32>
    %cst_52 = arith.constant dense<0.000000e+00> : vector<256x128xf32>
    %54 = tpu.matmul %51, %53, %cst_52 {dimension_numbers = #tpu.dot_dimension_numbers<[1], [0], [0], [1], [0, 0, 1, 1], [], []>} : vector<256x128xf32>, vector<128x128xf32>, vector<256x128xf32> -> vector<256x128xf32>
    %55 = arith.addf %49, %54 : vector<256x128xf32>
    %c2_53 = arith.constant 2 : index
    %c1_54 = arith.constant 1 : index
    %c0_55 = arith.constant 0 : index
    %56 = vector.load %arg6[%c2_53, %c1_54, %c0_55] : memref<18x24x128xf32, #tpu.memory_space<vmem>>, vector<16x16x128xf32>
    %57 = vector.shape_cast %56 : vector<16x16x128xf32> to vector<256x128xf32>
    %c7 = arith.constant 7 : index
    %c0_56 = arith.constant 0 : index
    %c0_57 = arith.constant 0 : index
    %58 = vector.load %arg3[%c7, %c0_56, %c0_57] : memref<9x128x128xf32, #tpu.memory_space<vmem>>, vector<1x128x128xf32>
    %59 = vector.shape_cast %58 : vector<1x128x128xf32> to vector<128x128xf32>
    %cst_58 = arith.constant dense<0.000000e+00> : vector<256x128xf32>
    %60 = tpu.matmul %57, %59, %cst_58 {dimension_numbers = #tpu.dot_dimension_numbers<[1], [0], [0], [1], [0, 0, 1, 1], [], []>} : vector<256x128xf32>, vector<128x128xf32>, vector<256x128xf32> -> vector<256x128xf32>
    %61 = arith.addf %55, %60 : vector<256x128xf32>
    %c2_59 = arith.constant 2 : index
    %c2_60 = arith.constant 2 : index
    %c0_61 = arith.constant 0 : index
    %62 = vector.load %arg6[%c2_59, %c2_60, %c0_61] : memref<18x24x128xf32, #tpu.memory_space<vmem>>, vector<16x16x128xf32>
    %63 = vector.shape_cast %62 : vector<16x16x128xf32> to vector<256x128xf32>
    %c8 = arith.constant 8 : index
    %c0_62 = arith.constant 0 : index
    %c0_63 = arith.constant 0 : index
    %64 = vector.load %arg3[%c8, %c0_62, %c0_63] : memref<9x128x128xf32, #tpu.memory_space<vmem>>, vector<1x128x128xf32>
    %65 = vector.shape_cast %64 : vector<1x128x128xf32> to vector<128x128xf32>
    %cst_64 = arith.constant dense<0.000000e+00> : vector<256x128xf32>
    %66 = tpu.matmul %63, %65, %cst_64 {dimension_numbers = #tpu.dot_dimension_numbers<[1], [0], [0], [1], [0, 0, 1, 1], [], []>} : vector<256x128xf32>, vector<128x128xf32>, vector<256x128xf32> -> vector<256x128xf32>
    %67 = arith.addf %61, %66 : vector<256x128xf32>
    %c0_65 = arith.constant 0 : index
    %c0_66 = arith.constant 0 : index
    %c0_67 = arith.constant 0 : index
    %68 = vector.load %arg4[%c0_65, %c0_66, %c0_67] : memref<1x256x128xf32, #tpu.memory_space<vmem>>, vector<1x256x128xf32>
    %69 = vector.shape_cast %68 : vector<1x256x128xf32> to vector<256x128xf32>
    %70 = vector.shape_cast %67 : vector<256x128xf32> to vector<1x256x128xf32>
    tpu.vector_store %arg4[%c0_65, %c0_66, %c0_67], %70 {strides = array<i32>} : memref<1x256x128xf32, #tpu.memory_space<vmem>>, vector<1x256x128xf32>,
    %cst_68 = arith.constant dense<0.000000e+00> : vector<128xf32>
    %71 = vector.multi_reduction <add>, %67, %cst_68 [0] : vector<256x128xf32> to vector<128xf32>
    %72 = vector.shape_cast %71 : vector<128xf32> to vector<1x128xf32>
    %73 = arith.mulf %67, %67 : vector<256x128xf32>
    %cst_69 = arith.constant dense<0.000000e+00> : vector<128xf32>
    %74 = vector.multi_reduction <add>, %73, %cst_69 [0] : vector<256x128xf32> to vector<128xf32>
    %75 = vector.shape_cast %74 : vector<128xf32> to vector<1x128xf32>
    %76 = tpu.concatenate %72, %75 in 0 : vector<1x128xf32>, vector<1x128xf32> -> vector<2x128xf32>
    %c0_70 = arith.constant 0 : index
    %c0_71 = arith.constant 0 : index
    %c0_72 = arith.constant 0 : index
    %77 = vector.load %arg5[%c0_70, %c0_71, %c0_72] : memref<1x2x128xf32, #tpu.memory_space<vmem>>, vector<1x2x128xf32>
    %78 = vector.shape_cast %77 : vector<1x2x128xf32> to vector<2x128xf32>
    %79 = vector.shape_cast %76 : vector<2x128xf32> to vector<1x2x128xf32>
    tpu.vector_store %arg5[%c0_70, %c0_71, %c0_72], %79 {strides = array<i32>} : memref<1x2x128xf32, #tpu.memory_space<vmem>>, vector<1x2x128xf32>,
    return
  }
  func.func @transform_0(%arg0: i32) -> (i32, i32, i32) {
    %c0_i32 = arith.constant 0 : i32
    %c0_i32_0 = arith.constant 0 : i32
    %c0_i32_1 = arith.constant 0 : i32
    return %arg0, %c0_i32, %c0_i32_0 : i32, i32, i32
  }
  func.func @transform_1(%arg0: i32) -> (i32, i32) {
    %c0_i32 = arith.constant 0 : i32
    %c0_i32_0 = arith.constant 0 : i32
    %c0_i32_1 = arith.constant 0 : i32
    return %c0_i32, %c0_i32_0 : i32, i32
  }
  func.func @transform_2(%arg0: i32) -> (i32, i32, i32) {
    %c0_i32 = arith.constant 0 : i32
    %c0_i32_0 = arith.constant 0 : i32
    %c0_i32_1 = arith.constant 0 : i32
    %c0_i32_2 = arith.constant 0 : i32
    return %c0_i32, %c0_i32_0, %c0_i32_1 : i32, i32, i32
  }
  func.func @transform_3(%arg0: i32) -> (i32, i32, i32) {
    %c0_i32 = arith.constant 0 : i32
    %c0_i32_0 = arith.constant 0 : i32
    %c0_i32_1 = arith.constant 0 : i32
    return %arg0, %c0_i32, %c0_i32_0 : i32, i32, i32
  }
  func.func @transform_4(%arg0: i32) -> (i32, i32, i32) {
    %c0_i32 = arith.constant 0 : i32
    %c0_i32_0 = arith.constant 0 : i32
    %c0_i32_1 = arith.constant 0 : i32
    return %arg0, %c0_i32, %c0_i32_0 : i32, i32, i32
  }
}

module attributes {stable_mosaic.version = 11 : i64} {
  func.func @_bn_relu_kernel(%arg0: i32, %arg1: memref<1x256x128xf32, #tpu.memory_space<vmem>>, %arg2: memref<2x128xf32, #tpu.memory_space<vmem>>, %arg3: memref<1x256x128xf32, #tpu.memory_space<vmem>>) attributes {dimension_semantics = [#tpu.dimension_semantics<parallel>], iteration_bounds = array<i64: 2>, scalar_prefetch = 0 : i64, scratch_operands = 0 : i64, tpu.core_type = #tpu.core_type<tc>, window_params = [{transform_indices = @transform_0, window_bounds = array<i64: 1, 256, 128>}, {pipeline_mode = #tpu.pipeline_mode<synchronous>, transform_indices = @transform_1, window_bounds = array<i64: 2, 128>}, {transform_indices = @transform_2, window_bounds = array<i64: 1, 256, 128>}]} {
    %c0 = arith.constant 0 : index
    %c0_0 = arith.constant 0 : index
    %c0_1 = arith.constant 0 : index
    %0 = vector.load %arg1[%c0, %c0_0, %c0_1] : memref<1x256x128xf32, #tpu.memory_space<vmem>>, vector<1x256x128xf32>
    %1 = vector.shape_cast %0 : vector<1x256x128xf32> to vector<256x128xf32>
    %c0_2 = arith.constant 0 : index
    %c0_3 = arith.constant 0 : index
    %2 = vector.load %arg2[%c0_2, %c0_3] : memref<2x128xf32, #tpu.memory_space<vmem>>, vector<1x128xf32>
    %3 = vector.broadcast %2 : vector<1x128xf32> to vector<256x128xf32>
    %4 = arith.mulf %1, %3 : vector<256x128xf32>
    %c1 = arith.constant 1 : index
    %c0_4 = arith.constant 0 : index
    %5 = vector.load %arg2[%c1, %c0_4] : memref<2x128xf32, #tpu.memory_space<vmem>>, vector<1x128xf32>
    %6 = vector.broadcast %5 : vector<1x128xf32> to vector<256x128xf32>
    %7 = arith.addf %4, %6 : vector<256x128xf32>
    %cst = arith.constant 0.000000e+00 : f32
    %8 = vector.broadcast %cst : f32 to vector<256x128xf32>
    %9 = arith.maximumf %7, %8 : vector<256x128xf32>
    %c0_5 = arith.constant 0 : index
    %c0_6 = arith.constant 0 : index
    %c0_7 = arith.constant 0 : index
    %10 = vector.load %arg3[%c0_5, %c0_6, %c0_7] : memref<1x256x128xf32, #tpu.memory_space<vmem>>, vector<1x256x128xf32>
    %11 = vector.shape_cast %10 : vector<1x256x128xf32> to vector<256x128xf32>
    %12 = vector.shape_cast %9 : vector<256x128xf32> to vector<1x256x128xf32>
    tpu.vector_store %arg3[%c0_5, %c0_6, %c0_7], %12 {strides = array<i32>} : memref<1x256x128xf32, #tpu.memory_space<vmem>>, vector<1x256x128xf32>,
    return
  }
  func.func @transform_0(%arg0: i32) -> (i32, i32, i32) {
    %c0_i32 = arith.constant 0 : i32
    %c0_i32_0 = arith.constant 0 : i32
    %c0_i32_1 = arith.constant 0 : i32
    return %arg0, %c0_i32, %c0_i32_0 : i32, i32, i32
  }
  func.func @transform_1(%arg0: i32) -> (i32, i32) {
    %c0_i32 = arith.constant 0 : i32
    %c0_i32_0 = arith.constant 0 : i32
    %c0_i32_1 = arith.constant 0 : i32
    return %c0_i32, %c0_i32_0 : i32, i32
  }
  func.func @transform_2(%arg0: i32) -> (i32, i32, i32) {
    %c0_i32 = arith.constant 0 : i32
    %c0_i32_0 = arith.constant 0 : i32
    %c0_i32_1 = arith.constant 0 : i32
    return %arg0, %c0_i32, %c0_i32_0 : i32, i32, i32
  }
}

</mosaic_0001>

<llo_original>
// kernel: conv_block_forward.5
$region0: #{conv_block_forward.5}
  #allocation0 [shape = 'u32[]', space=smem, size = 0x4, offset = 0x4, fixed_abs, tag = 'smem constant byte address 0x4 - core index']
  #allocation1 [shape = 'u32[144,128]{1,0:T(1,128)}', space=vmem, size = 0x12000, scoped, tag = 'internal scratch']
  %s0 = inlined_call_operand.vmem [shape: f32[2,256,128], index: 0, kind: input, shape index: {}]
  %s1 = inlined_call_operand.vmem [shape: f32[2,128], index: 1, kind: input, shape index: {}]
  %s2 = inlined_call_operand.vmem [shape: f32[2,256,128], index: 2, kind: output, shape index: {}]
  %s3 = sld [smem:[#allocation0]]
  $region41: #{conv_block_forward.5} parent=0
    _
  %s5 = ssub.s32 1, %s3
  %s6 = scalar_select 0, %s5, %s3
  loop: start=0, step=1, limit=4
  $region2: #{conv_block_forward.5} parent=0 // loop_pre_header
    _
  $region3: #{conv_block_forward.5} parent=0 // loop_header
    %s8 = sphi 0, %s12
    %p9 = scmp.ge.s32.totalorder %s8, 4
    %s18 = sphi 0, %s20
    %s21 = sphi 0, %s18
    %s22 = sphi 0, %s21
    %s38 = sphi 0, %s22
    %s42 = sphi 0, %s42
    %s44 = sphi 0, %s42
    %s45 = sphi 0, %s44
    %s59 = sphi 0, %s45
    %s65 = sphi 0, %s67
    %s68 = sphi 0, %s65
    %s69 = sphi 0, %s68
    %s85 = sphi 0, %s69
  $region4: #{conv_block_forward.5} parent=0 // loop_header_branch
    %11 = sbr.rel (%p9) target = $region8
  $region5: #{conv_block_forward.5} parent=0 // loop_body
    %s13 = ssub.s32 %s8, 1
    %s14 = ssub.s32 %s8, 2
    %s15 = sadd.s32 %s8, 1
    %s16 = ssub.s32 %s8, %s15
    %p17 = scmp.eq.s32.totalorder %s16, 0
    %s19 = sadd.s32 %s18, 1
    %s20 = scalar_select %p17, %s18, %s19
    %p23 = pneg %p17
    %p24 = scmp.eq.s32.totalorder %s8, 1
    %p25 = por %p23, %p24
    %p26 = scmp.ne.s32.totalorder %s18, %s21
    %p27 = scmp.eq.s32.totalorder %s8, 0
    %p28 = por %p26, %p27
    %p29 = scmp.ne.s32.totalorder %s18, %s21
    %p30 = scmp.eq.s32.totalorder %s13, 1
    %p31 = por %p29, %p30
    %p32 = scmp.ne.s32.totalorder %s21, %s22
    %p33 = scmp.eq.s32.totalorder %s13, 0
    %p34 = por %p32, %p33
    %p35 = scmp.ne.s32.totalorder %s21, %s22
    %p36 = scmp.eq.s32.totalorder %s14, 1
    %p37 = por %p35, %p36
    %p39 = scmp.ne.s32.totalorder %s22, %s38
    %p40 = scmp.eq.s32.totalorder %s14, 0
    %p41 = por %p39, %p40
    %s43 = sadd.s32 %s42, 1
    %p46 = scmp.eq.s32.totalorder %s8, 1
    %p47 = scmp.ne.s32.totalorder %s42, %s44
    %p48 = scmp.eq.s32.totalorder %s8, 0
    %p49 = por %p47, %p48
    %p50 = scmp.ne.s32.totalorder %s42, %s44
    %p51 = scmp.eq.s32.totalorder %s13, 1
    %p52 = por %p50, %p51
    %p53 = scmp.ne.s32.totalorder %s44, %s45
    %p54 = scmp.eq.s32.totalorder %s13, 0
    %p55 = por %p53, %p54
    %p56 = scmp.ne.s32.totalorder %s44, %s45
    %p57 = scmp.eq.s32.totalorder %s14, 1
    %p58 = por %p56, %p57
    %p60 = scmp.ne.s32.totalorder %s45, %s59
    %p61 = scmp.eq.s32.totalorder %s14, 0
    %p62 = por %p60, %p61
    %s63 = ssub.s32 %s8, %s15
    %p64 = scmp.eq.s32.totalorder %s63, 0
    %s66 = sadd.s32 %s65, 1
    %s67 = scalar_select %p64, %s65, %s66
    %p70 = pneg %p64
    %p71 = scmp.eq.s32.totalorder %s8, 1
    %p72 = por %p70, %p71
    %p73 = scmp.ne.s32.totalorder %s65, %s68
    %p74 = scmp.eq.s32.totalorder %s8, 0
    %p75 = por %p73, %p74
    %p76 = scmp.ne.s32.totalorder %s65, %s68
    %p77 = scmp.eq.s32.totalorder %s13, 1
    %p78 = por %p76, %p77
    %p79 = scmp.ne.s32.totalorder %s68, %s69
    %p80 = scmp.eq.s32.totalorder %s13, 0
    %p81 = por %p79, %p80
    %p82 = scmp.ne.s32.totalorder %s68, %s69
    %p83 = scmp.eq.s32.totalorder %s14, 1
    %p84 = por %p82, %p83
    %p86 = scmp.ne.s32.totalorder %s69, %s85
    %p87 = scmp.eq.s32.totalorder %s14, 0
    %p88 = por %p86, %p87
    %p89 = scmp.le.s32.totalorder 1, %s8
    %p90 = scmp.lt.s32.totalorder %s8, 3
    %p91 = pnand %p89, %p90
    %p92 = pneg %p91
    // Predicated region
    $region9: #{conv_block_forward.5} parent=5 // pred_check
      _
    $region10: #{conv_block_forward.5} parent=5 // pred_check_branch
      %94 = sbr.rel (%p91) target = $region12
    $region11: #{conv_block_forward.5} parent=5 // pred_region
      %s95 = ssub.s32 %s8, 1
      // Predicated region
      $region13: #{conv_block_forward.5} parent=11 // pred_check
        %p96 = pneg %p55
      $region14: #{conv_block_forward.5} parent=11 // pred_check_branch
        %98 = sbr.rel (%p96) target = $region16
      $region15: #{conv_block_forward.5} parent=11 // pred_region
        _
      $region16: #{conv_block_forward.5} parent=11 // pred_fallthru
        _
    $region12: #{conv_block_forward.5} parent=5 // pred_fallthru
      _
    %p99 = scmp.lt.s32.totalorder %s8, 2
    // Predicated region
    $region17: #{conv_block_forward.5} parent=5 // pred_check
      %p100 = pneg %p99
    $region18: #{conv_block_forward.5} parent=5 // pred_check_branch
      %102 = sbr.rel (%p100) target = $region20
    $region19: #{conv_block_forward.5} parent=5 // pred_region
      // Predicated region
      $region21: #{conv_block_forward.5} parent=19 // pred_check
        %p103 = pneg %p28
      $region22: #{conv_block_forward.5} parent=19 // pred_check_branch
        %105 = sbr.rel (%p103) target = $region24
      $region23: #{conv_block_forward.5} parent=19 // pred_region
        %p106 = scmp.lt.s32.totalorder %s8, 1
        %s107 = scalar_select %p106, %s8, 1
        %s108 = smul.addr %s107, 32
        %s109 = smul.addr %s108, 8
        %s110 = scalar_lea.vmem %s0, %s109
      $region24: #{conv_block_forward.5} parent=19 // pred_fallthru
        _
    $region20: #{conv_block_forward.5} parent=5 // pred_fallthru
      _
    %p111 = scmp.le.s32.totalorder 1, %s8
    %p112 = scmp.lt.s32.totalorder %s8, 3
    %p113 = pnand %p111, %p112
    %p114 = pneg %p113
    // Predicated region
    $region25: #{conv_block_forward.5} parent=5 // pred_check
      _
    $region26: #{conv_block_forward.5} parent=5 // pred_check_branch
      %116 = sbr.rel (%p113) target = $region28
    $region27: #{conv_block_forward.5} parent=5 // pred_region
      %s117 = ssub.s32 %s8, 1
      %p118 = scmp.lt.s32.totalorder %s13, 1
      %s119 = scalar_select %p118, %s13, 1
      %s120 = smul.addr %s119, 32
      %s121 = smul.addr %s120, 8
      %s122 = scalar_lea.vmem %s0, %s121
      %p123 = pneg %p34
      %p124 = pneg %p31
      %p125 = pneg %p55
      %p126 = pneg %p52
      %p127 = pneg %p81
      %p128 = pneg %p78
      %p129 = scmp.lt.s32.totalorder %s13, 1
      %s130 = scalar_select %p129, %s13, 1
      %s131 = smul.addr %s130, 32
      %s132 = smul.addr %s131, 8
      %s133 = scalar_lea.vmem %s2, %s132
      %p134 = scmp.lt.s32.totalorder %s13, 1
      %s135 = scalar_select %p134, %s13, 1
      %s136 = smul.addr %s135, 32
      %s137 = smul.addr %s136, 8
      %s138 = scalar_lea.vmem %s0, %s137
      %p139 = scmp.lt.s32.totalorder %s13, 1
      %s140 = scalar_select %p139, %s13, 1
      %s141 = smul.addr %s140, 32
      %s142 = smul.addr %s141, 8
      %s143 = scalar_lea.vmem %s2, %s142
      %v144 = vld [vmem:[%s138] sm:$0xff]
      %v145 = vld [vmem:[%s138 + $0x8] sm:$0xff]
      %v146 = vld [vmem:[%s138 + $0x10] sm:$0xff]
      %v147 = vld [vmem:[%s138 + $0x18] sm:$0xff]
      %v148 = vld [vmem:[%s138 + $0x20] sm:$0xff]
      %v149 = vld [vmem:[%s138 + $0x28] sm:$0xff]
      %v150 = vld [vmem:[%s138 + $0x30] sm:$0xff]
      %v151 = vld [vmem:[%s138 + $0x38] sm:$0xff]
      %v152 = vld [vmem:[%s138 + $0x40] sm:$0xff]
      %v153 = vld [vmem:[%s138 + $0x48] sm:$0xff]
      %v154 = vld [vmem:[%s138 + $0x50] sm:$0xff]
      %v155 = vld [vmem:[%s138 + $0x58] sm:$0xff]
      %v156 = vld [vmem:[%s138 + $0x60] sm:$0xff]
      %v157 = vld [vmem:[%s138 + $0x68] sm:$0xff]
      %v158 = vld [vmem:[%s138 + $0x70] sm:$0xff]
      %v159 = vld [vmem:[%s138 + $0x78] sm:$0xff]
      %v160 = vld [vmem:[%s138 + $0x80] sm:$0xff]
      %v161 = vld [vmem:[%s138 + $0x88] sm:$0xff]
      %v162 = vld [vmem:[%s138 + $0x90] sm:$0xff]
      %v163 = vld [vmem:[%s138 + $0x98] sm:$0xff]
      %v164 = vld [vmem:[%s138 + $0xa0] sm:$0xff]
      %v165 = vld [vmem:[%s138 + $0xa8] sm:$0xff]
      %v166 = vld [vmem:[%s138 + $0xb0] sm:$0xff]
      %v167 = vld [vmem:[%s138 + $0xb8] sm:$0xff]
      %v168 = vld [vmem:[%s138 + $0xc0] sm:$0xff]
      %v169 = vld [vmem:[%s138 + $0xc8] sm:$0xff]
      %v170 = vld [vmem:[%s138 + $0xd0] sm:$0xff]
      %v171 = vld [vmem:[%s138 + $0xd8] sm:$0xff]
      %v172 = vld [vmem:[%s138 + $0xe0] sm:$0xff]
      %v173 = vld [vmem:[%s138 + $0xe8] sm:$0xff]
      %v174 = vld [vmem:[%s138 + $0xf0] sm:$0xff]
      %v175 = vld [vmem:[%s138 + $0xf8] sm:$0xff]
      %v176 = vld [vmem:[%s1] sm:$0x1]
      %v177 = vlaneseq
      %v178 = vshrl.u32 %v177, 7
      %v179 = vsub.s32 0, %v178
      %v180 = vrot.slane %v176, %v179
      %v181 = vmul.f32 %v144, %v180
      %v182 = vmul.f32 %v145, %v180
      %v183 = vmul.f32 %v146, %v180
      %v184 = vmul.f32 %v147, %v180
      %v185 = vmul.f32 %v148, %v180
      %v186 = vmul.f32 %v149, %v180
      %v187 = vmul.f32 %v150, %v180
      %v188 = vmul.f32 %v151, %v180
      %v189 = vmul.f32 %v152, %v180
      %v190 = vmul.f32 %v153, %v180
      %v191 = vmul.f32 %v154, %v180
      %v192 = vmul.f32 %v155, %v180
      %v193 = vmul.f32 %v156, %v180
      %v194 = vmul.f32 %v157, %v180
      %v195 = vmul.f32 %v158, %v180
      %v196 = vmul.f32 %v159, %v180
      %v197 = vmul.f32 %v160, %v180
      %v198 = vmul.f32 %v161, %v180
      %v199 = vmul.f32 %v162, %v180
      %v200 = vmul.f32 %v163, %v180
      %v201 = vmul.f32 %v164, %v180
      %v202 = vmul.f32 %v165, %v180
      %v203 = vmul.f32 %v166, %v180
      %v204 = vmul.f32 %v167, %v180
      %v205 = vmul.f32 %v168, %v180
      %v206 = vmul.f32 %v169, %v180
      %v207 = vmul.f32 %v170, %v180
      %v208 = vmul.f32 %v171, %v180
      %v209 = vmul.f32 %v172, %v180
      %v210 = vmul.f32 %v173, %v180
      %v211 = vmul.f32 %v174, %v180
      %v212 = vmul.f32 %v175, %v180
      %v213 = vld [vmem:[%s1 + $0x1] sm:$0x1]
      %v214 = vlaneseq
      %v215 = vshrl.u32 %v214, 7
      %v216 = vsub.s32 0, %v215
      %v217 = vrot.slane %v213, %v216
      %v218 = vadd.f32 %v181, %v217
      %v219 = vadd.f32 %v182, %v217
      %v220 = vadd.f32 %v183, %v217
      %v221 = vadd.f32 %v184, %v217
      %v222 = vadd.f32 %v185, %v217
      %v223 = vadd.f32 %v186, %v217
      %v224 = vadd.f32 %v187, %v217
      %v225 = vadd.f32 %v188, %v217
      %v226 = vadd.f32 %v189, %v217
      %v227 = vadd.f32 %v190, %v217
      %v228 = vadd.f32 %v191, %v217
      %v229 = vadd.f32 %v192, %v217
      %v230 = vadd.f32 %v193, %v217
      %v231 = vadd.f32 %v194, %v217
      %v232 = vadd.f32 %v195, %v217
      %v233 = vadd.f32 %v196, %v217
      %v234 = vadd.f32 %v197, %v217
      %v235 = vadd.f32 %v198, %v217
      %v236 = vadd.f32 %v199, %v217
      %v237 = vadd.f32 %v200, %v217
      %v238 = vadd.f32 %v201, %v217
      %v239 = vadd.f32 %v202, %v217
      %v240 = vadd.f32 %v203, %v217
      %v241 = vadd.f32 %v204, %v217
      %v242 = vadd.f32 %v205, %v217
      %v243 = vadd.f32 %v206, %v217
      %v244 = vadd.f32 %v207, %v217
      %v245 = vadd.f32 %v208, %v217
      %v246 = vadd.f32 %v209, %v217
      %v247 = vadd.f32 %v210, %v217
      %v248 = vadd.f32 %v211, %v217
      %v249 = vadd.f32 %v212, %v217
      %v250 = vmax.f32 %v218, 0.0
      %v251 = vmax.f32 %v219, 0.0
      %v252 = vmax.f32 %v220, 0.0
      %v253 = vmax.f32 %v221, 0.0
      %v254 = vmax.f32 %v222, 0.0
      %v255 = vmax.f32 %v223, 0.0
      %v256 = vmax.f32 %v224, 0.0
      %v257 = vmax.f32 %v225, 0.0
      %v258 = vmax.f32 %v226, 0.0
      %v259 = vmax.f32 %v227, 0.0
      %v260 = vmax.f32 %v228, 0.0
      %v261 = vmax.f32 %v229, 0.0
      %v262 = vmax.f32 %v230, 0.0
      %v263 = vmax.f32 %v231, 0.0
      %v264 = vmax.f32 %v232, 0.0
      %v265 = vmax.f32 %v233, 0.0
      %v266 = vmax.f32 %v234, 0.0
      %v267 = vmax.f32 %v235, 0.0
      %v268 = vmax.f32 %v236, 0.0
      %v269 = vmax.f32 %v237, 0.0
      %v270 = vmax.f32 %v238, 0.0
      %v271 = vmax.f32 %v239, 0.0
      %v272 = vmax.f32 %v240, 0.0
      %v273 = vmax.f32 %v241, 0.0
      %v274 = vmax.f32 %v242, 0.0
      %v275 = vmax.f32 %v243, 0.0
      %v276 = vmax.f32 %v244, 0.0
      %v277 = vmax.f32 %v245, 0.0
      %v278 = vmax.f32 %v246, 0.0
      %v279 = vmax.f32 %v247, 0.0
      %v280 = vmax.f32 %v248, 0.0
      %v281 = vmax.f32 %v249, 0.0
      %282 = vst [vmem:[%s143] sm:$0xff] %v250
      %283 = vst [vmem:[%s143 + $0x8] sm:$0xff] %v251
      %284 = vst [vmem:[%s143 + $0x10] sm:$0xff] %v252
      %285 = vst [vmem:[%s143 + $0x18] sm:$0xff] %v253
      %286 = vst [vmem:[%s143 + $0x20] sm:$0xff] %v254
      %287 = vst [vmem:[%s143 + $0x28] sm:$0xff] %v255
      %288 = vst [vmem:[%s143 + $0x30] sm:$0xff] %v256
      %289 = vst [vmem:[%s143 + $0x38] sm:$0xff] %v257
      %290 = vst [vmem:[%s143 + $0x40] sm:$0xff] %v258
      %291 = vst [vmem:[%s143 + $0x48] sm:$0xff] %v259
      %292 = vst [vmem:[%s143 + $0x50] sm:$0xff] %v260
      %293 = vst [vmem:[%s143 + $0x58] sm:$0xff] %v261
      %294 = vst [vmem:[%s143 + $0x60] sm:$0xff] %v262
      %295 = vst [vmem:[%s143 + $0x68] sm:$0xff] %v263
      %296 = vst [vmem:[%s143 + $0x70] sm:$0xff] %v264
      %297 = vst [vmem:[%s143 + $0x78] sm:$0xff] %v265
      %298 = vst [vmem:[%s143 + $0x80] sm:$0xff] %v266
      %299 = vst [vmem:[%s143 + $0x88] sm:$0xff] %v267
      %300 = vst [vmem:[%s143 + $0x90] sm:$0xff] %v268
      %301 = vst [vmem:[%s143 + $0x98] sm:$0xff] %v269
      %302 = vst [vmem:[%s143 + $0xa0] sm:$0xff] %v270
      %303 = vst [vmem:[%s143 + $0xa8] sm:$0xff] %v271
      %304 = vst [vmem:[%s143 + $0xb0] sm:$0xff] %v272
      %305 = vst [vmem:[%s143 + $0xb8] sm:$0xff] %v273
      %306 = vst [vmem:[%s143 + $0xc0] sm:$0xff] %v274
      %307 = vst [vmem:[%s143 + $0xc8] sm:$0xff] %v275
      %308 = vst [vmem:[%s143 + $0xd0] sm:$0xff] %v276
      %309 = vst [vmem:[%s143 + $0xd8] sm:$0xff] %v277
      %310 = vst [vmem:[%s143 + $0xe0] sm:$0xff] %v278
      %311 = vst [vmem:[%s143 + $0xe8] sm:$0xff] %v279
      %312 = vst [vmem:[%s143 + $0xf0] sm:$0xff] %v280
      %313 = vst [vmem:[%s143 + $0xf8] sm:$0xff] %v281
      %p314 = scmp.lt.s32.totalorder %s13, 1
      %s315 = scalar_select %p314, %s13, 1
      %s316 = smul.addr %s315, 32
      %s317 = smul.addr %s316, 8
      %s318 = scalar_lea.vmem %s2, %s317
      // Predicated region
      $region29: #{conv_block_forward.5} parent=27 // pred_check
        %p319 = pneg %p78
      $region30: #{conv_block_forward.5} parent=27 // pred_check_branch
        %321 = sbr.rel (%p319) target = $region32
      $region31: #{conv_block_forward.5} parent=27 // pred_region
        _
      $region32: #{conv_block_forward.5} parent=27 // pred_fallthru
        _
    $region28: #{conv_block_forward.5} parent=5 // pred_fallthru
      _
    %p322 = scmp.le.s32.totalorder 2, %s8
    // Predicated region
    $region33: #{conv_block_forward.5} parent=5 // pred_check
      %p323 = pneg %p322
    $region34: #{conv_block_forward.5} parent=5 // pred_check_branch
      %325 = sbr.rel (%p323) target = $region36
    $region35: #{conv_block_forward.5} parent=5 // pred_region
      %s326 = ssub.s32 %s8, 2
      // Predicated region
      $region37: #{conv_block_forward.5} parent=35 // pred_check
        %p327 = pneg %p84
      $region38: #{conv_block_forward.5} parent=35 // pred_check_branch
        %329 = sbr.rel (%p327) target = $region40
      $region39: #{conv_block_forward.5} parent=35 // pred_region
        %p330 = scmp.lt.s32.totalorder %s14, 1
        %s331 = scalar_select %p330, %s14, 1
        %s332 = smul.addr %s331, 32
        %s333 = smul.addr %s332, 8
        %s334 = scalar_lea.vmem %s2, %s333
      $region40: #{conv_block_forward.5} parent=35 // pred_fallthru
        _
    $region36: #{conv_block_forward.5} parent=5 // pred_fallthru
      _
  $region6: #{conv_block_forward.5} parent=0 // loop_footer
    %s12 = sadd.s32 1, %s8
  $region7: #{conv_block_forward.5} parent=0 // loop_footer_branch
    %7 = sbr.rel target = $region3
  $region8: #{conv_block_forward.5} parent=0 // loop_exit
    _

// kernel: conv_block_forward.3
$region0: #{conv_block_forward.3}
  #allocation0 [shape = 'u32[]', space=smem, size = 0x4, offset = 0x4, fixed_abs, tag = 'smem constant byte address 0x4 - core index']
  #allocation1 [shape = 'u32[144,128]{1,0:T(1,128)}', space=vmem, size = 0x12000, scoped, tag = 'internal scratch']
  #allocation2 [shape = 'f32[18,24,128]{2,1,0:T(8,128)}', space=vmem, size = 0x36000, scoped, tag = 'scratch operand']
  %s0 = inlined_call_operand.vmem [shape: f32[2,256,128], index: 0, kind: input, shape index: {}]
  %s1 = inlined_call_operand.vmem [shape: f32[9,128,128], index: 1, kind: input, shape index: {}]
  %s2 = inlined_call_operand.vmem [shape: f32[2,256,128], index: 2, kind: output, shape index: {0}]
  %s3 = inlined_call_operand.vmem [shape: f32[2,2,128], index: 3, kind: output, shape index: {1}]
  %4 = xla_tuple %s2, %s3
  %s5 = sld [smem:[#allocation0]]
  $region53: #{conv_block_forward.3} parent=0
    _
  %s7 = ssub.s32 1, %s5
  %s8 = scalar_select 0, %s7, %s5
  loop: start=0, step=1, limit=4
  $region2: #{conv_block_forward.3} parent=0 // loop_pre_header
    _
  $region3: #{conv_block_forward.3} parent=0 // loop_header
    %s10 = sphi 0, %s14
    %p11 = scmp.ge.s32.totalorder %s10, 4
    %s20 = sphi 0, %s22
    %s23 = sphi 0, %s20
    %s24 = sphi 0, %s23
    %s40 = sphi 0, %s24
    %s44 = sphi 0, %s44
    %s46 = sphi 0, %s44
    %s47 = sphi 0, %s46
    %s61 = sphi 0, %s47
    %s67 = sphi 0, %s69
    %s70 = sphi 0, %s67
    %s71 = sphi 0, %s70
    %s87 = sphi 0, %s71
    %s93 = sphi 0, %s95
    %s96 = sphi 0, %s93
    %s97 = sphi 0, %s96
    %s113 = sphi 0, %s97
  $region4: #{conv_block_forward.3} parent=0 // loop_header_branch
    %13 = sbr.rel (%p11) target = $region8
  $region5: #{conv_block_forward.3} parent=0 // loop_body
    %s15 = ssub.s32 %s10, 1
    %s16 = ssub.s32 %s10, 2
    %s17 = sadd.s32 %s10, 1
    %s18 = ssub.s32 %s10, %s17
    %p19 = scmp.eq.s32.totalorder %s18, 0
    %s21 = sadd.s32 %s20, 1
    %s22 = scalar_select %p19, %s20, %s21
    %p25 = pneg %p19
    %p26 = scmp.eq.s32.totalorder %s10, 1
    %p27 = por %p25, %p26
    %p28 = scmp.ne.s32.totalorder %s20, %s23
    %p29 = scmp.eq.s32.totalorder %s10, 0
    %p30 = por %p28, %p29
    %p31 = scmp.ne.s32.totalorder %s20, %s23
    %p32 = scmp.eq.s32.totalorder %s15, 1
    %p33 = por %p31, %p32
    %p34 = scmp.ne.s32.totalorder %s23, %s24
    %p35 = scmp.eq.s32.totalorder %s15, 0
    %p36 = por %p34, %p35
    %p37 = scmp.ne.s32.totalorder %s23, %s24
    %p38 = scmp.eq.s32.totalorder %s16, 1
    %p39 = por %p37, %p38
    %p41 = scmp.ne.s32.totalorder %s24, %s40
    %p42 = scmp.eq.s32.totalorder %s16, 0
    %p43 = por %p41, %p42
    %s45 = sadd.s32 %s44, 1
    %p48 = scmp.eq.s32.totalorder %s10, 1
    %p49 = scmp.ne.s32.totalorder %s44, %s46
    %p50 = scmp.eq.s32.totalorder %s10, 0
    %p51 = por %p49, %p50
    %p52 = scmp.ne.s32.totalorder %s44, %s46
    %p53 = scmp.eq.s32.totalorder %s15, 1
    %p54 = por %p52, %p53
    %p55 = scmp.ne.s32.totalorder %s46, %s47
    %p56 = scmp.eq.s32.totalorder %s15, 0
    %p57 = por %p55, %p56
    %p58 = scmp.ne.s32.totalorder %s46, %s47
    %p59 = scmp.eq.s32.totalorder %s16, 1
    %p60 = por %p58, %p59
    %p62 = scmp.ne.s32.totalorder %s47, %s61
    %p63 = scmp.eq.s32.totalorder %s16, 0
    %p64 = por %p62, %p63
    %s65 = ssub.s32 %s10, %s17
    %p66 = scmp.eq.s32.totalorder %s65, 0
    %s68 = sadd.s32 %s67, 1
    %s69 = scalar_select %p66, %s67, %s68
    %p72 = pneg %p66
    %p73 = scmp.eq.s32.totalorder %s10, 1
    %p74 = por %p72, %p73
    %p75 = scmp.ne.s32.totalorder %s67, %s70
    %p76 = scmp.eq.s32.totalorder %s10, 0
    %p77 = por %p75, %p76
    %p78 = scmp.ne.s32.totalorder %s67, %s70
    %p79 = scmp.eq.s32.totalorder %s15, 1
    %p80 = por %p78, %p79
    %p81 = scmp.ne.s32.totalorder %s70, %s71
    %p82 = scmp.eq.s32.totalorder %s15, 0
    %p83 = por %p81, %p82
    %p84 = scmp.ne.s32.totalorder %s70, %s71
    %p85 = scmp.eq.s32.totalorder %s16, 1
    %p86 = por %p84, %p85
    %p88 = scmp.ne.s32.totalorder %s71, %s87
    %p89 = scmp.eq.s32.totalorder %s16, 0
    %p90 = por %p88, %p89
    %s91 = ssub.s32 %s10, %s17
    %p92 = scmp.eq.s32.totalorder %s91, 0
    %s94 = sadd.s32 %s93, 1
    %s95 = scalar_select %p92, %s93, %s94
    %p98 = pneg %p92
    %p99 = scmp.eq.s32.totalorder %s10, 1
    %p100 = por %p98, %p99
    %p101 = scmp.ne.s32.totalorder %s93, %s96
    %p102 = scmp.eq.s32.totalorder %s10, 0
    %p103 = por %p101, %p102
    %p104 = scmp.ne.s32.totalorder %s93, %s96
    %p105 = scmp.eq.s32.totalorder %s15, 1
    %p106 = por %p104, %p105
    %p107 = scmp.ne.s32.totalorder %s96, %s97
    %p108 = scmp.eq.s32.totalorder %s15, 0
    %p109 = por %p107, %p108
    %p110 = scmp.ne.s32.totalorder %s96, %s97
    %p111 = scmp.eq.s32.totalorder %s16, 1
    %p112 = por %p110, %p111
    %p114 = scmp.ne.s32.totalorder %s97, %s113
    %p115 = scmp.eq.s32.totalorder %s16, 0
    %p116 = por %p114, %p115
    %p117 = scmp.le.s32.totalorder 1, %s10
    %p118 = scmp.lt.s32.totalorder %s10, 3
    %p119 = pnand %p117, %p118
    %p120 = pneg %p119
    // Predicated region
    $region9: #{conv_block_forward.3} parent=5 // pred_check
      _
    $region10: #{conv_block_forward.3} parent=5 // pred_check_branch
      %122 = sbr.rel (%p119) target = $region12
    $region11: #{conv_block_forward.3} parent=5 // pred_region
      %s123 = ssub.s32 %s10, 1
      // Predicated region
      $region13: #{conv_block_forward.3} parent=11 // pred_check
        %p124 = pneg %p57
      $region14: #{conv_block_forward.3} parent=11 // pred_check_branch
        %126 = sbr.rel (%p124) target = $region16
      $region15: #{conv_block_forward.3} parent=11 // pred_region
        _
      $region16: #{conv_block_forward.3} parent=11 // pred_fallthru
        _
    $region12: #{conv_block_forward.3} parent=5 // pred_fallthru
      _
    %p127 = scmp.lt.s32.totalorder %s10, 2
    // Predicated region
    $region17: #{conv_block_forward.3} parent=5 // pred_check
      %p128 = pneg %p127
    $region18: #{conv_block_forward.3} parent=5 // pred_check_branch
      %130 = sbr.rel (%p128) target = $region20
    $region19: #{conv_block_forward.3} parent=5 // pred_region
      // Predicated region
      $region21: #{conv_block_forward.3} parent=19 // pred_check
        %p131 = pneg %p30
      $region22: #{conv_block_forward.3} parent=19 // pred_check_branch
        %133 = sbr.rel (%p131) target = $region24
      $region23: #{conv_block_forward.3} parent=19 // pred_region
        %p134 = scmp.lt.s32.totalorder %s10, 1
        %s135 = scalar_select %p134, %s10, 1
        %s136 = smul.addr %s135, 32
        %s137 = smul.addr %s136, 8
        %s138 = scalar_lea.vmem %s0, %s137
      $region24: #{conv_block_forward.3} parent=19 // pred_fallthru
        _
    $region20: #{conv_block_forward.3} parent=5 // pred_fallthru
      _
    %p139 = scmp.le.s32.totalorder 1, %s10
    %p140 = scmp.lt.s32.totalorder %s10, 3
    %p141 = pnand %p139, %p140
    %p142 = pneg %p141
    // Predicated region
    $region25: #{conv_block_forward.3} parent=5 // pred_check
      _
    $region26: #{conv_block_forward.3} parent=5 // pred_check_branch
      %144 = sbr.rel (%p141) target = $region28
    $region27: #{conv_block_forward.3} parent=5 // pred_region
      %s145 = ssub.s32 %s10, 1
      %p146 = scmp.lt.s32.totalorder %s15, 1
      %s147 = scalar_select %p146, %s15, 1
      %s148 = smul.addr %s147, 32
      %s149 = smul.addr %s148, 8
      %s150 = scalar_lea.vmem %s0, %s149
      %p151 = pneg %p36
      %p152 = pneg %p33
      %p153 = pneg %p57
      %p154 = pneg %p54
      %p155 = pneg %p83
      %p156 = pneg %p80
      %p157 = scmp.lt.s32.totalorder %s15, 1
      %s158 = scalar_select %p157, %s15, 1
      %s159 = smul.addr %s158, 32
      %s160 = smul.addr %s159, 8
      %s161 = scalar_lea.vmem %s2, %s160
      %p162 = pneg %p109
      %p163 = pneg %p106
      %p164 = scmp.lt.s32.totalorder %s15, 1
      %s165 = scalar_select %p164, %s15, 1
      %s166 = smul.addr %s165, 2
      %s167 = scalar_lea.vmem %s3, %s166
      %p168 = scmp.lt.s32.totalorder %s15, 1
      %s169 = scalar_select %p168, %s15, 1
      %s170 = smul.addr %s169, 32
      %s171 = smul.addr %s170, 8
      %s172 = scalar_lea.vmem %s0, %s171
      %p173 = scmp.lt.s32.totalorder %s15, 1
      %s174 = scalar_select %p173, %s15, 1
      %s175 = smul.addr %s174, 32
      %s176 = smul.addr %s175, 8
      %s177 = scalar_lea.vmem %s2, %s176
      %p178 = scmp.lt.s32.totalorder %s15, 1
      %s179 = scalar_select %p178, %s15, 1
      %s180 = smul.addr %s179, 2
      %s181 = scalar_lea.vmem %s3, %s180
      %p182 = scmp.eq.s32.totalorder %s15, 0
      // Predicated region
      $region29: #{conv_block_forward.3} parent=27 // pred_check
        %p183 = pneg %p182
      $region30: #{conv_block_forward.3} parent=27 // pred_check_branch
        %185 = sbr.rel (%p183) target = $region32
      $region31: #{conv_block_forward.3} parent=27 // pred_region
        %186 = vst [vmem:[#allocation2] sm:$0xff] 0.0
        %187 = vst [vmem:[#allocation2 + $0x8] sm:$0xff] 0.0
        %188 = vst [vmem:[#allocation2 + $0x10] sm:$0xff] 0.0
        %189 = vst [vmem:[#allocation2 + $0x18] sm:$0xff] 0.0
        %190 = vst [vmem:[#allocation2 + $0x20] sm:$0xff] 0.0
        %191 = vst [vmem:[#allocation2 + $0x28] sm:$0xff] 0.0
        %192 = vst [vmem:[#allocation2 + $0x30] sm:$0xff] 0.0
        %193 = vst [vmem:[#allocation2 + $0x38] sm:$0xff] 0.0
        %194 = vst [vmem:[#allocation2 + $0x40] sm:$0xff] 0.0
        %195 = vst [vmem:[#allocation2 + $0x48] sm:$0xff] 0.0
        %196 = vst [vmem:[#allocation2 + $0x50] sm:$0xff] 0.0
        %197 = vst [vmem:[#allocation2 + $0x58] sm:$0xff] 0.0
        %198 = vst [vmem:[#allocation2 + $0x60] sm:$0xff] 0.0
        %199 = vst [vmem:[#allocation2 + $0x68] sm:$0xff] 0.0
        %200 = vst [vmem:[#allocation2 + $0x70] sm:$0xff] 0.0
        %201 = vst [vmem:[#allocation2 + $0x78] sm:$0xff] 0.0
        %202 = vst [vmem:[#allocation2 + $0x80] sm:$0xff] 0.0
        %203 = vst [vmem:[#allocation2 + $0x88] sm:$0xff] 0.0
        %204 = vst [vmem:[#allocation2 + $0x90] sm:$0xff] 0.0
        %205 = vst [vmem:[#allocation2 + $0x98] sm:$0xff] 0.0
        %206 = vst [vmem:[#allocation2 + $0xa0] sm:$0xff] 0.0
        %207 = vst [vmem:[#allocation2 + $0xa8] sm:$0xff] 0.0
        %208 = vst [vmem:[#allocation2 + $0xb0] sm:$0xff] 0.0
        %209 = vst [vmem:[#allocation2 + $0xb8] sm:$0xff] 0.0
        %210 = vst [vmem:[#allocation2 + $0xc0] sm:$0xff] 0.0
        %211 = vst [vmem:[#allocation2 + $0xc8] sm:$0xff] 0.0
        %212 = vst [vmem:[#allocation2 + $0xd0] sm:$0xff] 0.0
        %213 = vst [vmem:[#allocation2 + $0xd8] sm:$0xff] 0.0
        %214 = vst [vmem:[#allocation2 + $0xe0] sm:$0xff] 0.0
        %215 = vst [vmem:[#allocation2 + $0xe8] sm:$0xff] 0.0
        %216 = vst [vmem:[#allocation2 + $0xf0] sm:$0xff] 0.0
        %217 = vst [vmem:[#allocation2 + $0xf8] sm:$0xff] 0.0
        %218 = vst [vmem:[#allocation2 + $0x100] sm:$0xff] 0.0
        %219 = vst [vmem:[#allocation2 + $0x108] sm:$0xff] 0.0
        %220 = vst [vmem:[#allocation2 + $0x110] sm:$0xff] 0.0
        %221 = vst [vmem:[#allocation2 + $0x118] sm:$0xff] 0.0
        %222 = vst [vmem:[#allocation2 + $0x120] sm:$0xff] 0.0
        %223 = vst [vmem:[#allocation2 + $0x128] sm:$0xff] 0.0
        %224 = vst [vmem:[#allocation2 + $0x130] sm:$0xff] 0.0
        %225 = vst [vmem:[#allocation2 + $0x138] sm:$0xff] 0.0
        %226 = vst [vmem:[#allocation2 + $0x140] sm:$0xff] 0.0
        %227 = vst [vmem:[#allocation2 + $0x148] sm:$0xff] 0.0
        %228 = vst [vmem:[#allocation2 + $0x150] sm:$0xff] 0.0
        %229 = vst [vmem:[#allocation2 + $0x158] sm:$0xff] 0.0
        %230 = vst [vmem:[#allocation2 + $0x160] sm:$0xff] 0.0
        %231 = vst [vmem:[#allocation2 + $0x168] sm:$0xff] 0.0
        %232 = vst [vmem:[#allocation2 + $0x170] sm:$0xff] 0.0
        %233 = vst [vmem:[#allocation2 + $0x178] sm:$0xff] 0.0
        %234 = vst [vmem:[#allocation2 + $0x180] sm:$0xff] 0.0
        %235 = vst [vmem:[#allocation2 + $0x188] sm:$0xff] 0.0
        %236 = vst [vmem:[#allocation2 + $0x190] sm:$0xff] 0.0
        %237 = vst [vmem:[#allocation2 + $0x198] sm:$0xff] 0.0
        %238 = vst [vmem:[#allocation2 + $0x1a0] sm:$0xff] 0.0
        %239 = vst [vmem:[#allocation2 + $0x1a8] sm:$0xff] 0.0
      $region32: #{conv_block_forward.3} parent=27 // pred_fallthru
        _
      %v240 = vld [vmem:[%s172] sm:$0xff]
      %v241 = vld [vmem:[%s172 + $0x8] sm:$0xff]
      %v242 = vld [vmem:[%s172 + $0x10] sm:$0xff]
      %v243 = vld [vmem:[%s172 + $0x18] sm:$0xff]
      %v244 = vld [vmem:[%s172 + $0x20] sm:$0xff]
      %v245 = vld [vmem:[%s172 + $0x28] sm:$0xff]
      %v246 = vld [vmem:[%s172 + $0x30] sm:$0xff]
      %v247 = vld [vmem:[%s172 + $0x38] sm:$0xff]
      %v248 = vld [vmem:[%s172 + $0x40] sm:$0xff]
      %v249 = vld [vmem:[%s172 + $0x48] sm:$0xff]
      %v250 = vld [vmem:[%s172 + $0x50] sm:$0xff]
      %v251 = vld [vmem:[%s172 + $0x58] sm:$0xff]
      %v252 = vld [vmem:[%s172 + $0x60] sm:$0xff]
      %v253 = vld [vmem:[%s172 + $0x68] sm:$0xff]
      %v254 = vld [vmem:[%s172 + $0x70] sm:$0xff]
      %v255 = vld [vmem:[%s172 + $0x78] sm:$0xff]
      %v256 = vld [vmem:[%s172 + $0x80] sm:$0xff]
      %v257 = vld [vmem:[%s172 + $0x88] sm:$0xff]
      %v258 = vld [vmem:[%s172 + $0x90] sm:$0xff]
      %v259 = vld [vmem:[%s172 + $0x98] sm:$0xff]
      %v260 = vld [vmem:[%s172 + $0xa0] sm:$0xff]
      %v261 = vld [vmem:[%s172 + $0xa8] sm:$0xff]
      %v262 = vld [vmem:[%s172 + $0xb0] sm:$0xff]
      %v263 = vld [vmem:[%s172 + $0xb8] sm:$0xff]
      %v264 = vld [vmem:[%s172 + $0xc0] sm:$0xff]
      %v265 = vld [vmem:[%s172 + $0xc8] sm:$0xff]
      %v266 = vld [vmem:[%s172 + $0xd0] sm:$0xff]
      %v267 = vld [vmem:[%s172 + $0xd8] sm:$0xff]
      %v268 = vld [vmem:[%s172 + $0xe0] sm:$0xff]
      %v269 = vld [vmem:[%s172 + $0xe8] sm:$0xff]
      %v270 = vld [vmem:[%s172 + $0xf0] sm:$0xff]
      %v271 = vld [vmem:[%s172 + $0xf8] sm:$0xff]
      %s272 = scalar_lea.vmem [#allocation2], 24
      %273 = vst [vmem:[%s272 + $0x1] sm:$0xff] %v240
      %274 = vst [vmem:[%s272 + $0x9] sm:$0xff] %v241
      %275 = vst [vmem:[%s272 + $0x19] sm:$0xff] %v242
      %276 = vst [vmem:[%s272 + $0x21] sm:$0xff] %v243
      %277 = vst [vmem:[%s272 + $0x31] sm:$0xff] %v244
      %278 = vst [vmem:[%s272 + $0x39] sm:$0xff] %v245
      %279 = vst [vmem:[%s272 + $0x49] sm:$0xff] %v246
      %280 = vst [vmem:[%s272 + $0x51] sm:$0xff] %v247
      %281 = vst [vmem:[%s272 + $0x61] sm:$0xff] %v248
      %282 = vst [vmem:[%s272 + $0x69] sm:$0xff] %v249
      %283 = vst [vmem:[%s272 + $0x79] sm:$0xff] %v250
      %284 = vst [vmem:[%s272 + $0x81] sm:$0xff] %v251
      %285 = vst [vmem:[%s272 + $0x91] sm:$0xff] %v252
      %286 = vst [vmem:[%s272 + $0x99] sm:$0xff] %v253
      %287 = vst [vmem:[%s272 + $0xa9] sm:$0xff] %v254
      %288 = vst [vmem:[%s272 + $0xb1] sm:$0xff] %v255
      %289 = vst [vmem:[%s272 + $0xc1] sm:$0xff] %v256
      %290 = vst [vmem:[%s272 + $0xc9] sm:$0xff] %v257
      %291 = vst [vmem:[%s272 + $0xd9] sm:$0xff] %v258
      %292 = vst [vmem:[%s272 + $0xe1] sm:$0xff] %v259
      %293 = vst [vmem:[%s272 + $0xf1] sm:$0xff] %v260
      %294 = vst [vmem:[%s272 + $0xf9] sm:$0xff] %v261
      %295 = vst [vmem:[%s272 + $0x109] sm:$0xff] %v262
      %296 = vst [vmem:[%s272 + $0x111] sm:$0xff] %v263
      %297 = vst [vmem:[%s272 + $0x121] sm:$0xff] %v264
      %298 = vst [vmem:[%s272 + $0x129] sm:$0xff] %v265
      %299 = vst [vmem:[%s272 + $0x139] sm:$0xff] %v266
      %300 = vst [vmem:[%s272 + $0x141] sm:$0xff] %v267
      %301 = vst [vmem:[%s272 + $0x151] sm:$0xff] %v268
      %302 = vst [vmem:[%s272 + $0x159] sm:$0xff] %v269
      %303 = vst [vmem:[%s272 + $0x169] sm:$0xff] %v270
      %304 = vst [vmem:[%s272 + $0x171] sm:$0xff] %v271
      %v305 = vld [vmem:[#allocation2] sm:$0xff]
      %v306 = vld [vmem:[#allocation2 + $0x8] sm:$0xff]
      %v307 = vld [vmem:[#allocation2 + $0x18] sm:$0xff]
      %v308 = vld [vmem:[#allocation2 + $0x20] sm:$0xff]
      %v309 = vld [vmem:[#allocation2 + $0x30] sm:$0xff]
      %v310 = vld [vmem:[#allocation2 + $0x38] sm:$0xff]
      %v311 = vld [vmem:[#allocation2 + $0x48] sm:$0xff]
      %v312 = vld [vmem:[#allocation2 + $0x50] sm:$0xff]
      %v313 = vld [vmem:[#allocation2 + $0x60] sm:$0xff]
      %v314 = vld [vmem:[#allocation2 + $0x68] sm:$0xff]
      %v315 = vld [vmem:[#allocation2 + $0x78] sm:$0xff]
      %v316 = vld [vmem:[#allocation2 + $0x80] sm:$0xff]
      %v317 = vld [vmem:[#allocation2 + $0x90] sm:$0xff]
      %v318 = vld [vmem:[#allocation2 + $0x98] sm:$0xff]
      %v319 = vld [vmem:[#allocation2 + $0xa8] sm:$0xff]
      %v320 = vld [vmem:[#allocation2 + $0xb0] sm:$0xff]
      %v321 = vld [vmem:[#allocation2 + $0xc0] sm:$0xff]
      %v322 = vld [vmem:[#allocation2 + $0xc8] sm:$0xff]
      %v323 = vld [vmem:[#allocation2 + $0xd8] sm:$0xff]
      %v324 = vld [vmem:[#allocation2 + $0xe0] sm:$0xff]
      %v325 = vld [vmem:[#allocation2 + $0xf0] sm:$0xff]
      %v326 = vld [vmem:[#allocation2 + $0xf8] sm:$0xff]
      %v327 = vld [vmem:[#allocation2 + $0x108] sm:$0xff]
      %v328 = vld [vmem:[#allocation2 + $0x110] sm:$0xff]
      %v329 = vld [vmem:[#allocation2 + $0x120] sm:$0xff]
      %v330 = vld [vmem:[#allocation2 + $0x128] sm:$0xff]
      %v331 = vld [vmem:[#allocation2 + $0x138] sm:$0xff]
      %v332 = vld [vmem:[#allocation2 + $0x140] sm:$0xff]
      %v333 = vld [vmem:[#allocation2 + $0x150] sm:$0xff]
      %v334 = vld [vmem:[#allocation2 + $0x158] sm:$0xff]
      %v335 = vld [vmem:[#allocation2 + $0x168] sm:$0xff]
      %v336 = vld [vmem:[#allocation2 + $0x170] sm:$0xff]
      %v337 = vld [vmem:[%s1] sm:$0xff]
      %v338 = vld [vmem:[%s1 + $0x8] sm:$0xff]
      %v339 = vld [vmem:[%s1 + $0x10] sm:$0xff]
      %v340 = vld [vmem:[%s1 + $0x18] sm:$0xff]
      %v341 = vld [vmem:[%s1 + $0x20] sm:$0xff]
      %v342 = vld [vmem:[%s1 + $0x28] sm:$0xff]
      %v343 = vld [vmem:[%s1 + $0x30] sm:$0xff]
      %v344 = vld [vmem:[%s1 + $0x38] sm:$0xff]
      %v345 = vld [vmem:[%s1 + $0x40] sm:$0xff]
      %v346 = vld [vmem:[%s1 + $0x48] sm:$0xff]
      %v347 = vld [vmem:[%s1 + $0x50] sm:$0xff]
      %v348 = vld [vmem:[%s1 + $0x58] sm:$0xff]
      %v349 = vld [vmem:[%s1 + $0x60] sm:$0xff]
      %v350 = vld [vmem:[%s1 + $0x68] sm:$0xff]
      %v351 = vld [vmem:[%s1 + $0x70] sm:$0xff]
      %v352 = vld [vmem:[%s1 + $0x78] sm:$0xff]
      %v353 = vld [vmem:[#allocation2 + $0x1] sm:$0xff]
      %v354 = vld [vmem:[#allocation2 + $0x9] sm:$0xff]
      %v355 = vld [vmem:[#allocation2 + $0x19] sm:$0xff]
      %v356 = vld [vmem:[#allocation2 + $0x21] sm:$0xff]
      %v357 = vld [vmem:[#allocation2 + $0x31] sm:$0xff]
      %v358 = vld [vmem:[#allocation2 + $0x39] sm:$0xff]
      %v359 = vld [vmem:[#allocation2 + $0x49] sm:$0xff]
      %v360 = vld [vmem:[#allocation2 + $0x51] sm:$0xff]
      %v361 = vld [vmem:[#allocation2 + $0x61] sm:$0xff]
      %v362 = vld [vmem:[#allocation2 + $0x69] sm:$0xff]
      %v363 = vld [vmem:[#allocation2 + $0x79] sm:$0xff]
      %v364 = vld [vmem:[#allocation2 + $0x81] sm:$0xff]
      %v365 = vld [vmem:[#allocation2 + $0x91] sm:$0xff]
      %v366 = vld [vmem:[#allocation2 + $0x99] sm:$0xff]
      %v367 = vld [vmem:[#allocation2 + $0xa9] sm:$0xff]
      %v368 = vld [vmem:[#allocation2 + $0xb1] sm:$0xff]
      %v369 = vld [vmem:[#allocation2 + $0xc1] sm:$0xff]
      %v370 = vld [vmem:[#allocation2 + $0xc9] sm:$0xff]
      %v371 = vld [vmem:[#allocation2 + $0xd9] sm:$0xff]
      %v372 = vld [vmem:[#allocation2 + $0xe1] sm:$0xff]
      %v373 = vld [vmem:[#allocation2 + $0xf1] sm:$0xff]
      %v374 = vld [vmem:[#allocation2 + $0xf9] sm:$0xff]
      %v375 = vld [vmem:[#allocation2 + $0x109] sm:$0xff]
      %v376 = vld [vmem:[#allocation2 + $0x111] sm:$0xff]
      %v377 = vld [vmem:[#allocation2 + $0x121] sm:$0xff]
      %v378 = vld [vmem:[#allocation2 + $0x129] sm:$0xff]
      %v379 = vld [vmem:[#allocation2 + $0x139] sm:$0xff]
      %v380 = vld [vmem:[#allocation2 + $0x141] sm:$0xff]
      %v381 = vld [vmem:[#allocation2 + $0x151] sm:$0xff]
      %v382 = vld [vmem:[#allocation2 + $0x159] sm:$0xff]
      %v383 = vld [vmem:[#allocation2 + $0x169] sm:$0xff]
      %v384 = vld [vmem:[#allocation2 + $0x171] sm:$0xff]
      %s385 = scalar_lea.vmem %s1, 128
      %v386 = vld [vmem:[%s385] sm:$0xff]
      %v387 = vld [vmem:[%s385 + $0x8] sm:$0xff]
      %v388 = vld [vmem:[%s385 + $0x10] sm:$0xff]
      %v389 = vld [vmem:[%s385 + $0x18] sm:$0xff]
      %v390 = vld [vmem:[%s385 + $0x20] sm:$0xff]
      %v391 = vld [vmem:[%s385 + $0x28] sm:$0xff]
      %v392 = vld [vmem:[%s385 + $0x30] sm:$0xff]
      %v393 = vld [vmem:[%s385 + $0x38] sm:$0xff]
      %v394 = vld [vmem:[%s385 + $0x40] sm:$0xff]
      %v395 = vld [vmem:[%s385 + $0x48] sm:$0xff]
      %v396 = vld [vmem:[%s385 + $0x50] sm:$0xff]
      %v397 = vld [vmem:[%s385 + $0x58] sm:$0xff]
      %v398 = vld [vmem:[%s385 + $0x60] sm:$0xff]
      %v399 = vld [vmem:[%s385 + $0x68] sm:$0xff]
      %v400 = vld [vmem:[%s385 + $0x70] sm:$0xff]
      %v401 = vld [vmem:[%s385 + $0x78] sm:$0xff]
      %402 = vmatprep.subr.mxu0 0.0
      %403 = vmatpush1.msra.mxu0 %v386
      %404 = vmatprep.subr.mxu0 0.0
      %405 = vmatpush1.msra.mxu0 %v387
      %406 = vmatprep.subr.mxu0 0.0
      %407 = vmatpush1.msra.mxu0 %v388
      %408 = vmatprep.subr.mxu0 0.0
      %409 = vmatpush1.msra.mxu0 %v389
      %410 = vmatprep.subr.mxu0 0.0
      %411 = vmatpush1.msra.mxu0 %v390
      %412 = vmatprep.subr.mxu0 0.0
      %413 = vmatpush1.msra.mxu0 %v391
      %414 = vmatprep.subr.mxu0 0.0
      %415 = vmatpush1.msra.mxu0 %v392
      %416 = vmatprep.subr.mxu0 0.0
      %417 = vmatpush1.msra.mxu0 %v393
      %418 = vmatprep.subr.mxu0 0.0
      %419 = vmatpush1.msra.mxu0 %v394
      %420 = vmatprep.subr.mxu0 0.0
      %421 = vmatpush1.msra.mxu0 %v395
      %422 = vmatprep.subr.mxu0 0.0
      %423 = vmatpush1.msra.mxu0 %v396
      %424 = vmatprep.subr.mxu0 0.0
      %425 = vmatpush1.msra.mxu0 %v397
      %426 = vmatprep.subr.mxu0 0.0
      %427 = vmatpush1.msra.mxu0 %v398
      %428 = vmatprep.subr.mxu0 0.0
      %429 = vmatpush1.msra.mxu0 %v399
      %430 = vmatprep.subr.mxu0 0.0
      %431 = vmatpush1.msra.mxu0 %v400
      %432 = vmatprep.subr.mxu0 0.0
      %433 = vmatpush1.msra.mxu0 %v401
      %434 = vmatprep.subr.mxu0 0.0
      %435 = vmatpush1.msra.mxu0 0.0
      %436 = vmatprep.subr.mxu0 0.0
      %437 = vmatpush1.msra.mxu0 0.0
      %438 = vmatprep.subr.mxu0 0.0
      %439 = vmatpush1.msra.mxu0 0.0
      %440 = vmatprep.subr.mxu0 0.0
      %441 = vmatpush1.msra.mxu0 0.0
      %442 = vmatprep.subr.mxu0 0.0
      %443 = vmatpush1.msra.mxu0 0.0
      %444 = vmatprep.subr.mxu0 0.0
      %445 = vmatpush1.msra.mxu0 0.0
      %446 = vmatprep.subr.mxu0 0.0
      %447 = vmatpush1.msra.mxu0 0.0
      %448 = vmatprep.subr.mxu0 0.0
      %449 = vmatpush1.msra.mxu0 0.0
      %450 = vmatprep.subr.mxu0 0.0
      %451 = vmatpush1.msra.mxu0 0.0
      %452 = vmatprep.subr.mxu0 0.0
      %453 = vmatpush1.msra.mxu0 0.0
      %454 = vmatprep.subr.mxu0 0.0
      %455 = vmatpush1.msra.mxu0 0.0
      %456 = vmatprep.subr.mxu0 0.0
      %457 = vmatpush1.msra.mxu0 0.0
      %458 = vmatprep.subr.mxu0 0.0
      %459 = vmatpush1.msra.mxu0 0.0
      %460 = vmatprep.subr.mxu0 0.0
      %461 = vmatpush1.msra.mxu0 0.0
      %462 = vmatprep.subr.mxu0 0.0
      %463 = vmatpush1.msra.mxu0 0.0
      %464 = vmatprep.subr.mxu0 0.0
      %465 = vmatpush1.msra.mxu0 0.0
      %466 = vmatprep.mubr.f32.mxu0 0.0
      %467 = vmatmul.mubr.f32.gmra.mrb[0].mxu0 %v353
      %v468 = vpop.f32.mrb[0].mxu0
      %v469 = vadd.f32 0.0, %v468
      %v470 = vpop.f32.mrb[0].mxu0
      %471 = vmatprep.mubr.f32.mxu0 0.0
      %472 = vmatmul.mubr.f32.gmra.mrb[0].mxu0 %v354
      %v473 = vpop.f32.mrb[0].mxu0
      %v474 = vadd.f32 0.0, %v473
      %v475 = vpop.f32.mrb[0].mxu0
      %476 = vmatprep.mubr.f32.mxu0 0.0
      %477 = vmatmul.mubr.f32.gmra.mrb[0].mxu0 %v355
      %v478 = vpop.f32.mrb[0].mxu0
      %v479 = vadd.f32 0.0, %v478
      %v480 = vpop.f32.mrb[0].mxu0
      %481 = vmatprep.mubr.f32.mxu0 0.0
      %482 = vmatmul.mubr.f32.gmra.mrb[0].mxu0 %v356
      %v483 = vpop.f32.mrb[0].mxu0
      %v484 = vadd.f32 0.0, %v483
      %v485 = vpop.f32.mrb[0].mxu0
      %486 = vmatprep.mubr.f32.mxu0 0.0
      %487 = vmatmul.mubr.f32.gmra.mrb[0].mxu0 %v357
      %v488 = vpop.f32.mrb[0].mxu0
      %v489 = vadd.f32 0.0, %v488
      %v490 = vpop.f32.mrb[0].mxu0
      %491 = vmatprep.mubr.f32.mxu0 0.0
      %492 = vmatmul.mubr.f32.gmra.mrb[0].mxu0 %v358
      %v493 = vpop.f32.mrb[0].mxu0
      %v494 = vadd.f32 0.0, %v493
      %v495 = vpop.f32.mrb[0].mxu0
      %496 = vmatprep.mubr.f32.mxu0 0.0
      %497 = vmatmul.mubr.f32.gmra.mrb[0].mxu0 %v359
      %v498 = vpop.f32.mrb[0].mxu0
      %v499 = vadd.f32 0.0, %v498
      %v500 = vpop.f32.mrb[0].mxu0
      %501 = vmatprep.mubr.f32.mxu0 0.0
      %502 = vmatmul.mubr.f32.gmra.mrb[0].mxu0 %v360
      %v503 = vpop.f32.mrb[0].mxu0
      %v504 = vadd.f32 0.0, %v503
      %v505 = vpop.f32.mrb[0].mxu0
      %506 = vmatprep.mubr.f32.mxu0 0.0
      %507 = vmatmul.mubr.f32.gmra.mrb[0].mxu0 %v361
      %v508 = vpop.f32.mrb[0].mxu0
      %v509 = vadd.f32 0.0, %v508
      %v510 = vpop.f32.mrb[0].mxu0
      %511 = vmatprep.mubr.f32.mxu0 0.0
      %512 = vmatmul.mubr.f32.gmra.mrb[0].mxu0 %v362
      %v513 = vpop.f32.mrb[0].mxu0
      %v514 = vadd.f32 0.0, %v513
      %v515 = vpop.f32.mrb[0].mxu0
      %516 = vmatprep.mubr.f32.mxu0 0.0
      %517 = vmatmul.mubr.f32.gmra.mrb[0].mxu0 %v363
      %v518 = vpop.f32.mrb[0].mxu0
      %v519 = vadd.f32 0.0, %v518
      %v520 = vpop.f32.mrb[0].mxu0
      %521 = vmatprep.mubr.f32.mxu0 0.0
      %522 = vmatmul.mubr.f32.gmra.mrb[0].mxu0 %v364
      %v523 = vpop.f32.mrb[0].mxu0
      %v524 = vadd.f32 0.0, %v523
      %v525 = vpop.f32.mrb[0].mxu0
      %526 = vmatprep.mubr.f32.mxu0 0.0
      %527 = vmatmul.mubr.f32.gmra.mrb[0].mxu0 %v365
      %v528 = vpop.f32.mrb[0].mxu0
      %v529 = vadd.f32 0.0, %v528
      %v530 = vpop.f32.mrb[0].mxu0
      %531 = vmatprep.mubr.f32.mxu0 0.0
      %532 = vmatmul.mubr.f32.gmra.mrb[0].mxu0 %v366
      %v533 = vpop.f32.mrb[0].mxu0
      %v534 = vadd.f32 0.0, %v533
      %v535 = vpop.f32.mrb[0].mxu0
      %536 = vmatprep.mubr.f32.mxu0 0.0
      %537 = vmatmul.mubr.f32.gmra.mrb[0].mxu0 %v367
      %v538 = vpop.f32.mrb[0].mxu0
      %v539 = vadd.f32 0.0, %v538
      %v540 = vpop.f32.mrb[0].mxu0
      %541 = vmatprep.mubr.f32.mxu0 0.0
      %542 = vmatmul.mubr.f32.gmra.mrb[0].mxu0 %v368
      %v543 = vpop.f32.mrb[0].mxu0
      %v544 = vadd.f32 0.0, %v543
      %v545 = vpop.f32.mrb[0].mxu0
      %546 = vmatprep.mubr.f32.mxu0 0.0
      %547 = vmatmul.mubr.f32.gmra.mrb[0].mxu0 %v369
      %v548 = vpop.f32.mrb[0].mxu0
      %v549 = vadd.f32 0.0, %v548
      %v550 = vpop.f32.mrb[0].mxu0
      %551 = vmatprep.mubr.f32.mxu0 0.0
      %552 = vmatmul.mubr.f32.gmra.mrb[0].mxu0 %v370
      %v553 = vpop.f32.mrb[0].mxu0
      %v554 = vadd.f32 0.0, %v553
      %v555 = vpop.f32.mrb[0].mxu0
      %556 = vmatprep.mubr.f32.mxu0 0.0
      %557 = vmatmul.mubr.f32.gmra.mrb[0].mxu0 %v371
      %v558 = vpop.f32.mrb[0].mxu0
      %v559 = vadd.f32 0.0, %v558
      %v560 = vpop.f32.mrb[0].mxu0
      %561 = vmatprep.mubr.f32.mxu0 0.0
      %562 = vmatmul.mubr.f32.gmra.mrb[0].mxu0 %v372
      %v563 = vpop.f32.mrb[0].mxu0
      %v564 = vadd.f32 0.0, %v563
      %v565 = vpop.f32.mrb[0].mxu0
      %566 = vmatprep.mubr.f32.mxu0 0.0
      %567 = vmatmul.mubr.f32.gmra.mrb[0].mxu0 %v373
      %v568 = vpop.f32.mrb[0].mxu0
      %v569 = vadd.f32 0.0, %v568
      %v570 = vpop.f32.mrb[0].mxu0
      %571 = vmatprep.mubr.f32.mxu0 0.0
      %572 = vmatmul.mubr.f32.gmra.mrb[0].mxu0 %v374
      %v573 = vpop.f32.mrb[0].mxu0
      %v574 = vadd.f32 0.0, %v573
      %v575 = vpop.f32.mrb[0].mxu0
      %576 = vmatprep.mubr.f32.mxu0 0.0
      %577 = vmatmul.mubr.f32.gmra.mrb[0].mxu0 %v375
      %v578 = vpop.f32.mrb[0].mxu0
      %v579 = vadd.f32 0.0, %v578
      %v580 = vpop.f32.mrb[0].mxu0
      %581 = vmatprep.mubr.f32.mxu0 0.0
      %582 = vmatmul.mubr.f32.gmra.mrb[0].mxu0 %v376
      %v583 = vpop.f32.mrb[0].mxu0
      %v584 = vadd.f32 0.0, %v583
      %v585 = vpop.f32.mrb[0].mxu0
      %586 = vmatprep.mubr.f32.mxu0 0.0
      %587 = vmatmul.mubr.f32.gmra.mrb[0].mxu0 %v377
      %v588 = vpop.f32.mrb[0].mxu0
      %v589 = vadd.f32 0.0, %v588
      %v590 = vpop.f32.mrb[0].mxu0
      %591 = vmatprep.mubr.f32.mxu0 0.0
      %592 = vmatmul.mubr.f32.gmra.mrb[0].mxu0 %v378
      %v593 = vpop.f32.mrb[0].mxu0
      %v594 = vadd.f32 0.0, %v593
      %v595 = vpop.f32.mrb[0].mxu0
      %596 = vmatprep.mubr.f32.mxu0 0.0
      %597 = vmatmul.mubr.f32.gmra.mrb[0].mxu0 %v379
      %v598 = vpop.f32.mrb[0].mxu0
      %v599 = vadd.f32 0.0, %v598
      %v600 = vpop.f32.mrb[0].mxu0
      %601 = vmatprep.mubr.f32.mxu0 0.0
      %602 = vmatmul.mubr.f32.gmra.mrb[0].mxu0 %v380
      %v603 = vpop.f32.mrb[0].mxu0
      %v604 = vadd.f32 0.0, %v603
      %v605 = vpop.f32.mrb[0].mxu0
      %606 = vmatprep.mubr.f32.mxu0 0.0
      %607 = vmatmul.mubr.f32.gmra.mrb[0].mxu0 %v381
      %v608 = vpop.f32.mrb[0].mxu0
      %v609 = vadd.f32 0.0, %v608
      %v610 = vpop.f32.mrb[0].mxu0
      %611 = vmatprep.mubr.f32.mxu0 0.0
      %612 = vmatmul.mubr.f32.gmra.mrb[0].mxu0 %v382
      %v613 = vpop.f32.mrb[0].mxu0
      %v614 = vadd.f32 0.0, %v613
      %v615 = vpop.f32.mrb[0].mxu0
      %616 = vmatprep.mubr.f32.mxu0 0.0
      %617 = vmatmul.mubr.f32.gmra.mrb[0].mxu0 %v383
      %v618 = vpop.f32.mrb[0].mxu0
      %v619 = vadd.f32 0.0, %v618
      %v620 = vpop.f32.mrb[0].mxu0
      %621 = vmatprep.mubr.f32.mxu0 0.0
      %622 = vmatmul.mubr.f32.gmra.mrb[0].mxu0 %v384
      %v623 = vpop.f32.mrb[0].mxu0
      %v624 = vadd.f32 0.0, %v623
      %v625 = vpop.f32.mrb[0].mxu0
      %626 = vdwg.mxu0
      %627 = vmatprep.subr.mxu0 0.0
      %628 = vmatpush1.msra.mxu0 %v337
      %629 = vmatprep.subr.mxu0 0.0
      %630 = vmatpush1.msra.mxu0 %v338
      %631 = vmatprep.subr.mxu0 0.0
      %632 = vmatpush1.msra.mxu0 %v339
      %633 = vmatprep.subr.mxu0 0.0
      %634 = vmatpush1.msra.mxu0 %v340
      %635 = vmatprep.subr.mxu0 0.0
      %636 = vmatpush1.msra.mxu0 %v341
      %637 = vmatprep.subr.mxu0 0.0
      %638 = vmatpush1.msra.mxu0 %v342
      %639 = vmatprep.subr.mxu0 0.0
      %640 = vmatpush1.msra.mxu0 %v343
      %641 = vmatprep.subr.mxu0 0.0
      %642 = vmatpush1.msra.mxu0 %v344
      %643 = vmatprep.subr.mxu0 0.0
      %644 = vmatpush1.msra.mxu0 %v345
      %645 = vmatprep.subr.mxu0 0.0
      %646 = vmatpush1.msra.mxu0 %v346
      %647 = vmatprep.subr.mxu0 0.0
      %648 = vmatpush1.msra.mxu0 %v347
      %649 = vmatprep.subr.mxu0 0.0
      %650 = vmatpush1.msra.mxu0 %v348
      %651 = vmatprep.subr.mxu0 0.0
      %652 = vmatpush1.msra.mxu0 %v349
      %653 = vmatprep.subr.mxu0 0.0
      %654 = vmatpush1.msra.mxu0 %v350
      %655 = vmatprep.subr.mxu0 0.0
      %656 = vmatpush1.msra.mxu0 %v351
      %657 = vmatprep.subr.mxu0 0.0
      %658 = vmatpush1.msra.mxu0 %v352
      %659 = vmatprep.subr.mxu0 0.0
      %660 = vmatpush1.msra.mxu0 0.0
      %661 = vmatprep.subr.mxu0 0.0
      %662 = vmatpush1.msra.mxu0 0.0
      %663 = vmatprep.subr.mxu0 0.0
      %664 = vmatpush1.msra.mxu0 0.0
      %665 = vmatprep.subr.mxu0 0.0
      %666 = vmatpush1.msra.mxu0 0.0
      %667 = vmatprep.subr.mxu0 0.0
      %668 = vmatpush1.msra.mxu0 0.0
      %669 = vmatprep.subr.mxu0 0.0
      %670 = vmatpush1.msra.mxu0 0.0
      %671 = vmatprep.subr.mxu0 0.0
      %672 = vmatpush1.msra.mxu0 0.0
      %673 = vmatprep.subr.mxu0 0.0
      %674 = vmatpush1.msra.mxu0 0.0
      %675 = vmatprep.subr.mxu0 0.0
      %676 = vmatpush1.msra.mxu0 0.0
      %677 = vmatprep.subr.mxu0 0.0
      %678 = vmatpush1.msra.mxu0 0.0
      %679 = vmatprep.subr.mxu0 0.0
      %680 = vmatpush1.msra.mxu0 0.0
      %681 = vmatprep.subr.mxu0 0.0
      %682 = vmatpush1.msra.mxu0 0.0
      %683 = vmatprep.subr.mxu0 0.0
      %684 = vmatpush1.msra.mxu0 0.0
      %685 = vmatprep.subr.mxu0 0.0
      %686 = vmatpush1.msra.mxu0 0.0
      %687 = vmatprep.subr.mxu0 0.0
      %688 = vmatpush1.msra.mxu0 0.0
      %689 = vmatprep.subr.mxu0 0.0
      %690 = vmatpush1.msra.mxu0 0.0
      %691 = vmatprep.mubr.f32.mxu0 0.0
      %692 = vmatmul.mubr.f32.gmra.mrb[0].mxu0 %v305
      %v693 = vpop.f32.mrb[0].mxu0
      %v694 = vadd.f32 %v469, %v693
      %v695 = vpop.f32.mrb[0].mxu0
      %696 = vmatprep.mubr.f32.mxu0 0.0
      %697 = vmatmul.mubr.f32.gmra.mrb[0].mxu0 %v306
      %v698 = vpop.f32.mrb[0].mxu0
      %v699 = vadd.f32 %v474, %v698
      %v700 = vpop.f32.mrb[0].mxu0
      %701 = vmatprep.mubr.f32.mxu0 0.0
      %702 = vmatmul.mubr.f32.gmra.mrb[0].mxu0 %v307
      %v703 = vpop.f32.mrb[0].mxu0
      %v704 = vadd.f32 %v479, %v703
      %v705 = vpop.f32.mrb[0].mxu0
      %706 = vmatprep.mubr.f32.mxu0 0.0
      %707 = vmatmul.mubr.f32.gmra.mrb[0].mxu0 %v308
      %v708 = vpop.f32.mrb[0].mxu0
      %v709 = vadd.f32 %v484, %v708
      %v710 = vpop.f32.mrb[0].mxu0
      %711 = vmatprep.mubr.f32.mxu0 0.0
      %712 = vmatmul.mubr.f32.gmra.mrb[0].mxu0 %v309
      %v713 = vpop.f32.mrb[0].mxu0
      %v714 = vadd.f32 %v489, %v713
      %v715 = vpop.f32.mrb[0].mxu0
      %716 = vmatprep.mubr.f32.mxu0 0.0
      %717 = vmatmul.mubr.f32.gmra.mrb[0].mxu0 %v310
      %v718 = vpop.f32.mrb[0].mxu0
      %v719 = vadd.f32 %v494, %v718
      %v720 = vpop.f32.mrb[0].mxu0
      %721 = vmatprep.mubr.f32.mxu0 0.0
      %722 = vmatmul.mubr.f32.gmra.mrb[0].mxu0 %v311
      %v723 = vpop.f32.mrb[0].mxu0
      %v724 = vadd.f32 %v499, %v723
      %v725 = vpop.f32.mrb[0].mxu0
      %726 = vmatprep.mubr.f32.mxu0 0.0
      %727 = vmatmul.mubr.f32.gmra.mrb[0].mxu0 %v312
      %v728 = vpop.f32.mrb[0].mxu0
      %v729 = vadd.f32 %v504, %v728
      %v730 = vpop.f32.mrb[0].mxu0
      %731 = vmatprep.mubr.f32.mxu0 0.0
      %732 = vmatmul.mubr.f32.gmra.mrb[0].mxu0 %v313
      %v733 = vpop.f32.mrb[0].mxu0
      %v734 = vadd.f32 %v509, %v733
      %v735 = vpop.f32.mrb[0].mxu0
      %736 = vmatprep.mubr.f32.mxu0 0.0
      %737 = vmatmul.mubr.f32.gmra.mrb[0].mxu0 %v314
      %v738 = vpop.f32.mrb[0].mxu0
      %v739 = vadd.f32 %v514, %v738
      %v740 = vpop.f32.mrb[0].mxu0
      %741 = vmatprep.mubr.f32.mxu0 0.0
      %742 = vmatmul.mubr.f32.gmra.mrb[0].mxu0 %v315
      %v743 = vpop.f32.mrb[0].mxu0
      %v744 = vadd.f32 %v519, %v743
      %v745 = vpop.f32.mrb[0].mxu0
      %746 = vmatprep.mubr.f32.mxu0 0.0
      %747 = vmatmul.mubr.f32.gmra.mrb[0].mxu0 %v316
      %v748 = vpop.f32.mrb[0].mxu0
      %v749 = vadd.f32 %v524, %v748
      %v750 = vpop.f32.mrb[0].mxu0
      %751 = vmatprep.mubr.f32.mxu0 0.0
      %752 = vmatmul.mubr.f32.gmra.mrb[0].mxu0 %v317
      %v753 = vpop.f32.mrb[0].mxu0
      %v754 = vadd.f32 %v529, %v753
      %v755 = vpop.f32.mrb[0].mxu0
      %756 = vmatprep.mubr.f32.mxu0 0.0
      %757 = vmatmul.mubr.f32.gmra.mrb[0].mxu0 %v318
      %v758 = vpop.f32.mrb[0].mxu0
      %v759 = vadd.f32 %v534, %v758
      %v760 = vpop.f32.mrb[0].mxu0
      %761 = vmatprep.mubr.f32.mxu0 0.0
      %762 = vmatmul.mubr.f32.gmra.mrb[0].mxu0 %v319
      %v763 = vpop.f32.mrb[0].mxu0
      %v764 = vadd.f32 %v539, %v763
      %v765 = vpop.f32.mrb[0].mxu0
      %766 = vmatprep.mubr.f32.mxu0 0.0
      %767 = vmatmul.mubr.f32.gmra.mrb[0].mxu0 %v320
      %v768 = vpop.f32.mrb[0].mxu0
      %v769 = vadd.f32 %v544, %v768
      %v770 = vpop.f32.mrb[0].mxu0
      %771 = vmatprep.mubr.f32.mxu0 0.0
      %772 = vmatmul.mubr.f32.gmra.mrb[0].mxu0 %v321
      %v773 = vpop.f32.mrb[0].mxu0
      %v774 = vadd.f32 %v549, %v773
      %v775 = vpop.f32.mrb[0].mxu0
      %776 = vmatprep.mubr.f32.mxu0 0.0
      %777 = vmatmul.mubr.f32.gmra.mrb[0].mxu0 %v322
      %v778 = vpop.f32.mrb[0].mxu0
      %v779 = vadd.f32 %v554, %v778
      %v780 = vpop.f32.mrb[0].mxu0
      %781 = vmatprep.mubr.f32.mxu0 0.0
      %782 = vmatmul.mubr.f32.gmra.mrb[0].mxu0 %v323
      %v783 = vpop.f32.mrb[0].mxu0
      %v784 = vadd.f32 %v559, %v783
      %v785 = vpop.f32.mrb[0].mxu0
      %786 = vmatprep.mubr.f32.mxu0 0.0
      %787 = vmatmul.mubr.f32.gmra.mrb[0].mxu0 %v324
      %v788 = vpop.f32.mrb[0].mxu0
      %v789 = vadd.f32 %v564, %v788
      %v790 = vpop.f32.mrb[0].mxu0
      %791 = vmatprep.mubr.f32.mxu0 0.0
      %792 = vmatmul.mubr.f32.gmra.mrb[0].mxu0 %v325
      %v793 = vpop.f32.mrb[0].mxu0
      %v794 = vadd.f32 %v569, %v793
      %v795 = vpop.f32.mrb[0].mxu0
      %796 = vmatprep.mubr.f32.mxu0 0.0
      %797 = vmatmul.mubr.f32.gmra.mrb[0].mxu0 %v326
      %v798 = vpop.f32.mrb[0].mxu0
      %v799 = vadd.f32 %v574, %v798
      %v800 = vpop.f32.mrb[0].mxu0
      %801 = vmatprep.mubr.f32.mxu0 0.0
      %802 = vmatmul.mubr.f32.gmra.mrb[0].mxu0 %v327
      %v803 = vpop.f32.mrb[0].mxu0
      %v804 = vadd.f32 %v579, %v803
      %v805 = vpop.f32.mrb[0].mxu0
      %806 = vmatprep.mubr.f32.mxu0 0.0
      %807 = vmatmul.mubr.f32.gmra.mrb[0].mxu0 %v328
      %v808 = vpop.f32.mrb[0].mxu0
      %v809 = vadd.f32 %v584, %v808
      %v810 = vpop.f32.mrb[0].mxu0
      %811 = vmatprep.mubr.f32.mxu0 0.0
      %812 = vmatmul.mubr.f32.gmra.mrb[0].mxu0 %v329
      %v813 = vpop.f32.mrb[0].mxu0
      %v814 = vadd.f32 %v589, %v813
      %v815 = vpop.f32.mrb[0].mxu0
      %816 = vmatprep.mubr.f32.mxu0 0.0
      %817 = vmatmul.mubr.f32.gmra.mrb[0].mxu0 %v330
      %v818 = vpop.f32.mrb[0].mxu0
      %v819 = vadd.f32 %v594, %v818
      %v820 = vpop.f32.mrb[0].mxu0
      %821 = vmatprep.mubr.f32.mxu0 0.0
      %822 = vmatmul.mubr.f32.gmra.mrb[0].mxu0 %v331
      %v823 = vpop.f32.mrb[0].mxu0
      %v824 = vadd.f32 %v599, %v823
      %v825 = vpop.f32.mrb[0].mxu0
      %826 = vmatprep.mubr.f32.mxu0 0.0
      %827 = vmatmul.mubr.f32.gmra.mrb[0].mxu0 %v332
      %v828 = vpop.f32.mrb[0].mxu0
      %v829 = vadd.f32 %v604, %v828
      %v830 = vpop.f32.mrb[0].mxu0
      %831 = vmatprep.mubr.f32.mxu0 0.0
      %832 = vmatmul.mubr.f32.gmra.mrb[0].mxu0 %v333
      %v833 = vpop.f32.mrb[0].mxu0
      %v834 = vadd.f32 %v609, %v833
      %v835 = vpop.f32.mrb[0].mxu0
      %836 = vmatprep.mubr.f32.mxu0 0.0
      %837 = vmatmul.mubr.f32.gmra.mrb[0].mxu0 %v334
      %v838 = vpop.f32.mrb[0].mxu0
      %v839 = vadd.f32 %v614, %v838
      %v840 = vpop.f32.mrb[0].mxu0
      %841 = vmatprep.mubr.f32.mxu0 0.0
      %842 = vmatmul.mubr.f32.gmra.mrb[0].mxu0 %v335
      %v843 = vpop.f32.mrb[0].mxu0
      %v844 = vadd.f32 %v619, %v843
      %v845 = vpop.f32.mrb[0].mxu0
      %846 = vmatprep.mubr.f32.mxu0 0.0
      %847 = vmatmul.mubr.f32.gmra.mrb[0].mxu0 %v336
      %v848 = vpop.f32.mrb[0].mxu0
      %v849 = vadd.f32 %v624, %v848
      %v850 = vpop.f32.mrb[0].mxu0
      %851 = vdwg.mxu0
      %v852 = vld [vmem:[#allocation2 + $0x2] sm:$0xff]
      %v853 = vld [vmem:[#allocation2 + $0xa] sm:$0xff]
      %v854 = vld [vmem:[#allocation2 + $0x1a] sm:$0xff]
      %v855 = vld [vmem:[#allocation2 + $0x22] sm:$0xff]
      %v856 = vld [vmem:[#allocation2 + $0x32] sm:$0xff]
      %v857 = vld [vmem:[#allocation2 + $0x3a] sm:$0xff]
      %v858 = vld [vmem:[#allocation2 + $0x4a] sm:$0xff]
      %v859 = vld [vmem:[#allocation2 + $0x52] sm:$0xff]
      %v860 = vld [vmem:[#allocation2 + $0x62] sm:$0xff]
      %v861 = vld [vmem:[#allocation2 + $0x6a] sm:$0xff]
      %v862 = vld [vmem:[#allocation2 + $0x7a] sm:$0xff]
      %v863 = vld [vmem:[#allocation2 + $0x82] sm:$0xff]
      %v864 = vld [vmem:[#allocation2 + $0x92] sm:$0xff]
      %v865 = vld [vmem:[#allocation2 + $0x9a] sm:$0xff]
      %v866 = vld [vmem:[#allocation2 + $0xaa] sm:$0xff]
      %v867 = vld [vmem:[#allocation2 + $0xb2] sm:$0xff]
      %v868 = vld [vmem:[#allocation2 + $0xc2] sm:$0xff]
      %v869 = vld [vmem:[#allocation2 + $0xca] sm:$0xff]
      %v870 = vld [vmem:[#allocation2 + $0xda] sm:$0xff]
      %v871 = vld [vmem:[#allocation2 + $0xe2] sm:$0xff]
      %v872 = vld [vmem:[#allocation2 + $0xf2] sm:$0xff]
      %v873 = vld [vmem:[#allocation2 + $0xfa] sm:$0xff]
      %v874 = vld [vmem:[#allocation2 + $0x10a] sm:$0xff]
      %v875 = vld [vmem:[#allocation2 + $0x112] sm:$0xff]
      %v876 = vld [vmem:[#allocation2 + $0x122] sm:$0xff]
      %v877 = vld [vmem:[#allocation2 + $0x12a] sm:$0xff]
      %v878 = vld [vmem:[#allocation2 + $0x13a] sm:$0xff]
      %v879 = vld [vmem:[#allocation2 + $0x142] sm:$0xff]
      %v880 = vld [vmem:[#allocation2 + $0x152] sm:$0xff]
      %v881 = vld [vmem:[#allocation2 + $0x15a] sm:$0xff]
      %v882 = vld [vmem:[#allocation2 + $0x16a] sm:$0xff]
      %v883 = vld [vmem:[#allocation2 + $0x172] sm:$0xff]
      %s884 = scalar_lea.vmem %s1, 256
      %v885 = vld [vmem:[%s884] sm:$0xff]
      %v886 = vld [vmem:[%s884 + $0x8] sm:$0xff]
      %v887 = vld [vmem:[%s884 + $0x10] sm:$0xff]
      %v888 = vld [vmem:[%s884 + $0x18] sm:$0xff]
      %v889 = vld [vmem:[%s884 + $0x20] sm:$0xff]
      %v890 = vld [vmem:[%s884 + $0x28] sm:$0xff]
      %v891 = vld [vmem:[%s884 + $0x30] sm:$0xff]
      %v892 = vld [vmem:[%s884 + $0x38] sm:$0xff]
      %v893 = vld [vmem:[%s884 + $0x40] sm:$0xff]
      %v894 = vld [vmem:[%s884 + $0x48] sm:$0xff]
      %v895 = vld [vmem:[%s884 + $0x50] sm:$0xff]
      %v896 = vld [vmem:[%s884 + $0x58] sm:$0xff]
      %v897 = vld [vmem:[%s884 + $0x60] sm:$0xff]
      %v898 = vld [vmem:[%s884 + $0x68] sm:$0xff]
      %v899 = vld [vmem:[%s884 + $0x70] sm:$0xff]
      %v900 = vld [vmem:[%s884 + $0x78] sm:$0xff]
      %901 = vmatprep.subr.mxu0 0.0
      %902 = vmatpush1.msra.mxu0 %v885
      %903 = vmatprep.subr.mxu0 0.0
      %904 = vmatpush1.msra.mxu0 %v886
      %905 = vmatprep.subr.mxu0 0.0
      %906 = vmatpush1.msra.mxu0 %v887
      %907 = vmatprep.subr.mxu0 0.0
      %908 = vmatpush1.msra.mxu0 %v888
      %909 = vmatprep.subr.mxu0 0.0
      %910 = vmatpush1.msra.mxu0 %v889
      %911 = vmatprep.subr.mxu0 0.0
      %912 = vmatpush1.msra.mxu0 %v890
      %913 = vmatprep.subr.mxu0 0.0
      %914 = vmatpush1.msra.mxu0 %v891
      %915 = vmatprep.subr.mxu0 0.0
      %916 = vmatpush1.msra.mxu0 %v892
      %917 = vmatprep.subr.mxu0 0.0
      %918 = vmatpush1.msra.mxu0 %v893
      %919 = vmatprep.subr.mxu0 0.0
      %920 = vmatpush1.msra.mxu0 %v894
      %921 = vmatprep.subr.mxu0 0.0
      %922 = vmatpush1.msra.mxu0 %v895
      %923 = vmatprep.subr.mxu0 0.0
      %924 = vmatpush1.msra.mxu0 %v896
      %925 = vmatprep.subr.mxu0 0.0
      %926 = vmatpush1.msra.mxu0 %v897
      %927 = vmatprep.subr.mxu0 0.0
      %928 = vmatpush1.msra.mxu0 %v898
      %929 = vmatprep.subr.mxu0 0.0
      %930 = vmatpush1.msra.mxu0 %v899
      %931 = vmatprep.subr.mxu0 0.0
      %932 = vmatpush1.msra.mxu0 %v900
      %933 = vmatprep.subr.mxu0 0.0
      %934 = vmatpush1.msra.mxu0 0.0
      %935 = vmatprep.subr.mxu0 0.0
      %936 = vmatpush1.msra.mxu0 0.0
      %937 = vmatprep.subr.mxu0 0.0
      %938 = vmatpush1.msra.mxu0 0.0
      %939 = vmatprep.subr.mxu0 0.0
      %940 = vmatpush1.msra.mxu0 0.0
      %941 = vmatprep.subr.mxu0 0.0
      %942 = vmatpush1.msra.mxu0 0.0
      %943 = vmatprep.subr.mxu0 0.0
      %944 = vmatpush1.msra.mxu0 0.0
      %945 = vmatprep.subr.mxu0 0.0
      %946 = vmatpush1.msra.mxu0 0.0
      %947 = vmatprep.subr.mxu0 0.0
      %948 = vmatpush1.msra.mxu0 0.0
      %949 = vmatprep.subr.mxu0 0.0
      %950 = vmatpush1.msra.mxu0 0.0
      %951 = vmatprep.subr.mxu0 0.0
      %952 = vmatpush1.msra.mxu0 0.0
      %953 = vmatprep.subr.mxu0 0.0
      %954 = vmatpush1.msra.mxu0 0.0
      %955 = vmatprep.subr.mxu0 0.0
      %956 = vmatpush1.msra.mxu0 0.0
      %957 = vmatprep.subr.mxu0 0.0
      %958 = vmatpush1.msra.mxu0 0.0
      %959 = vmatprep.subr.mxu0 0.0
      %960 = vmatpush1.msra.mxu0 0.0
      %961 = vmatprep.subr.mxu0 0.0
      %962 = vmatpush1.msra.mxu0 0.0
      %963 = vmatprep.subr.mxu0 0.0
      %964 = vmatpush1.msra.mxu0 0.0
      %965 = vmatprep.mubr.f32.mxu0 0.0
      %966 = vmatmul.mubr.f32.gmra.mrb[0].mxu0 %v852
      %v967 = vpop.f32.mrb[0].mxu0
      %v968 = vadd.f32 0.0, %v967
      %v969 = vpop.f32.mrb[0].mxu0
      %970 = vmatprep.mubr.f32.mxu0 0.0
      %971 = vmatmul.mubr.f32.gmra.mrb[0].mxu0 %v853
      %v972 = vpop.f32.mrb[0].mxu0
      %v973 = vadd.f32 0.0, %v972
      %v974 = vpop.f32.mrb[0].mxu0
      %975 = vmatprep.mubr.f32.mxu0 0.0
      %976 = vmatmul.mubr.f32.gmra.mrb[0].mxu0 %v854
      %v977 = vpop.f32.mrb[0].mxu0
      %v978 = vadd.f32 0.0, %v977
      %v979 = vpop.f32.mrb[0].mxu0
      %980 = vmatprep.mubr.f32.mxu0 0.0
      %981 = vmatmul.mubr.f32.gmra.mrb[0].mxu0 %v855
      %v982 = vpop.f32.mrb[0].mxu0
      %v983 = vadd.f32 0.0, %v982
      %v984 = vpop.f32.mrb[0].mxu0
      %985 = vmatprep.mubr.f32.mxu0 0.0
      %986 = vmatmul.mubr.f32.gmra.mrb[0].mxu0 %v856
      %v987 = vpop.f32.mrb[0].mxu0
      %v988 = vadd.f32 0.0, %v987
      %v989 = vpop.f32.mrb[0].mxu0
      %990 = vmatprep.mubr.f32.mxu0 0.0
      %991 = vmatmul.mubr.f32.gmra.mrb[0].mxu0 %v857
      %v992 = vpop.f32.mrb[0].mxu0
      %v993 = vadd.f32 0.0, %v992
      %v994 = vpop.f32.mrb[0].mxu0
      %995 = vmatprep.mubr.f32.mxu0 0.0
      %996 = vmatmul.mubr.f32.gmra.mrb[0].mxu0 %v858
      %v997 = vpop.f32.mrb[0].mxu0
      %v998 = vadd.f32 0.0, %v997
      %v999 = vpop.f32.mrb[0].mxu0
      %1000 = vmatprep.mubr.f32.mxu0 0.0
      %1001 = vmatmul.mubr.f32.gmra.mrb[0].mxu0 %v859
      %v1002 = vpop.f32.mrb[0].mxu0
      %v1003 = vadd.f32 0.0, %v1002
      %v1004 = vpop.f32.mrb[0].mxu0
      %1005 = vmatprep.mubr.f32.mxu0 0.0
      %1006 = vmatmul.mubr.f32.gmra.mrb[0].mxu0 %v860
      %v1007 = vpop.f32.mrb[0].mxu0
      %v1008 = vadd.f32 0.0, %v1007
      %v1009 = vpop.f32.mrb[0].mxu0
      %1010 = vmatprep.mubr.f32.mxu0 0.0
      %1011 = vmatmul.mubr.f32.gmra.mrb[0].mxu0 %v861
      %v1012 = vpop.f32.mrb[0].mxu0
      %v1013 = vadd.f32 0.0, %v1012
      %v1014 = vpop.f32.mrb[0].mxu0
      %1015 = vmatprep.mubr.f32.mxu0 0.0
      %1016 = vmatmul.mubr.f32.gmra.mrb[0].mxu0 %v862
      %v1017 = vpop.f32.mrb[0].mxu0
      %v1018 = vadd.f32 0.0, %v1017
      %v1019 = vpop.f32.mrb[0].mxu0
      %1020 = vmatprep.mubr.f32.mxu0 0.0
      %1021 = vmatmul.mubr.f32.gmra.mrb[0].mxu0 %v863
      %v1022 = vpop.f32.mrb[0].mxu0
      %v1023 = vadd.f32 0.0, %v1022
      %v1024 = vpop.f32.mrb[0].mxu0
      %1025 = vmatprep.mubr.f32.mxu0 0.0
      %1026 = vmatmul.mubr.f32.gmra.mrb[0].mxu0 %v864
      %v1027 = vpop.f32.mrb[0].mxu0
      %v1028 = vadd.f32 0.0, %v1027
      %v1029 = vpop.f32.mrb[0].mxu0
      %1030 = vmatprep.mubr.f32.mxu0 0.0
      %1031 = vmatmul.mubr.f32.gmra.mrb[0].mxu0 %v865
      %v1032 = vpop.f32.mrb[0].mxu0
      %v1033 = vadd.f32 0.0, %v1032
      %v1034 = vpop.f32.mrb[0].mxu0
      %1035 = vmatprep.mubr.f32.mxu0 0.0
      %1036 = vmatmul.mubr.f32.gmra.mrb[0].mxu0 %v866
      %v1037 = vpop.f32.mrb[0].mxu0
      %v1038 = vadd.f32 0.0, %v1037
      %v1039 = vpop.f32.mrb[0].mxu0
      %1040 = vmatprep.mubr.f32.mxu0 0.0
      %1041 = vmatmul.mubr.f32.gmra.mrb[0].mxu0 %v867
      %v1042 = vpop.f32.mrb[0].mxu0
      %v1043 = vadd.f32 0.0, %v1042
      %v1044 = vpop.f32.mrb[0].mxu0
      %1045 = vmatprep.mubr.f32.mxu0 0.0
      %1046 = vmatmul.mubr.f32.gmra.mrb[0].mxu0 %v868
      %v1047 = vpop.f32.mrb[0].mxu0
      %v1048 = vadd.f32 0.0, %v1047
      %v1049 = vpop.f32.mrb[0].mxu0
      %1050 = vmatprep.mubr.f32.mxu0 0.0
      %1051 = vmatmul.mubr.f32.gmra.mrb[0].mxu0 %v869
      %v1052 = vpop.f32.mrb[0].mxu0
      %v1053 = vadd.f32 0.0, %v1052
      %v1054 = vpop.f32.mrb[0].mxu0
      %1055 = vmatprep.mubr.f32.mxu0 0.0
      %1056 = vmatmul.mubr.f32.gmra.mrb[0].mxu0 %v870
      %v1057 = vpop.f32.mrb[0].mxu0
      %v1058 = vadd.f32 0.0, %v1057
      %v1059 = vpop.f32.mrb[0].mxu0
      %1060 = vmatprep.mubr.f32.mxu0 0.0
      %1061 = vmatmul.mubr.f32.gmra.mrb[0].mxu0 %v871
      %v1062 = vpop.f32.mrb[0].mxu0
      %v1063 = vadd.f32 0.0, %v1062
      %v1064 = vpop.f32.mrb[0].mxu0
      %1065 = vmatprep.mubr.f32.mxu0 0.0
      %1066 = vmatmul.mubr.f32.gmra.mrb[0].mxu0 %v872
      %v1067 = vpop.f32.mrb[0].mxu0
      %v1068 = vadd.f32 0.0, %v1067
      %v1069 = vpop.f32.mrb[0].mxu0
      %1070 = vmatprep.mubr.f32.mxu0 0.0
      %1071 = vmatmul.mubr.f32.gmra.mrb[0].mxu0 %v873
      %v1072 = vpop.f32.mrb[0].mxu0
      %v1073 = vadd.f32 0.0, %v1072
      %v1074 = vpop.f32.mrb[0].mxu0
      %1075 = vmatprep.mubr.f32.mxu0 0.0
      %1076 = vmatmul.mubr.f32.gmra.mrb[0].mxu0 %v874
      %v1077 = vpop.f32.mrb[0].mxu0
      %v1078 = vadd.f32 0.0, %v1077
      %v1079 = vpop.f32.mrb[0].mxu0
      %1080 = vmatprep.mubr.f32.mxu0 0.0
      %1081 = vmatmul.mubr.f32.gmra.mrb[0].mxu0 %v875
      %v1082 = vpop.f32.mrb[0].mxu0
      %v1083 = vadd.f32 0.0, %v1082
      %v1084 = vpop.f32.mrb[0].mxu0
      %1085 = vmatprep.mubr.f32.mxu0 0.0
      %1086 = vmatmul.mubr.f32.gmra.mrb[0].mxu0 %v876
      %v1087 = vpop.f32.mrb[0].mxu0
      %v1088 = vadd.f32 0.0, %v1087
      %v1089 = vpop.f32.mrb[0].mxu0
      %1090 = vmatprep.mubr.f32.mxu0 0.0
      %1091 = vmatmul.mubr.f32.gmra.mrb[0].mxu0 %v877
      %v1092 = vpop.f32.mrb[0].mxu0
      %v1093 = vadd.f32 0.0, %v1092
      %v1094 = vpop.f32.mrb[0].mxu0
      %1095 = vmatprep.mubr.f32.mxu0 0.0
      %1096 = vmatmul.mubr.f32.gmra.mrb[0].mxu0 %v878
      %v1097 = vpop.f32.mrb[0].mxu0
      %v1098 = vadd.f32 0.0, %v1097
      %v1099 = vpop.f32.mrb[0].mxu0
      %1100 = vmatprep.mubr.f32.mxu0 0.0
      %1101 = vmatmul.mubr.f32.gmra.mrb[0].mxu0 %v879
      %v1102 = vpop.f32.mrb[0].mxu0
      %v1103 = vadd.f32 0.0, %v1102
      %v1104 = vpop.f32.mrb[0].mxu0
      %1105 = vmatprep.mubr.f32.mxu0 0.0
      %1106 = vmatmul.mubr.f32.gmra.mrb[0].mxu0 %v880
      %v1107 = vpop.f32.mrb[0].mxu0
      %v1108 = vadd.f32 0.0, %v1107
      %v1109 = vpop.f32.mrb[0].mxu0
      %1110 = vmatprep.mubr.f32.mxu0 0.0
      %1111 = vmatmul.mubr.f32.gmra.mrb[0].mxu0 %v881
      %v1112 = vpop.f32.mrb[0].mxu0
      %v1113 = vadd.f32 0.0, %v1112
      %v1114 = vpop.f32.mrb[0].mxu0
      %1115 = vmatprep.mubr.f32.mxu0 0.0
      %1116 = vmatmul.mubr.f32.gmra.mrb[0].mxu0 %v882
      %v1117 = vpop.f32.mrb[0].mxu0
      %v1118 = vadd.f32 0.0, %v1117
      %v1119 = vpop.f32.mrb[0].mxu0
      %1120 = vmatprep.mubr.f32.mxu0 0.0
      %1121 = vmatmul.mubr.f32.gmra.mrb[0].mxu0 %v883
      %v1122 = vpop.f32.mrb[0].mxu0
      %v1123 = vadd.f32 0.0, %v1122
      %v1124 = vpop.f32.mrb[0].mxu0
      %1125 = vdwg.mxu0
      %v1126 = vadd.f32 %v694, %v968
      %v1127 = vadd.f32 %v699, %v973
      %v1128 = vadd.f32 %v704, %v978
      %v1129 = vadd.f32 %v709, %v983
      %v1130 = vadd.f32 %v714, %v988
      %v1131 = vadd.f32 %v719, %v993
      %v1132 = vadd.f32 %v724, %v998
      %v1133 = vadd.f32 %v729, %v1003
      %v1134 = vadd.f32 %v734, %v1008
      %v1135 = vadd.f32 %v739, %v1013
      %v1136 = vadd.f32 %v744, %v1018
      %v1137 = vadd.f32 %v749, %v1023
      %v1138 = vadd.f32 %v754, %v1028
      %v1139 = vadd.f32 %v759, %v1033
      %v1140 = vadd.f32 %v764, %v1038
      %v1141 = vadd.f32 %v769, %v1043
      %v1142 = vadd.f32 %v774, %v1048
      %v1143 = vadd.f32 %v779, %v1053
      %v1144 = vadd.f32 %v784, %v1058
      %v1145 = vadd.f32 %v789, %v1063
      %v1146 = vadd.f32 %v794, %v1068
      %v1147 = vadd.f32 %v799, %v1073
      %v1148 = vadd.f32 %v804, %v1078
      %v1149 = vadd.f32 %v809, %v1083
      %v1150 = vadd.f32 %v814, %v1088
      %v1151 = vadd.f32 %v819, %v1093
      %v1152 = vadd.f32 %v824, %v1098
      %v1153 = vadd.f32 %v829, %v1103
      %v1154 = vadd.f32 %v834, %v1108
      %v1155 = vadd.f32 %v839, %v1113
      %v1156 = vadd.f32 %v844, %v1118
      %v1157 = vadd.f32 %v849, %v1123
      %v1158 = vld [vmem:[%s272] sm:$0xff]
      %v1159 = vld [vmem:[%s272 + $0x8] sm:$0xff]
      %v1160 = vld [vmem:[%s272 + $0x18] sm:$0xff]
      %v1161 = vld [vmem:[%s272 + $0x20] sm:$0xff]
      %v1162 = vld [vmem:[%s272 + $0x30] sm:$0xff]
      %v1163 = vld [vmem:[%s272 + $0x38] sm:$0xff]
      %v1164 = vld [vmem:[%s272 + $0x48] sm:$0xff]
      %v1165 = vld [vmem:[%s272 + $0x50] sm:$0xff]
      %v1166 = vld [vmem:[%s272 + $0x60] sm:$0xff]
      %v1167 = vld [vmem:[%s272 + $0x68] sm:$0xff]
      %v1168 = vld [vmem:[%s272 + $0x78] sm:$0xff]
      %v1169 = vld [vmem:[%s272 + $0x80] sm:$0xff]
      %v1170 = vld [vmem:[%s272 + $0x90] sm:$0xff]
      %v1171 = vld [vmem:[%s272 + $0x98] sm:$0xff]
      %v1172 = vld [vmem:[%s272 + $0xa8] sm:$0xff]
      %v1173 = vld [vmem:[%s272 + $0xb0] sm:$0xff]
      %v1174 = vld [vmem:[%s272 + $0xc0] sm:$0xff]
      %v1175 = vld [vmem:[%s272 + $0xc8] sm:$0xff]
      %v1176 = vld [vmem:[%s272 + $0xd8] sm:$0xff]
      %v1177 = vld [vmem:[%s272 + $0xe0] sm:$0xff]
      %v1178 = vld [vmem:[%s272 + $0xf0] sm:$0xff]
      %v1179 = vld [vmem:[%s272 + $0xf8] sm:$0xff]
      %v1180 = vld [vmem:[%s272 + $0x108] sm:$0xff]
      %v1181 = vld [vmem:[%s272 + $0x110] sm:$0xff]
      %v1182 = vld [vmem:[%s272 + $0x120] sm:$0xff]
      %v1183 = vld [vmem:[%s272 + $0x128] sm:$0xff]
      %v1184 = vld [vmem:[%s272 + $0x138] sm:$0xff]
      %v1185 = vld [vmem:[%s272 + $0x140] sm:$0xff]
      %v1186 = vld [vmem:[%s272 + $0x150] sm:$0xff]
      %v1187 = vld [vmem:[%s272 + $0x158] sm:$0xff]
      %v1188 = vld [vmem:[%s272 + $0x168] sm:$0xff]
      %v1189 = vld [vmem:[%s272 + $0x170] sm:$0xff]
      %s1190 = scalar_lea.vmem %s1, 384
      %v1191 = vld [vmem:[%s1190] sm:$0xff]
      %v1192 = vld [vmem:[%s1190 + $0x8] sm:$0xff]
      %v1193 = vld [vmem:[%s1190 + $0x10] sm:$0xff]
      %v1194 = vld [vmem:[%s1190 + $0x18] sm:$0xff]
      %v1195 = vld [vmem:[%s1190 + $0x20] sm:$0xff]
      %v1196 = vld [vmem:[%s1190 + $0x28] sm:$0xff]
      %v1197 = vld [vmem:[%s1190 + $0x30] sm:$0xff]
      %v1198 = vld [vmem:[%s1190 + $0x38] sm:$0xff]
      %v1199 = vld [vmem:[%s1190 + $0x40] sm:$0xff]
      %v1200 = vld [vmem:[%s1190 + $0x48] sm:$0xff]
      %v1201 = vld [vmem:[%s1190 + $0x50] sm:$0xff]
      %v1202 = vld [vmem:[%s1190 + $0x58] sm:$0xff]
      %v1203 = vld [vmem:[%s1190 + $0x60] sm:$0xff]
      %v1204 = vld [vmem:[%s1190 + $0x68] sm:$0xff]
      %v1205 = vld [vmem:[%s1190 + $0x70] sm:$0xff]
      %v1206 = vld [vmem:[%s1190 + $0x78] sm:$0xff]
      %1207 = vmatprep.subr.mxu0 0.0
      %1208 = vmatpush1.msra.mxu0 %v1191
      %1209 = vmatprep.subr.mxu0 0.0
      %1210 = vmatpush1.msra.mxu0 %v1192
      %1211 = vmatprep.subr.mxu0 0.0
      %1212 = vmatpush1.msra.mxu0 %v1193
      %1213 = vmatprep.subr.mxu0 0.0
      %1214 = vmatpush1.msra.mxu0 %v1194
      %1215 = vmatprep.subr.mxu0 0.0
      %1216 = vmatpush1.msra.mxu0 %v1195
      %1217 = vmatprep.subr.mxu0 0.0
      %1218 = vmatpush1.msra.mxu0 %v1196
      %1219 = vmatprep.subr.mxu0 0.0
      %1220 = vmatpush1.msra.mxu0 %v1197
      %1221 = vmatprep.subr.mxu0 0.0
      %1222 = vmatpush1.msra.mxu0 %v1198
      %1223 = vmatprep.subr.mxu0 0.0
      %1224 = vmatpush1.msra.mxu0 %v1199
      %1225 = vmatprep.subr.mxu0 0.0
      %1226 = vmatpush1.msra.mxu0 %v1200
      %1227 = vmatprep.subr.mxu0 0.0
      %1228 = vmatpush1.msra.mxu0 %v1201
      %1229 = vmatprep.subr.mxu0 0.0
      %1230 = vmatpush1.msra.mxu0 %v1202
      %1231 = vmatprep.subr.mxu0 0.0
      %1232 = vmatpush1.msra.mxu0 %v1203
      %1233 = vmatprep.subr.mxu0 0.0
      %1234 = vmatpush1.msra.mxu0 %v1204
      %1235 = vmatprep.subr.mxu0 0.0
      %1236 = vmatpush1.msra.mxu0 %v1205
      %1237 = vmatprep.subr.mxu0 0.0
      %1238 = vmatpush1.msra.mxu0 %v1206
      %1239 = vmatprep.subr.mxu0 0.0
      %1240 = vmatpush1.msra.mxu0 0.0
      %1241 = vmatprep.subr.mxu0 0.0
      %1242 = vmatpush1.msra.mxu0 0.0
      %1243 = vmatprep.subr.mxu0 0.0
      %1244 = vmatpush1.msra.mxu0 0.0
      %1245 = vmatprep.subr.mxu0 0.0
      %1246 = vmatpush1.msra.mxu0 0.0
      %1247 = vmatprep.subr.mxu0 0.0
      %1248 = vmatpush1.msra.mxu0 0.0
      %1249 = vmatprep.subr.mxu0 0.0
      %1250 = vmatpush1.msra.mxu0 0.0
      %1251 = vmatprep.subr.mxu0 0.0
      %1252 = vmatpush1.msra.mxu0 0.0
      %1253 = vmatprep.subr.mxu0 0.0
      %1254 = vmatpush1.msra.mxu0 0.0
      %1255 = vmatprep.subr.mxu0 0.0
      %1256 = vmatpush1.msra.mxu0 0.0
      %1257 = vmatprep.subr.mxu0 0.0
      %1258 = vmatpush1.msra.mxu0 0.0
      %1259 = vmatprep.subr.mxu0 0.0
      %1260 = vmatpush1.msra.mxu0 0.0
      %1261 = vmatprep.subr.mxu0 0.0
      %1262 = vmatpush1.msra.mxu0 0.0
      %1263 = vmatprep.subr.mxu0 0.0
      %1264 = vmatpush1.msra.mxu0 0.0
      %1265 = vmatprep.subr.mxu0 0.0
      %1266 = vmatpush1.msra.mxu0 0.0
      %1267 = vmatprep.subr.mxu0 0.0
      %1268 = vmatpush1.msra.mxu0 0.0
      %1269 = vmatprep.subr.mxu0 0.0
      %1270 = vmatpush1.msra.mxu0 0.0
      %1271 = vmatprep.mubr.f32.mxu0 0.0
      %1272 = vmatmul.mubr.f32.gmra.mrb[0].mxu0 %v1158
      %v1273 = vpop.f32.mrb[0].mxu0
      %v1274 = vadd.f32 0.0, %v1273
      %v1275 = vpop.f32.mrb[0].mxu0
      %1276 = vmatprep.mubr.f32.mxu0 0.0
      %1277 = vmatmul.mubr.f32.gmra.mrb[0].mxu0 %v1159
      %v1278 = vpop.f32.mrb[0].mxu0
      %v1279 = vadd.f32 0.0, %v1278
      %v1280 = vpop.f32.mrb[0].mxu0
      %1281 = vmatprep.mubr.f32.mxu0 0.0
      %1282 = vmatmul.mubr.f32.gmra.mrb[0].mxu0 %v1160
      %v1283 = vpop.f32.mrb[0].mxu0
      %v1284 = vadd.f32 0.0, %v1283
      %v1285 = vpop.f32.mrb[0].mxu0
      %1286 = vmatprep.mubr.f32.mxu0 0.0
      %1287 = vmatmul.mubr.f32.gmra.mrb[0].mxu0 %v1161
      %v1288 = vpop.f32.mrb[0].mxu0
      %v1289 = vadd.f32 0.0, %v1288
      %v1290 = vpop.f32.mrb[0].mxu0
      %1291 = vmatprep.mubr.f32.mxu0 0.0
      %1292 = vmatmul.mubr.f32.gmra.mrb[0].mxu0 %v1162
      %v1293 = vpop.f32.mrb[0].mxu0
      %v1294 = vadd.f32 0.0, %v1293
      %v1295 = vpop.f32.mrb[0].mxu0
      %1296 = vmatprep.mubr.f32.mxu0 0.0
      %1297 = vmatmul.mubr.f32.gmra.mrb[0].mxu0 %v1163
      %v1298 = vpop.f32.mrb[0].mxu0
      %v1299 = vadd.f32 0.0, %v1298
      %v1300 = vpop.f32.mrb[0].mxu0
      %1301 = vmatprep.mubr.f32.mxu0 0.0
      %1302 = vmatmul.mubr.f32.gmra.mrb[0].mxu0 %v1164
      %v1303 = vpop.f32.mrb[0].mxu0
      %v1304 = vadd.f32 0.0, %v1303
      %v1305 = vpop.f32.mrb[0].mxu0
      %1306 = vmatprep.mubr.f32.mxu0 0.0
      %1307 = vmatmul.mubr.f32.gmra.mrb[0].mxu0 %v1165
      %v1308 = vpop.f32.mrb[0].mxu0
      %v1309 = vadd.f32 0.0, %v1308
      %v1310 = vpop.f32.mrb[0].mxu0
      %1311 = vmatprep.mubr.f32.mxu0 0.0
      %1312 = vmatmul.mubr.f32.gmra.mrb[0].mxu0 %v1166
      %v1313 = vpop.f32.mrb[0].mxu0
      %v1314 = vadd.f32 0.0, %v1313
      %v1315 = vpop.f32.mrb[0].mxu0
      %1316 = vmatprep.mubr.f32.mxu0 0.0
      %1317 = vmatmul.mubr.f32.gmra.mrb[0].mxu0 %v1167
      %v1318 = vpop.f32.mrb[0].mxu0
      %v1319 = vadd.f32 0.0, %v1318
      %v1320 = vpop.f32.mrb[0].mxu0
      %1321 = vmatprep.mubr.f32.mxu0 0.0
      %1322 = vmatmul.mubr.f32.gmra.mrb[0].mxu0 %v1168
      %v1323 = vpop.f32.mrb[0].mxu0
      %v1324 = vadd.f32 0.0, %v1323
      %v1325 = vpop.f32.mrb[0].mxu0
      %1326 = vmatprep.mubr.f32.mxu0 0.0
      %1327 = vmatmul.mubr.f32.gmra.mrb[0].mxu0 %v1169
      %v1328 = vpop.f32.mrb[0].mxu0
      %v1329 = vadd.f32 0.0, %v1328
      %v1330 = vpop.f32.mrb[0].mxu0
      %1331 = vmatprep.mubr.f32.mxu0 0.0
      %1332 = vmatmul.mubr.f32.gmra.mrb[0].mxu0 %v1170
      %v1333 = vpop.f32.mrb[0].mxu0
      %v1334 = vadd.f32 0.0, %v1333
      %v1335 = vpop.f32.mrb[0].mxu0
      %1336 = vmatprep.mubr.f32.mxu0 0.0
      %1337 = vmatmul.mubr.f32.gmra.mrb[0].mxu0 %v1171
      %v1338 = vpop.f32.mrb[0].mxu0
      %v1339 = vadd.f32 0.0, %v1338
      %v1340 = vpop.f32.mrb[0].mxu0
      %1341 = vmatprep.mubr.f32.mxu0 0.0
      %1342 = vmatmul.mubr.f32.gmra.mrb[0].mxu0 %v1172
      %v1343 = vpop.f32.mrb[0].mxu0
      %v1344 = vadd.f32 0.0, %v1343
      %v1345 = vpop.f32.mrb[0].mxu0
      %1346 = vmatprep.mubr.f32.mxu0 0.0
      %1347 = vmatmul.mubr.f32.gmra.mrb[0].mxu0 %v1173
      %v1348 = vpop.f32.mrb[0].mxu0
      %v1349 = vadd.f32 0.0, %v1348
      %v1350 = vpop.f32.mrb[0].mxu0
      %1351 = vmatprep.mubr.f32.mxu0 0.0
      %1352 = vmatmul.mubr.f32.gmra.mrb[0].mxu0 %v1174
      %v1353 = vpop.f32.mrb[0].mxu0
      %v1354 = vadd.f32 0.0, %v1353
      %v1355 = vpop.f32.mrb[0].mxu0
      %1356 = vmatprep.mubr.f32.mxu0 0.0
      %1357 = vmatmul.mubr.f32.gmra.mrb[0].mxu0 %v1175
      %v1358 = vpop.f32.mrb[0].mxu0
      %v1359 = vadd.f32 0.0, %v1358
      %v1360 = vpop.f32.mrb[0].mxu0
      %1361 = vmatprep.mubr.f32.mxu0 0.0
      %1362 = vmatmul.mubr.f32.gmra.mrb[0].mxu0 %v1176
      %v1363 = vpop.f32.mrb[0].mxu0
      %v1364 = vadd.f32 0.0, %v1363
      %v1365 = vpop.f32.mrb[0].mxu0
      %1366 = vmatprep.mubr.f32.mxu0 0.0
      %1367 = vmatmul.mubr.f32.gmra.mrb[0].mxu0 %v1177
      %v1368 = vpop.f32.mrb[0].mxu0
      %v1369 = vadd.f32 0.0, %v1368
      %v1370 = vpop.f32.mrb[0].mxu0
      %1371 = vmatprep.mubr.f32.mxu0 0.0
      %1372 = vmatmul.mubr.f32.gmra.mrb[0].mxu0 %v1178
      %v1373 = vpop.f32.mrb[0].mxu0
      %v1374 = vadd.f32 0.0, %v1373
      %v1375 = vpop.f32.mrb[0].mxu0
      %1376 = vmatprep.mubr.f32.mxu0 0.0
      %1377 = vmatmul.mubr.f32.gmra.mrb[0].mxu0 %v1179
      %v1378 = vpop.f32.mrb[0].mxu0
      %v1379 = vadd.f32 0.0, %v1378
      %v1380 = vpop.f32.mrb[0].mxu0
      %1381 = vmatprep.mubr.f32.mxu0 0.0
      %1382 = vmatmul.mubr.f32.gmra.mrb[0].mxu0 %v1180
      %v1383 = vpop.f32.mrb[0].mxu0
      %v1384 = vadd.f32 0.0, %v1383
      %v1385 = vpop.f32.mrb[0].mxu0
      %1386 = vmatprep.mubr.f32.mxu0 0.0
      %1387 = vmatmul.mubr.f32.gmra.mrb[0].mxu0 %v1181
      %v1388 = vpop.f32.mrb[0].mxu0
      %v1389 = vadd.f32 0.0, %v1388
      %v1390 = vpop.f32.mrb[0].mxu0
      %1391 = vmatprep.mubr.f32.mxu0 0.0
      %1392 = vmatmul.mubr.f32.gmra.mrb[0].mxu0 %v1182
      %v1393 = vpop.f32.mrb[0].mxu0
      %v1394 = vadd.f32 0.0, %v1393
      %v1395 = vpop.f32.mrb[0].mxu0
      %1396 = vmatprep.mubr.f32.mxu0 0.0
      %1397 = vmatmul.mubr.f32.gmra.mrb[0].mxu0 %v1183
      %v1398 = vpop.f32.mrb[0].mxu0
      %v1399 = vadd.f32 0.0, %v1398
      %v1400 = vpop.f32.mrb[0].mxu0
      %1401 = vmatprep.mubr.f32.mxu0 0.0
      %1402 = vmatmul.mubr.f32.gmra.mrb[0].mxu0 %v1184
      %v1403 = vpop.f32.mrb[0].mxu0
      %v1404 = vadd.f32 0.0, %v1403
      %v1405 = vpop.f32.mrb[0].mxu0
      %1406 = vmatprep.mubr.f32.mxu0 0.0
      %1407 = vmatmul.mubr.f32.gmra.mrb[0].mxu0 %v1185
      %v1408 = vpop.f32.mrb[0].mxu0
      %v1409 = vadd.f32 0.0, %v1408
      %v1410 = vpop.f32.mrb[0].mxu0
      %1411 = vmatprep.mubr.f32.mxu0 0.0
      %1412 = vmatmul.mubr.f32.gmra.mrb[0].mxu0 %v1186
      %v1413 = vpop.f32.mrb[0].mxu0
      %v1414 = vadd.f32 0.0, %v1413
      %v1415 = vpop.f32.mrb[0].mxu0
      %1416 = vmatprep.mubr.f32.mxu0 0.0
      %1417 = vmatmul.mubr.f32.gmra.mrb[0].mxu0 %v1187
      %v1418 = vpop.f32.mrb[0].mxu0
      %v1419 = vadd.f32 0.0, %v1418
      %v1420 = vpop.f32.mrb[0].mxu0
      %1421 = vmatprep.mubr.f32.mxu0 0.0
      %1422 = vmatmul.mubr.f32.gmra.mrb[0].mxu0 %v1188
      %v1423 = vpop.f32.mrb[0].mxu0
      %v1424 = vadd.f32 0.0, %v1423
      %v1425 = vpop.f32.mrb[0].mxu0
      %1426 = vmatprep.mubr.f32.mxu0 0.0
      %1427 = vmatmul.mubr.f32.gmra.mrb[0].mxu0 %v1189
      %v1428 = vpop.f32.mrb[0].mxu0
      %v1429 = vadd.f32 0.0, %v1428
      %v1430 = vpop.f32.mrb[0].mxu0
      %1431 = vdwg.mxu0
      %v1432 = vadd.f32 %v1126, %v1274
      %v1433 = vadd.f32 %v1127, %v1279
      %v1434 = vadd.f32 %v1128, %v1284
      %v1435 = vadd.f32 %v1129, %v1289
      %v1436 = vadd.f32 %v1130, %v1294
      %v1437 = vadd.f32 %v1131, %v1299
      %v1438 = vadd.f32 %v1132, %v1304
      %v1439 = vadd.f32 %v1133, %v1309
      %v1440 = vadd.f32 %v1134, %v1314
      %v1441 = vadd.f32 %v1135, %v1319
      %v1442 = vadd.f32 %v1136, %v1324
      %v1443 = vadd.f32 %v1137, %v1329
      %v1444 = vadd.f32 %v1138, %v1334
      %v1445 = vadd.f32 %v1139, %v1339
      %v1446 = vadd.f32 %v1140, %v1344
      %v1447 = vadd.f32 %v1141, %v1349
      %v1448 = vadd.f32 %v1142, %v1354
      %v1449 = vadd.f32 %v1143, %v1359
      %v1450 = vadd.f32 %v1144, %v1364
      %v1451 = vadd.f32 %v1145, %v1369
      %v1452 = vadd.f32 %v1146, %v1374
      %v1453 = vadd.f32 %v1147, %v1379
      %v1454 = vadd.f32 %v1148, %v1384
      %v1455 = vadd.f32 %v1149, %v1389
      %v1456 = vadd.f32 %v1150, %v1394
      %v1457 = vadd.f32 %v1151, %v1399
      %v1458 = vadd.f32 %v1152, %v1404
      %v1459 = vadd.f32 %v1153, %v1409
      %v1460 = vadd.f32 %v1154, %v1414
      %v1461 = vadd.f32 %v1155, %v1419
      %v1462 = vadd.f32 %v1156, %v1424
      %v1463 = vadd.f32 %v1157, %v1429
      %v1464 = vld [vmem:[%s272 + $0x1] sm:$0xff]
      %v1465 = vld [vmem:[%s272 + $0x9] sm:$0xff]
      %v1466 = vld [vmem:[%s272 + $0x19] sm:$0xff]
      %v1467 = vld [vmem:[%s272 + $0x21] sm:$0xff]
      %v1468 = vld [vmem:[%s272 + $0x31] sm:$0xff]
      %v1469 = vld [vmem:[%s272 + $0x39] sm:$0xff]
      %v1470 = vld [vmem:[%s272 + $0x49] sm:$0xff]
      %v1471 = vld [vmem:[%s272 + $0x51] sm:$0xff]
      %v1472 = vld [vmem:[%s272 + $0x61] sm:$0xff]
      %v1473 = vld [vmem:[%s272 + $0x69] sm:$0xff]
      %v1474 = vld [vmem:[%s272 + $0x79] sm:$0xff]
      %v1475 = vld [vmem:[%s272 + $0x81] sm:$0xff]
      %v1476 = vld [vmem:[%s272 + $0x91] sm:$0xff]
      %v1477 = vld [vmem:[%s272 + $0x99] sm:$0xff]
      %v1478 = vld [vmem:[%s272 + $0xa9] sm:$0xff]
      %v1479 = vld [vmem:[%s272 + $0xb1] sm:$0xff]
      %v1480 = vld [vmem:[%s272 + $0xc1] sm:$0xff]
      %v1481 = vld [vmem:[%s272 + $0xc9] sm:$0xff]
      %v1482 = vld [vmem:[%s272 + $0xd9] sm:$0xff]
      %v1483 = vld [vmem:[%s272 + $0xe1] sm:$0xff]
      %v1484 = vld [vmem:[%s272 + $0xf1] sm:$0xff]
      %v1485 = vld [vmem:[%s272 + $0xf9] sm:$0xff]
      %v1486 = vld [vmem:[%s272 + $0x109] sm:$0xff]
      %v1487 = vld [vmem:[%s272 + $0x111] sm:$0xff]
      %v1488 = vld [vmem:[%s272 + $0x121] sm:$0xff]
      %v1489 = vld [vmem:[%s272 + $0x129] sm:$0xff]
      %v1490 = vld [vmem:[%s272 + $0x139] sm:$0xff]
      %v1491 = vld [vmem:[%s272 + $0x141] sm:$0xff]
      %v1492 = vld [vmem:[%s272 + $0x151] sm:$0xff]
      %v1493 = vld [vmem:[%s272 + $0x159] sm:$0xff]
      %v1494 = vld [vmem:[%s272 + $0x169] sm:$0xff]
      %v1495 = vld [vmem:[%s272 + $0x171] sm:$0xff]
      %s1496 = scalar_lea.vmem %s1, 512
      %v1497 = vld [vmem:[%s1496] sm:$0xff]
      %v1498 = vld [vmem:[%s1496 + $0x8] sm:$0xff]
      %v1499 = vld [vmem:[%s1496 + $0x10] sm:$0xff]
      %v1500 = vld [vmem:[%s1496 + $0x18] sm:$0xff]
      %v1501 = vld [vmem:[%s1496 + $0x20] sm:$0xff]
      %v1502 = vld [vmem:[%s1496 + $0x28] sm:$0xff]
      %v1503 = vld [vmem:[%s1496 + $0x30] sm:$0xff]
      %v1504 = vld [vmem:[%s1496 + $0x38] sm:$0xff]
      %v1505 = vld [vmem:[%s1496 + $0x40] sm:$0xff]
      %v1506 = vld [vmem:[%s1496 + $0x48] sm:$0xff]
      %v1507 = vld [vmem:[%s1496 + $0x50] sm:$0xff]
      %v1508 = vld [vmem:[%s1496 + $0x58] sm:$0xff]
      %v1509 = vld [vmem:[%s1496 + $0x60] sm:$0xff]
      %v1510 = vld [vmem:[%s1496 + $0x68] sm:$0xff]
      %v1511 = vld [vmem:[%s1496 + $0x70] sm:$0xff]
      %v1512 = vld [vmem:[%s1496 + $0x78] sm:$0xff]
      %1513 = vmatprep.subr.mxu0 0.0
      %1514 = vmatpush1.msra.mxu0 %v1497
      %1515 = vmatprep.subr.mxu0 0.0
      %1516 = vmatpush1.msra.mxu0 %v1498
      %1517 = vmatprep.subr.mxu0 0.0
      %1518 = vmatpush1.msra.mxu0 %v1499
      %1519 = vmatprep.subr.mxu0 0.0
      %1520 = vmatpush1.msra.mxu0 %v1500
      %1521 = vmatprep.subr.mxu0 0.0
      %1522 = vmatpush1.msra.mxu0 %v1501
      %1523 = vmatprep.subr.mxu0 0.0
      %1524 = vmatpush1.msra.mxu0 %v1502
      %1525 = vmatprep.subr.mxu0 0.0
      %1526 = vmatpush1.msra.mxu0 %v1503
      %1527 = vmatprep.subr.mxu0 0.0
      %1528 = vmatpush1.msra.mxu0 %v1504
      %1529 = vmatprep.subr.mxu0 0.0
      %1530 = vmatpush1.msra.mxu0 %v1505
      %1531 = vmatprep.subr.mxu0 0.0
      %1532 = vmatpush1.msra.mxu0 %v1506
      %1533 = vmatprep.subr.mxu0 0.0
      %1534 = vmatpush1.msra.mxu0 %v1507
      %1535 = vmatprep.subr.mxu0 0.0
      %1536 = vmatpush1.msra.mxu0 %v1508
      %1537 = vmatprep.subr.mxu0 0.0
      %1538 = vmatpush1.msra.mxu0 %v1509
      %1539 = vmatprep.subr.mxu0 0.0
      %1540 = vmatpush1.msra.mxu0 %v1510
      %1541 = vmatprep.subr.mxu0 0.0
      %1542 = vmatpush1.msra.mxu0 %v1511
      %1543 = vmatprep.subr.mxu0 0.0
      %1544 = vmatpush1.msra.mxu0 %v1512
      %1545 = vmatprep.subr.mxu0 0.0
      %1546 = vmatpush1.msra.mxu0 0.0
      %1547 = vmatprep.subr.mxu0 0.0
      %1548 = vmatpush1.msra.mxu0 0.0
      %1549 = vmatprep.subr.mxu0 0.0
      %1550 = vmatpush1.msra.mxu0 0.0
      %1551 = vmatprep.subr.mxu0 0.0
      %1552 = vmatpush1.msra.mxu0 0.0
      %1553 = vmatprep.subr.mxu0 0.0
      %1554 = vmatpush1.msra.mxu0 0.0
      %1555 = vmatprep.subr.mxu0 0.0
      %1556 = vmatpush1.msra.mxu0 0.0
      %1557 = vmatprep.subr.mxu0 0.0
      %1558 = vmatpush1.msra.mxu0 0.0
      %1559 = vmatprep.subr.mxu0 0.0
      %1560 = vmatpush1.msra.mxu0 0.0
      %1561 = vmatprep.subr.mxu0 0.0
      %1562 = vmatpush1.msra.mxu0 0.0
      %1563 = vmatprep.subr.mxu0 0.0
      %1564 = vmatpush1.msra.mxu0 0.0
      %1565 = vmatprep.subr.mxu0 0.0
      %1566 = vmatpush1.msra.mxu0 0.0
      %1567 = vmatprep.subr.mxu0 0.0
      %1568 = vmatpush1.msra.mxu0 0.0
      %1569 = vmatprep.subr.mxu0 0.0
      %1570 = vmatpush1.msra.mxu0 0.0
      %1571 = vmatprep.subr.mxu0 0.0
      %1572 = vmatpush1.msra.mxu0 0.0
      %1573 = vmatprep.subr.mxu0 0.0
      %1574 = vmatpush1.msra.mxu0 0.0
      %1575 = vmatprep.subr.mxu0 0.0
      %1576 = vmatpush1.msra.mxu0 0.0
      %1577 = vmatprep.mubr.f32.mxu0 0.0
      %1578 = vmatmul.mubr.f32.gmra.mrb[0].mxu0 %v1464
      %v1579 = vpop.f32.mrb[0].mxu0
      %v1580 = vadd.f32 0.0, %v1579
      %v1581 = vpop.f32.mrb[0].mxu0
      %1582 = vmatprep.mubr.f32.mxu0 0.0
      %1583 = vmatmul.mubr.f32.gmra.mrb[0].mxu0 %v1465
      %v1584 = vpop.f32.mrb[0].mxu0
      %v1585 = vadd.f32 0.0, %v1584
      %v1586 = vpop.f32.mrb[0].mxu0
      %1587 = vmatprep.mubr.f32.mxu0 0.0
      %1588 = vmatmul.mubr.f32.gmra.mrb[0].mxu0 %v1466
      %v1589 = vpop.f32.mrb[0].mxu0
      %v1590 = vadd.f32 0.0, %v1589
      %v1591 = vpop.f32.mrb[0].mxu0
      %1592 = vmatprep.mubr.f32.mxu0 0.0
      %1593 = vmatmul.mubr.f32.gmra.mrb[0].mxu0 %v1467
      %v1594 = vpop.f32.mrb[0].mxu0
      %v1595 = vadd.f32 0.0, %v1594
      %v1596 = vpop.f32.mrb[0].mxu0
      %1597 = vmatprep.mubr.f32.mxu0 0.0
      %1598 = vmatmul.mubr.f32.gmra.mrb[0].mxu0 %v1468
      %v1599 = vpop.f32.mrb[0].mxu0
      %v1600 = vadd.f32 0.0, %v1599
      %v1601 = vpop.f32.mrb[0].mxu0
      %1602 = vmatprep.mubr.f32.mxu0 0.0
      %1603 = vmatmul.mubr.f32.gmra.mrb[0].mxu0 %v1469
      %v1604 = vpop.f32.mrb[0].mxu0
      %v1605 = vadd.f32 0.0, %v1604
      %v1606 = vpop.f32.mrb[0].mxu0
      %1607 = vmatprep.mubr.f32.mxu0 0.0
      %1608 = vmatmul.mubr.f32.gmra.mrb[0].mxu0 %v1470
      %v1609 = vpop.f32.mrb[0].mxu0
      %v1610 = vadd.f32 0.0, %v1609
      %v1611 = vpop.f32.mrb[0].mxu0
      %1612 = vmatprep.mubr.f32.mxu0 0.0
      %1613 = vmatmul.mubr.f32.gmra.mrb[0].mxu0 %v1471
      %v1614 = vpop.f32.mrb[0].mxu0
      %v1615 = vadd.f32 0.0, %v1614
      %v1616 = vpop.f32.mrb[0].mxu0
      %1617 = vmatprep.mubr.f32.mxu0 0.0
      %1618 = vmatmul.mubr.f32.gmra.mrb[0].mxu0 %v1472
      %v1619 = vpop.f32.mrb[0].mxu0
      %v1620 = vadd.f32 0.0, %v1619
      %v1621 = vpop.f32.mrb[0].mxu0
      %1622 = vmatprep.mubr.f32.mxu0 0.0
      %1623 = vmatmul.mubr.f32.gmra.mrb[0].mxu0 %v1473
      %v1624 = vpop.f32.mrb[0].mxu0
      %v1625 = vadd.f32 0.0, %v1624
      %v1626 = vpop.f32.mrb[0].mxu0
      %1627 = vmatprep.mubr.f32.mxu0 0.0
      %1628 = vmatmul.mubr.f32.gmra.mrb[0].mxu0 %v1474
      %v1629 = vpop.f32.mrb[0].mxu0
      %v1630 = vadd.f32 0.0, %v1629
      %v1631 = vpop.f32.mrb[0].mxu0
      %1632 = vmatprep.mubr.f32.mxu0 0.0
      %1633 = vmatmul.mubr.f32.gmra.mrb[0].mxu0 %v1475
      %v1634 = vpop.f32.mrb[0].mxu0
      %v1635 = vadd.f32 0.0, %v1634
      %v1636 = vpop.f32.mrb[0].mxu0
      %1637 = vmatprep.mubr.f32.mxu0 0.0
      %1638 = vmatmul.mubr.f32.gmra.mrb[0].mxu0 %v1476
      %v1639 = vpop.f32.mrb[0].mxu0
      %v1640 = vadd.f32 0.0, %v1639
      %v1641 = vpop.f32.mrb[0].mxu0
      %1642 = vmatprep.mubr.f32.mxu0 0.0
      %1643 = vmatmul.mubr.f32.gmra.mrb[0].mxu0 %v1477
      %v1644 = vpop.f32.mrb[0].mxu0
      %v1645 = vadd.f32 0.0, %v1644
      %v1646 = vpop.f32.mrb[0].mxu0
      %1647 = vmatprep.mubr.f32.mxu0 0.0
      %1648 = vmatmul.mubr.f32.gmra.mrb[0].mxu0 %v1478
      %v1649 = vpop.f32.mrb[0].mxu0
      %v1650 = vadd.f32 0.0, %v1649
      %v1651 = vpop.f32.mrb[0].mxu0
      %1652 = vmatprep.mubr.f32.mxu0 0.0
      %1653 = vmatmul.mubr.f32.gmra.mrb[0].mxu0 %v1479
      %v1654 = vpop.f32.mrb[0].mxu0
      %v1655 = vadd.f32 0.0, %v1654
      %v1656 = vpop.f32.mrb[0].mxu0
      %1657 = vmatprep.mubr.f32.mxu0 0.0
      %1658 = vmatmul.mubr.f32.gmra.mrb[0].mxu0 %v1480
      %v1659 = vpop.f32.mrb[0].mxu0
      %v1660 = vadd.f32 0.0, %v1659
      %v1661 = vpop.f32.mrb[0].mxu0
      %1662 = vmatprep.mubr.f32.mxu0 0.0
      %1663 = vmatmul.mubr.f32.gmra.mrb[0].mxu0 %v1481
      %v1664 = vpop.f32.mrb[0].mxu0
      %v1665 = vadd.f32 0.0, %v1664
      %v1666 = vpop.f32.mrb[0].mxu0
      %1667 = vmatprep.mubr.f32.mxu0 0.0
      %1668 = vmatmul.mubr.f32.gmra.mrb[0].mxu0 %v1482
      %v1669 = vpop.f32.mrb[0].mxu0
      %v1670 = vadd.f32 0.0, %v1669
      %v1671 = vpop.f32.mrb[0].mxu0
      %1672 = vmatprep.mubr.f32.mxu0 0.0
      %1673 = vmatmul.mubr.f32.gmra.mrb[0].mxu0 %v1483
      %v1674 = vpop.f32.mrb[0].mxu0
      %v1675 = vadd.f32 0.0, %v1674
      %v1676 = vpop.f32.mrb[0].mxu0
      %1677 = vmatprep.mubr.f32.mxu0 0.0
      %1678 = vmatmul.mubr.f32.gmra.mrb[0].mxu0 %v1484
      %v1679 = vpop.f32.mrb[0].mxu0
      %v1680 = vadd.f32 0.0, %v1679
      %v1681 = vpop.f32.mrb[0].mxu0
      %1682 = vmatprep.mubr.f32.mxu0 0.0
      %1683 = vmatmul.mubr.f32.gmra.mrb[0].mxu0 %v1485
      %v1684 = vpop.f32.mrb[0].mxu0
      %v1685 = vadd.f32 0.0, %v1684
      %v1686 = vpop.f32.mrb[0].mxu0
      %1687 = vmatprep.mubr.f32.mxu0 0.0
      %1688 = vmatmul.mubr.f32.gmra.mrb[0].mxu0 %v1486
      %v1689 = vpop.f32.mrb[0].mxu0
      %v1690 = vadd.f32 0.0, %v1689
      %v1691 = vpop.f32.mrb[0].mxu0
      %1692 = vmatprep.mubr.f32.mxu0 0.0
      %1693 = vmatmul.mubr.f32.gmra.mrb[0].mxu0 %v1487
      %v1694 = vpop.f32.mrb[0].mxu0
      %v1695 = vadd.f32 0.0, %v1694
      %v1696 = vpop.f32.mrb[0].mxu0
      %1697 = vmatprep.mubr.f32.mxu0 0.0
      %1698 = vmatmul.mubr.f32.gmra.mrb[0].mxu0 %v1488
      %v1699 = vpop.f32.mrb[0].mxu0
      %v1700 = vadd.f32 0.0, %v1699
      %v1701 = vpop.f32.mrb[0].mxu0
      %1702 = vmatprep.mubr.f32.mxu0 0.0
      %1703 = vmatmul.mubr.f32.gmra.mrb[0].mxu0 %v1489
      %v1704 = vpop.f32.mrb[0].mxu0
      %v1705 = vadd.f32 0.0, %v1704
      %v1706 = vpop.f32.mrb[0].mxu0
      %1707 = vmatprep.mubr.f32.mxu0 0.0
      %1708 = vmatmul.mubr.f32.gmra.mrb[0].mxu0 %v1490
      %v1709 = vpop.f32.mrb[0].mxu0
      %v1710 = vadd.f32 0.0, %v1709
      %v1711 = vpop.f32.mrb[0].mxu0
      %1712 = vmatprep.mubr.f32.mxu0 0.0
      %1713 = vmatmul.mubr.f32.gmra.mrb[0].mxu0 %v1491
      %v1714 = vpop.f32.mrb[0].mxu0
      %v1715 = vadd.f32 0.0, %v1714
      %v1716 = vpop.f32.mrb[0].mxu0
      %1717 = vmatprep.mubr.f32.mxu0 0.0
      %1718 = vmatmul.mubr.f32.gmra.mrb[0].mxu0 %v1492
      %v1719 = vpop.f32.mrb[0].mxu0
      %v1720 = vadd.f32 0.0, %v1719
      %v1721 = vpop.f32.mrb[0].mxu0
      %1722 = vmatprep.mubr.f32.mxu0 0.0
      %1723 = vmatmul.mubr.f32.gmra.mrb[0].mxu0 %v1493
      %v1724 = vpop.f32.mrb[0].mxu0
      %v1725 = vadd.f32 0.0, %v1724
      %v1726 = vpop.f32.mrb[0].mxu0
      %1727 = vmatprep.mubr.f32.mxu0 0.0
      %1728 = vmatmul.mubr.f32.gmra.mrb[0].mxu0 %v1494
      %v1729 = vpop.f32.mrb[0].mxu0
      %v1730 = vadd.f32 0.0, %v1729
      %v1731 = vpop.f32.mrb[0].mxu0
      %1732 = vmatprep.mubr.f32.mxu0 0.0
      %1733 = vmatmul.mubr.f32.gmra.mrb[0].mxu0 %v1495
      %v1734 = vpop.f32.mrb[0].mxu0
      %v1735 = vadd.f32 0.0, %v1734
      %v1736 = vpop.f32.mrb[0].mxu0
      %1737 = vdwg.mxu0
      %v1738 = vadd.f32 %v1432, %v1580
      %v1739 = vadd.f32 %v1433, %v1585
      %v1740 = vadd.f32 %v1434, %v1590
      %v1741 = vadd.f32 %v1435, %v1595
      %v1742 = vadd.f32 %v1436, %v1600
      %v1743 = vadd.f32 %v1437, %v1605
      %v1744 = vadd.f32 %v1438, %v1610
      %v1745 = vadd.f32 %v1439, %v1615
      %v1746 = vadd.f32 %v1440, %v1620
      %v1747 = vadd.f32 %v1441, %v1625
      %v1748 = vadd.f32 %v1442, %v1630
      %v1749 = vadd.f32 %v1443, %v1635
      %v1750 = vadd.f32 %v1444, %v1640
      %v1751 = vadd.f32 %v1445, %v1645
      %v1752 = vadd.f32 %v1446, %v1650
      %v1753 = vadd.f32 %v1447, %v1655
      %v1754 = vadd.f32 %v1448, %v1660
      %v1755 = vadd.f32 %v1449, %v1665
      %v1756 = vadd.f32 %v1450, %v1670
      %v1757 = vadd.f32 %v1451, %v1675
      %v1758 = vadd.f32 %v1452, %v1680
      %v1759 = vadd.f32 %v1453, %v1685
      %v1760 = vadd.f32 %v1454, %v1690
      %v1761 = vadd.f32 %v1455, %v1695
      %v1762 = vadd.f32 %v1456, %v1700
      %v1763 = vadd.f32 %v1457, %v1705
      %v1764 = vadd.f32 %v1458, %v1710
      %v1765 = vadd.f32 %v1459, %v1715
      %v1766 = vadd.f32 %v1460, %v1720
      %v1767 = vadd.f32 %v1461, %v1725
      %v1768 = vadd.f32 %v1462, %v1730
      %v1769 = vadd.f32 %v1463, %v1735
      %v1770 = vld [vmem:[%s272 + $0x2] sm:$0xff]
      %v1771 = vld [vmem:[%s272 + $0xa] sm:$0xff]
      %v1772 = vld [vmem:[%s272 + $0x1a] sm:$0xff]
      %v1773 = vld [vmem:[%s272 + $0x22] sm:$0xff]
      %v1774 = vld [vmem:[%s272 + $0x32] sm:$0xff]
      %v1775 = vld [vmem:[%s272 + $0x3a] sm:$0xff]
      %v1776 = vld [vmem:[%s272 + $0x4a] sm:$0xff]
      %v1777 = vld [vmem:[%s272 + $0x52] sm:$0xff]
      %v1778 = vld [vmem:[%s272 + $0x62] sm:$0xff]
      %v1779 = vld [vmem:[%s272 + $0x6a] sm:$0xff]
      %v1780 = vld [vmem:[%s272 + $0x7a] sm:$0xff]
      %v1781 = vld [vmem:[%s272 + $0x82] sm:$0xff]
      %v1782 = vld [vmem:[%s272 + $0x92] sm:$0xff]
      %v1783 = vld [vmem:[%s272 + $0x9a] sm:$0xff]
      %v1784 = vld [vmem:[%s272 + $0xaa] sm:$0xff]
      %v1785 = vld [vmem:[%s272 + $0xb2] sm:$0xff]
      %v1786 = vld [vmem:[%s272 + $0xc2] sm:$0xff]
      %v1787 = vld [vmem:[%s272 + $0xca] sm:$0xff]
      %v1788 = vld [vmem:[%s272 + $0xda] sm:$0xff]
      %v1789 = vld [vmem:[%s272 + $0xe2] sm:$0xff]
      %v1790 = vld [vmem:[%s272 + $0xf2] sm:$0xff]
      %v1791 = vld [vmem:[%s272 + $0xfa] sm:$0xff]
      %v1792 = vld [vmem:[%s272 + $0x10a] sm:$0xff]
      %v1793 = vld [vmem:[%s272 + $0x112] sm:$0xff]
      %v1794 = vld [vmem:[%s272 + $0x122] sm:$0xff]
      %v1795 = vld [vmem:[%s272 + $0x12a] sm:$0xff]
      %v1796 = vld [vmem:[%s272 + $0x13a] sm:$0xff]
      %v1797 = vld [vmem:[%s272 + $0x142] sm:$0xff]
      %v1798 = vld [vmem:[%s272 + $0x152] sm:$0xff]
      %v1799 = vld [vmem:[%s272 + $0x15a] sm:$0xff]
      %v1800 = vld [vmem:[%s272 + $0x16a] sm:$0xff]
      %v1801 = vld [vmem:[%s272 + $0x172] sm:$0xff]
      %s1802 = scalar_lea.vmem %s1, 640
      %v1803 = vld [vmem:[%s1802] sm:$0xff]
      %v1804 = vld [vmem:[%s1802 + $0x8] sm:$0xff]
      %v1805 = vld [vmem:[%s1802 + $0x10] sm:$0xff]
      %v1806 = vld [vmem:[%s1802 + $0x18] sm:$0xff]
      %v1807 = vld [vmem:[%s1802 + $0x20] sm:$0xff]
      %v1808 = vld [vmem:[%s1802 + $0x28] sm:$0xff]
      %v1809 = vld [vmem:[%s1802 + $0x30] sm:$0xff]
      %v1810 = vld [vmem:[%s1802 + $0x38] sm:$0xff]
      %v1811 = vld [vmem:[%s1802 + $0x40] sm:$0xff]
      %v1812 = vld [vmem:[%s1802 + $0x48] sm:$0xff]
      %v1813 = vld [vmem:[%s1802 + $0x50] sm:$0xff]
      %v1814 = vld [vmem:[%s1802 + $0x58] sm:$0xff]
      %v1815 = vld [vmem:[%s1802 + $0x60] sm:$0xff]
      %v1816 = vld [vmem:[%s1802 + $0x68] sm:$0xff]
      %v1817 = vld [vmem:[%s1802 + $0x70] sm:$0xff]
      %v1818 = vld [vmem:[%s1802 + $0x78] sm:$0xff]
      %1819 = vmatprep.subr.mxu0 0.0
      %1820 = vmatpush1.msra.mxu0 %v1803
      %1821 = vmatprep.subr.mxu0 0.0
      %1822 = vmatpush1.msra.mxu0 %v1804
      %1823 = vmatprep.subr.mxu0 0.0
      %1824 = vmatpush1.msra.mxu0 %v1805
      %1825 = vmatprep.subr.mxu0 0.0
      %1826 = vmatpush1.msra.mxu0 %v1806
      %1827 = vmatprep.subr.mxu0 0.0
      %1828 = vmatpush1.msra.mxu0 %v1807
      %1829 = vmatprep.subr.mxu0 0.0
      %1830 = vmatpush1.msra.mxu0 %v1808
      %1831 = vmatprep.subr.mxu0 0.0
      %1832 = vmatpush1.msra.mxu0 %v1809
      %1833 = vmatprep.subr.mxu0 0.0
      %1834 = vmatpush1.msra.mxu0 %v1810
      %1835 = vmatprep.subr.mxu0 0.0
      %1836 = vmatpush1.msra.mxu0 %v1811
      %1837 = vmatprep.subr.mxu0 0.0
      %1838 = vmatpush1.msra.mxu0 %v1812
      %1839 = vmatprep.subr.mxu0 0.0
      %1840 = vmatpush1.msra.mxu0 %v1813
      %1841 = vmatprep.subr.mxu0 0.0
      %1842 = vmatpush1.msra.mxu0 %v1814
      %1843 = vmatprep.subr.mxu0 0.0
      %1844 = vmatpush1.msra.mxu0 %v1815
      %1845 = vmatprep.subr.mxu0 0.0
      %1846 = vmatpush1.msra.mxu0 %v1816
      %1847 = vmatprep.subr.mxu0 0.0
      %1848 = vmatpush1.msra.mxu0 %v1817
      %1849 = vmatprep.subr.mxu0 0.0
      %1850 = vmatpush1.msra.mxu0 %v1818
      %1851 = vmatprep.subr.mxu0 0.0
      %1852 = vmatpush1.msra.mxu0 0.0
      %1853 = vmatprep.subr.mxu0 0.0
      %1854 = vmatpush1.msra.mxu0 0.0
      %1855 = vmatprep.subr.mxu0 0.0
      %1856 = vmatpush1.msra.mxu0 0.0
      %1857 = vmatprep.subr.mxu0 0.0
      %1858 = vmatpush1.msra.mxu0 0.0
      %1859 = vmatprep.subr.mxu0 0.0
      %1860 = vmatpush1.msra.mxu0 0.0
      %1861 = vmatprep.subr.mxu0 0.0
      %1862 = vmatpush1.msra.mxu0 0.0
      %1863 = vmatprep.subr.mxu0 0.0
      %1864 = vmatpush1.msra.mxu0 0.0
      %1865 = vmatprep.subr.mxu0 0.0
      %1866 = vmatpush1.msra.mxu0 0.0
      %1867 = vmatprep.subr.mxu0 0.0
      %1868 = vmatpush1.msra.mxu0 0.0
      %1869 = vmatprep.subr.mxu0 0.0
      %1870 = vmatpush1.msra.mxu0 0.0
      %1871 = vmatprep.subr.mxu0 0.0
      %1872 = vmatpush1.msra.mxu0 0.0
      %1873 = vmatprep.subr.mxu0 0.0
      %1874 = vmatpush1.msra.mxu0 0.0
      %1875 = vmatprep.subr.mxu0 0.0
      %1876 = vmatpush1.msra.mxu0 0.0
      %1877 = vmatprep.subr.mxu0 0.0
      %1878 = vmatpush1.msra.mxu0 0.0
      %1879 = vmatprep.subr.mxu0 0.0
      %1880 = vmatpush1.msra.mxu0 0.0
      %1881 = vmatprep.subr.mxu0 0.0
      %1882 = vmatpush1.msra.mxu0 0.0
      %1883 = vmatprep.mubr.f32.mxu0 0.0
      %1884 = vmatmul.mubr.f32.gmra.mrb[0].mxu0 %v1770
      %v1885 = vpop.f32.mrb[0].mxu0
      %v1886 = vadd.f32 0.0, %v1885
      %v1887 = vpop.f32.mrb[0].mxu0
      %1888 = vmatprep.mubr.f32.mxu0 0.0
      %1889 = vmatmul.mubr.f32.gmra.mrb[0].mxu0 %v1771
      %v1890 = vpop.f32.mrb[0].mxu0
      %v1891 = vadd.f32 0.0, %v1890
      %v1892 = vpop.f32.mrb[0].mxu0
      %1893 = vmatprep.mubr.f32.mxu0 0.0
      %1894 = vmatmul.mubr.f32.gmra.mrb[0].mxu0 %v1772
      %v1895 = vpop.f32.mrb[0].mxu0
      %v1896 = vadd.f32 0.0, %v1895
      %v1897 = vpop.f32.mrb[0].mxu0
      %1898 = vmatprep.mubr.f32.mxu0 0.0
      %1899 = vmatmul.mubr.f32.gmra.mrb[0].mxu0 %v1773
      %v1900 = vpop.f32.mrb[0].mxu0
      %v1901 = vadd.f32 0.0, %v1900
      %v1902 = vpop.f32.mrb[0].mxu0
      %1903 = vmatprep.mubr.f32.mxu0 0.0
      %1904 = vmatmul.mubr.f32.gmra.mrb[0].mxu0 %v1774
      %v1905 = vpop.f32.mrb[0].mxu0
      %v1906 = vadd.f32 0.0, %v1905
      %v1907 = vpop.f32.mrb[0].mxu0
      %1908 = vmatprep.mubr.f32.mxu0 0.0
      %1909 = vmatmul.mubr.f32.gmra.mrb[0].mxu0 %v1775
      %v1910 = vpop.f32.mrb[0].mxu0
      %v1911 = vadd.f32 0.0, %v1910
      %v1912 = vpop.f32.mrb[0].mxu0
      %1913 = vmatprep.mubr.f32.mxu0 0.0
      %1914 = vmatmul.mubr.f32.gmra.mrb[0].mxu0 %v1776
      %v1915 = vpop.f32.mrb[0].mxu0
      %v1916 = vadd.f32 0.0, %v1915
      %v1917 = vpop.f32.mrb[0].mxu0
      %1918 = vmatprep.mubr.f32.mxu0 0.0
      %1919 = vmatmul.mubr.f32.gmra.mrb[0].mxu0 %v1777
      %v1920 = vpop.f32.mrb[0].mxu0
      %v1921 = vadd.f32 0.0, %v1920
      %v1922 = vpop.f32.mrb[0].mxu0
      %1923 = vmatprep.mubr.f32.mxu0 0.0
      %1924 = vmatmul.mubr.f32.gmra.mrb[0].mxu0 %v1778
      %v1925 = vpop.f32.mrb[0].mxu0
      %v1926 = vadd.f32 0.0, %v1925
      %v1927 = vpop.f32.mrb[0].mxu0
      %1928 = vmatprep.mubr.f32.mxu0 0.0
      %1929 = vmatmul.mubr.f32.gmra.mrb[0].mxu0 %v1779
      %v1930 = vpop.f32.mrb[0].mxu0
      %v1931 = vadd.f32 0.0, %v1930
      %v1932 = vpop.f32.mrb[0].mxu0
      %1933 = vmatprep.mubr.f32.mxu0 0.0
      %1934 = vmatmul.mubr.f32.gmra.mrb[0].mxu0 %v1780
      %v1935 = vpop.f32.mrb[0].mxu0
      %v1936 = vadd.f32 0.0, %v1935
      %v1937 = vpop.f32.mrb[0].mxu0
      %1938 = vmatprep.mubr.f32.mxu0 0.0
      %1939 = vmatmul.mubr.f32.gmra.mrb[0].mxu0 %v1781
      %v1940 = vpop.f32.mrb[0].mxu0
      %v1941 = vadd.f32 0.0, %v1940
      %v1942 = vpop.f32.mrb[0].mxu0
      %1943 = vmatprep.mubr.f32.mxu0 0.0
      %1944 = vmatmul.mubr.f32.gmra.mrb[0].mxu0 %v1782
      %v1945 = vpop.f32.mrb[0].mxu0
      %v1946 = vadd.f32 0.0, %v1945
      %v1947 = vpop.f32.mrb[0].mxu0
      %1948 = vmatprep.mubr.f32.mxu0 0.0
      %1949 = vmatmul.mubr.f32.gmra.mrb[0].mxu0 %v1783
      %v1950 = vpop.f32.mrb[0].mxu0
      %v1951 = vadd.f32 0.0, %v1950
      %v1952 = vpop.f32.mrb[0].mxu0
      %1953 = vmatprep.mubr.f32.mxu0 0.0
      %1954 = vmatmul.mubr.f32.gmra.mrb[0].mxu0 %v1784
      %v1955 = vpop.f32.mrb[0].mxu0
      %v1956 = vadd.f32 0.0, %v1955
      %v1957 = vpop.f32.mrb[0].mxu0
      %1958 = vmatprep.mubr.f32.mxu0 0.0
      %1959 = vmatmul.mubr.f32.gmra.mrb[0].mxu0 %v1785
      %v1960 = vpop.f32.mrb[0].mxu0
      %v1961 = vadd.f32 0.0, %v1960
      %v1962 = vpop.f32.mrb[0].mxu0
      %1963 = vmatprep.mubr.f32.mxu0 0.0
      %1964 = vmatmul.mubr.f32.gmra.mrb[0].mxu0 %v1786
      %v1965 = vpop.f32.mrb[0].mxu0
      %v1966 = vadd.f32 0.0, %v1965
      %v1967 = vpop.f32.mrb[0].mxu0
      %1968 = vmatprep.mubr.f32.mxu0 0.0
      %1969 = vmatmul.mubr.f32.gmra.mrb[0].mxu0 %v1787
      %v1970 = vpop.f32.mrb[0].mxu0
      %v1971 = vadd.f32 0.0, %v1970
      %v1972 = vpop.f32.mrb[0].mxu0
      %1973 = vmatprep.mubr.f32.mxu0 0.0
      %1974 = vmatmul.mubr.f32.gmra.mrb[0].mxu0 %v1788
      %v1975 = vpop.f32.mrb[0].mxu0
      %v1976 = vadd.f32 0.0, %v1975
      %v1977 = vpop.f32.mrb[0].mxu0
      %1978 = vmatprep.mubr.f32.mxu0 0.0
      %1979 = vmatmul.mubr.f32.gmra.mrb[0].mxu0 %v1789
      %v1980 = vpop.f32.mrb[0].mxu0
      %v1981 = vadd.f32 0.0, %v1980
      %v1982 = vpop.f32.mrb[0].mxu0
      %1983 = vmatprep.mubr.f32.mxu0 0.0
      %1984 = vmatmul.mubr.f32.gmra.mrb[0].mxu0 %v1790
      %v1985 = vpop.f32.mrb[0].mxu0
      %v1986 = vadd.f32 0.0, %v1985
      %v1987 = vpop.f32.mrb[0].mxu0
      %1988 = vmatprep.mubr.f32.mxu0 0.0
      %1989 = vmatmul.mubr.f32.gmra.mrb[0].mxu0 %v1791
      %v1990 = vpop.f32.mrb[0].mxu0
      %v1991 = vadd.f32 0.0, %v1990
      %v1992 = vpop.f32.mrb[0].mxu0
      %1993 = vmatprep.mubr.f32.mxu0 0.0
      %1994 = vmatmul.mubr.f32.gmra.mrb[0].mxu0 %v1792
      %v1995 = vpop.f32.mrb[0].mxu0
      %v1996 = vadd.f32 0.0, %v1995
      %v1997 = vpop.f32.mrb[0].mxu0
      %1998 = vmatprep.mubr.f32.mxu0 0.0
      %1999 = vmatmul.mubr.f32.gmra.mrb[0].mxu0 %v1793
      %v2000 = vpop.f32.mrb[0].mxu0
      %v2001 = vadd.f32 0.0, %v2000
      %v2002 = vpop.f32.mrb[0].mxu0
      %2003 = vmatprep.mubr.f32.mxu0 0.0
      %2004 = vmatmul.mubr.f32.gmra.mrb[0].mxu0 %v1794
      %v2005 = vpop.f32.mrb[0].mxu0
      %v2006 = vadd.f32 0.0, %v2005
      %v2007 = vpop.f32.mrb[0].mxu0
      %2008 = vmatprep.mubr.f32.mxu0 0.0
      %2009 = vmatmul.mubr.f32.gmra.mrb[0].mxu0 %v1795
      %v2010 = vpop.f32.mrb[0].mxu0
      %v2011 = vadd.f32 0.0, %v2010
      %v2012 = vpop.f32.mrb[0].mxu0
      %2013 = vmatprep.mubr.f32.mxu0 0.0
      %2014 = vmatmul.mubr.f32.gmra.mrb[0].mxu0 %v1796
      %v2015 = vpop.f32.mrb[0].mxu0
      %v2016 = vadd.f32 0.0, %v2015
      %v2017 = vpop.f32.mrb[0].mxu0
      %2018 = vmatprep.mubr.f32.mxu0 0.0
      %2019 = vmatmul.mubr.f32.gmra.mrb[0].mxu0 %v1797
      %v2020 = vpop.f32.mrb[0].mxu0
      %v2021 = vadd.f32 0.0, %v2020
      %v2022 = vpop.f32.mrb[0].mxu0
      %2023 = vmatprep.mubr.f32.mxu0 0.0
      %2024 = vmatmul.mubr.f32.gmra.mrb[0].mxu0 %v1798
      %v2025 = vpop.f32.mrb[0].mxu0
      %v2026 = vadd.f32 0.0, %v2025
      %v2027 = vpop.f32.mrb[0].mxu0
      %2028 = vmatprep.mubr.f32.mxu0 0.0
      %2029 = vmatmul.mubr.f32.gmra.mrb[0].mxu0 %v1799
      %v2030 = vpop.f32.mrb[0].mxu0
      %v2031 = vadd.f32 0.0, %v2030
      %v2032 = vpop.f32.mrb[0].mxu0
      %2033 = vmatprep.mubr.f32.mxu0 0.0
      %2034 = vmatmul.mubr.f32.gmra.mrb[0].mxu0 %v1800
      %v2035 = vpop.f32.mrb[0].mxu0
      %v2036 = vadd.f32 0.0, %v2035
      %v2037 = vpop.f32.mrb[0].mxu0
      %2038 = vmatprep.mubr.f32.mxu0 0.0
      %2039 = vmatmul.mubr.f32.gmra.mrb[0].mxu0 %v1801
      %v2040 = vpop.f32.mrb[0].mxu0
      %v2041 = vadd.f32 0.0, %v2040
      %v2042 = vpop.f32.mrb[0].mxu0
      %2043 = vdwg.mxu0
      %v2044 = vadd.f32 %v1738, %v1886
      %v2045 = vadd.f32 %v1739, %v1891
      %v2046 = vadd.f32 %v1740, %v1896
      %v2047 = vadd.f32 %v1741, %v1901
      %v2048 = vadd.f32 %v1742, %v1906
      %v2049 = vadd.f32 %v1743, %v1911
      %v2050 = vadd.f32 %v1744, %v1916
      %v2051 = vadd.f32 %v1745, %v1921
      %v2052 = vadd.f32 %v1746, %v1926
      %v2053 = vadd.f32 %v1747, %v1931
      %v2054 = vadd.f32 %v1748, %v1936
      %v2055 = vadd.f32 %v1749, %v1941
      %v2056 = vadd.f32 %v1750, %v1946
      %v2057 = vadd.f32 %v1751, %v1951
      %v2058 = vadd.f32 %v1752, %v1956
      %v2059 = vadd.f32 %v1753, %v1961
      %v2060 = vadd.f32 %v1754, %v1966
      %v2061 = vadd.f32 %v1755, %v1971
      %v2062 = vadd.f32 %v1756, %v1976
      %v2063 = vadd.f32 %v1757, %v1981
      %v2064 = vadd.f32 %v1758, %v1986
      %v2065 = vadd.f32 %v1759, %v1991
      %v2066 = vadd.f32 %v1760, %v1996
      %v2067 = vadd.f32 %v1761, %v2001
      %v2068 = vadd.f32 %v1762, %v2006
      %v2069 = vadd.f32 %v1763, %v2011
      %v2070 = vadd.f32 %v1764, %v2016
      %v2071 = vadd.f32 %v1765, %v2021
      %v2072 = vadd.f32 %v1766, %v2026
      %v2073 = vadd.f32 %v1767, %v2031
      %v2074 = vadd.f32 %v1768, %v2036
      %v2075 = vadd.f32 %v1769, %v2041
      %s2076 = scalar_lea.vmem [#allocation2], 48
      %v2077 = vld [vmem:[%s2076] sm:$0xff]
      %v2078 = vld [vmem:[%s2076 + $0x8] sm:$0xff]
      %v2079 = vld [vmem:[%s2076 + $0x18] sm:$0xff]
      %v2080 = vld [vmem:[%s2076 + $0x20] sm:$0xff]
      %v2081 = vld [vmem:[%s2076 + $0x30] sm:$0xff]
      %v2082 = vld [vmem:[%s2076 + $0x38] sm:$0xff]
      %v2083 = vld [vmem:[%s2076 + $0x48] sm:$0xff]
      %v2084 = vld [vmem:[%s2076 + $0x50] sm:$0xff]
      %v2085 = vld [vmem:[%s2076 + $0x60] sm:$0xff]
      %v2086 = vld [vmem:[%s2076 + $0x68] sm:$0xff]
      %v2087 = vld [vmem:[%s2076 + $0x78] sm:$0xff]
      %v2088 = vld [vmem:[%s2076 + $0x80] sm:$0xff]
      %v2089 = vld [vmem:[%s2076 + $0x90] sm:$0xff]
      %v2090 = vld [vmem:[%s2076 + $0x98] sm:$0xff]
      %v2091 = vld [vmem:[%s2076 + $0xa8] sm:$0xff]
      %v2092 = vld [vmem:[%s2076 + $0xb0] sm:$0xff]
      %v2093 = vld [vmem:[%s2076 + $0xc0] sm:$0xff]
      %v2094 = vld [vmem:[%s2076 + $0xc8] sm:$0xff]
      %v2095 = vld [vmem:[%s2076 + $0xd8] sm:$0xff]
      %v2096 = vld [vmem:[%s2076 + $0xe0] sm:$0xff]
      %v2097 = vld [vmem:[%s2076 + $0xf0] sm:$0xff]
      %v2098 = vld [vmem:[%s2076 + $0xf8] sm:$0xff]
      %v2099 = vld [vmem:[%s2076 + $0x108] sm:$0xff]
      %v2100 = vld [vmem:[%s2076 + $0x110] sm:$0xff]
      %v2101 = vld [vmem:[%s2076 + $0x120] sm:$0xff]
      %v2102 = vld [vmem:[%s2076 + $0x128] sm:$0xff]
      %v2103 = vld [vmem:[%s2076 + $0x138] sm:$0xff]
      %v2104 = vld [vmem:[%s2076 + $0x140] sm:$0xff]
      %v2105 = vld [vmem:[%s2076 + $0x150] sm:$0xff]
      %v2106 = vld [vmem:[%s2076 + $0x158] sm:$0xff]
      %v2107 = vld [vmem:[%s2076 + $0x168] sm:$0xff]
      %v2108 = vld [vmem:[%s2076 + $0x170] sm:$0xff]
      %s2109 = scalar_lea.vmem %s1, 768
      %v2110 = vld [vmem:[%s2109] sm:$0xff]
      %v2111 = vld [vmem:[%s2109 + $0x8] sm:$0xff]
      %v2112 = vld [vmem:[%s2109 + $0x10] sm:$0xff]
      %v2113 = vld [vmem:[%s2109 + $0x18] sm:$0xff]
      %v2114 = vld [vmem:[%s2109 + $0x20] sm:$0xff]
      %v2115 = vld [vmem:[%s2109 + $0x28] sm:$0xff]
      %v2116 = vld [vmem:[%s2109 + $0x30] sm:$0xff]
      %v2117 = vld [vmem:[%s2109 + $0x38] sm:$0xff]
      %v2118 = vld [vmem:[%s2109 + $0x40] sm:$0xff]
      %v2119 = vld [vmem:[%s2109 + $0x48] sm:$0xff]
      %v2120 = vld [vmem:[%s2109 + $0x50] sm:$0xff]
      %v2121 = vld [vmem:[%s2109 + $0x58] sm:$0xff]
      %v2122 = vld [vmem:[%s2109 + $0x60] sm:$0xff]
      %v2123 = vld [vmem:[%s2109 + $0x68] sm:$0xff]
      %v2124 = vld [vmem:[%s2109 + $0x70] sm:$0xff]
      %v2125 = vld [vmem:[%s2109 + $0x78] sm:$0xff]
      %2126 = vmatprep.subr.mxu0 0.0
      %2127 = vmatpush1.msra.mxu0 %v2110
      %2128 = vmatprep.subr.mxu0 0.0
      %2129 = vmatpush1.msra.mxu0 %v2111
      %2130 = vmatprep.subr.mxu0 0.0
      %2131 = vmatpush1.msra.mxu0 %v2112
      %2132 = vmatprep.subr.mxu0 0.0
      %2133 = vmatpush1.msra.mxu0 %v2113
      %2134 = vmatprep.subr.mxu0 0.0
      %2135 = vmatpush1.msra.mxu0 %v2114
      %2136 = vmatprep.subr.mxu0 0.0
      %2137 = vmatpush1.msra.mxu0 %v2115
      %2138 = vmatprep.subr.mxu0 0.0
      %2139 = vmatpush1.msra.mxu0 %v2116
      %2140 = vmatprep.subr.mxu0 0.0
      %2141 = vmatpush1.msra.mxu0 %v2117
      %2142 = vmatprep.subr.mxu0 0.0
      %2143 = vmatpush1.msra.mxu0 %v2118
      %2144 = vmatprep.subr.mxu0 0.0
      %2145 = vmatpush1.msra.mxu0 %v2119
      %2146 = vmatprep.subr.mxu0 0.0
      %2147 = vmatpush1.msra.mxu0 %v2120
      %2148 = vmatprep.subr.mxu0 0.0
      %2149 = vmatpush1.msra.mxu0 %v2121
      %2150 = vmatprep.subr.mxu0 0.0
      %2151 = vmatpush1.msra.mxu0 %v2122
      %2152 = vmatprep.subr.mxu0 0.0
      %2153 = vmatpush1.msra.mxu0 %v2123
      %2154 = vmatprep.subr.mxu0 0.0
      %2155 = vmatpush1.msra.mxu0 %v2124
      %2156 = vmatprep.subr.mxu0 0.0
      %2157 = vmatpush1.msra.mxu0 %v2125
      %2158 = vmatprep.subr.mxu0 0.0
      %2159 = vmatpush1.msra.mxu0 0.0
      %2160 = vmatprep.subr.mxu0 0.0
      %2161 = vmatpush1.msra.mxu0 0.0
      %2162 = vmatprep.subr.mxu0 0.0
      %2163 = vmatpush1.msra.mxu0 0.0
      %2164 = vmatprep.subr.mxu0 0.0
      %2165 = vmatpush1.msra.mxu0 0.0
      %2166 = vmatprep.subr.mxu0 0.0
      %2167 = vmatpush1.msra.mxu0 0.0
      %2168 = vmatprep.subr.mxu0 0.0
      %2169 = vmatpush1.msra.mxu0 0.0
      %2170 = vmatprep.subr.mxu0 0.0
      %2171 = vmatpush1.msra.mxu0 0.0
      %2172 = vmatprep.subr.mxu0 0.0
      %2173 = vmatpush1.msra.mxu0 0.0
      %2174 = vmatprep.subr.mxu0 0.0
      %2175 = vmatpush1.msra.mxu0 0.0
      %2176 = vmatprep.subr.mxu0 0.0
      %2177 = vmatpush1.msra.mxu0 0.0
      %2178 = vmatprep.subr.mxu0 0.0
      %2179 = vmatpush1.msra.mxu0 0.0
      %2180 = vmatprep.subr.mxu0 0.0
      %2181 = vmatpush1.msra.mxu0 0.0
      %2182 = vmatprep.subr.mxu0 0.0
      %2183 = vmatpush1.msra.mxu0 0.0
      %2184 = vmatprep.subr.mxu0 0.0
      %2185 = vmatpush1.msra.mxu0 0.0
      %2186 = vmatprep.subr.mxu0 0.0
      %2187 = vmatpush1.msra.mxu0 0.0
      %2188 = vmatprep.subr.mxu0 0.0
      %2189 = vmatpush1.msra.mxu0 0.0
      %2190 = vmatprep.mubr.f32.mxu0 0.0
      %2191 = vmatmul.mubr.f32.gmra.mrb[0].mxu0 %v2077
      %v2192 = vpop.f32.mrb[0].mxu0
      %v2193 = vadd.f32 0.0, %v2192
      %v2194 = vpop.f32.mrb[0].mxu0
      %2195 = vmatprep.mubr.f32.mxu0 0.0
      %2196 = vmatmul.mubr.f32.gmra.mrb[0].mxu0 %v2078
      %v2197 = vpop.f32.mrb[0].mxu0
      %v2198 = vadd.f32 0.0, %v2197
      %v2199 = vpop.f32.mrb[0].mxu0
      %2200 = vmatprep.mubr.f32.mxu0 0.0
      %2201 = vmatmul.mubr.f32.gmra.mrb[0].mxu0 %v2079
      %v2202 = vpop.f32.mrb[0].mxu0
      %v2203 = vadd.f32 0.0, %v2202
      %v2204 = vpop.f32.mrb[0].mxu0
      %2205 = vmatprep.mubr.f32.mxu0 0.0
      %2206 = vmatmul.mubr.f32.gmra.mrb[0].mxu0 %v2080
      %v2207 = vpop.f32.mrb[0].mxu0
      %v2208 = vadd.f32 0.0, %v2207
      %v2209 = vpop.f32.mrb[0].mxu0
      %2210 = vmatprep.mubr.f32.mxu0 0.0
      %2211 = vmatmul.mubr.f32.gmra.mrb[0].mxu0 %v2081
      %v2212 = vpop.f32.mrb[0].mxu0
      %v2213 = vadd.f32 0.0, %v2212
      %v2214 = vpop.f32.mrb[0].mxu0
      %2215 = vmatprep.mubr.f32.mxu0 0.0
      %2216 = vmatmul.mubr.f32.gmra.mrb[0].mxu0 %v2082
      %v2217 = vpop.f32.mrb[0].mxu0
      %v2218 = vadd.f32 0.0, %v2217
      %v2219 = vpop.f32.mrb[0].mxu0
      %2220 = vmatprep.mubr.f32.mxu0 0.0
      %2221 = vmatmul.mubr.f32.gmra.mrb[0].mxu0 %v2083
      %v2222 = vpop.f32.mrb[0].mxu0
      %v2223 = vadd.f32 0.0, %v2222
      %v2224 = vpop.f32.mrb[0].mxu0
      %2225 = vmatprep.mubr.f32.mxu0 0.0
      %2226 = vmatmul.mubr.f32.gmra.mrb[0].mxu0 %v2084
      %v2227 = vpop.f32.mrb[0].mxu0
      %v2228 = vadd.f32 0.0, %v2227
      %v2229 = vpop.f32.mrb[0].mxu0
      %2230 = vmatprep.mubr.f32.mxu0 0.0
      %2231 = vmatmul.mubr.f32.gmra.mrb[0].mxu0 %v2085
      %v2232 = vpop.f32.mrb[0].mxu0
      %v2233 = vadd.f32 0.0, %v2232
      %v2234 = vpop.f32.mrb[0].mxu0
      %2235 = vmatprep.mubr.f32.mxu0 0.0
      %2236 = vmatmul.mubr.f32.gmra.mrb[0].mxu0 %v2086
      %v2237 = vpop.f32.mrb[0].mxu0
      %v2238 = vadd.f32 0.0, %v2237
      %v2239 = vpop.f32.mrb[0].mxu0
      %2240 = vmatprep.mubr.f32.mxu0 0.0
      %2241 = vmatmul.mubr.f32.gmra.mrb[0].mxu0 %v2087
      %v2242 = vpop.f32.mrb[0].mxu0
      %v2243 = vadd.f32 0.0, %v2242
      %v2244 = vpop.f32.mrb[0].mxu0
      %2245 = vmatprep.mubr.f32.mxu0 0.0
      %2246 = vmatmul.mubr.f32.gmra.mrb[0].mxu0 %v2088
      %v2247 = vpop.f32.mrb[0].mxu0
      %v2248 = vadd.f32 0.0, %v2247
      %v2249 = vpop.f32.mrb[0].mxu0
      %2250 = vmatprep.mubr.f32.mxu0 0.0
      %2251 = vmatmul.mubr.f32.gmra.mrb[0].mxu0 %v2089
      %v2252 = vpop.f32.mrb[0].mxu0
      %v2253 = vadd.f32 0.0, %v2252
      %v2254 = vpop.f32.mrb[0].mxu0
      %2255 = vmatprep.mubr.f32.mxu0 0.0
      %2256 = vmatmul.mubr.f32.gmra.mrb[0].mxu0 %v2090
      %v2257 = vpop.f32.mrb[0].mxu0
      %v2258 = vadd.f32 0.0, %v2257
      %v2259 = vpop.f32.mrb[0].mxu0
      %2260 = vmatprep.mubr.f32.mxu0 0.0
      %2261 = vmatmul.mubr.f32.gmra.mrb[0].mxu0 %v2091
      %v2262 = vpop.f32.mrb[0].mxu0
      %v2263 = vadd.f32 0.0, %v2262
      %v2264 = vpop.f32.mrb[0].mxu0
      %2265 = vmatprep.mubr.f32.mxu0 0.0
      %2266 = vmatmul.mubr.f32.gmra.mrb[0].mxu0 %v2092
      %v2267 = vpop.f32.mrb[0].mxu0
      %v2268 = vadd.f32 0.0, %v2267
      %v2269 = vpop.f32.mrb[0].mxu0
      %2270 = vmatprep.mubr.f32.mxu0 0.0
      %2271 = vmatmul.mubr.f32.gmra.mrb[0].mxu0 %v2093
      %v2272 = vpop.f32.mrb[0].mxu0
      %v2273 = vadd.f32 0.0, %v2272
      %v2274 = vpop.f32.mrb[0].mxu0
      %2275 = vmatprep.mubr.f32.mxu0 0.0
      %2276 = vmatmul.mubr.f32.gmra.mrb[0].mxu0 %v2094
      %v2277 = vpop.f32.mrb[0].mxu0
      %v2278 = vadd.f32 0.0, %v2277
      %v2279 = vpop.f32.mrb[0].mxu0
      %2280 = vmatprep.mubr.f32.mxu0 0.0
      %2281 = vmatmul.mubr.f32.gmra.mrb[0].mxu0 %v2095
      %v2282 = vpop.f32.mrb[0].mxu0
      %v2283 = vadd.f32 0.0, %v2282
      %v2284 = vpop.f32.mrb[0].mxu0
      %2285 = vmatprep.mubr.f32.mxu0 0.0
      %2286 = vmatmul.mubr.f32.gmra.mrb[0].mxu0 %v2096
      %v2287 = vpop.f32.mrb[0].mxu0
      %v2288 = vadd.f32 0.0, %v2287
      %v2289 = vpop.f32.mrb[0].mxu0
      %2290 = vmatprep.mubr.f32.mxu0 0.0
      %2291 = vmatmul.mubr.f32.gmra.mrb[0].mxu0 %v2097
      %v2292 = vpop.f32.mrb[0].mxu0
      %v2293 = vadd.f32 0.0, %v2292
      %v2294 = vpop.f32.mrb[0].mxu0
      %2295 = vmatprep.mubr.f32.mxu0 0.0
      %2296 = vmatmul.mubr.f32.gmra.mrb[0].mxu0 %v2098
      %v2297 = vpop.f32.mrb[0].mxu0
      %v2298 = vadd.f32 0.0, %v2297
      %v2299 = vpop.f32.mrb[0].mxu0
      %2300 = vmatprep.mubr.f32.mxu0 0.0
      %2301 = vmatmul.mubr.f32.gmra.mrb[0].mxu0 %v2099
      %v2302 = vpop.f32.mrb[0].mxu0
      %v2303 = vadd.f32 0.0, %v2302
      %v2304 = vpop.f32.mrb[0].mxu0
      %2305 = vmatprep.mubr.f32.mxu0 0.0
      %2306 = vmatmul.mubr.f32.gmra.mrb[0].mxu0 %v2100
      %v2307 = vpop.f32.mrb[0].mxu0
      %v2308 = vadd.f32 0.0, %v2307
      %v2309 = vpop.f32.mrb[0].mxu0
      %2310 = vmatprep.mubr.f32.mxu0 0.0
      %2311 = vmatmul.mubr.f32.gmra.mrb[0].mxu0 %v2101
      %v2312 = vpop.f32.mrb[0].mxu0
      %v2313 = vadd.f32 0.0, %v2312
      %v2314 = vpop.f32.mrb[0].mxu0
      %2315 = vmatprep.mubr.f32.mxu0 0.0
      %2316 = vmatmul.mubr.f32.gmra.mrb[0].mxu0 %v2102
      %v2317 = vpop.f32.mrb[0].mxu0
      %v2318 = vadd.f32 0.0, %v2317
      %v2319 = vpop.f32.mrb[0].mxu0
      %2320 = vmatprep.mubr.f32.mxu0 0.0
      %2321 = vmatmul.mubr.f32.gmra.mrb[0].mxu0 %v2103
      %v2322 = vpop.f32.mrb[0].mxu0
      %v2323 = vadd.f32 0.0, %v2322
      %v2324 = vpop.f32.mrb[0].mxu0
      %2325 = vmatprep.mubr.f32.mxu0 0.0
      %2326 = vmatmul.mubr.f32.gmra.mrb[0].mxu0 %v2104
      %v2327 = vpop.f32.mrb[0].mxu0
      %v2328 = vadd.f32 0.0, %v2327
      %v2329 = vpop.f32.mrb[0].mxu0
      %2330 = vmatprep.mubr.f32.mxu0 0.0
      %2331 = vmatmul.mubr.f32.gmra.mrb[0].mxu0 %v2105
      %v2332 = vpop.f32.mrb[0].mxu0
      %v2333 = vadd.f32 0.0, %v2332
      %v2334 = vpop.f32.mrb[0].mxu0
      %2335 = vmatprep.mubr.f32.mxu0 0.0
      %2336 = vmatmul.mubr.f32.gmra.mrb[0].mxu0 %v2106
      %v2337 = vpop.f32.mrb[0].mxu0
      %v2338 = vadd.f32 0.0, %v2337
      %v2339 = vpop.f32.mrb[0].mxu0
      %2340 = vmatprep.mubr.f32.mxu0 0.0
      %2341 = vmatmul.mubr.f32.gmra.mrb[0].mxu0 %v2107
      %v2342 = vpop.f32.mrb[0].mxu0
      %v2343 = vadd.f32 0.0, %v2342
      %v2344 = vpop.f32.mrb[0].mxu0
      %2345 = vmatprep.mubr.f32.mxu0 0.0
      %2346 = vmatmul.mubr.f32.gmra.mrb[0].mxu0 %v2108
      %v2347 = vpop.f32.mrb[0].mxu0
      %v2348 = vadd.f32 0.0, %v2347
      %v2349 = vpop.f32.mrb[0].mxu0
      %2350 = vdwg.mxu0
      %v2351 = vadd.f32 %v2044, %v2193
      %v2352 = vadd.f32 %v2045, %v2198
      %v2353 = vadd.f32 %v2046, %v2203
      %v2354 = vadd.f32 %v2047, %v2208
      %v2355 = vadd.f32 %v2048, %v2213
      %v2356 = vadd.f32 %v2049, %v2218
      %v2357 = vadd.f32 %v2050, %v2223
      %v2358 = vadd.f32 %v2051, %v2228
      %v2359 = vadd.f32 %v2052, %v2233
      %v2360 = vadd.f32 %v2053, %v2238
      %v2361 = vadd.f32 %v2054, %v2243
      %v2362 = vadd.f32 %v2055, %v2248
      %v2363 = vadd.f32 %v2056, %v2253
      %v2364 = vadd.f32 %v2057, %v2258
      %v2365 = vadd.f32 %v2058, %v2263
      %v2366 = vadd.f32 %v2059, %v2268
      %v2367 = vadd.f32 %v2060, %v2273
      %v2368 = vadd.f32 %v2061, %v2278
      %v2369 = vadd.f32 %v2062, %v2283
      %v2370 = vadd.f32 %v2063, %v2288
      %v2371 = vadd.f32 %v2064, %v2293
      %v2372 = vadd.f32 %v2065, %v2298
      %v2373 = vadd.f32 %v2066, %v2303
      %v2374 = vadd.f32 %v2067, %v2308
      %v2375 = vadd.f32 %v2068, %v2313
      %v2376 = vadd.f32 %v2069, %v2318
      %v2377 = vadd.f32 %v2070, %v2323
      %v2378 = vadd.f32 %v2071, %v2328
      %v2379 = vadd.f32 %v2072, %v2333
      %v2380 = vadd.f32 %v2073, %v2338
      %v2381 = vadd.f32 %v2074, %v2343
      %v2382 = vadd.f32 %v2075, %v2348
      %v2383 = vld [vmem:[%s2076 + $0x1] sm:$0xff]
      %v2384 = vld [vmem:[%s2076 + $0x9] sm:$0xff]
      %v2385 = vld [vmem:[%s2076 + $0x19] sm:$0xff]
      %v2386 = vld [vmem:[%s2076 + $0x21] sm:$0xff]
      %v2387 = vld [vmem:[%s2076 + $0x31] sm:$0xff]
      %v2388 = vld [vmem:[%s2076 + $0x39] sm:$0xff]
      %v2389 = vld [vmem:[%s2076 + $0x49] sm:$0xff]
      %v2390 = vld [vmem:[%s2076 + $0x51] sm:$0xff]
      %v2391 = vld [vmem:[%s2076 + $0x61] sm:$0xff]
      %v2392 = vld [vmem:[%s2076 + $0x69] sm:$0xff]
      %v2393 = vld [vmem:[%s2076 + $0x79] sm:$0xff]
      %v2394 = vld [vmem:[%s2076 + $0x81] sm:$0xff]
      %v2395 = vld [vmem:[%s2076 + $0x91] sm:$0xff]
      %v2396 = vld [vmem:[%s2076 + $0x99] sm:$0xff]
      %v2397 = vld [vmem:[%s2076 + $0xa9] sm:$0xff]
      %v2398 = vld [vmem:[%s2076 + $0xb1] sm:$0xff]
      %v2399 = vld [vmem:[%s2076 + $0xc1] sm:$0xff]
      %v2400 = vld [vmem:[%s2076 + $0xc9] sm:$0xff]
      %v2401 = vld [vmem:[%s2076 + $0xd9] sm:$0xff]
      %v2402 = vld [vmem:[%s2076 + $0xe1] sm:$0xff]
      %v2403 = vld [vmem:[%s2076 + $0xf1] sm:$0xff]
      %v2404 = vld [vmem:[%s2076 + $0xf9] sm:$0xff]
      %v2405 = vld [vmem:[%s2076 + $0x109] sm:$0xff]
      %v2406 = vld [vmem:[%s2076 + $0x111] sm:$0xff]
      %v2407 = vld [vmem:[%s2076 + $0x121] sm:$0xff]
      %v2408 = vld [vmem:[%s2076 + $0x129] sm:$0xff]
      %v2409 = vld [vmem:[%s2076 + $0x139] sm:$0xff]
      %v2410 = vld [vmem:[%s2076 + $0x141] sm:$0xff]
      %v2411 = vld [vmem:[%s2076 + $0x151] sm:$0xff]
      %v2412 = vld [vmem:[%s2076 + $0x159] sm:$0xff]
      %v2413 = vld [vmem:[%s2076 + $0x169] sm:$0xff]
      %v2414 = vld [vmem:[%s2076 + $0x171] sm:$0xff]
      %s2415 = scalar_lea.vmem %s1, 896
      %v2416 = vld [vmem:[%s2415] sm:$0xff]
      %v2417 = vld [vmem:[%s2415 + $0x8] sm:$0xff]
      %v2418 = vld [vmem:[%s2415 + $0x10] sm:$0xff]
      %v2419 = vld [vmem:[%s2415 + $0x18] sm:$0xff]
      %v2420 = vld [vmem:[%s2415 + $0x20] sm:$0xff]
      %v2421 = vld [vmem:[%s2415 + $0x28] sm:$0xff]
      %v2422 = vld [vmem:[%s2415 + $0x30] sm:$0xff]
      %v2423 = vld [vmem:[%s2415 + $0x38] sm:$0xff]
      %v2424 = vld [vmem:[%s2415 + $0x40] sm:$0xff]
      %v2425 = vld [vmem:[%s2415 + $0x48] sm:$0xff]
      %v2426 = vld [vmem:[%s2415 + $0x50] sm:$0xff]
      %v2427 = vld [vmem:[%s2415 + $0x58] sm:$0xff]
      %v2428 = vld [vmem:[%s2415 + $0x60] sm:$0xff]
      %v2429 = vld [vmem:[%s2415 + $0x68] sm:$0xff]
      %v2430 = vld [vmem:[%s2415 + $0x70] sm:$0xff]
      %v2431 = vld [vmem:[%s2415 + $0x78] sm:$0xff]
      %2432 = vmatprep.subr.mxu0 0.0
      %2433 = vmatpush1.msra.mxu0 %v2416
      %2434 = vmatprep.subr.mxu0 0.0
      %2435 = vmatpush1.msra.mxu0 %v2417
      %2436 = vmatprep.subr.mxu0 0.0
      %2437 = vmatpush1.msra.mxu0 %v2418
      %2438 = vmatprep.subr.mxu0 0.0
      %2439 = vmatpush1.msra.mxu0 %v2419
      %2440 = vmatprep.subr.mxu0 0.0
      %2441 = vmatpush1.msra.mxu0 %v2420
      %2442 = vmatprep.subr.mxu0 0.0
      %2443 = vmatpush1.msra.mxu0 %v2421
      %2444 = vmatprep.subr.mxu0 0.0
      %2445 = vmatpush1.msra.mxu0 %v2422
      %2446 = vmatprep.subr.mxu0 0.0
      %2447 = vmatpush1.msra.mxu0 %v2423
      %2448 = vmatprep.subr.mxu0 0.0
      %2449 = vmatpush1.msra.mxu0 %v2424
      %2450 = vmatprep.subr.mxu0 0.0
      %2451 = vmatpush1.msra.mxu0 %v2425
      %2452 = vmatprep.subr.mxu0 0.0
      %2453 = vmatpush1.msra.mxu0 %v2426
      %2454 = vmatprep.subr.mxu0 0.0
      %2455 = vmatpush1.msra.mxu0 %v2427
      %2456 = vmatprep.subr.mxu0 0.0
      %2457 = vmatpush1.msra.mxu0 %v2428
      %2458 = vmatprep.subr.mxu0 0.0
      %2459 = vmatpush1.msra.mxu0 %v2429
      %2460 = vmatprep.subr.mxu0 0.0
      %2461 = vmatpush1.msra.mxu0 %v2430
      %2462 = vmatprep.subr.mxu0 0.0
      %2463 = vmatpush1.msra.mxu0 %v2431
      %2464 = vmatprep.subr.mxu0 0.0
      %2465 = vmatpush1.msra.mxu0 0.0
      %2466 = vmatprep.subr.mxu0 0.0
      %2467 = vmatpush1.msra.mxu0 0.0
      %2468 = vmatprep.subr.mxu0 0.0
      %2469 = vmatpush1.msra.mxu0 0.0
      %2470 = vmatprep.subr.mxu0 0.0
      %2471 = vmatpush1.msra.mxu0 0.0
      %2472 = vmatprep.subr.mxu0 0.0
      %2473 = vmatpush1.msra.mxu0 0.0
      %2474 = vmatprep.subr.mxu0 0.0
      %2475 = vmatpush1.msra.mxu0 0.0
      %2476 = vmatprep.subr.mxu0 0.0
      %2477 = vmatpush1.msra.mxu0 0.0
      %2478 = vmatprep.subr.mxu0 0.0
      %2479 = vmatpush1.msra.mxu0 0.0
      %2480 = vmatprep.subr.mxu0 0.0
      %2481 = vmatpush1.msra.mxu0 0.0
      %2482 = vmatprep.subr.mxu0 0.0
      %2483 = vmatpush1.msra.mxu0 0.0
      %2484 = vmatprep.subr.mxu0 0.0
      %2485 = vmatpush1.msra.mxu0 0.0
      %2486 = vmatprep.subr.mxu0 0.0
      %2487 = vmatpush1.msra.mxu0 0.0
      %2488 = vmatprep.subr.mxu0 0.0
      %2489 = vmatpush1.msra.mxu0 0.0
      %2490 = vmatprep.subr.mxu0 0.0
      %2491 = vmatpush1.msra.mxu0 0.0
      %2492 = vmatprep.subr.mxu0 0.0
      %2493 = vmatpush1.msra.mxu0 0.0
      %2494 = vmatprep.subr.mxu0 0.0
      %2495 = vmatpush1.msra.mxu0 0.0
      %2496 = vmatprep.mubr.f32.mxu0 0.0
      %2497 = vmatmul.mubr.f32.gmra.mrb[0].mxu0 %v2383
      %v2498 = vpop.f32.mrb[0].mxu0
      %v2499 = vadd.f32 0.0, %v2498
      %v2500 = vpop.f32.mrb[0].mxu0
      %2501 = vmatprep.mubr.f32.mxu0 0.0
      %2502 = vmatmul.mubr.f32.gmra.mrb[0].mxu0 %v2384
      %v2503 = vpop.f32.mrb[0].mxu0
      %v2504 = vadd.f32 0.0, %v2503
      %v2505 = vpop.f32.mrb[0].mxu0
      %2506 = vmatprep.mubr.f32.mxu0 0.0
      %2507 = vmatmul.mubr.f32.gmra.mrb[0].mxu0 %v2385
      %v2508 = vpop.f32.mrb[0].mxu0
      %v2509 = vadd.f32 0.0, %v2508
      %v2510 = vpop.f32.mrb[0].mxu0
      %2511 = vmatprep.mubr.f32.mxu0 0.0
      %2512 = vmatmul.mubr.f32.gmra.mrb[0].mxu0 %v2386
      %v2513 = vpop.f32.mrb[0].mxu0
      %v2514 = vadd.f32 0.0, %v2513
      %v2515 = vpop.f32.mrb[0].mxu0
      %2516 = vmatprep.mubr.f32.mxu0 0.0
      %2517 = vmatmul.mubr.f32.gmra.mrb[0].mxu0 %v2387
      %v2518 = vpop.f32.mrb[0].mxu0
      %v2519 = vadd.f32 0.0, %v2518
      %v2520 = vpop.f32.mrb[0].mxu0
      %2521 = vmatprep.mubr.f32.mxu0 0.0
      %2522 = vmatmul.mubr.f32.gmra.mrb[0].mxu0 %v2388
      %v2523 = vpop.f32.mrb[0].mxu0
      %v2524 = vadd.f32 0.0, %v2523
      %v2525 = vpop.f32.mrb[0].mxu0
      %2526 = vmatprep.mubr.f32.mxu0 0.0
      %2527 = vmatmul.mubr.f32.gmra.mrb[0].mxu0 %v2389
      %v2528 = vpop.f32.mrb[0].mxu0
      %v2529 = vadd.f32 0.0, %v2528
      %v2530 = vpop.f32.mrb[0].mxu0
      %2531 = vmatprep.mubr.f32.mxu0 0.0
      %2532 = vmatmul.mubr.f32.gmra.mrb[0].mxu0 %v2390
      %v2533 = vpop.f32.mrb[0].mxu0
      %v2534 = vadd.f32 0.0, %v2533
      %v2535 = vpop.f32.mrb[0].mxu0
      %2536 = vmatprep.mubr.f32.mxu0 0.0
      %2537 = vmatmul.mubr.f32.gmra.mrb[0].mxu0 %v2391
      %v2538 = vpop.f32.mrb[0].mxu0
      %v2539 = vadd.f32 0.0, %v2538
      %v2540 = vpop.f32.mrb[0].mxu0
      %2541 = vmatprep.mubr.f32.mxu0 0.0
      %2542 = vmatmul.mubr.f32.gmra.mrb[0].mxu0 %v2392
      %v2543 = vpop.f32.mrb[0].mxu0
      %v2544 = vadd.f32 0.0, %v2543
      %v2545 = vpop.f32.mrb[0].mxu0
      %2546 = vmatprep.mubr.f32.mxu0 0.0
      %2547 = vmatmul.mubr.f32.gmra.mrb[0].mxu0 %v2393
      %v2548 = vpop.f32.mrb[0].mxu0
      %v2549 = vadd.f32 0.0, %v2548
      %v2550 = vpop.f32.mrb[0].mxu0
      %2551 = vmatprep.mubr.f32.mxu0 0.0
      %2552 = vmatmul.mubr.f32.gmra.mrb[0].mxu0 %v2394
      %v2553 = vpop.f32.mrb[0].mxu0
      %v2554 = vadd.f32 0.0, %v2553
      %v2555 = vpop.f32.mrb[0].mxu0
      %2556 = vmatprep.mubr.f32.mxu0 0.0
      %2557 = vmatmul.mubr.f32.gmra.mrb[0].mxu0 %v2395
      %v2558 = vpop.f32.mrb[0].mxu0
      %v2559 = vadd.f32 0.0, %v2558
      %v2560 = vpop.f32.mrb[0].mxu0
      %2561 = vmatprep.mubr.f32.mxu0 0.0
      %2562 = vmatmul.mubr.f32.gmra.mrb[0].mxu0 %v2396
      %v2563 = vpop.f32.mrb[0].mxu0
      %v2564 = vadd.f32 0.0, %v2563
      %v2565 = vpop.f32.mrb[0].mxu0
      %2566 = vmatprep.mubr.f32.mxu0 0.0
      %2567 = vmatmul.mubr.f32.gmra.mrb[0].mxu0 %v2397
      %v2568 = vpop.f32.mrb[0].mxu0
      %v2569 = vadd.f32 0.0, %v2568
      %v2570 = vpop.f32.mrb[0].mxu0
      %2571 = vmatprep.mubr.f32.mxu0 0.0
      %2572 = vmatmul.mubr.f32.gmra.mrb[0].mxu0 %v2398
      %v2573 = vpop.f32.mrb[0].mxu0
      %v2574 = vadd.f32 0.0, %v2573
      %v2575 = vpop.f32.mrb[0].mxu0
      %2576 = vmatprep.mubr.f32.mxu0 0.0
      %2577 = vmatmul.mubr.f32.gmra.mrb[0].mxu0 %v2399
      %v2578 = vpop.f32.mrb[0].mxu0
      %v2579 = vadd.f32 0.0, %v2578
      %v2580 = vpop.f32.mrb[0].mxu0
      %2581 = vmatprep.mubr.f32.mxu0 0.0
      %2582 = vmatmul.mubr.f32.gmra.mrb[0].mxu0 %v2400
      %v2583 = vpop.f32.mrb[0].mxu0
      %v2584 = vadd.f32 0.0, %v2583
      %v2585 = vpop.f32.mrb[0].mxu0
      %2586 = vmatprep.mubr.f32.mxu0 0.0
      %2587 = vmatmul.mubr.f32.gmra.mrb[0].mxu0 %v2401
      %v2588 = vpop.f32.mrb[0].mxu0
      %v2589 = vadd.f32 0.0, %v2588
      %v2590 = vpop.f32.mrb[0].mxu0
      %2591 = vmatprep.mubr.f32.mxu0 0.0
      %2592 = vmatmul.mubr.f32.gmra.mrb[0].mxu0 %v2402
      %v2593 = vpop.f32.mrb[0].mxu0
      %v2594 = vadd.f32 0.0, %v2593
      %v2595 = vpop.f32.mrb[0].mxu0
      %2596 = vmatprep.mubr.f32.mxu0 0.0
      %2597 = vmatmul.mubr.f32.gmra.mrb[0].mxu0 %v2403
      %v2598 = vpop.f32.mrb[0].mxu0
      %v2599 = vadd.f32 0.0, %v2598
      %v2600 = vpop.f32.mrb[0].mxu0
      %2601 = vmatprep.mubr.f32.mxu0 0.0
      %2602 = vmatmul.mubr.f32.gmra.mrb[0].mxu0 %v2404
      %v2603 = vpop.f32.mrb[0].mxu0
      %v2604 = vadd.f32 0.0, %v2603
      %v2605 = vpop.f32.mrb[0].mxu0
      %2606 = vmatprep.mubr.f32.mxu0 0.0
      %2607 = vmatmul.mubr.f32.gmra.mrb[0].mxu0 %v2405
      %v2608 = vpop.f32.mrb[0].mxu0
      %v2609 = vadd.f32 0.0, %v2608
      %v2610 = vpop.f32.mrb[0].mxu0
      %2611 = vmatprep.mubr.f32.mxu0 0.0
      %2612 = vmatmul.mubr.f32.gmra.mrb[0].mxu0 %v2406
      %v2613 = vpop.f32.mrb[0].mxu0
      %v2614 = vadd.f32 0.0, %v2613
      %v2615 = vpop.f32.mrb[0].mxu0
      %2616 = vmatprep.mubr.f32.mxu0 0.0
      %2617 = vmatmul.mubr.f32.gmra.mrb[0].mxu0 %v2407
      %v2618 = vpop.f32.mrb[0].mxu0
      %v2619 = vadd.f32 0.0, %v2618
      %v2620 = vpop.f32.mrb[0].mxu0
      %2621 = vmatprep.mubr.f32.mxu0 0.0
      %2622 = vmatmul.mubr.f32.gmra.mrb[0].mxu0 %v2408
      %v2623 = vpop.f32.mrb[0].mxu0
      %v2624 = vadd.f32 0.0, %v2623
      %v2625 = vpop.f32.mrb[0].mxu0
      %2626 = vmatprep.mubr.f32.mxu0 0.0
      %2627 = vmatmul.mubr.f32.gmra.mrb[0].mxu0 %v2409
      %v2628 = vpop.f32.mrb[0].mxu0
      %v2629 = vadd.f32 0.0, %v2628
      %v2630 = vpop.f32.mrb[0].mxu0
      %2631 = vmatprep.mubr.f32.mxu0 0.0
      %2632 = vmatmul.mubr.f32.gmra.mrb[0].mxu0 %v2410
      %v2633 = vpop.f32.mrb[0].mxu0
      %v2634 = vadd.f32 0.0, %v2633
      %v2635 = vpop.f32.mrb[0].mxu0
      %2636 = vmatprep.mubr.f32.mxu0 0.0
      %2637 = vmatmul.mubr.f32.gmra.mrb[0].mxu0 %v2411
      %v2638 = vpop.f32.mrb[0].mxu0
      %v2639 = vadd.f32 0.0, %v2638
      %v2640 = vpop.f32.mrb[0].mxu0
      %2641 = vmatprep.mubr.f32.mxu0 0.0
      %2642 = vmatmul.mubr.f32.gmra.mrb[0].mxu0 %v2412
      %v2643 = vpop.f32.mrb[0].mxu0
      %v2644 = vadd.f32 0.0, %v2643
      %v2645 = vpop.f32.mrb[0].mxu0
      %2646 = vmatprep.mubr.f32.mxu0 0.0
      %2647 = vmatmul.mubr.f32.gmra.mrb[0].mxu0 %v2413
      %v2648 = vpop.f32.mrb[0].mxu0
      %v2649 = vadd.f32 0.0, %v2648
      %v2650 = vpop.f32.mrb[0].mxu0
      %2651 = vmatprep.mubr.f32.mxu0 0.0
      %2652 = vmatmul.mubr.f32.gmra.mrb[0].mxu0 %v2414
      %v2653 = vpop.f32.mrb[0].mxu0
      %v2654 = vadd.f32 0.0, %v2653
      %v2655 = vpop.f32.mrb[0].mxu0
      %2656 = vdwg.mxu0
      %v2657 = vadd.f32 %v2351, %v2499
      %v2658 = vadd.f32 %v2352, %v2504
      %v2659 = vadd.f32 %v2353, %v2509
      %v2660 = vadd.f32 %v2354, %v2514
      %v2661 = vadd.f32 %v2355, %v2519
      %v2662 = vadd.f32 %v2356, %v2524
      %v2663 = vadd.f32 %v2357, %v2529
      %v2664 = vadd.f32 %v2358, %v2534
      %v2665 = vadd.f32 %v2359, %v2539
      %v2666 = vadd.f32 %v2360, %v2544
      %v2667 = vadd.f32 %v2361, %v2549
      %v2668 = vadd.f32 %v2362, %v2554
      %v2669 = vadd.f32 %v2363, %v2559
      %v2670 = vadd.f32 %v2364, %v2564
      %v2671 = vadd.f32 %v2365, %v2569
      %v2672 = vadd.f32 %v2366, %v2574
      %v2673 = vadd.f32 %v2367, %v2579
      %v2674 = vadd.f32 %v2368, %v2584
      %v2675 = vadd.f32 %v2369, %v2589
      %v2676 = vadd.f32 %v2370, %v2594
      %v2677 = vadd.f32 %v2371, %v2599
      %v2678 = vadd.f32 %v2372, %v2604
      %v2679 = vadd.f32 %v2373, %v2609
      %v2680 = vadd.f32 %v2374, %v2614
      %v2681 = vadd.f32 %v2375, %v2619
      %v2682 = vadd.f32 %v2376, %v2624
      %v2683 = vadd.f32 %v2377, %v2629
      %v2684 = vadd.f32 %v2378, %v2634
      %v2685 = vadd.f32 %v2379, %v2639
      %v2686 = vadd.f32 %v2380, %v2644
      %v2687 = vadd.f32 %v2381, %v2649
      %v2688 = vadd.f32 %v2382, %v2654
      %v2689 = vld [vmem:[%s2076 + $0x2] sm:$0xff]
      %v2690 = vld [vmem:[%s2076 + $0xa] sm:$0xff]
      %v2691 = vld [vmem:[%s2076 + $0x1a] sm:$0xff]
      %v2692 = vld [vmem:[%s2076 + $0x22] sm:$0xff]
      %v2693 = vld [vmem:[%s2076 + $0x32] sm:$0xff]
      %v2694 = vld [vmem:[%s2076 + $0x3a] sm:$0xff]
      %v2695 = vld [vmem:[%s2076 + $0x4a] sm:$0xff]
      %v2696 = vld [vmem:[%s2076 + $0x52] sm:$0xff]
      %v2697 = vld [vmem:[%s2076 + $0x62] sm:$0xff]
      %v2698 = vld [vmem:[%s2076 + $0x6a] sm:$0xff]
      %v2699 = vld [vmem:[%s2076 + $0x7a] sm:$0xff]
      %v2700 = vld [vmem:[%s2076 + $0x82] sm:$0xff]
      %v2701 = vld [vmem:[%s2076 + $0x92] sm:$0xff]
      %v2702 = vld [vmem:[%s2076 + $0x9a] sm:$0xff]
      %v2703 = vld [vmem:[%s2076 + $0xaa] sm:$0xff]
      %v2704 = vld [vmem:[%s2076 + $0xb2] sm:$0xff]
      %v2705 = vld [vmem:[%s2076 + $0xc2] sm:$0xff]
      %v2706 = vld [vmem:[%s2076 + $0xca] sm:$0xff]
      %v2707 = vld [vmem:[%s2076 + $0xda] sm:$0xff]
      %v2708 = vld [vmem:[%s2076 + $0xe2] sm:$0xff]
      %v2709 = vld [vmem:[%s2076 + $0xf2] sm:$0xff]
      %v2710 = vld [vmem:[%s2076 + $0xfa] sm:$0xff]
      %v2711 = vld [vmem:[%s2076 + $0x10a] sm:$0xff]
      %v2712 = vld [vmem:[%s2076 + $0x112] sm:$0xff]
      %v2713 = vld [vmem:[%s2076 + $0x122] sm:$0xff]
      %v2714 = vld [vmem:[%s2076 + $0x12a] sm:$0xff]
      %v2715 = vld [vmem:[%s2076 + $0x13a] sm:$0xff]
      %v2716 = vld [vmem:[%s2076 + $0x142] sm:$0xff]
      %v2717 = vld [vmem:[%s2076 + $0x152] sm:$0xff]
      %v2718 = vld [vmem:[%s2076 + $0x15a] sm:$0xff]
      %v2719 = vld [vmem:[%s2076 + $0x16a] sm:$0xff]
      %v2720 = vld [vmem:[%s2076 + $0x172] sm:$0xff]
      %s2721 = scalar_lea.vmem %s1, 1024
      %v2722 = vld [vmem:[%s2721] sm:$0xff]
      %v2723 = vld [vmem:[%s2721 + $0x8] sm:$0xff]
      %v2724 = vld [vmem:[%s2721 + $0x10] sm:$0xff]
      %v2725 = vld [vmem:[%s2721 + $0x18] sm:$0xff]
      %v2726 = vld [vmem:[%s2721 + $0x20] sm:$0xff]
      %v2727 = vld [vmem:[%s2721 + $0x28] sm:$0xff]
      %v2728 = vld [vmem:[%s2721 + $0x30] sm:$0xff]
      %v2729 = vld [vmem:[%s2721 + $0x38] sm:$0xff]
      %v2730 = vld [vmem:[%s2721 + $0x40] sm:$0xff]
      %v2731 = vld [vmem:[%s2721 + $0x48] sm:$0xff]
      %v2732 = vld [vmem:[%s2721 + $0x50] sm:$0xff]
      %v2733 = vld [vmem:[%s2721 + $0x58] sm:$0xff]
      %v2734 = vld [vmem:[%s2721 + $0x60] sm:$0xff]
      %v2735 = vld [vmem:[%s2721 + $0x68] sm:$0xff]
      %v2736 = vld [vmem:[%s2721 + $0x70] sm:$0xff]
      %v2737 = vld [vmem:[%s2721 + $0x78] sm:$0xff]
      %2738 = vmatprep.subr.mxu0 0.0
      %2739 = vmatpush1.msra.mxu0 %v2722
      %2740 = vmatprep.subr.mxu0 0.0
      %2741 = vmatpush1.msra.mxu0 %v2723
      %2742 = vmatprep.subr.mxu0 0.0
      %2743 = vmatpush1.msra.mxu0 %v2724
      %2744 = vmatprep.subr.mxu0 0.0
      %2745 = vmatpush1.msra.mxu0 %v2725
      %2746 = vmatprep.subr.mxu0 0.0
      %2747 = vmatpush1.msra.mxu0 %v2726
      %2748 = vmatprep.subr.mxu0 0.0
      %2749 = vmatpush1.msra.mxu0 %v2727
      %2750 = vmatprep.subr.mxu0 0.0
      %2751 = vmatpush1.msra.mxu0 %v2728
      %2752 = vmatprep.subr.mxu0 0.0
      %2753 = vmatpush1.msra.mxu0 %v2729
      %2754 = vmatprep.subr.mxu0 0.0
      %2755 = vmatpush1.msra.mxu0 %v2730
      %2756 = vmatprep.subr.mxu0 0.0
      %2757 = vmatpush1.msra.mxu0 %v2731
      %2758 = vmatprep.subr.mxu0 0.0
      %2759 = vmatpush1.msra.mxu0 %v2732
      %2760 = vmatprep.subr.mxu0 0.0
      %2761 = vmatpush1.msra.mxu0 %v2733
      %2762 = vmatprep.subr.mxu0 0.0
      %2763 = vmatpush1.msra.mxu0 %v2734
      %2764 = vmatprep.subr.mxu0 0.0
      %2765 = vmatpush1.msra.mxu0 %v2735
      %2766 = vmatprep.subr.mxu0 0.0
      %2767 = vmatpush1.msra.mxu0 %v2736
      %2768 = vmatprep.subr.mxu0 0.0
      %2769 = vmatpush1.msra.mxu0 %v2737
      %2770 = vmatprep.subr.mxu0 0.0
      %2771 = vmatpush1.msra.mxu0 0.0
      %2772 = vmatprep.subr.mxu0 0.0
      %2773 = vmatpush1.msra.mxu0 0.0
      %2774 = vmatprep.subr.mxu0 0.0
      %2775 = vmatpush1.msra.mxu0 0.0
      %2776 = vmatprep.subr.mxu0 0.0
      %2777 = vmatpush1.msra.mxu0 0.0
      %2778 = vmatprep.subr.mxu0 0.0
      %2779 = vmatpush1.msra.mxu0 0.0
      %2780 = vmatprep.subr.mxu0 0.0
      %2781 = vmatpush1.msra.mxu0 0.0
      %2782 = vmatprep.subr.mxu0 0.0
      %2783 = vmatpush1.msra.mxu0 0.0
      %2784 = vmatprep.subr.mxu0 0.0
      %2785 = vmatpush1.msra.mxu0 0.0
      %2786 = vmatprep.subr.mxu0 0.0
      %2787 = vmatpush1.msra.mxu0 0.0
      %2788 = vmatprep.subr.mxu0 0.0
      %2789 = vmatpush1.msra.mxu0 0.0
      %2790 = vmatprep.subr.mxu0 0.0
      %2791 = vmatpush1.msra.mxu0 0.0
      %2792 = vmatprep.subr.mxu0 0.0
      %2793 = vmatpush1.msra.mxu0 0.0
      %2794 = vmatprep.subr.mxu0 0.0
      %2795 = vmatpush1.msra.mxu0 0.0
      %2796 = vmatprep.subr.mxu0 0.0
      %2797 = vmatpush1.msra.mxu0 0.0
      %2798 = vmatprep.subr.mxu0 0.0
      %2799 = vmatpush1.msra.mxu0 0.0
      %2800 = vmatprep.subr.mxu0 0.0
      %2801 = vmatpush1.msra.mxu0 0.0
      %2802 = vmatprep.mubr.f32.mxu0 0.0
      %2803 = vmatmul.mubr.f32.gmra.mrb[0].mxu0 %v2689
      %v2804 = vpop.f32.mrb[0].mxu0
      %v2805 = vadd.f32 0.0, %v2804
      %v2806 = vpop.f32.mrb[0].mxu0
      %2807 = vmatprep.mubr.f32.mxu0 0.0
      %2808 = vmatmul.mubr.f32.gmra.mrb[0].mxu0 %v2690
      %v2809 = vpop.f32.mrb[0].mxu0
      %v2810 = vadd.f32 0.0, %v2809
      %v2811 = vpop.f32.mrb[0].mxu0
      %2812 = vmatprep.mubr.f32.mxu0 0.0
      %2813 = vmatmul.mubr.f32.gmra.mrb[0].mxu0 %v2691
      %v2814 = vpop.f32.mrb[0].mxu0
      %v2815 = vadd.f32 0.0, %v2814
      %v2816 = vpop.f32.mrb[0].mxu0
      %2817 = vmatprep.mubr.f32.mxu0 0.0
      %2818 = vmatmul.mubr.f32.gmra.mrb[0].mxu0 %v2692
      %v2819 = vpop.f32.mrb[0].mxu0
      %v2820 = vadd.f32 0.0, %v2819
      %v2821 = vpop.f32.mrb[0].mxu0
      %2822 = vmatprep.mubr.f32.mxu0 0.0
      %2823 = vmatmul.mubr.f32.gmra.mrb[0].mxu0 %v2693
      %v2824 = vpop.f32.mrb[0].mxu0
      %v2825 = vadd.f32 0.0, %v2824
      %v2826 = vpop.f32.mrb[0].mxu0
      %2827 = vmatprep.mubr.f32.mxu0 0.0
      %2828 = vmatmul.mubr.f32.gmra.mrb[0].mxu0 %v2694
      %v2829 = vpop.f32.mrb[0].mxu0
      %v2830 = vadd.f32 0.0, %v2829
      %v2831 = vpop.f32.mrb[0].mxu0
      %2832 = vmatprep.mubr.f32.mxu0 0.0
      %2833 = vmatmul.mubr.f32.gmra.mrb[0].mxu0 %v2695
      %v2834 = vpop.f32.mrb[0].mxu0
      %v2835 = vadd.f32 0.0, %v2834
      %v2836 = vpop.f32.mrb[0].mxu0
      %2837 = vmatprep.mubr.f32.mxu0 0.0
      %2838 = vmatmul.mubr.f32.gmra.mrb[0].mxu0 %v2696
      %v2839 = vpop.f32.mrb[0].mxu0
      %v2840 = vadd.f32 0.0, %v2839
      %v2841 = vpop.f32.mrb[0].mxu0
      %2842 = vmatprep.mubr.f32.mxu0 0.0
      %2843 = vmatmul.mubr.f32.gmra.mrb[0].mxu0 %v2697
      %v2844 = vpop.f32.mrb[0].mxu0
      %v2845 = vadd.f32 0.0, %v2844
      %v2846 = vpop.f32.mrb[0].mxu0
      %2847 = vmatprep.mubr.f32.mxu0 0.0
      %2848 = vmatmul.mubr.f32.gmra.mrb[0].mxu0 %v2698
      %v2849 = vpop.f32.mrb[0].mxu0
      %v2850 = vadd.f32 0.0, %v2849
      %v2851 = vpop.f32.mrb[0].mxu0
      %2852 = vmatprep.mubr.f32.mxu0 0.0
      %2853 = vmatmul.mubr.f32.gmra.mrb[0].mxu0 %v2699
      %v2854 = vpop.f32.mrb[0].mxu0
      %v2855 = vadd.f32 0.0, %v2854
      %v2856 = vpop.f32.mrb[0].mxu0
      %2857 = vmatprep.mubr.f32.mxu0 0.0
      %2858 = vmatmul.mubr.f32.gmra.mrb[0].mxu0 %v2700
      %v2859 = vpop.f32.mrb[0].mxu0
      %v2860 = vadd.f32 0.0, %v2859
      %v2861 = vpop.f32.mrb[0].mxu0
      %2862 = vmatprep.mubr.f32.mxu0 0.0
      %2863 = vmatmul.mubr.f32.gmra.mrb[0].mxu0 %v2701
      %v2864 = vpop.f32.mrb[0].mxu0
      %v2865 = vadd.f32 0.0, %v2864
      %v2866 = vpop.f32.mrb[0].mxu0
      %2867 = vmatprep.mubr.f32.mxu0 0.0
      %2868 = vmatmul.mubr.f32.gmra.mrb[0].mxu0 %v2702
      %v2869 = vpop.f32.mrb[0].mxu0
      %v2870 = vadd.f32 0.0, %v2869
      %v2871 = vpop.f32.mrb[0].mxu0
      %2872 = vmatprep.mubr.f32.mxu0 0.0
      %2873 = vmatmul.mubr.f32.gmra.mrb[0].mxu0 %v2703
      %v2874 = vpop.f32.mrb[0].mxu0
      %v2875 = vadd.f32 0.0, %v2874
      %v2876 = vpop.f32.mrb[0].mxu0
      %2877 = vmatprep.mubr.f32.mxu0 0.0
      %2878 = vmatmul.mubr.f32.gmra.mrb[0].mxu0 %v2704
      %v2879 = vpop.f32.mrb[0].mxu0
      %v2880 = vadd.f32 0.0, %v2879
      %v2881 = vpop.f32.mrb[0].mxu0
      %2882 = vmatprep.mubr.f32.mxu0 0.0
      %2883 = vmatmul.mubr.f32.gmra.mrb[0].mxu0 %v2705
      %v2884 = vpop.f32.mrb[0].mxu0
      %v2885 = vadd.f32 0.0, %v2884
      %v2886 = vpop.f32.mrb[0].mxu0
      %2887 = vmatprep.mubr.f32.mxu0 0.0
      %2888 = vmatmul.mubr.f32.gmra.mrb[0].mxu0 %v2706
      %v2889 = vpop.f32.mrb[0].mxu0
      %v2890 = vadd.f32 0.0, %v2889
      %v2891 = vpop.f32.mrb[0].mxu0
      %2892 = vmatprep.mubr.f32.mxu0 0.0
      %2893 = vmatmul.mubr.f32.gmra.mrb[0].mxu0 %v2707
      %v2894 = vpop.f32.mrb[0].mxu0
      %v2895 = vadd.f32 0.0, %v2894
      %v2896 = vpop.f32.mrb[0].mxu0
      %2897 = vmatprep.mubr.f32.mxu0 0.0
      %2898 = vmatmul.mubr.f32.gmra.mrb[0].mxu0 %v2708
      %v2899 = vpop.f32.mrb[0].mxu0
      %v2900 = vadd.f32 0.0, %v2899
      %v2901 = vpop.f32.mrb[0].mxu0
      %2902 = vmatprep.mubr.f32.mxu0 0.0
      %2903 = vmatmul.mubr.f32.gmra.mrb[0].mxu0 %v2709
      %v2904 = vpop.f32.mrb[0].mxu0
      %v2905 = vadd.f32 0.0, %v2904
      %v2906 = vpop.f32.mrb[0].mxu0
      %2907 = vmatprep.mubr.f32.mxu0 0.0
      %2908 = vmatmul.mubr.f32.gmra.mrb[0].mxu0 %v2710
      %v2909 = vpop.f32.mrb[0].mxu0
      %v2910 = vadd.f32 0.0, %v2909
      %v2911 = vpop.f32.mrb[0].mxu0
      %2912 = vmatprep.mubr.f32.mxu0 0.0
      %2913 = vmatmul.mubr.f32.gmra.mrb[0].mxu0 %v2711
      %v2914 = vpop.f32.mrb[0].mxu0
      %v2915 = vadd.f32 0.0, %v2914
      %v2916 = vpop.f32.mrb[0].mxu0
      %2917 = vmatprep.mubr.f32.mxu0 0.0
      %2918 = vmatmul.mubr.f32.gmra.mrb[0].mxu0 %v2712
      %v2919 = vpop.f32.mrb[0].mxu0
      %v2920 = vadd.f32 0.0, %v2919
      %v2921 = vpop.f32.mrb[0].mxu0
      %2922 = vmatprep.mubr.f32.mxu0 0.0
      %2923 = vmatmul.mubr.f32.gmra.mrb[0].mxu0 %v2713
      %v2924 = vpop.f32.mrb[0].mxu0
      %v2925 = vadd.f32 0.0, %v2924
      %v2926 = vpop.f32.mrb[0].mxu0
      %2927 = vmatprep.mubr.f32.mxu0 0.0
      %2928 = vmatmul.mubr.f32.gmra.mrb[0].mxu0 %v2714
      %v2929 = vpop.f32.mrb[0].mxu0
      %v2930 = vadd.f32 0.0, %v2929
      %v2931 = vpop.f32.mrb[0].mxu0
      %2932 = vmatprep.mubr.f32.mxu0 0.0
      %2933 = vmatmul.mubr.f32.gmra.mrb[0].mxu0 %v2715
      %v2934 = vpop.f32.mrb[0].mxu0
      %v2935 = vadd.f32 0.0, %v2934
      %v2936 = vpop.f32.mrb[0].mxu0
      %2937 = vmatprep.mubr.f32.mxu0 0.0
      %2938 = vmatmul.mubr.f32.gmra.mrb[0].mxu0 %v2716
      %v2939 = vpop.f32.mrb[0].mxu0
      %v2940 = vadd.f32 0.0, %v2939
      %v2941 = vpop.f32.mrb[0].mxu0
      %2942 = vmatprep.mubr.f32.mxu0 0.0
      %2943 = vmatmul.mubr.f32.gmra.mrb[0].mxu0 %v2717
      %v2944 = vpop.f32.mrb[0].mxu0
      %v2945 = vadd.f32 0.0, %v2944
      %v2946 = vpop.f32.mrb[0].mxu0
      %2947 = vmatprep.mubr.f32.mxu0 0.0
      %2948 = vmatmul.mubr.f32.gmra.mrb[0].mxu0 %v2718
      %v2949 = vpop.f32.mrb[0].mxu0
      %v2950 = vadd.f32 0.0, %v2949
      %v2951 = vpop.f32.mrb[0].mxu0
      %2952 = vmatprep.mubr.f32.mxu0 0.0
      %2953 = vmatmul.mubr.f32.gmra.mrb[0].mxu0 %v2719
      %v2954 = vpop.f32.mrb[0].mxu0
      %v2955 = vadd.f32 0.0, %v2954
      %v2956 = vpop.f32.mrb[0].mxu0
      %2957 = vmatprep.mubr.f32.mxu0 0.0
      %2958 = vmatmul.mubr.f32.gmra.mrb[0].mxu0 %v2720
      %v2959 = vpop.f32.mrb[0].mxu0
      %v2960 = vadd.f32 0.0, %v2959
      %v2961 = vpop.f32.mrb[0].mxu0
      %2962 = vdwg.mxu0
      %v2963 = vadd.f32 %v2657, %v2805
      %v2964 = vadd.f32 %v2658, %v2810
      %v2965 = vadd.f32 %v2659, %v2815
      %v2966 = vadd.f32 %v2660, %v2820
      %v2967 = vadd.f32 %v2661, %v2825
      %v2968 = vadd.f32 %v2662, %v2830
      %v2969 = vadd.f32 %v2663, %v2835
      %v2970 = vadd.f32 %v2664, %v2840
      %v2971 = vadd.f32 %v2665, %v2845
      %v2972 = vadd.f32 %v2666, %v2850
      %v2973 = vadd.f32 %v2667, %v2855
      %v2974 = vadd.f32 %v2668, %v2860
      %v2975 = vadd.f32 %v2669, %v2865
      %v2976 = vadd.f32 %v2670, %v2870
      %v2977 = vadd.f32 %v2671, %v2875
      %v2978 = vadd.f32 %v2672, %v2880
      %v2979 = vadd.f32 %v2673, %v2885
      %v2980 = vadd.f32 %v2674, %v2890
      %v2981 = vadd.f32 %v2675, %v2895
      %v2982 = vadd.f32 %v2676, %v2900
      %v2983 = vadd.f32 %v2677, %v2905
      %v2984 = vadd.f32 %v2678, %v2910
      %v2985 = vadd.f32 %v2679, %v2915
      %v2986 = vadd.f32 %v2680, %v2920
      %v2987 = vadd.f32 %v2681, %v2925
      %v2988 = vadd.f32 %v2682, %v2930
      %v2989 = vadd.f32 %v2683, %v2935
      %v2990 = vadd.f32 %v2684, %v2940
      %v2991 = vadd.f32 %v2685, %v2945
      %v2992 = vadd.f32 %v2686, %v2950
      %v2993 = vadd.f32 %v2687, %v2955
      %v2994 = vadd.f32 %v2688, %v2960
      %2995 = vst [vmem:[%s177] sm:$0xff] %v2963
      %2996 = vst [vmem:[%s177 + $0x8] sm:$0xff] %v2964
      %2997 = vst [vmem:[%s177 + $0x10] sm:$0xff] %v2965
      %2998 = vst [vmem:[%s177 + $0x18] sm:$0xff] %v2966
      %2999 = vst [vmem:[%s177 + $0x20] sm:$0xff] %v2967
      %3000 = vst [vmem:[%s177 + $0x28] sm:$0xff] %v2968
      %3001 = vst [vmem:[%s177 + $0x30] sm:$0xff] %v2969
      %3002 = vst [vmem:[%s177 + $0x38] sm:$0xff] %v2970
      %3003 = vst [vmem:[%s177 + $0x40] sm:$0xff] %v2971
      %3004 = vst [vmem:[%s177 + $0x48] sm:$0xff] %v2972
      %3005 = vst [vmem:[%s177 + $0x50] sm:$0xff] %v2973
      %3006 = vst [vmem:[%s177 + $0x58] sm:$0xff] %v2974
      %3007 = vst [vmem:[%s177 + $0x60] sm:$0xff] %v2975
      %3008 = vst [vmem:[%s177 + $0x68] sm:$0xff] %v2976
      %3009 = vst [vmem:[%s177 + $0x70] sm:$0xff] %v2977
      %3010 = vst [vmem:[%s177 + $0x78] sm:$0xff] %v2978
      %3011 = vst [vmem:[%s177 + $0x80] sm:$0xff] %v2979
      %3012 = vst [vmem:[%s177 + $0x88] sm:$0xff] %v2980
      %3013 = vst [vmem:[%s177 + $0x90] sm:$0xff] %v2981
      %3014 = vst [vmem:[%s177 + $0x98] sm:$0xff] %v2982
      %3015 = vst [vmem:[%s177 + $0xa0] sm:$0xff] %v2983
      %3016 = vst [vmem:[%s177 + $0xa8] sm:$0xff] %v2984
      %3017 = vst [vmem:[%s177 + $0xb0] sm:$0xff] %v2985
      %3018 = vst [vmem:[%s177 + $0xb8] sm:$0xff] %v2986
      %3019 = vst [vmem:[%s177 + $0xc0] sm:$0xff] %v2987
      %3020 = vst [vmem:[%s177 + $0xc8] sm:$0xff] %v2988
      %3021 = vst [vmem:[%s177 + $0xd0] sm:$0xff] %v2989
      %3022 = vst [vmem:[%s177 + $0xd8] sm:$0xff] %v2990
      %3023 = vst [vmem:[%s177 + $0xe0] sm:$0xff] %v2991
      %3024 = vst [vmem:[%s177 + $0xe8] sm:$0xff] %v2992
      %3025 = vst [vmem:[%s177 + $0xf0] sm:$0xff] %v2993
      %3026 = vst [vmem:[%s177 + $0xf8] sm:$0xff] %v2994
      %v3027 = vadd.f32 %v2963, %v2964
      %v3028 = vadd.f32 %v3027, %v2965
      %v3029 = vadd.f32 %v3028, %v2966
      %v3030 = vadd.f32 %v3029, %v2967
      %v3031 = vadd.f32 %v3030, %v2968
      %v3032 = vadd.f32 %v3031, %v2969
      %v3033 = vadd.f32 %v3032, %v2970
      %v3034 = vadd.f32 %v3033, %v2971
      %v3035 = vadd.f32 %v3034, %v2972
      %v3036 = vadd.f32 %v3035, %v2973
      %v3037 = vadd.f32 %v3036, %v2974
      %v3038 = vadd.f32 %v3037, %v2975
      %v3039 = vadd.f32 %v3038, %v2976
      %v3040 = vadd.f32 %v3039, %v2977
      %v3041 = vadd.f32 %v3040, %v2978
      %v3042 = vadd.f32 %v3041, %v2979
      %v3043 = vadd.f32 %v3042, %v2980
      %v3044 = vadd.f32 %v3043, %v2981
      %v3045 = vadd.f32 %v3044, %v2982
      %v3046 = vadd.f32 %v3045, %v2983
      %v3047 = vadd.f32 %v3046, %v2984
      %v3048 = vadd.f32 %v3047, %v2985
      %v3049 = vadd.f32 %v3048, %v2986
      %v3050 = vadd.f32 %v3049, %v2987
      %v3051 = vadd.f32 %v3050, %v2988
      %v3052 = vadd.f32 %v3051, %v2989
      %v3053 = vadd.f32 %v3052, %v2990
      %v3054 = vadd.f32 %v3053, %v2991
      %v3055 = vadd.f32 %v3054, %v2992
      %v3056 = vadd.f32 %v3055, %v2993
      %v3057 = vadd.f32 %v3056, %v2994
      %v3058 = vrot.slane %v3057, 4
      %v3059 = vadd.f32 %v3057, %v3058
      %v3060 = vrot.slane %v3059, 2
      %v3061 = vadd.f32 %v3059, %v3060
      %v3062 = vrot.slane %v3061, 1
      %v3063 = vadd.f32 %v3061, %v3062
      %v3064 = vmul.f32 %v2963, %v2963
      %v3065 = vmul.f32 %v2964, %v2964
      %v3066 = vmul.f32 %v2965, %v2965
      %v3067 = vmul.f32 %v2966, %v2966
      %v3068 = vmul.f32 %v2967, %v2967
      %v3069 = vmul.f32 %v2968, %v2968
      %v3070 = vmul.f32 %v2969, %v2969
      %v3071 = vmul.f32 %v2970, %v2970
      %v3072 = vmul.f32 %v2971, %v2971
      %v3073 = vmul.f32 %v2972, %v2972
      %v3074 = vmul.f32 %v2973, %v2973
      %v3075 = vmul.f32 %v2974, %v2974
      %v3076 = vmul.f32 %v2975, %v2975
      %v3077 = vmul.f32 %v2976, %v2976
      %v3078 = vmul.f32 %v2977, %v2977
      %v3079 = vmul.f32 %v2978, %v2978
      %v3080 = vmul.f32 %v2979, %v2979
      %v3081 = vmul.f32 %v2980, %v2980
      %v3082 = vmul.f32 %v2981, %v2981
      %v3083 = vmul.f32 %v2982, %v2982
      %v3084 = vmul.f32 %v2983, %v2983
      %v3085 = vmul.f32 %v2984, %v2984
      %v3086 = vmul.f32 %v2985, %v2985
      %v3087 = vmul.f32 %v2986, %v2986
      %v3088 = vmul.f32 %v2987, %v2987
      %v3089 = vmul.f32 %v2988, %v2988
      %v3090 = vmul.f32 %v2989, %v2989
      %v3091 = vmul.f32 %v2990, %v2990
      %v3092 = vmul.f32 %v2991, %v2991
      %v3093 = vmul.f32 %v2992, %v2992
      %v3094 = vmul.f32 %v2993, %v2993
      %v3095 = vmul.f32 %v2994, %v2994
      %v3096 = vadd.f32 %v3064, %v3065
      %v3097 = vadd.f32 %v3096, %v3066
      %v3098 = vadd.f32 %v3097, %v3067
      %v3099 = vadd.f32 %v3098, %v3068
      %v3100 = vadd.f32 %v3099, %v3069
      %v3101 = vadd.f32 %v3100, %v3070
      %v3102 = vadd.f32 %v3101, %v3071
      %v3103 = vadd.f32 %v3102, %v3072
      %v3104 = vadd.f32 %v3103, %v3073
      %v3105 = vadd.f32 %v3104, %v3074
      %v3106 = vadd.f32 %v3105, %v3075
      %v3107 = vadd.f32 %v3106, %v3076
      %v3108 = vadd.f32 %v3107, %v3077
      %v3109 = vadd.f32 %v3108, %v3078
      %v3110 = vadd.f32 %v3109, %v3079
      %v3111 = vadd.f32 %v3110, %v3080
      %v3112 = vadd.f32 %v3111, %v3081
      %v3113 = vadd.f32 %v3112, %v3082
      %v3114 = vadd.f32 %v3113, %v3083
      %v3115 = vadd.f32 %v3114, %v3084
      %v3116 = vadd.f32 %v3115, %v3085
      %v3117 = vadd.f32 %v3116, %v3086
      %v3118 = vadd.f32 %v3117, %v3087
      %v3119 = vadd.f32 %v3118, %v3088
      %v3120 = vadd.f32 %v3119, %v3089
      %v3121 = vadd.f32 %v3120, %v3090
      %v3122 = vadd.f32 %v3121, %v3091
      %v3123 = vadd.f32 %v3122, %v3092
      %v3124 = vadd.f32 %v3123, %v3093
      %v3125 = vadd.f32 %v3124, %v3094
      %v3126 = vadd.f32 %v3125, %v3095
      %v3127 = vrot.slane %v3126, 4
      %v3128 = vadd.f32 %v3126, %v3127
      %v3129 = vrot.slane %v3128, 2
      %v3130 = vadd.f32 %v3128, %v3129
      %v3131 = vrot.slane %v3130, 1
      %v3132 = vadd.f32 %v3130, %v3131
      %vm3133 = vcmask 1040384
      %v3134 = vsel %vm3133, %v3063, %v3132
      %3135 = vst [vmem:[%s181] sm:$0x3] %v3134
      %p3136 = scmp.lt.s32.totalorder %s15, 1
      %s3137 = scalar_select %p3136, %s15, 1
      %s3138 = smul.addr %s3137, 32
      %s3139 = smul.addr %s3138, 8
      %s3140 = scalar_lea.vmem %s2, %s3139
      %p3141 = scmp.lt.s32.totalorder %s15, 1
      %s3142 = scalar_select %p3141, %s15, 1
      %s3143 = smul.addr %s3142, 2
      %s3144 = scalar_lea.vmem %s3, %s3143
      // Predicated region
      $region33: #{conv_block_forward.3} parent=27 // pred_check
        %p3145 = pneg %p80
      $region34: #{conv_block_forward.3} parent=27 // pred_check_branch
        %3147 = sbr.rel (%p3145) target = $region36
      $region35: #{conv_block_forward.3} parent=27 // pred_region
        _
      $region36: #{conv_block_forward.3} parent=27 // pred_fallthru
        _
      // Predicated region
      $region37: #{conv_block_forward.3} parent=27 // pred_check
        %p3148 = pneg %p106
      $region38: #{conv_block_forward.3} parent=27 // pred_check_branch
        %3150 = sbr.rel (%p3148) target = $region40
      $region39: #{conv_block_forward.3} parent=27 // pred_region
        _
      $region40: #{conv_block_forward.3} parent=27 // pred_fallthru
        _
    $region28: #{conv_block_forward.3} parent=5 // pred_fallthru
      _
    %p3151 = scmp.le.s32.totalorder 2, %s10
    // Predicated region
    $region41: #{conv_block_forward.3} parent=5 // pred_check
      %p3152 = pneg %p3151
    $region42: #{conv_block_forward.3} parent=5 // pred_check_branch
      %3154 = sbr.rel (%p3152) target = $region44
    $region43: #{conv_block_forward.3} parent=5 // pred_region
      %s3155 = ssub.s32 %s10, 2
      // Predicated region
      $region45: #{conv_block_forward.3} parent=43 // pred_check
        %p3156 = pneg %p86
      $region46: #{conv_block_forward.3} parent=43 // pred_check_branch
        %3158 = sbr.rel (%p3156) target = $region48
      $region47: #{conv_block_forward.3} parent=43 // pred_region
        %p3159 = scmp.lt.s32.totalorder %s16, 1
        %s3160 = scalar_select %p3159, %s16, 1
        %s3161 = smul.addr %s3160, 32
        %s3162 = smul.addr %s3161, 8
        %s3163 = scalar_lea.vmem %s2, %s3162
      $region48: #{conv_block_forward.3} parent=43 // pred_fallthru
        _
      // Predicated region
      $region49: #{conv_block_forward.3} parent=43 // pred_check
        %p3164 = pneg %p112
      $region50: #{conv_block_forward.3} parent=43 // pred_check_branch
        %3166 = sbr.rel (%p3164) target = $region52
      $region51: #{conv_block_forward.3} parent=43 // pred_region
        %p3167 = scmp.lt.s32.totalorder %s16, 1
        %s3168 = scalar_select %p3167, %s16, 1
        %s3169 = smul.addr %s3168, 2
        %s3170 = scalar_lea.vmem %s3, %s3169
      $region52: #{conv_block_forward.3} parent=43 // pred_fallthru
        _
    $region44: #{conv_block_forward.3} parent=5 // pred_fallthru
      _
  $region6: #{conv_block_forward.3} parent=0 // loop_footer
    %s14 = sadd.s32 1, %s10
  $region7: #{conv_block_forward.3} parent=0 // loop_footer_branch
    %9 = sbr.rel target = $region3
  $region8: #{conv_block_forward.3} parent=0 // loop_exit
    _

// kernel: conv_block_forward.4
$region0: #{conv_block_forward.4}
  #allocation0 [shape = 'u32[]', space=smem, size = 0x4, offset = 0x4, fixed_abs, tag = 'smem constant byte address 0x4 - core index']
  #allocation1 [shape = 'u32[144,128]{1,0:T(1,128)}', space=vmem, size = 0x12000, scoped, tag = 'internal scratch']
  #allocation2 [shape = 'f32[18,24,128]{2,1,0:T(8,128)}', space=vmem, size = 0x36000, scoped, tag = 'scratch operand']
  %s0 = inlined_call_operand.vmem [shape: f32[2,256,128], index: 0, kind: input, shape index: {}]
  %s1 = inlined_call_operand.vmem [shape: f32[2,128], index: 1, kind: input, shape index: {}]
  %s2 = inlined_call_operand.vmem [shape: f32[9,128,128], index: 2, kind: input, shape index: {}]
  %s3 = inlined_call_operand.vmem [shape: f32[2,256,128], index: 3, kind: output, shape index: {0}]
  %s4 = inlined_call_operand.vmem [shape: f32[2,2,128], index: 4, kind: output, shape index: {1}]
  %5 = xla_tuple %s3, %s4
  %s6 = sld [smem:[#allocation0]]
  $region57: #{conv_block_forward.4} parent=0
    _
  %s8 = ssub.s32 1, %s6
  %s9 = scalar_select 0, %s8, %s6
  loop: start=0, step=1, limit=4
  $region2: #{conv_block_forward.4} parent=0 // loop_pre_header
    _
  $region3: #{conv_block_forward.4} parent=0 // loop_header
    %s11 = sphi 0, %s15
    %p12 = scmp.ge.s32.totalorder %s11, 4
    %s21 = sphi 0, %s23
    %s24 = sphi 0, %s21
    %s25 = sphi 0, %s24
    %s41 = sphi 0, %s25
    %s45 = sphi 0, %s45
    %s47 = sphi 0, %s45
    %s48 = sphi 0, %s47
    %s62 = sphi 0, %s48
    %s66 = sphi 0, %s66
    %s68 = sphi 0, %s66
    %s69 = sphi 0, %s68
    %s83 = sphi 0, %s69
    %s89 = sphi 0, %s91
    %s92 = sphi 0, %s89
    %s93 = sphi 0, %s92
    %s109 = sphi 0, %s93
    %s115 = sphi 0, %s117
    %s118 = sphi 0, %s115
    %s119 = sphi 0, %s118
    %s135 = sphi 0, %s119
  $region4: #{conv_block_forward.4} parent=0 // loop_header_branch
    %14 = sbr.rel (%p12) target = $region8
  $region5: #{conv_block_forward.4} parent=0 // loop_body
    %s16 = ssub.s32 %s11, 1
    %s17 = ssub.s32 %s11, 2
    %s18 = sadd.s32 %s11, 1
    %s19 = ssub.s32 %s11, %s18
    %p20 = scmp.eq.s32.totalorder %s19, 0
    %s22 = sadd.s32 %s21, 1
    %s23 = scalar_select %p20, %s21, %s22
    %p26 = pneg %p20
    %p27 = scmp.eq.s32.totalorder %s11, 1
    %p28 = por %p26, %p27
    %p29 = scmp.ne.s32.totalorder %s21, %s24
    %p30 = scmp.eq.s32.totalorder %s11, 0
    %p31 = por %p29, %p30
    %p32 = scmp.ne.s32.totalorder %s21, %s24
    %p33 = scmp.eq.s32.totalorder %s16, 1
    %p34 = por %p32, %p33
    %p35 = scmp.ne.s32.totalorder %s24, %s25
    %p36 = scmp.eq.s32.totalorder %s16, 0
    %p37 = por %p35, %p36
    %p38 = scmp.ne.s32.totalorder %s24, %s25
    %p39 = scmp.eq.s32.totalorder %s17, 1
    %p40 = por %p38, %p39
    %p42 = scmp.ne.s32.totalorder %s25, %s41
    %p43 = scmp.eq.s32.totalorder %s17, 0
    %p44 = por %p42, %p43
    %s46 = sadd.s32 %s45, 1
    %p49 = scmp.eq.s32.totalorder %s11, 1
    %p50 = scmp.ne.s32.totalorder %s45, %s47
    %p51 = scmp.eq.s32.totalorder %s11, 0
    %p52 = por %p50, %p51
    %p53 = scmp.ne.s32.totalorder %s45, %s47
    %p54 = scmp.eq.s32.totalorder %s16, 1
    %p55 = por %p53, %p54
    %p56 = scmp.ne.s32.totalorder %s47, %s48
    %p57 = scmp.eq.s32.totalorder %s16, 0
    %p58 = por %p56, %p57
    %p59 = scmp.ne.s32.totalorder %s47, %s48
    %p60 = scmp.eq.s32.totalorder %s17, 1
    %p61 = por %p59, %p60
    %p63 = scmp.ne.s32.totalorder %s48, %s62
    %p64 = scmp.eq.s32.totalorder %s17, 0
    %p65 = por %p63, %p64
    %s67 = sadd.s32 %s66, 1
    %p70 = scmp.eq.s32.totalorder %s11, 1
    %p71 = scmp.ne.s32.totalorder %s66, %s68
    %p72 = scmp.eq.s32.totalorder %s11, 0
    %p73 = por %p71, %p72
    %p74 = scmp.ne.s32.totalorder %s66, %s68
    %p75 = scmp.eq.s32.totalorder %s16, 1
    %p76 = por %p74, %p75
    %p77 = scmp.ne.s32.totalorder %s68, %s69
    %p78 = scmp.eq.s32.totalorder %s16, 0
    %p79 = por %p77, %p78
    %p80 = scmp.ne.s32.totalorder %s68, %s69
    %p81 = scmp.eq.s32.totalorder %s17, 1
    %p82 = por %p80, %p81
    %p84 = scmp.ne.s32.totalorder %s69, %s83
    %p85 = scmp.eq.s32.totalorder %s17, 0
    %p86 = por %p84, %p85
    %s87 = ssub.s32 %s11, %s18
    %p88 = scmp.eq.s32.totalorder %s87, 0
    %s90 = sadd.s32 %s89, 1
    %s91 = scalar_select %p88, %s89, %s90
    %p94 = pneg %p88
    %p95 = scmp.eq.s32.totalorder %s11, 1
    %p96 = por %p94, %p95
    %p97 = scmp.ne.s32.totalorder %s89, %s92
    %p98 = scmp.eq.s32.totalorder %s11, 0
    %p99 = por %p97, %p98
    %p100 = scmp.ne.s32.totalorder %s89, %s92
    %p101 = scmp.eq.s32.totalorder %s16, 1
    %p102 = por %p100, %p101
    %p103 = scmp.ne.s32.totalorder %s92, %s93
    %p104 = scmp.eq.s32.totalorder %s16, 0
    %p105 = por %p103, %p104
    %p106 = scmp.ne.s32.totalorder %s92, %s93
    %p107 = scmp.eq.s32.totalorder %s17, 1
    %p108 = por %p106, %p107
    %p110 = scmp.ne.s32.totalorder %s93, %s109
    %p111 = scmp.eq.s32.totalorder %s17, 0
    %p112 = por %p110, %p111
    %s113 = ssub.s32 %s11, %s18
    %p114 = scmp.eq.s32.totalorder %s113, 0
    %s116 = sadd.s32 %s115, 1
    %s117 = scalar_select %p114, %s115, %s116
    %p120 = pneg %p114
    %p121 = scmp.eq.s32.totalorder %s11, 1
    %p122 = por %p120, %p121
    %p123 = scmp.ne.s32.totalorder %s115, %s118
    %p124 = scmp.eq.s32.totalorder %s11, 0
    %p125 = por %p123, %p124
    %p126 = scmp.ne.s32.totalorder %s115, %s118
    %p127 = scmp.eq.s32.totalorder %s16, 1
    %p128 = por %p126, %p127
    %p129 = scmp.ne.s32.totalorder %s118, %s119
    %p130 = scmp.eq.s32.totalorder %s16, 0
    %p131 = por %p129, %p130
    %p132 = scmp.ne.s32.totalorder %s118, %s119
    %p133 = scmp.eq.s32.totalorder %s17, 1
    %p134 = por %p132, %p133
    %p136 = scmp.ne.s32.totalorder %s119, %s135
    %p137 = scmp.eq.s32.totalorder %s17, 0
    %p138 = por %p136, %p137
    %p139 = scmp.le.s32.totalorder 1, %s11
    %p140 = scmp.lt.s32.totalorder %s11, 3
    %p141 = pnand %p139, %p140
    %p142 = pneg %p141
    // Predicated region
    $region9: #{conv_block_forward.4} parent=5 // pred_check
      _
    $region10: #{conv_block_forward.4} parent=5 // pred_check_branch
      %144 = sbr.rel (%p141) target = $region12
    $region11: #{conv_block_forward.4} parent=5 // pred_region
      %s145 = ssub.s32 %s11, 1
      // Predicated region
      $region13: #{conv_block_forward.4} parent=11 // pred_check
        %p146 = pneg %p58
      $region14: #{conv_block_forward.4} parent=11 // pred_check_branch
        %148 = sbr.rel (%p146) target = $region16
      $region15: #{conv_block_forward.4} parent=11 // pred_region
        _
      $region16: #{conv_block_forward.4} parent=11 // pred_fallthru
        _
      // Predicated region
      $region17: #{conv_block_forward.4} parent=11 // pred_check
        %p149 = pneg %p79
      $region18: #{conv_block_forward.4} parent=11 // pred_check_branch
        %151 = sbr.rel (%p149) target = $region20
      $region19: #{conv_block_forward.4} parent=11 // pred_region
        _
      $region20: #{conv_block_forward.4} parent=11 // pred_fallthru
        _
    $region12: #{conv_block_forward.4} parent=5 // pred_fallthru
      _
    %p152 = scmp.lt.s32.totalorder %s11, 2
    // Predicated region
    $region21: #{conv_block_forward.4} parent=5 // pred_check
      %p153 = pneg %p152
    $region22: #{conv_block_forward.4} parent=5 // pred_check_branch
      %155 = sbr.rel (%p153) target = $region24
    $region23: #{conv_block_forward.4} parent=5 // pred_region
      // Predicated region
      $region25: #{conv_block_forward.4} parent=23 // pred_check
        %p156 = pneg %p31
      $region26: #{conv_block_forward.4} parent=23 // pred_check_branch
        %158 = sbr.rel (%p156) target = $region28
      $region27: #{conv_block_forward.4} parent=23 // pred_region
        %p159 = scmp.lt.s32.totalorder %s11, 1
        %s160 = scalar_select %p159, %s11, 1
        %s161 = smul.addr %s160, 32
        %s162 = smul.addr %s161, 8
        %s163 = scalar_lea.vmem %s0, %s162
      $region28: #{conv_block_forward.4} parent=23 // pred_fallthru
        _
    $region24: #{conv_block_forward.4} parent=5 // pred_fallthru
      _
    %p164 = scmp.le.s32.totalorder 1, %s11
    %p165 = scmp.lt.s32.totalorder %s11, 3
    %p166 = pnand %p164, %p165
    %p167 = pneg %p166
    // Predicated region
    $region29: #{conv_block_forward.4} parent=5 // pred_check
      _
    $region30: #{conv_block_forward.4} parent=5 // pred_check_branch
      %169 = sbr.rel (%p166) target = $region32
    $region31: #{conv_block_forward.4} parent=5 // pred_region
      %s170 = ssub.s32 %s11, 1
      %p171 = scmp.lt.s32.totalorder %s16, 1
      %s172 = scalar_select %p171, %s16, 1
      %s173 = smul.addr %s172, 32
      %s174 = smul.addr %s173, 8
      %s175 = scalar_lea.vmem %s0, %s174
      %p176 = pneg %p37
      %p177 = pneg %p34
      %p178 = pneg %p58
      %p179 = pneg %p55
      %p180 = pneg %p79
      %p181 = pneg %p76
      %p182 = pneg %p105
      %p183 = pneg %p102
      %p184 = scmp.lt.s32.totalorder %s16, 1
      %s185 = scalar_select %p184, %s16, 1
      %s186 = smul.addr %s185, 32
      %s187 = smul.addr %s186, 8
      %s188 = scalar_lea.vmem %s3, %s187
      %p189 = pneg %p131
      %p190 = pneg %p128
      %p191 = scmp.lt.s32.totalorder %s16, 1
      %s192 = scalar_select %p191, %s16, 1
      %s193 = smul.addr %s192, 2
      %s194 = scalar_lea.vmem %s4, %s193
      %p195 = scmp.lt.s32.totalorder %s16, 1
      %s196 = scalar_select %p195, %s16, 1
      %s197 = smul.addr %s196, 32
      %s198 = smul.addr %s197, 8
      %s199 = scalar_lea.vmem %s0, %s198
      %p200 = scmp.lt.s32.totalorder %s16, 1
      %s201 = scalar_select %p200, %s16, 1
      %s202 = smul.addr %s201, 32
      %s203 = smul.addr %s202, 8
      %s204 = scalar_lea.vmem %s3, %s203
      %p205 = scmp.lt.s32.totalorder %s16, 1
      %s206 = scalar_select %p205, %s16, 1
      %s207 = smul.addr %s206, 2
      %s208 = scalar_lea.vmem %s4, %s207
      %p209 = scmp.eq.s32.totalorder %s16, 0
      // Predicated region
      $region33: #{conv_block_forward.4} parent=31 // pred_check
        %p210 = pneg %p209
      $region34: #{conv_block_forward.4} parent=31 // pred_check_branch
        %212 = sbr.rel (%p210) target = $region36
      $region35: #{conv_block_forward.4} parent=31 // pred_region
        %213 = vst [vmem:[#allocation2] sm:$0xff] 0.0
        %214 = vst [vmem:[#allocation2 + $0x8] sm:$0xff] 0.0
        %215 = vst [vmem:[#allocation2 + $0x10] sm:$0xff] 0.0
        %216 = vst [vmem:[#allocation2 + $0x18] sm:$0xff] 0.0
        %217 = vst [vmem:[#allocation2 + $0x20] sm:$0xff] 0.0
        %218 = vst [vmem:[#allocation2 + $0x28] sm:$0xff] 0.0
        %219 = vst [vmem:[#allocation2 + $0x30] sm:$0xff] 0.0
        %220 = vst [vmem:[#allocation2 + $0x38] sm:$0xff] 0.0
        %221 = vst [vmem:[#allocation2 + $0x40] sm:$0xff] 0.0
        %222 = vst [vmem:[#allocation2 + $0x48] sm:$0xff] 0.0
        %223 = vst [vmem:[#allocation2 + $0x50] sm:$0xff] 0.0
        %224 = vst [vmem:[#allocation2 + $0x58] sm:$0xff] 0.0
        %225 = vst [vmem:[#allocation2 + $0x60] sm:$0xff] 0.0
        %226 = vst [vmem:[#allocation2 + $0x68] sm:$0xff] 0.0
        %227 = vst [vmem:[#allocation2 + $0x70] sm:$0xff] 0.0
        %228 = vst [vmem:[#allocation2 + $0x78] sm:$0xff] 0.0
        %229 = vst [vmem:[#allocation2 + $0x80] sm:$0xff] 0.0
        %230 = vst [vmem:[#allocation2 + $0x88] sm:$0xff] 0.0
        %231 = vst [vmem:[#allocation2 + $0x90] sm:$0xff] 0.0
        %232 = vst [vmem:[#allocation2 + $0x98] sm:$0xff] 0.0
        %233 = vst [vmem:[#allocation2 + $0xa0] sm:$0xff] 0.0
        %234 = vst [vmem:[#allocation2 + $0xa8] sm:$0xff] 0.0
        %235 = vst [vmem:[#allocation2 + $0xb0] sm:$0xff] 0.0
        %236 = vst [vmem:[#allocation2 + $0xb8] sm:$0xff] 0.0
        %237 = vst [vmem:[#allocation2 + $0xc0] sm:$0xff] 0.0
        %238 = vst [vmem:[#allocation2 + $0xc8] sm:$0xff] 0.0
        %239 = vst [vmem:[#allocation2 + $0xd0] sm:$0xff] 0.0
        %240 = vst [vmem:[#allocation2 + $0xd8] sm:$0xff] 0.0
        %241 = vst [vmem:[#allocation2 + $0xe0] sm:$0xff] 0.0
        %242 = vst [vmem:[#allocation2 + $0xe8] sm:$0xff] 0.0
        %243 = vst [vmem:[#allocation2 + $0xf0] sm:$0xff] 0.0
        %244 = vst [vmem:[#allocation2 + $0xf8] sm:$0xff] 0.0
        %245 = vst [vmem:[#allocation2 + $0x100] sm:$0xff] 0.0
        %246 = vst [vmem:[#allocation2 + $0x108] sm:$0xff] 0.0
        %247 = vst [vmem:[#allocation2 + $0x110] sm:$0xff] 0.0
        %248 = vst [vmem:[#allocation2 + $0x118] sm:$0xff] 0.0
        %249 = vst [vmem:[#allocation2 + $0x120] sm:$0xff] 0.0
        %250 = vst [vmem:[#allocation2 + $0x128] sm:$0xff] 0.0
        %251 = vst [vmem:[#allocation2 + $0x130] sm:$0xff] 0.0
        %252 = vst [vmem:[#allocation2 + $0x138] sm:$0xff] 0.0
        %253 = vst [vmem:[#allocation2 + $0x140] sm:$0xff] 0.0
        %254 = vst [vmem:[#allocation2 + $0x148] sm:$0xff] 0.0
        %255 = vst [vmem:[#allocation2 + $0x150] sm:$0xff] 0.0
        %256 = vst [vmem:[#allocation2 + $0x158] sm:$0xff] 0.0
        %257 = vst [vmem:[#allocation2 + $0x160] sm:$0xff] 0.0
        %258 = vst [vmem:[#allocation2 + $0x168] sm:$0xff] 0.0
        %259 = vst [vmem:[#allocation2 + $0x170] sm:$0xff] 0.0
        %260 = vst [vmem:[#allocation2 + $0x178] sm:$0xff] 0.0
        %261 = vst [vmem:[#allocation2 + $0x180] sm:$0xff] 0.0
        %262 = vst [vmem:[#allocation2 + $0x188] sm:$0xff] 0.0
        %263 = vst [vmem:[#allocation2 + $0x190] sm:$0xff] 0.0
        %264 = vst [vmem:[#allocation2 + $0x198] sm:$0xff] 0.0
        %265 = vst [vmem:[#allocation2 + $0x1a0] sm:$0xff] 0.0
        %266 = vst [vmem:[#allocation2 + $0x1a8] sm:$0xff] 0.0
      $region36: #{conv_block_forward.4} parent=31 // pred_fallthru
        _
      %v267 = vld [vmem:[%s199] sm:$0xff]
      %v268 = vld [vmem:[%s199 + $0x8] sm:$0xff]
      %v269 = vld [vmem:[%s199 + $0x10] sm:$0xff]
      %v270 = vld [vmem:[%s199 + $0x18] sm:$0xff]
      %v271 = vld [vmem:[%s199 + $0x20] sm:$0xff]
      %v272 = vld [vmem:[%s199 + $0x28] sm:$0xff]
      %v273 = vld [vmem:[%s199 + $0x30] sm:$0xff]
      %v274 = vld [vmem:[%s199 + $0x38] sm:$0xff]
      %v275 = vld [vmem:[%s199 + $0x40] sm:$0xff]
      %v276 = vld [vmem:[%s199 + $0x48] sm:$0xff]
      %v277 = vld [vmem:[%s199 + $0x50] sm:$0xff]
      %v278 = vld [vmem:[%s199 + $0x58] sm:$0xff]
      %v279 = vld [vmem:[%s199 + $0x60] sm:$0xff]
      %v280 = vld [vmem:[%s199 + $0x68] sm:$0xff]
      %v281 = vld [vmem:[%s199 + $0x70] sm:$0xff]
      %v282 = vld [vmem:[%s199 + $0x78] sm:$0xff]
      %v283 = vld [vmem:[%s199 + $0x80] sm:$0xff]
      %v284 = vld [vmem:[%s199 + $0x88] sm:$0xff]
      %v285 = vld [vmem:[%s199 + $0x90] sm:$0xff]
      %v286 = vld [vmem:[%s199 + $0x98] sm:$0xff]
      %v287 = vld [vmem:[%s199 + $0xa0] sm:$0xff]
      %v288 = vld [vmem:[%s199 + $0xa8] sm:$0xff]
      %v289 = vld [vmem:[%s199 + $0xb0] sm:$0xff]
      %v290 = vld [vmem:[%s199 + $0xb8] sm:$0xff]
      %v291 = vld [vmem:[%s199 + $0xc0] sm:$0xff]
      %v292 = vld [vmem:[%s199 + $0xc8] sm:$0xff]
      %v293 = vld [vmem:[%s199 + $0xd0] sm:$0xff]
      %v294 = vld [vmem:[%s199 + $0xd8] sm:$0xff]
      %v295 = vld [vmem:[%s199 + $0xe0] sm:$0xff]
      %v296 = vld [vmem:[%s199 + $0xe8] sm:$0xff]
      %v297 = vld [vmem:[%s199 + $0xf0] sm:$0xff]
      %v298 = vld [vmem:[%s199 + $0xf8] sm:$0xff]
      %v299 = vld [vmem:[%s1] sm:$0x1]
      %v300 = vlaneseq
      %v301 = vshrl.u32 %v300, 7
      %v302 = vsub.s32 0, %v301
      %v303 = vrot.slane %v299, %v302
      %v304 = vmul.f32 %v267, %v303
      %v305 = vmul.f32 %v268, %v303
      %v306 = vmul.f32 %v269, %v303
      %v307 = vmul.f32 %v270, %v303
      %v308 = vmul.f32 %v271, %v303
      %v309 = vmul.f32 %v272, %v303
      %v310 = vmul.f32 %v273, %v303
      %v311 = vmul.f32 %v274, %v303
      %v312 = vmul.f32 %v275, %v303
      %v313 = vmul.f32 %v276, %v303
      %v314 = vmul.f32 %v277, %v303
      %v315 = vmul.f32 %v278, %v303
      %v316 = vmul.f32 %v279, %v303
      %v317 = vmul.f32 %v280, %v303
      %v318 = vmul.f32 %v281, %v303
      %v319 = vmul.f32 %v282, %v303
      %v320 = vmul.f32 %v283, %v303
      %v321 = vmul.f32 %v284, %v303
      %v322 = vmul.f32 %v285, %v303
      %v323 = vmul.f32 %v286, %v303
      %v324 = vmul.f32 %v287, %v303
      %v325 = vmul.f32 %v288, %v303
      %v326 = vmul.f32 %v289, %v303
      %v327 = vmul.f32 %v290, %v303
      %v328 = vmul.f32 %v291, %v303
      %v329 = vmul.f32 %v292, %v303
      %v330 = vmul.f32 %v293, %v303
      %v331 = vmul.f32 %v294, %v303
      %v332 = vmul.f32 %v295, %v303
      %v333 = vmul.f32 %v296, %v303
      %v334 = vmul.f32 %v297, %v303
      %v335 = vmul.f32 %v298, %v303
      %v336 = vld [vmem:[%s1 + $0x1] sm:$0x1]
      %v337 = vlaneseq
      %v338 = vshrl.u32 %v337, 7
      %v339 = vsub.s32 0, %v338
      %v340 = vrot.slane %v336, %v339
      %v341 = vadd.f32 %v304, %v340
      %v342 = vadd.f32 %v305, %v340
      %v343 = vadd.f32 %v306, %v340
      %v344 = vadd.f32 %v307, %v340
      %v345 = vadd.f32 %v308, %v340
      %v346 = vadd.f32 %v309, %v340
      %v347 = vadd.f32 %v310, %v340
      %v348 = vadd.f32 %v311, %v340
      %v349 = vadd.f32 %v312, %v340
      %v350 = vadd.f32 %v313, %v340
      %v351 = vadd.f32 %v314, %v340
      %v352 = vadd.f32 %v315, %v340
      %v353 = vadd.f32 %v316, %v340
      %v354 = vadd.f32 %v317, %v340
      %v355 = vadd.f32 %v318, %v340
      %v356 = vadd.f32 %v319, %v340
      %v357 = vadd.f32 %v320, %v340
      %v358 = vadd.f32 %v321, %v340
      %v359 = vadd.f32 %v322, %v340
      %v360 = vadd.f32 %v323, %v340
      %v361 = vadd.f32 %v324, %v340
      %v362 = vadd.f32 %v325, %v340
      %v363 = vadd.f32 %v326, %v340
      %v364 = vadd.f32 %v327, %v340
      %v365 = vadd.f32 %v328, %v340
      %v366 = vadd.f32 %v329, %v340
      %v367 = vadd.f32 %v330, %v340
      %v368 = vadd.f32 %v331, %v340
      %v369 = vadd.f32 %v332, %v340
      %v370 = vadd.f32 %v333, %v340
      %v371 = vadd.f32 %v334, %v340
      %v372 = vadd.f32 %v335, %v340
      %v373 = vmax.f32 %v341, 0.0
      %v374 = vmax.f32 %v342, 0.0
      %v375 = vmax.f32 %v343, 0.0
      %v376 = vmax.f32 %v344, 0.0
      %v377 = vmax.f32 %v345, 0.0
      %v378 = vmax.f32 %v346, 0.0
      %v379 = vmax.f32 %v347, 0.0
      %v380 = vmax.f32 %v348, 0.0
      %v381 = vmax.f32 %v349, 0.0
      %v382 = vmax.f32 %v350, 0.0
      %v383 = vmax.f32 %v351, 0.0
      %v384 = vmax.f32 %v352, 0.0
      %v385 = vmax.f32 %v353, 0.0
      %v386 = vmax.f32 %v354, 0.0
      %v387 = vmax.f32 %v355, 0.0
      %v388 = vmax.f32 %v356, 0.0
      %v389 = vmax.f32 %v357, 0.0
      %v390 = vmax.f32 %v358, 0.0
      %v391 = vmax.f32 %v359, 0.0
      %v392 = vmax.f32 %v360, 0.0
      %v393 = vmax.f32 %v361, 0.0
      %v394 = vmax.f32 %v362, 0.0
      %v395 = vmax.f32 %v363, 0.0
      %v396 = vmax.f32 %v364, 0.0
      %v397 = vmax.f32 %v365, 0.0
      %v398 = vmax.f32 %v366, 0.0
      %v399 = vmax.f32 %v367, 0.0
      %v400 = vmax.f32 %v368, 0.0
      %v401 = vmax.f32 %v369, 0.0
      %v402 = vmax.f32 %v370, 0.0
      %v403 = vmax.f32 %v371, 0.0
      %v404 = vmax.f32 %v372, 0.0
      %s405 = scalar_lea.vmem [#allocation2], 24
      %406 = vst [vmem:[%s405 + $0x1] sm:$0xff] %v373
      %407 = vst [vmem:[%s405 + $0x9] sm:$0xff] %v374
      %408 = vst [vmem:[%s405 + $0x19] sm:$0xff] %v375
      %409 = vst [vmem:[%s405 + $0x21] sm:$0xff] %v376
      %410 = vst [vmem:[%s405 + $0x31] sm:$0xff] %v377
      %411 = vst [vmem:[%s405 + $0x39] sm:$0xff] %v378
      %412 = vst [vmem:[%s405 + $0x49] sm:$0xff] %v379
      %413 = vst [vmem:[%s405 + $0x51] sm:$0xff] %v380
      %414 = vst [vmem:[%s405 + $0x61] sm:$0xff] %v381
      %415 = vst [vmem:[%s405 + $0x69] sm:$0xff] %v382
      %416 = vst [vmem:[%s405 + $0x79] sm:$0xff] %v383
      %417 = vst [vmem:[%s405 + $0x81] sm:$0xff] %v384
      %418 = vst [vmem:[%s405 + $0x91] sm:$0xff] %v385
      %419 = vst [vmem:[%s405 + $0x99] sm:$0xff] %v386
      %420 = vst [vmem:[%s405 + $0xa9] sm:$0xff] %v387
      %421 = vst [vmem:[%s405 + $0xb1] sm:$0xff] %v388
      %422 = vst [vmem:[%s405 + $0xc1] sm:$0xff] %v389
      %423 = vst [vmem:[%s405 + $0xc9] sm:$0xff] %v390
      %424 = vst [vmem:[%s405 + $0xd9] sm:$0xff] %v391
      %425 = vst [vmem:[%s405 + $0xe1] sm:$0xff] %v392
      %426 = vst [vmem:[%s405 + $0xf1] sm:$0xff] %v393
      %427 = vst [vmem:[%s405 + $0xf9] sm:$0xff] %v394
      %428 = vst [vmem:[%s405 + $0x109] sm:$0xff] %v395
      %429 = vst [vmem:[%s405 + $0x111] sm:$0xff] %v396
      %430 = vst [vmem:[%s405 + $0x121] sm:$0xff] %v397
      %431 = vst [vmem:[%s405 + $0x129] sm:$0xff] %v398
      %432 = vst [vmem:[%s405 + $0x139] sm:$0xff] %v399
      %433 = vst [vmem:[%s405 + $0x141] sm:$0xff] %v400
      %434 = vst [vmem:[%s405 + $0x151] sm:$0xff] %v401
      %435 = vst [vmem:[%s405 + $0x159] sm:$0xff] %v402
      %436 = vst [vmem:[%s405 + $0x169] sm:$0xff] %v403
      %437 = vst [vmem:[%s405 + $0x171] sm:$0xff] %v404
      %v438 = vld [vmem:[#allocation2] sm:$0xff]
      %v439 = vld [vmem:[#allocation2 + $0x8] sm:$0xff]
      %v440 = vld [vmem:[#allocation2 + $0x18] sm:$0xff]
      %v441 = vld [vmem:[#allocation2 + $0x20] sm:$0xff]
      %v442 = vld [vmem:[#allocation2 + $0x30] sm:$0xff]
      %v443 = vld [vmem:[#allocation2 + $0x38] sm:$0xff]
      %v444 = vld [vmem:[#allocation2 + $0x48] sm:$0xff]
      %v445 = vld [vmem:[#allocation2 + $0x50] sm:$0xff]
      %v446 = vld [vmem:[#allocation2 + $0x60] sm:$0xff]
      %v447 = vld [vmem:[#allocation2 + $0x68] sm:$0xff]
      %v448 = vld [vmem:[#allocation2 + $0x78] sm:$0xff]
      %v449 = vld [vmem:[#allocation2 + $0x80] sm:$0xff]
      %v450 = vld [vmem:[#allocation2 + $0x90] sm:$0xff]
      %v451 = vld [vmem:[#allocation2 + $0x98] sm:$0xff]
      %v452 = vld [vmem:[#allocation2 + $0xa8] sm:$0xff]
      %v453 = vld [vmem:[#allocation2 + $0xb0] sm:$0xff]
      %v454 = vld [vmem:[#allocation2 + $0xc0] sm:$0xff]
      %v455 = vld [vmem:[#allocation2 + $0xc8] sm:$0xff]
      %v456 = vld [vmem:[#allocation2 + $0xd8] sm:$0xff]
      %v457 = vld [vmem:[#allocation2 + $0xe0] sm:$0xff]
      %v458 = vld [vmem:[#allocation2 + $0xf0] sm:$0xff]
      %v459 = vld [vmem:[#allocation2 + $0xf8] sm:$0xff]
      %v460 = vld [vmem:[#allocation2 + $0x108] sm:$0xff]
      %v461 = vld [vmem:[#allocation2 + $0x110] sm:$0xff]
      %v462 = vld [vmem:[#allocation2 + $0x120] sm:$0xff]
      %v463 = vld [vmem:[#allocation2 + $0x128] sm:$0xff]
      %v464 = vld [vmem:[#allocation2 + $0x138] sm:$0xff]
      %v465 = vld [vmem:[#allocation2 + $0x140] sm:$0xff]
      %v466 = vld [vmem:[#allocation2 + $0x150] sm:$0xff]
      %v467 = vld [vmem:[#allocation2 + $0x158] sm:$0xff]
      %v468 = vld [vmem:[#allocation2 + $0x168] sm:$0xff]
      %v469 = vld [vmem:[#allocation2 + $0x170] sm:$0xff]
      %v470 = vld [vmem:[%s2] sm:$0xff]
      %v471 = vld [vmem:[%s2 + $0x8] sm:$0xff]
      %v472 = vld [vmem:[%s2 + $0x10] sm:$0xff]
      %v473 = vld [vmem:[%s2 + $0x18] sm:$0xff]
      %v474 = vld [vmem:[%s2 + $0x20] sm:$0xff]
      %v475 = vld [vmem:[%s2 + $0x28] sm:$0xff]
      %v476 = vld [vmem:[%s2 + $0x30] sm:$0xff]
      %v477 = vld [vmem:[%s2 + $0x38] sm:$0xff]
      %v478 = vld [vmem:[%s2 + $0x40] sm:$0xff]
      %v479 = vld [vmem:[%s2 + $0x48] sm:$0xff]
      %v480 = vld [vmem:[%s2 + $0x50] sm:$0xff]
      %v481 = vld [vmem:[%s2 + $0x58] sm:$0xff]
      %v482 = vld [vmem:[%s2 + $0x60] sm:$0xff]
      %v483 = vld [vmem:[%s2 + $0x68] sm:$0xff]
      %v484 = vld [vmem:[%s2 + $0x70] sm:$0xff]
      %v485 = vld [vmem:[%s2 + $0x78] sm:$0xff]
      %v486 = vld [vmem:[#allocation2 + $0x1] sm:$0xff]
      %v487 = vld [vmem:[#allocation2 + $0x9] sm:$0xff]
      %v488 = vld [vmem:[#allocation2 + $0x19] sm:$0xff]
      %v489 = vld [vmem:[#allocation2 + $0x21] sm:$0xff]
      %v490 = vld [vmem:[#allocation2 + $0x31] sm:$0xff]
      %v491 = vld [vmem:[#allocation2 + $0x39] sm:$0xff]
      %v492 = vld [vmem:[#allocation2 + $0x49] sm:$0xff]
      %v493 = vld [vmem:[#allocation2 + $0x51] sm:$0xff]
      %v494 = vld [vmem:[#allocation2 + $0x61] sm:$0xff]
      %v495 = vld [vmem:[#allocation2 + $0x69] sm:$0xff]
      %v496 = vld [vmem:[#allocation2 + $0x79] sm:$0xff]
      %v497 = vld [vmem:[#allocation2 + $0x81] sm:$0xff]
      %v498 = vld [vmem:[#allocation2 + $0x91] sm:$0xff]
      %v499 = vld [vmem:[#allocation2 + $0x99] sm:$0xff]
      %v500 = vld [vmem:[#allocation2 + $0xa9] sm:$0xff]
      %v501 = vld [vmem:[#allocation2 + $0xb1] sm:$0xff]
      %v502 = vld [vmem:[#allocation2 + $0xc1] sm:$0xff]
      %v503 = vld [vmem:[#allocation2 + $0xc9] sm:$0xff]
      %v504 = vld [vmem:[#allocation2 + $0xd9] sm:$0xff]
      %v505 = vld [vmem:[#allocation2 + $0xe1] sm:$0xff]
      %v506 = vld [vmem:[#allocation2 + $0xf1] sm:$0xff]
      %v507 = vld [vmem:[#allocation2 + $0xf9] sm:$0xff]
      %v508 = vld [vmem:[#allocation2 + $0x109] sm:$0xff]
      %v509 = vld [vmem:[#allocation2 + $0x111] sm:$0xff]
      %v510 = vld [vmem:[#allocation2 + $0x121] sm:$0xff]
      %v511 = vld [vmem:[#allocation2 + $0x129] sm:$0xff]
      %v512 = vld [vmem:[#allocation2 + $0x139] sm:$0xff]
      %v513 = vld [vmem:[#allocation2 + $0x141] sm:$0xff]
      %v514 = vld [vmem:[#allocation2 + $0x151] sm:$0xff]
      %v515 = vld [vmem:[#allocation2 + $0x159] sm:$0xff]
      %v516 = vld [vmem:[#allocation2 + $0x169] sm:$0xff]
      %v517 = vld [vmem:[#allocation2 + $0x171] sm:$0xff]
      %s518 = scalar_lea.vmem %s2, 128
      %v519 = vld [vmem:[%s518] sm:$0xff]
      %v520 = vld [vmem:[%s518 + $0x8] sm:$0xff]
      %v521 = vld [vmem:[%s518 + $0x10] sm:$0xff]
      %v522 = vld [vmem:[%s518 + $0x18] sm:$0xff]
      %v523 = vld [vmem:[%s518 + $0x20] sm:$0xff]
      %v524 = vld [vmem:[%s518 + $0x28] sm:$0xff]
      %v525 = vld [vmem:[%s518 + $0x30] sm:$0xff]
      %v526 = vld [vmem:[%s518 + $0x38] sm:$0xff]
      %v527 = vld [vmem:[%s518 + $0x40] sm:$0xff]
      %v528 = vld [vmem:[%s518 + $0x48] sm:$0xff]
      %v529 = vld [vmem:[%s518 + $0x50] sm:$0xff]
      %v530 = vld [vmem:[%s518 + $0x58] sm:$0xff]
      %v531 = vld [vmem:[%s518 + $0x60] sm:$0xff]
      %v532 = vld [vmem:[%s518 + $0x68] sm:$0xff]
      %v533 = vld [vmem:[%s518 + $0x70] sm:$0xff]
      %v534 = vld [vmem:[%s518 + $0x78] sm:$0xff]
      %535 = vmatprep.subr.mxu0 0.0
      %536 = vmatpush1.msra.mxu0 %v519
      %537 = vmatprep.subr.mxu0 0.0
      %538 = vmatpush1.msra.mxu0 %v520
      %539 = vmatprep.subr.mxu0 0.0
      %540 = vmatpush1.msra.mxu0 %v521
      %541 = vmatprep.subr.mxu0 0.0
      %542 = vmatpush1.msra.mxu0 %v522
      %543 = vmatprep.subr.mxu0 0.0
      %544 = vmatpush1.msra.mxu0 %v523
      %545 = vmatprep.subr.mxu0 0.0
      %546 = vmatpush1.msra.mxu0 %v524
      %547 = vmatprep.subr.mxu0 0.0
      %548 = vmatpush1.msra.mxu0 %v525
      %549 = vmatprep.subr.mxu0 0.0
      %550 = vmatpush1.msra.mxu0 %v526
      %551 = vmatprep.subr.mxu0 0.0
      %552 = vmatpush1.msra.mxu0 %v527
      %553 = vmatprep.subr.mxu0 0.0
      %554 = vmatpush1.msra.mxu0 %v528
      %555 = vmatprep.subr.mxu0 0.0
      %556 = vmatpush1.msra.mxu0 %v529
      %557 = vmatprep.subr.mxu0 0.0
      %558 = vmatpush1.msra.mxu0 %v530
      %559 = vmatprep.subr.mxu0 0.0
      %560 = vmatpush1.msra.mxu0 %v531
      %561 = vmatprep.subr.mxu0 0.0
      %562 = vmatpush1.msra.mxu0 %v532
      %563 = vmatprep.subr.mxu0 0.0
      %564 = vmatpush1.msra.mxu0 %v533
      %565 = vmatprep.subr.mxu0 0.0
      %566 = vmatpush1.msra.mxu0 %v534
      %567 = vmatprep.subr.mxu0 0.0
      %568 = vmatpush1.msra.mxu0 0.0
      %569 = vmatprep.subr.mxu0 0.0
      %570 = vmatpush1.msra.mxu0 0.0
      %571 = vmatprep.subr.mxu0 0.0
      %572 = vmatpush1.msra.mxu0 0.0
      %573 = vmatprep.subr.mxu0 0.0
      %574 = vmatpush1.msra.mxu0 0.0
      %575 = vmatprep.subr.mxu0 0.0
      %576 = vmatpush1.msra.mxu0 0.0
      %577 = vmatprep.subr.mxu0 0.0
      %578 = vmatpush1.msra.mxu0 0.0
      %579 = vmatprep.subr.mxu0 0.0
      %580 = vmatpush1.msra.mxu0 0.0
      %581 = vmatprep.subr.mxu0 0.0
      %582 = vmatpush1.msra.mxu0 0.0
      %583 = vmatprep.subr.mxu0 0.0
      %584 = vmatpush1.msra.mxu0 0.0
      %585 = vmatprep.subr.mxu0 0.0
      %586 = vmatpush1.msra.mxu0 0.0
      %587 = vmatprep.subr.mxu0 0.0
      %588 = vmatpush1.msra.mxu0 0.0
      %589 = vmatprep.subr.mxu0 0.0
      %590 = vmatpush1.msra.mxu0 0.0
      %591 = vmatprep.subr.mxu0 0.0
      %592 = vmatpush1.msra.mxu0 0.0
      %593 = vmatprep.subr.mxu0 0.0
      %594 = vmatpush1.msra.mxu0 0.0
      %595 = vmatprep.subr.mxu0 0.0
      %596 = vmatpush1.msra.mxu0 0.0
      %597 = vmatprep.subr.mxu0 0.0
      %598 = vmatpush1.msra.mxu0 0.0
      %599 = vmatprep.mubr.f32.mxu0 0.0
      %600 = vmatmul.mubr.f32.gmra.mrb[0].mxu0 %v486
      %v601 = vpop.f32.mrb[0].mxu0
      %v602 = vadd.f32 0.0, %v601
      %v603 = vpop.f32.mrb[0].mxu0
      %604 = vmatprep.mubr.f32.mxu0 0.0
      %605 = vmatmul.mubr.f32.gmra.mrb[0].mxu0 %v487
      %v606 = vpop.f32.mrb[0].mxu0
      %v607 = vadd.f32 0.0, %v606
      %v608 = vpop.f32.mrb[0].mxu0
      %609 = vmatprep.mubr.f32.mxu0 0.0
      %610 = vmatmul.mubr.f32.gmra.mrb[0].mxu0 %v488
      %v611 = vpop.f32.mrb[0].mxu0
      %v612 = vadd.f32 0.0, %v611
      %v613 = vpop.f32.mrb[0].mxu0
      %614 = vmatprep.mubr.f32.mxu0 0.0
      %615 = vmatmul.mubr.f32.gmra.mrb[0].mxu0 %v489
      %v616 = vpop.f32.mrb[0].mxu0
      %v617 = vadd.f32 0.0, %v616
      %v618 = vpop.f32.mrb[0].mxu0
      %619 = vmatprep.mubr.f32.mxu0 0.0
      %620 = vmatmul.mubr.f32.gmra.mrb[0].mxu0 %v490
      %v621 = vpop.f32.mrb[0].mxu0
      %v622 = vadd.f32 0.0, %v621
      %v623 = vpop.f32.mrb[0].mxu0
      %624 = vmatprep.mubr.f32.mxu0 0.0
      %625 = vmatmul.mubr.f32.gmra.mrb[0].mxu0 %v491
      %v626 = vpop.f32.mrb[0].mxu0
      %v627 = vadd.f32 0.0, %v626
      %v628 = vpop.f32.mrb[0].mxu0
      %629 = vmatprep.mubr.f32.mxu0 0.0
      %630 = vmatmul.mubr.f32.gmra.mrb[0].mxu0 %v492
      %v631 = vpop.f32.mrb[0].mxu0
      %v632 = vadd.f32 0.0, %v631
      %v633 = vpop.f32.mrb[0].mxu0
      %634 = vmatprep.mubr.f32.mxu0 0.0
      %635 = vmatmul.mubr.f32.gmra.mrb[0].mxu0 %v493
      %v636 = vpop.f32.mrb[0].mxu0
      %v637 = vadd.f32 0.0, %v636
      %v638 = vpop.f32.mrb[0].mxu0
      %639 = vmatprep.mubr.f32.mxu0 0.0
      %640 = vmatmul.mubr.f32.gmra.mrb[0].mxu0 %v494
      %v641 = vpop.f32.mrb[0].mxu0
      %v642 = vadd.f32 0.0, %v641
      %v643 = vpop.f32.mrb[0].mxu0
      %644 = vmatprep.mubr.f32.mxu0 0.0
      %645 = vmatmul.mubr.f32.gmra.mrb[0].mxu0 %v495
      %v646 = vpop.f32.mrb[0].mxu0
      %v647 = vadd.f32 0.0, %v646
      %v648 = vpop.f32.mrb[0].mxu0
      %649 = vmatprep.mubr.f32.mxu0 0.0
      %650 = vmatmul.mubr.f32.gmra.mrb[0].mxu0 %v496
      %v651 = vpop.f32.mrb[0].mxu0
      %v652 = vadd.f32 0.0, %v651
      %v653 = vpop.f32.mrb[0].mxu0
      %654 = vmatprep.mubr.f32.mxu0 0.0
      %655 = vmatmul.mubr.f32.gmra.mrb[0].mxu0 %v497
      %v656 = vpop.f32.mrb[0].mxu0
      %v657 = vadd.f32 0.0, %v656
      %v658 = vpop.f32.mrb[0].mxu0
      %659 = vmatprep.mubr.f32.mxu0 0.0
      %660 = vmatmul.mubr.f32.gmra.mrb[0].mxu0 %v498
      %v661 = vpop.f32.mrb[0].mxu0
      %v662 = vadd.f32 0.0, %v661
      %v663 = vpop.f32.mrb[0].mxu0
      %664 = vmatprep.mubr.f32.mxu0 0.0
      %665 = vmatmul.mubr.f32.gmra.mrb[0].mxu0 %v499
      %v666 = vpop.f32.mrb[0].mxu0
      %v667 = vadd.f32 0.0, %v666
      %v668 = vpop.f32.mrb[0].mxu0
      %669 = vmatprep.mubr.f32.mxu0 0.0
      %670 = vmatmul.mubr.f32.gmra.mrb[0].mxu0 %v500
      %v671 = vpop.f32.mrb[0].mxu0
      %v672 = vadd.f32 0.0, %v671
      %v673 = vpop.f32.mrb[0].mxu0
      %674 = vmatprep.mubr.f32.mxu0 0.0
      %675 = vmatmul.mubr.f32.gmra.mrb[0].mxu0 %v501
      %v676 = vpop.f32.mrb[0].mxu0
      %v677 = vadd.f32 0.0, %v676
      %v678 = vpop.f32.mrb[0].mxu0
      %679 = vmatprep.mubr.f32.mxu0 0.0
      %680 = vmatmul.mubr.f32.gmra.mrb[0].mxu0 %v502
      %v681 = vpop.f32.mrb[0].mxu0
      %v682 = vadd.f32 0.0, %v681
      %v683 = vpop.f32.mrb[0].mxu0
      %684 = vmatprep.mubr.f32.mxu0 0.0
      %685 = vmatmul.mubr.f32.gmra.mrb[0].mxu0 %v503
      %v686 = vpop.f32.mrb[0].mxu0
      %v687 = vadd.f32 0.0, %v686
      %v688 = vpop.f32.mrb[0].mxu0
      %689 = vmatprep.mubr.f32.mxu0 0.0
      %690 = vmatmul.mubr.f32.gmra.mrb[0].mxu0 %v504
      %v691 = vpop.f32.mrb[0].mxu0
      %v692 = vadd.f32 0.0, %v691
      %v693 = vpop.f32.mrb[0].mxu0
      %694 = vmatprep.mubr.f32.mxu0 0.0
      %695 = vmatmul.mubr.f32.gmra.mrb[0].mxu0 %v505
      %v696 = vpop.f32.mrb[0].mxu0
      %v697 = vadd.f32 0.0, %v696
      %v698 = vpop.f32.mrb[0].mxu0
      %699 = vmatprep.mubr.f32.mxu0 0.0
      %700 = vmatmul.mubr.f32.gmra.mrb[0].mxu0 %v506
      %v701 = vpop.f32.mrb[0].mxu0
      %v702 = vadd.f32 0.0, %v701
      %v703 = vpop.f32.mrb[0].mxu0
      %704 = vmatprep.mubr.f32.mxu0 0.0
      %705 = vmatmul.mubr.f32.gmra.mrb[0].mxu0 %v507
      %v706 = vpop.f32.mrb[0].mxu0
      %v707 = vadd.f32 0.0, %v706
      %v708 = vpop.f32.mrb[0].mxu0
      %709 = vmatprep.mubr.f32.mxu0 0.0
      %710 = vmatmul.mubr.f32.gmra.mrb[0].mxu0 %v508
      %v711 = vpop.f32.mrb[0].mxu0
      %v712 = vadd.f32 0.0, %v711
      %v713 = vpop.f32.mrb[0].mxu0
      %714 = vmatprep.mubr.f32.mxu0 0.0
      %715 = vmatmul.mubr.f32.gmra.mrb[0].mxu0 %v509
      %v716 = vpop.f32.mrb[0].mxu0
      %v717 = vadd.f32 0.0, %v716
      %v718 = vpop.f32.mrb[0].mxu0
      %719 = vmatprep.mubr.f32.mxu0 0.0
      %720 = vmatmul.mubr.f32.gmra.mrb[0].mxu0 %v510
      %v721 = vpop.f32.mrb[0].mxu0
      %v722 = vadd.f32 0.0, %v721
      %v723 = vpop.f32.mrb[0].mxu0
      %724 = vmatprep.mubr.f32.mxu0 0.0
      %725 = vmatmul.mubr.f32.gmra.mrb[0].mxu0 %v511
      %v726 = vpop.f32.mrb[0].mxu0
      %v727 = vadd.f32 0.0, %v726
      %v728 = vpop.f32.mrb[0].mxu0
      %729 = vmatprep.mubr.f32.mxu0 0.0
      %730 = vmatmul.mubr.f32.gmra.mrb[0].mxu0 %v512
      %v731 = vpop.f32.mrb[0].mxu0
      %v732 = vadd.f32 0.0, %v731
      %v733 = vpop.f32.mrb[0].mxu0
      %734 = vmatprep.mubr.f32.mxu0 0.0
      %735 = vmatmul.mubr.f32.gmra.mrb[0].mxu0 %v513
      %v736 = vpop.f32.mrb[0].mxu0
      %v737 = vadd.f32 0.0, %v736
      %v738 = vpop.f32.mrb[0].mxu0
      %739 = vmatprep.mubr.f32.mxu0 0.0
      %740 = vmatmul.mubr.f32.gmra.mrb[0].mxu0 %v514
      %v741 = vpop.f32.mrb[0].mxu0
      %v742 = vadd.f32 0.0, %v741
      %v743 = vpop.f32.mrb[0].mxu0
      %744 = vmatprep.mubr.f32.mxu0 0.0
      %745 = vmatmul.mubr.f32.gmra.mrb[0].mxu0 %v515
      %v746 = vpop.f32.mrb[0].mxu0
      %v747 = vadd.f32 0.0, %v746
      %v748 = vpop.f32.mrb[0].mxu0
      %749 = vmatprep.mubr.f32.mxu0 0.0
      %750 = vmatmul.mubr.f32.gmra.mrb[0].mxu0 %v516
      %v751 = vpop.f32.mrb[0].mxu0
      %v752 = vadd.f32 0.0, %v751
      %v753 = vpop.f32.mrb[0].mxu0
      %754 = vmatprep.mubr.f32.mxu0 0.0
      %755 = vmatmul.mubr.f32.gmra.mrb[0].mxu0 %v517
      %v756 = vpop.f32.mrb[0].mxu0
      %v757 = vadd.f32 0.0, %v756
      %v758 = vpop.f32.mrb[0].mxu0
      %759 = vdwg.mxu0
      %760 = vmatprep.subr.mxu0 0.0
      %761 = vmatpush1.msra.mxu0 %v470
      %762 = vmatprep.subr.mxu0 0.0
      %763 = vmatpush1.msra.mxu0 %v471
      %764 = vmatprep.subr.mxu0 0.0
      %765 = vmatpush1.msra.mxu0 %v472
      %766 = vmatprep.subr.mxu0 0.0
      %767 = vmatpush1.msra.mxu0 %v473
      %768 = vmatprep.subr.mxu0 0.0
      %769 = vmatpush1.msra.mxu0 %v474
      %770 = vmatprep.subr.mxu0 0.0
      %771 = vmatpush1.msra.mxu0 %v475
      %772 = vmatprep.subr.mxu0 0.0
      %773 = vmatpush1.msra.mxu0 %v476
      %774 = vmatprep.subr.mxu0 0.0
      %775 = vmatpush1.msra.mxu0 %v477
      %776 = vmatprep.subr.mxu0 0.0
      %777 = vmatpush1.msra.mxu0 %v478
      %778 = vmatprep.subr.mxu0 0.0
      %779 = vmatpush1.msra.mxu0 %v479
      %780 = vmatprep.subr.mxu0 0.0
      %781 = vmatpush1.msra.mxu0 %v480
      %782 = vmatprep.subr.mxu0 0.0
      %783 = vmatpush1.msra.mxu0 %v481
      %784 = vmatprep.subr.mxu0 0.0
      %785 = vmatpush1.msra.mxu0 %v482
      %786 = vmatprep.subr.mxu0 0.0
      %787 = vmatpush1.msra.mxu0 %v483
      %788 = vmatprep.subr.mxu0 0.0
      %789 = vmatpush1.msra.mxu0 %v484
      %790 = vmatprep.subr.mxu0 0.0
      %791 = vmatpush1.msra.mxu0 %v485
      %792 = vmatprep.subr.mxu0 0.0
      %793 = vmatpush1.msra.mxu0 0.0
      %794 = vmatprep.subr.mxu0 0.0
      %795 = vmatpush1.msra.mxu0 0.0
      %796 = vmatprep.subr.mxu0 0.0
      %797 = vmatpush1.msra.mxu0 0.0
      %798 = vmatprep.subr.mxu0 0.0
      %799 = vmatpush1.msra.mxu0 0.0
      %800 = vmatprep.subr.mxu0 0.0
      %801 = vmatpush1.msra.mxu0 0.0
      %802 = vmatprep.subr.mxu0 0.0
      %803 = vmatpush1.msra.mxu0 0.0
      %804 = vmatprep.subr.mxu0 0.0
      %805 = vmatpush1.msra.mxu0 0.0
      %806 = vmatprep.subr.mxu0 0.0
      %807 = vmatpush1.msra.mxu0 0.0
      %808 = vmatprep.subr.mxu0 0.0
      %809 = vmatpush1.msra.mxu0 0.0
      %810 = vmatprep.subr.mxu0 0.0
      %811 = vmatpush1.msra.mxu0 0.0
      %812 = vmatprep.subr.mxu0 0.0
      %813 = vmatpush1.msra.mxu0 0.0
      %814 = vmatprep.subr.mxu0 0.0
      %815 = vmatpush1.msra.mxu0 0.0
      %816 = vmatprep.subr.mxu0 0.0
      %817 = vmatpush1.msra.mxu0 0.0
      %818 = vmatprep.subr.mxu0 0.0
      %819 = vmatpush1.msra.mxu0 0.0
      %820 = vmatprep.subr.mxu0 0.0
      %821 = vmatpush1.msra.mxu0 0.0
      %822 = vmatprep.subr.mxu0 0.0
      %823 = vmatpush1.msra.mxu0 0.0
      %824 = vmatprep.mubr.f32.mxu0 0.0
      %825 = vmatmul.mubr.f32.gmra.mrb[0].mxu0 %v438
      %v826 = vpop.f32.mrb[0].mxu0
      %v827 = vadd.f32 %v602, %v826
      %v828 = vpop.f32.mrb[0].mxu0
      %829 = vmatprep.mubr.f32.mxu0 0.0
      %830 = vmatmul.mubr.f32.gmra.mrb[0].mxu0 %v439
      %v831 = vpop.f32.mrb[0].mxu0
      %v832 = vadd.f32 %v607, %v831
      %v833 = vpop.f32.mrb[0].mxu0
      %834 = vmatprep.mubr.f32.mxu0 0.0
      %835 = vmatmul.mubr.f32.gmra.mrb[0].mxu0 %v440
      %v836 = vpop.f32.mrb[0].mxu0
      %v837 = vadd.f32 %v612, %v836
      %v838 = vpop.f32.mrb[0].mxu0
      %839 = vmatprep.mubr.f32.mxu0 0.0
      %840 = vmatmul.mubr.f32.gmra.mrb[0].mxu0 %v441
      %v841 = vpop.f32.mrb[0].mxu0
      %v842 = vadd.f32 %v617, %v841
      %v843 = vpop.f32.mrb[0].mxu0
      %844 = vmatprep.mubr.f32.mxu0 0.0
      %845 = vmatmul.mubr.f32.gmra.mrb[0].mxu0 %v442
      %v846 = vpop.f32.mrb[0].mxu0
      %v847 = vadd.f32 %v622, %v846
      %v848 = vpop.f32.mrb[0].mxu0
      %849 = vmatprep.mubr.f32.mxu0 0.0
      %850 = vmatmul.mubr.f32.gmra.mrb[0].mxu0 %v443
      %v851 = vpop.f32.mrb[0].mxu0
      %v852 = vadd.f32 %v627, %v851
      %v853 = vpop.f32.mrb[0].mxu0
      %854 = vmatprep.mubr.f32.mxu0 0.0
      %855 = vmatmul.mubr.f32.gmra.mrb[0].mxu0 %v444
      %v856 = vpop.f32.mrb[0].mxu0
      %v857 = vadd.f32 %v632, %v856
      %v858 = vpop.f32.mrb[0].mxu0
      %859 = vmatprep.mubr.f32.mxu0 0.0
      %860 = vmatmul.mubr.f32.gmra.mrb[0].mxu0 %v445
      %v861 = vpop.f32.mrb[0].mxu0
      %v862 = vadd.f32 %v637, %v861
      %v863 = vpop.f32.mrb[0].mxu0
      %864 = vmatprep.mubr.f32.mxu0 0.0
      %865 = vmatmul.mubr.f32.gmra.mrb[0].mxu0 %v446
      %v866 = vpop.f32.mrb[0].mxu0
      %v867 = vadd.f32 %v642, %v866
      %v868 = vpop.f32.mrb[0].mxu0
      %869 = vmatprep.mubr.f32.mxu0 0.0
      %870 = vmatmul.mubr.f32.gmra.mrb[0].mxu0 %v447
      %v871 = vpop.f32.mrb[0].mxu0
      %v872 = vadd.f32 %v647, %v871
      %v873 = vpop.f32.mrb[0].mxu0
      %874 = vmatprep.mubr.f32.mxu0 0.0
      %875 = vmatmul.mubr.f32.gmra.mrb[0].mxu0 %v448
      %v876 = vpop.f32.mrb[0].mxu0
      %v877 = vadd.f32 %v652, %v876
      %v878 = vpop.f32.mrb[0].mxu0
      %879 = vmatprep.mubr.f32.mxu0 0.0
      %880 = vmatmul.mubr.f32.gmra.mrb[0].mxu0 %v449
      %v881 = vpop.f32.mrb[0].mxu0
      %v882 = vadd.f32 %v657, %v881
      %v883 = vpop.f32.mrb[0].mxu0
      %884 = vmatprep.mubr.f32.mxu0 0.0
      %885 = vmatmul.mubr.f32.gmra.mrb[0].mxu0 %v450
      %v886 = vpop.f32.mrb[0].mxu0
      %v887 = vadd.f32 %v662, %v886
      %v888 = vpop.f32.mrb[0].mxu0
      %889 = vmatprep.mubr.f32.mxu0 0.0
      %890 = vmatmul.mubr.f32.gmra.mrb[0].mxu0 %v451
      %v891 = vpop.f32.mrb[0].mxu0
      %v892 = vadd.f32 %v667, %v891
      %v893 = vpop.f32.mrb[0].mxu0
      %894 = vmatprep.mubr.f32.mxu0 0.0
      %895 = vmatmul.mubr.f32.gmra.mrb[0].mxu0 %v452
      %v896 = vpop.f32.mrb[0].mxu0
      %v897 = vadd.f32 %v672, %v896
      %v898 = vpop.f32.mrb[0].mxu0
      %899 = vmatprep.mubr.f32.mxu0 0.0
      %900 = vmatmul.mubr.f32.gmra.mrb[0].mxu0 %v453
      %v901 = vpop.f32.mrb[0].mxu0
      %v902 = vadd.f32 %v677, %v901
      %v903 = vpop.f32.mrb[0].mxu0
      %904 = vmatprep.mubr.f32.mxu0 0.0
      %905 = vmatmul.mubr.f32.gmra.mrb[0].mxu0 %v454
      %v906 = vpop.f32.mrb[0].mxu0
      %v907 = vadd.f32 %v682, %v906
      %v908 = vpop.f32.mrb[0].mxu0
      %909 = vmatprep.mubr.f32.mxu0 0.0
      %910 = vmatmul.mubr.f32.gmra.mrb[0].mxu0 %v455
      %v911 = vpop.f32.mrb[0].mxu0
      %v912 = vadd.f32 %v687, %v911
      %v913 = vpop.f32.mrb[0].mxu0
      %914 = vmatprep.mubr.f32.mxu0 0.0
      %915 = vmatmul.mubr.f32.gmra.mrb[0].mxu0 %v456
      %v916 = vpop.f32.mrb[0].mxu0
      %v917 = vadd.f32 %v692, %v916
      %v918 = vpop.f32.mrb[0].mxu0
      %919 = vmatprep.mubr.f32.mxu0 0.0
      %920 = vmatmul.mubr.f32.gmra.mrb[0].mxu0 %v457
      %v921 = vpop.f32.mrb[0].mxu0
      %v922 = vadd.f32 %v697, %v921
      %v923 = vpop.f32.mrb[0].mxu0
      %924 = vmatprep.mubr.f32.mxu0 0.0
      %925 = vmatmul.mubr.f32.gmra.mrb[0].mxu0 %v458
      %v926 = vpop.f32.mrb[0].mxu0
      %v927 = vadd.f32 %v702, %v926
      %v928 = vpop.f32.mrb[0].mxu0
      %929 = vmatprep.mubr.f32.mxu0 0.0
      %930 = vmatmul.mubr.f32.gmra.mrb[0].mxu0 %v459
      %v931 = vpop.f32.mrb[0].mxu0
      %v932 = vadd.f32 %v707, %v931
      %v933 = vpop.f32.mrb[0].mxu0
      %934 = vmatprep.mubr.f32.mxu0 0.0
      %935 = vmatmul.mubr.f32.gmra.mrb[0].mxu0 %v460
      %v936 = vpop.f32.mrb[0].mxu0
      %v937 = vadd.f32 %v712, %v936
      %v938 = vpop.f32.mrb[0].mxu0
      %939 = vmatprep.mubr.f32.mxu0 0.0
      %940 = vmatmul.mubr.f32.gmra.mrb[0].mxu0 %v461
      %v941 = vpop.f32.mrb[0].mxu0
      %v942 = vadd.f32 %v717, %v941
      %v943 = vpop.f32.mrb[0].mxu0
      %944 = vmatprep.mubr.f32.mxu0 0.0
      %945 = vmatmul.mubr.f32.gmra.mrb[0].mxu0 %v462
      %v946 = vpop.f32.mrb[0].mxu0
      %v947 = vadd.f32 %v722, %v946
      %v948 = vpop.f32.mrb[0].mxu0
      %949 = vmatprep.mubr.f32.mxu0 0.0
      %950 = vmatmul.mubr.f32.gmra.mrb[0].mxu0 %v463
      %v951 = vpop.f32.mrb[0].mxu0
      %v952 = vadd.f32 %v727, %v951
      %v953 = vpop.f32.mrb[0].mxu0
      %954 = vmatprep.mubr.f32.mxu0 0.0
      %955 = vmatmul.mubr.f32.gmra.mrb[0].mxu0 %v464
      %v956 = vpop.f32.mrb[0].mxu0
      %v957 = vadd.f32 %v732, %v956
      %v958 = vpop.f32.mrb[0].mxu0
      %959 = vmatprep.mubr.f32.mxu0 0.0
      %960 = vmatmul.mubr.f32.gmra.mrb[0].mxu0 %v465
      %v961 = vpop.f32.mrb[0].mxu0
      %v962 = vadd.f32 %v737, %v961
      %v963 = vpop.f32.mrb[0].mxu0
      %964 = vmatprep.mubr.f32.mxu0 0.0
      %965 = vmatmul.mubr.f32.gmra.mrb[0].mxu0 %v466
      %v966 = vpop.f32.mrb[0].mxu0
      %v967 = vadd.f32 %v742, %v966
      %v968 = vpop.f32.mrb[0].mxu0
      %969 = vmatprep.mubr.f32.mxu0 0.0
      %970 = vmatmul.mubr.f32.gmra.mrb[0].mxu0 %v467
      %v971 = vpop.f32.mrb[0].mxu0
      %v972 = vadd.f32 %v747, %v971
      %v973 = vpop.f32.mrb[0].mxu0
      %974 = vmatprep.mubr.f32.mxu0 0.0
      %975 = vmatmul.mubr.f32.gmra.mrb[0].mxu0 %v468
      %v976 = vpop.f32.mrb[0].mxu0
      %v977 = vadd.f32 %v752, %v976
      %v978 = vpop.f32.mrb[0].mxu0
      %979 = vmatprep.mubr.f32.mxu0 0.0
      %980 = vmatmul.mubr.f32.gmra.mrb[0].mxu0 %v469
      %v981 = vpop.f32.mrb[0].mxu0
      %v982 = vadd.f32 %v757, %v981
      %v983 = vpop.f32.mrb[0].mxu0
      %984 = vdwg.mxu0
      %v985 = vld [vmem:[#allocation2 + $0x2] sm:$0xff]
      %v986 = vld [vmem:[#allocation2 + $0xa] sm:$0xff]
      %v987 = vld [vmem:[#allocation2 + $0x1a] sm:$0xff]
      %v988 = vld [vmem:[#allocation2 + $0x22] sm:$0xff]
      %v989 = vld [vmem:[#allocation2 + $0x32] sm:$0xff]
      %v990 = vld [vmem:[#allocation2 + $0x3a] sm:$0xff]
      %v991 = vld [vmem:[#allocation2 + $0x4a] sm:$0xff]
      %v992 = vld [vmem:[#allocation2 + $0x52] sm:$0xff]
      %v993 = vld [vmem:[#allocation2 + $0x62] sm:$0xff]
      %v994 = vld [vmem:[#allocation2 + $0x6a] sm:$0xff]
      %v995 = vld [vmem:[#allocation2 + $0x7a] sm:$0xff]
      %v996 = vld [vmem:[#allocation2 + $0x82] sm:$0xff]
      %v997 = vld [vmem:[#allocation2 + $0x92] sm:$0xff]
      %v998 = vld [vmem:[#allocation2 + $0x9a] sm:$0xff]
      %v999 = vld [vmem:[#allocation2 + $0xaa] sm:$0xff]
      %v1000 = vld [vmem:[#allocation2 + $0xb2] sm:$0xff]
      %v1001 = vld [vmem:[#allocation2 + $0xc2] sm:$0xff]
      %v1002 = vld [vmem:[#allocation2 + $0xca] sm:$0xff]
      %v1003 = vld [vmem:[#allocation2 + $0xda] sm:$0xff]
      %v1004 = vld [vmem:[#allocation2 + $0xe2] sm:$0xff]
      %v1005 = vld [vmem:[#allocation2 + $0xf2] sm:$0xff]
      %v1006 = vld [vmem:[#allocation2 + $0xfa] sm:$0xff]
      %v1007 = vld [vmem:[#allocation2 + $0x10a] sm:$0xff]
      %v1008 = vld [vmem:[#allocation2 + $0x112] sm:$0xff]
      %v1009 = vld [vmem:[#allocation2 + $0x122] sm:$0xff]
      %v1010 = vld [vmem:[#allocation2 + $0x12a] sm:$0xff]
      %v1011 = vld [vmem:[#allocation2 + $0x13a] sm:$0xff]
      %v1012 = vld [vmem:[#allocation2 + $0x142] sm:$0xff]
      %v1013 = vld [vmem:[#allocation2 + $0x152] sm:$0xff]
      %v1014 = vld [vmem:[#allocation2 + $0x15a] sm:$0xff]
      %v1015 = vld [vmem:[#allocation2 + $0x16a] sm:$0xff]
      %v1016 = vld [vmem:[#allocation2 + $0x172] sm:$0xff]
      %s1017 = scalar_lea.vmem %s2, 256
      %v1018 = vld [vmem:[%s1017] sm:$0xff]
      %v1019 = vld [vmem:[%s1017 + $0x8] sm:$0xff]
      %v1020 = vld [vmem:[%s1017 + $0x10] sm:$0xff]
      %v1021 = vld [vmem:[%s1017 + $0x18] sm:$0xff]
      %v1022 = vld [vmem:[%s1017 + $0x20] sm:$0xff]
      %v1023 = vld [vmem:[%s1017 + $0x28] sm:$0xff]
      %v1024 = vld [vmem:[%s1017 + $0x30] sm:$0xff]
      %v1025 = vld [vmem:[%s1017 + $0x38] sm:$0xff]
      %v1026 = vld [vmem:[%s1017 + $0x40] sm:$0xff]
      %v1027 = vld [vmem:[%s1017 + $0x48] sm:$0xff]
      %v1028 = vld [vmem:[%s1017 + $0x50] sm:$0xff]
      %v1029 = vld [vmem:[%s1017 + $0x58] sm:$0xff]
      %v1030 = vld [vmem:[%s1017 + $0x60] sm:$0xff]
      %v1031 = vld [vmem:[%s1017 + $0x68] sm:$0xff]
      %v1032 = vld [vmem:[%s1017 + $0x70] sm:$0xff]
      %v1033 = vld [vmem:[%s1017 + $0x78] sm:$0xff]
      %1034 = vmatprep.subr.mxu0 0.0
      %1035 = vmatpush1.msra.mxu0 %v1018
      %1036 = vmatprep.subr.mxu0 0.0
      %1037 = vmatpush1.msra.mxu0 %v1019
      %1038 = vmatprep.subr.mxu0 0.0
      %1039 = vmatpush1.msra.mxu0 %v1020
      %1040 = vmatprep.subr.mxu0 0.0
      %1041 = vmatpush1.msra.mxu0 %v1021
      %1042 = vmatprep.subr.mxu0 0.0
      %1043 = vmatpush1.msra.mxu0 %v1022
      %1044 = vmatprep.subr.mxu0 0.0
      %1045 = vmatpush1.msra.mxu0 %v1023
      %1046 = vmatprep.subr.mxu0 0.0
      %1047 = vmatpush1.msra.mxu0 %v1024
      %1048 = vmatprep.subr.mxu0 0.0
      %1049 = vmatpush1.msra.mxu0 %v1025
      %1050 = vmatprep.subr.mxu0 0.0
      %1051 = vmatpush1.msra.mxu0 %v1026
      %1052 = vmatprep.subr.mxu0 0.0
      %1053 = vmatpush1.msra.mxu0 %v1027
      %1054 = vmatprep.subr.mxu0 0.0
      %1055 = vmatpush1.msra.mxu0 %v1028
      %1056 = vmatprep.subr.mxu0 0.0
      %1057 = vmatpush1.msra.mxu0 %v1029
      %1058 = vmatprep.subr.mxu0 0.0
      %1059 = vmatpush1.msra.mxu0 %v1030
      %1060 = vmatprep.subr.mxu0 0.0
      %1061 = vmatpush1.msra.mxu0 %v1031
      %1062 = vmatprep.subr.mxu0 0.0
      %1063 = vmatpush1.msra.mxu0 %v1032
      %1064 = vmatprep.subr.mxu0 0.0
      %1065 = vmatpush1.msra.mxu0 %v1033
      %1066 = vmatprep.subr.mxu0 0.0
      %1067 = vmatpush1.msra.mxu0 0.0
      %1068 = vmatprep.subr.mxu0 0.0
      %1069 = vmatpush1.msra.mxu0 0.0
      %1070 = vmatprep.subr.mxu0 0.0
      %1071 = vmatpush1.msra.mxu0 0.0
      %1072 = vmatprep.subr.mxu0 0.0
      %1073 = vmatpush1.msra.mxu0 0.0
      %1074 = vmatprep.subr.mxu0 0.0
      %1075 = vmatpush1.msra.mxu0 0.0
      %1076 = vmatprep.subr.mxu0 0.0
      %1077 = vmatpush1.msra.mxu0 0.0
      %1078 = vmatprep.subr.mxu0 0.0
      %1079 = vmatpush1.msra.mxu0 0.0
      %1080 = vmatprep.subr.mxu0 0.0
      %1081 = vmatpush1.msra.mxu0 0.0
      %1082 = vmatprep.subr.mxu0 0.0
      %1083 = vmatpush1.msra.mxu0 0.0
      %1084 = vmatprep.subr.mxu0 0.0
      %1085 = vmatpush1.msra.mxu0 0.0
      %1086 = vmatprep.subr.mxu0 0.0
      %1087 = vmatpush1.msra.mxu0 0.0
      %1088 = vmatprep.subr.mxu0 0.0
      %1089 = vmatpush1.msra.mxu0 0.0
      %1090 = vmatprep.subr.mxu0 0.0
      %1091 = vmatpush1.msra.mxu0 0.0
      %1092 = vmatprep.subr.mxu0 0.0
      %1093 = vmatpush1.msra.mxu0 0.0
      %1094 = vmatprep.subr.mxu0 0.0
      %1095 = vmatpush1.msra.mxu0 0.0
      %1096 = vmatprep.subr.mxu0 0.0
      %1097 = vmatpush1.msra.mxu0 0.0
      %1098 = vmatprep.mubr.f32.mxu0 0.0
      %1099 = vmatmul.mubr.f32.gmra.mrb[0].mxu0 %v985
      %v1100 = vpop.f32.mrb[0].mxu0
      %v1101 = vadd.f32 0.0, %v1100
      %v1102 = vpop.f32.mrb[0].mxu0
      %1103 = vmatprep.mubr.f32.mxu0 0.0
      %1104 = vmatmul.mubr.f32.gmra.mrb[0].mxu0 %v986
      %v1105 = vpop.f32.mrb[0].mxu0
      %v1106 = vadd.f32 0.0, %v1105
      %v1107 = vpop.f32.mrb[0].mxu0
      %1108 = vmatprep.mubr.f32.mxu0 0.0
      %1109 = vmatmul.mubr.f32.gmra.mrb[0].mxu0 %v987
      %v1110 = vpop.f32.mrb[0].mxu0
      %v1111 = vadd.f32 0.0, %v1110
      %v1112 = vpop.f32.mrb[0].mxu0
      %1113 = vmatprep.mubr.f32.mxu0 0.0
      %1114 = vmatmul.mubr.f32.gmra.mrb[0].mxu0 %v988
      %v1115 = vpop.f32.mrb[0].mxu0
      %v1116 = vadd.f32 0.0, %v1115
      %v1117 = vpop.f32.mrb[0].mxu0
      %1118 = vmatprep.mubr.f32.mxu0 0.0
      %1119 = vmatmul.mubr.f32.gmra.mrb[0].mxu0 %v989
      %v1120 = vpop.f32.mrb[0].mxu0
      %v1121 = vadd.f32 0.0, %v1120
      %v1122 = vpop.f32.mrb[0].mxu0
      %1123 = vmatprep.mubr.f32.mxu0 0.0
      %1124 = vmatmul.mubr.f32.gmra.mrb[0].mxu0 %v990
      %v1125 = vpop.f32.mrb[0].mxu0
      %v1126 = vadd.f32 0.0, %v1125
      %v1127 = vpop.f32.mrb[0].mxu0
      %1128 = vmatprep.mubr.f32.mxu0 0.0
      %1129 = vmatmul.mubr.f32.gmra.mrb[0].mxu0 %v991
      %v1130 = vpop.f32.mrb[0].mxu0
      %v1131 = vadd.f32 0.0, %v1130
      %v1132 = vpop.f32.mrb[0].mxu0
      %1133 = vmatprep.mubr.f32.mxu0 0.0
      %1134 = vmatmul.mubr.f32.gmra.mrb[0].mxu0 %v992
      %v1135 = vpop.f32.mrb[0].mxu0
      %v1136 = vadd.f32 0.0, %v1135
      %v1137 = vpop.f32.mrb[0].mxu0
      %1138 = vmatprep.mubr.f32.mxu0 0.0
      %1139 = vmatmul.mubr.f32.gmra.mrb[0].mxu0 %v993
      %v1140 = vpop.f32.mrb[0].mxu0
      %v1141 = vadd.f32 0.0, %v1140
      %v1142 = vpop.f32.mrb[0].mxu0
      %1143 = vmatprep.mubr.f32.mxu0 0.0
      %1144 = vmatmul.mubr.f32.gmra.mrb[0].mxu0 %v994
      %v1145 = vpop.f32.mrb[0].mxu0
      %v1146 = vadd.f32 0.0, %v1145
      %v1147 = vpop.f32.mrb[0].mxu0
      %1148 = vmatprep.mubr.f32.mxu0 0.0
      %1149 = vmatmul.mubr.f32.gmra.mrb[0].mxu0 %v995
      %v1150 = vpop.f32.mrb[0].mxu0
      %v1151 = vadd.f32 0.0, %v1150
      %v1152 = vpop.f32.mrb[0].mxu0
      %1153 = vmatprep.mubr.f32.mxu0 0.0
      %1154 = vmatmul.mubr.f32.gmra.mrb[0].mxu0 %v996
      %v1155 = vpop.f32.mrb[0].mxu0
      %v1156 = vadd.f32 0.0, %v1155
      %v1157 = vpop.f32.mrb[0].mxu0
      %1158 = vmatprep.mubr.f32.mxu0 0.0
      %1159 = vmatmul.mubr.f32.gmra.mrb[0].mxu0 %v997
      %v1160 = vpop.f32.mrb[0].mxu0
      %v1161 = vadd.f32 0.0, %v1160
      %v1162 = vpop.f32.mrb[0].mxu0
      %1163 = vmatprep.mubr.f32.mxu0 0.0
      %1164 = vmatmul.mubr.f32.gmra.mrb[0].mxu0 %v998
      %v1165 = vpop.f32.mrb[0].mxu0
      %v1166 = vadd.f32 0.0, %v1165
      %v1167 = vpop.f32.mrb[0].mxu0
      %1168 = vmatprep.mubr.f32.mxu0 0.0
      %1169 = vmatmul.mubr.f32.gmra.mrb[0].mxu0 %v999
      %v1170 = vpop.f32.mrb[0].mxu0
      %v1171 = vadd.f32 0.0, %v1170
      %v1172 = vpop.f32.mrb[0].mxu0
      %1173 = vmatprep.mubr.f32.mxu0 0.0
      %1174 = vmatmul.mubr.f32.gmra.mrb[0].mxu0 %v1000
      %v1175 = vpop.f32.mrb[0].mxu0
      %v1176 = vadd.f32 0.0, %v1175
      %v1177 = vpop.f32.mrb[0].mxu0
      %1178 = vmatprep.mubr.f32.mxu0 0.0
      %1179 = vmatmul.mubr.f32.gmra.mrb[0].mxu0 %v1001
      %v1180 = vpop.f32.mrb[0].mxu0
      %v1181 = vadd.f32 0.0, %v1180
      %v1182 = vpop.f32.mrb[0].mxu0
      %1183 = vmatprep.mubr.f32.mxu0 0.0
      %1184 = vmatmul.mubr.f32.gmra.mrb[0].mxu0 %v1002
      %v1185 = vpop.f32.mrb[0].mxu0
      %v1186 = vadd.f32 0.0, %v1185
      %v1187 = vpop.f32.mrb[0].mxu0
      %1188 = vmatprep.mubr.f32.mxu0 0.0
      %1189 = vmatmul.mubr.f32.gmra.mrb[0].mxu0 %v1003
      %v1190 = vpop.f32.mrb[0].mxu0
      %v1191 = vadd.f32 0.0, %v1190
      %v1192 = vpop.f32.mrb[0].mxu0
      %1193 = vmatprep.mubr.f32.mxu0 0.0
      %1194 = vmatmul.mubr.f32.gmra.mrb[0].mxu0 %v1004
      %v1195 = vpop.f32.mrb[0].mxu0
      %v1196 = vadd.f32 0.0, %v1195
      %v1197 = vpop.f32.mrb[0].mxu0
      %1198 = vmatprep.mubr.f32.mxu0 0.0
      %1199 = vmatmul.mubr.f32.gmra.mrb[0].mxu0 %v1005
      %v1200 = vpop.f32.mrb[0].mxu0
      %v1201 = vadd.f32 0.0, %v1200
      %v1202 = vpop.f32.mrb[0].mxu0
      %1203 = vmatprep.mubr.f32.mxu0 0.0
      %1204 = vmatmul.mubr.f32.gmra.mrb[0].mxu0 %v1006
      %v1205 = vpop.f32.mrb[0].mxu0
      %v1206 = vadd.f32 0.0, %v1205
      %v1207 = vpop.f32.mrb[0].mxu0
      %1208 = vmatprep.mubr.f32.mxu0 0.0
      %1209 = vmatmul.mubr.f32.gmra.mrb[0].mxu0 %v1007
      %v1210 = vpop.f32.mrb[0].mxu0
      %v1211 = vadd.f32 0.0, %v1210
      %v1212 = vpop.f32.mrb[0].mxu0
      %1213 = vmatprep.mubr.f32.mxu0 0.0
      %1214 = vmatmul.mubr.f32.gmra.mrb[0].mxu0 %v1008
      %v1215 = vpop.f32.mrb[0].mxu0
      %v1216 = vadd.f32 0.0, %v1215
      %v1217 = vpop.f32.mrb[0].mxu0
      %1218 = vmatprep.mubr.f32.mxu0 0.0
      %1219 = vmatmul.mubr.f32.gmra.mrb[0].mxu0 %v1009
      %v1220 = vpop.f32.mrb[0].mxu0
      %v1221 = vadd.f32 0.0, %v1220
      %v1222 = vpop.f32.mrb[0].mxu0
      %1223 = vmatprep.mubr.f32.mxu0 0.0
      %1224 = vmatmul.mubr.f32.gmra.mrb[0].mxu0 %v1010
      %v1225 = vpop.f32.mrb[0].mxu0
      %v1226 = vadd.f32 0.0, %v1225
      %v1227 = vpop.f32.mrb[0].mxu0
      %1228 = vmatprep.mubr.f32.mxu0 0.0
      %1229 = vmatmul.mubr.f32.gmra.mrb[0].mxu0 %v1011
      %v1230 = vpop.f32.mrb[0].mxu0
      %v1231 = vadd.f32 0.0, %v1230
      %v1232 = vpop.f32.mrb[0].mxu0
      %1233 = vmatprep.mubr.f32.mxu0 0.0
      %1234 = vmatmul.mubr.f32.gmra.mrb[0].mxu0 %v1012
      %v1235 = vpop.f32.mrb[0].mxu0
      %v1236 = vadd.f32 0.0, %v1235
      %v1237 = vpop.f32.mrb[0].mxu0
      %1238 = vmatprep.mubr.f32.mxu0 0.0
      %1239 = vmatmul.mubr.f32.gmra.mrb[0].mxu0 %v1013
      %v1240 = vpop.f32.mrb[0].mxu0
      %v1241 = vadd.f32 0.0, %v1240
      %v1242 = vpop.f32.mrb[0].mxu0
      %1243 = vmatprep.mubr.f32.mxu0 0.0
      %1244 = vmatmul.mubr.f32.gmra.mrb[0].mxu0 %v1014
      %v1245 = vpop.f32.mrb[0].mxu0
      %v1246 = vadd.f32 0.0, %v1245
      %v1247 = vpop.f32.mrb[0].mxu0
      %1248 = vmatprep.mubr.f32.mxu0 0.0
      %1249 = vmatmul.mubr.f32.gmra.mrb[0].mxu0 %v1015
      %v1250 = vpop.f32.mrb[0].mxu0
      %v1251 = vadd.f32 0.0, %v1250
      %v1252 = vpop.f32.mrb[0].mxu0
      %1253 = vmatprep.mubr.f32.mxu0 0.0
      %1254 = vmatmul.mubr.f32.gmra.mrb[0].mxu0 %v1016
      %v1255 = vpop.f32.mrb[0].mxu0
      %v1256 = vadd.f32 0.0, %v1255
      %v1257 = vpop.f32.mrb[0].mxu0
      %1258 = vdwg.mxu0
      %v1259 = vadd.f32 %v827, %v1101
      %v1260 = vadd.f32 %v832, %v1106
      %v1261 = vadd.f32 %v837, %v1111
      %v1262 = vadd.f32 %v842, %v1116
      %v1263 = vadd.f32 %v847, %v1121
      %v1264 = vadd.f32 %v852, %v1126
      %v1265 = vadd.f32 %v857, %v1131
      %v1266 = vadd.f32 %v862, %v1136
      %v1267 = vadd.f32 %v867, %v1141
      %v1268 = vadd.f32 %v872, %v1146
      %v1269 = vadd.f32 %v877, %v1151
      %v1270 = vadd.f32 %v882, %v1156
      %v1271 = vadd.f32 %v887, %v1161
      %v1272 = vadd.f32 %v892, %v1166
      %v1273 = vadd.f32 %v897, %v1171
      %v1274 = vadd.f32 %v902, %v1176
      %v1275 = vadd.f32 %v907, %v1181
      %v1276 = vadd.f32 %v912, %v1186
      %v1277 = vadd.f32 %v917, %v1191
      %v1278 = vadd.f32 %v922, %v1196
      %v1279 = vadd.f32 %v927, %v1201
      %v1280 = vadd.f32 %v932, %v1206
      %v1281 = vadd.f32 %v937, %v1211
      %v1282 = vadd.f32 %v942, %v1216
      %v1283 = vadd.f32 %v947, %v1221
      %v1284 = vadd.f32 %v952, %v1226
      %v1285 = vadd.f32 %v957, %v1231
      %v1286 = vadd.f32 %v962, %v1236
      %v1287 = vadd.f32 %v967, %v1241
      %v1288 = vadd.f32 %v972, %v1246
      %v1289 = vadd.f32 %v977, %v1251
      %v1290 = vadd.f32 %v982, %v1256
      %v1291 = vld [vmem:[%s405] sm:$0xff]
      %v1292 = vld [vmem:[%s405 + $0x8] sm:$0xff]
      %v1293 = vld [vmem:[%s405 + $0x18] sm:$0xff]
      %v1294 = vld [vmem:[%s405 + $0x20] sm:$0xff]
      %v1295 = vld [vmem:[%s405 + $0x30] sm:$0xff]
      %v1296 = vld [vmem:[%s405 + $0x38] sm:$0xff]
      %v1297 = vld [vmem:[%s405 + $0x48] sm:$0xff]
      %v1298 = vld [vmem:[%s405 + $0x50] sm:$0xff]
      %v1299 = vld [vmem:[%s405 + $0x60] sm:$0xff]
      %v1300 = vld [vmem:[%s405 + $0x68] sm:$0xff]
      %v1301 = vld [vmem:[%s405 + $0x78] sm:$0xff]
      %v1302 = vld [vmem:[%s405 + $0x80] sm:$0xff]
      %v1303 = vld [vmem:[%s405 + $0x90] sm:$0xff]
      %v1304 = vld [vmem:[%s405 + $0x98] sm:$0xff]
      %v1305 = vld [vmem:[%s405 + $0xa8] sm:$0xff]
      %v1306 = vld [vmem:[%s405 + $0xb0] sm:$0xff]
      %v1307 = vld [vmem:[%s405 + $0xc0] sm:$0xff]
      %v1308 = vld [vmem:[%s405 + $0xc8] sm:$0xff]
      %v1309 = vld [vmem:[%s405 + $0xd8] sm:$0xff]
      %v1310 = vld [vmem:[%s405 + $0xe0] sm:$0xff]
      %v1311 = vld [vmem:[%s405 + $0xf0] sm:$0xff]
      %v1312 = vld [vmem:[%s405 + $0xf8] sm:$0xff]
      %v1313 = vld [vmem:[%s405 + $0x108] sm:$0xff]
      %v1314 = vld [vmem:[%s405 + $0x110] sm:$0xff]
      %v1315 = vld [vmem:[%s405 + $0x120] sm:$0xff]
      %v1316 = vld [vmem:[%s405 + $0x128] sm:$0xff]
      %v1317 = vld [vmem:[%s405 + $0x138] sm:$0xff]
      %v1318 = vld [vmem:[%s405 + $0x140] sm:$0xff]
      %v1319 = vld [vmem:[%s405 + $0x150] sm:$0xff]
      %v1320 = vld [vmem:[%s405 + $0x158] sm:$0xff]
      %v1321 = vld [vmem:[%s405 + $0x168] sm:$0xff]
      %v1322 = vld [vmem:[%s405 + $0x170] sm:$0xff]
      %s1323 = scalar_lea.vmem %s2, 384
      %v1324 = vld [vmem:[%s1323] sm:$0xff]
      %v1325 = vld [vmem:[%s1323 + $0x8] sm:$0xff]
      %v1326 = vld [vmem:[%s1323 + $0x10] sm:$0xff]
      %v1327 = vld [vmem:[%s1323 + $0x18] sm:$0xff]
      %v1328 = vld [vmem:[%s1323 + $0x20] sm:$0xff]
      %v1329 = vld [vmem:[%s1323 + $0x28] sm:$0xff]
      %v1330 = vld [vmem:[%s1323 + $0x30] sm:$0xff]
      %v1331 = vld [vmem:[%s1323 + $0x38] sm:$0xff]
      %v1332 = vld [vmem:[%s1323 + $0x40] sm:$0xff]
      %v1333 = vld [vmem:[%s1323 + $0x48] sm:$0xff]
      %v1334 = vld [vmem:[%s1323 + $0x50] sm:$0xff]
      %v1335 = vld [vmem:[%s1323 + $0x58] sm:$0xff]
      %v1336 = vld [vmem:[%s1323 + $0x60] sm:$0xff]
      %v1337 = vld [vmem:[%s1323 + $0x68] sm:$0xff]
      %v1338 = vld [vmem:[%s1323 + $0x70] sm:$0xff]
      %v1339 = vld [vmem:[%s1323 + $0x78] sm:$0xff]
      %1340 = vmatprep.subr.mxu0 0.0
      %1341 = vmatpush1.msra.mxu0 %v1324
      %1342 = vmatprep.subr.mxu0 0.0
      %1343 = vmatpush1.msra.mxu0 %v1325
      %1344 = vmatprep.subr.mxu0 0.0
      %1345 = vmatpush1.msra.mxu0 %v1326
      %1346 = vmatprep.subr.mxu0 0.0
      %1347 = vmatpush1.msra.mxu0 %v1327
      %1348 = vmatprep.subr.mxu0 0.0
      %1349 = vmatpush1.msra.mxu0 %v1328
      %1350 = vmatprep.subr.mxu0 0.0
      %1351 = vmatpush1.msra.mxu0 %v1329
      %1352 = vmatprep.subr.mxu0 0.0
      %1353 = vmatpush1.msra.mxu0 %v1330
      %1354 = vmatprep.subr.mxu0 0.0
      %1355 = vmatpush1.msra.mxu0 %v1331
      %1356 = vmatprep.subr.mxu0 0.0
      %1357 = vmatpush1.msra.mxu0 %v1332
      %1358 = vmatprep.subr.mxu0 0.0
      %1359 = vmatpush1.msra.mxu0 %v1333
      %1360 = vmatprep.subr.mxu0 0.0
      %1361 = vmatpush1.msra.mxu0 %v1334
      %1362 = vmatprep.subr.mxu0 0.0
      %1363 = vmatpush1.msra.mxu0 %v1335
      %1364 = vmatprep.subr.mxu0 0.0
      %1365 = vmatpush1.msra.mxu0 %v1336
      %1366 = vmatprep.subr.mxu0 0.0
      %1367 = vmatpush1.msra.mxu0 %v1337
      %1368 = vmatprep.subr.mxu0 0.0
      %1369 = vmatpush1.msra.mxu0 %v1338
      %1370 = vmatprep.subr.mxu0 0.0
      %1371 = vmatpush1.msra.mxu0 %v1339
      %1372 = vmatprep.subr.mxu0 0.0
      %1373 = vmatpush1.msra.mxu0 0.0
      %1374 = vmatprep.subr.mxu0 0.0
      %1375 = vmatpush1.msra.mxu0 0.0
      %1376 = vmatprep.subr.mxu0 0.0
      %1377 = vmatpush1.msra.mxu0 0.0
      %1378 = vmatprep.subr.mxu0 0.0
      %1379 = vmatpush1.msra.mxu0 0.0
      %1380 = vmatprep.subr.mxu0 0.0
      %1381 = vmatpush1.msra.mxu0 0.0
      %1382 = vmatprep.subr.mxu0 0.0
      %1383 = vmatpush1.msra.mxu0 0.0
      %1384 = vmatprep.subr.mxu0 0.0
      %1385 = vmatpush1.msra.mxu0 0.0
      %1386 = vmatprep.subr.mxu0 0.0
      %1387 = vmatpush1.msra.mxu0 0.0
      %1388 = vmatprep.subr.mxu0 0.0
      %1389 = vmatpush1.msra.mxu0 0.0
      %1390 = vmatprep.subr.mxu0 0.0
      %1391 = vmatpush1.msra.mxu0 0.0
      %1392 = vmatprep.subr.mxu0 0.0
      %1393 = vmatpush1.msra.mxu0 0.0
      %1394 = vmatprep.subr.mxu0 0.0
      %1395 = vmatpush1.msra.mxu0 0.0
      %1396 = vmatprep.subr.mxu0 0.0
      %1397 = vmatpush1.msra.mxu0 0.0
      %1398 = vmatprep.subr.mxu0 0.0
      %1399 = vmatpush1.msra.mxu0 0.0
      %1400 = vmatprep.subr.mxu0 0.0
      %1401 = vmatpush1.msra.mxu0 0.0
      %1402 = vmatprep.subr.mxu0 0.0
      %1403 = vmatpush1.msra.mxu0 0.0
      %1404 = vmatprep.mubr.f32.mxu0 0.0
      %1405 = vmatmul.mubr.f32.gmra.mrb[0].mxu0 %v1291
      %v1406 = vpop.f32.mrb[0].mxu0
      %v1407 = vadd.f32 0.0, %v1406
      %v1408 = vpop.f32.mrb[0].mxu0
      %1409 = vmatprep.mubr.f32.mxu0 0.0
      %1410 = vmatmul.mubr.f32.gmra.mrb[0].mxu0 %v1292
      %v1411 = vpop.f32.mrb[0].mxu0
      %v1412 = vadd.f32 0.0, %v1411
      %v1413 = vpop.f32.mrb[0].mxu0
      %1414 = vmatprep.mubr.f32.mxu0 0.0
      %1415 = vmatmul.mubr.f32.gmra.mrb[0].mxu0 %v1293
      %v1416 = vpop.f32.mrb[0].mxu0
      %v1417 = vadd.f32 0.0, %v1416
      %v1418 = vpop.f32.mrb[0].mxu0
      %1419 = vmatprep.mubr.f32.mxu0 0.0
      %1420 = vmatmul.mubr.f32.gmra.mrb[0].mxu0 %v1294
      %v1421 = vpop.f32.mrb[0].mxu0
      %v1422 = vadd.f32 0.0, %v1421
      %v1423 = vpop.f32.mrb[0].mxu0
      %1424 = vmatprep.mubr.f32.mxu0 0.0
      %1425 = vmatmul.mubr.f32.gmra.mrb[0].mxu0 %v1295
      %v1426 = vpop.f32.mrb[0].mxu0
      %v1427 = vadd.f32 0.0, %v1426
      %v1428 = vpop.f32.mrb[0].mxu0
      %1429 = vmatprep.mubr.f32.mxu0 0.0
      %1430 = vmatmul.mubr.f32.gmra.mrb[0].mxu0 %v1296
      %v1431 = vpop.f32.mrb[0].mxu0
      %v1432 = vadd.f32 0.0, %v1431
      %v1433 = vpop.f32.mrb[0].mxu0
      %1434 = vmatprep.mubr.f32.mxu0 0.0
      %1435 = vmatmul.mubr.f32.gmra.mrb[0].mxu0 %v1297
      %v1436 = vpop.f32.mrb[0].mxu0
      %v1437 = vadd.f32 0.0, %v1436
      %v1438 = vpop.f32.mrb[0].mxu0
      %1439 = vmatprep.mubr.f32.mxu0 0.0
      %1440 = vmatmul.mubr.f32.gmra.mrb[0].mxu0 %v1298
      %v1441 = vpop.f32.mrb[0].mxu0
      %v1442 = vadd.f32 0.0, %v1441
      %v1443 = vpop.f32.mrb[0].mxu0
      %1444 = vmatprep.mubr.f32.mxu0 0.0
      %1445 = vmatmul.mubr.f32.gmra.mrb[0].mxu0 %v1299
      %v1446 = vpop.f32.mrb[0].mxu0
      %v1447 = vadd.f32 0.0, %v1446
      %v1448 = vpop.f32.mrb[0].mxu0
      %1449 = vmatprep.mubr.f32.mxu0 0.0
      %1450 = vmatmul.mubr.f32.gmra.mrb[0].mxu0 %v1300
      %v1451 = vpop.f32.mrb[0].mxu0
      %v1452 = vadd.f32 0.0, %v1451
      %v1453 = vpop.f32.mrb[0].mxu0
      %1454 = vmatprep.mubr.f32.mxu0 0.0
      %1455 = vmatmul.mubr.f32.gmra.mrb[0].mxu0 %v1301
      %v1456 = vpop.f32.mrb[0].mxu0
      %v1457 = vadd.f32 0.0, %v1456
      %v1458 = vpop.f32.mrb[0].mxu0
      %1459 = vmatprep.mubr.f32.mxu0 0.0
      %1460 = vmatmul.mubr.f32.gmra.mrb[0].mxu0 %v1302
      %v1461 = vpop.f32.mrb[0].mxu0
      %v1462 = vadd.f32 0.0, %v1461
      %v1463 = vpop.f32.mrb[0].mxu0
      %1464 = vmatprep.mubr.f32.mxu0 0.0
      %1465 = vmatmul.mubr.f32.gmra.mrb[0].mxu0 %v1303
      %v1466 = vpop.f32.mrb[0].mxu0
      %v1467 = vadd.f32 0.0, %v1466
      %v1468 = vpop.f32.mrb[0].mxu0
      %1469 = vmatprep.mubr.f32.mxu0 0.0
      %1470 = vmatmul.mubr.f32.gmra.mrb[0].mxu0 %v1304
      %v1471 = vpop.f32.mrb[0].mxu0
      %v1472 = vadd.f32 0.0, %v1471
      %v1473 = vpop.f32.mrb[0].mxu0
      %1474 = vmatprep.mubr.f32.mxu0 0.0
      %1475 = vmatmul.mubr.f32.gmra.mrb[0].mxu0 %v1305
      %v1476 = vpop.f32.mrb[0].mxu0
      %v1477 = vadd.f32 0.0, %v1476
      %v1478 = vpop.f32.mrb[0].mxu0
      %1479 = vmatprep.mubr.f32.mxu0 0.0
      %1480 = vmatmul.mubr.f32.gmra.mrb[0].mxu0 %v1306
      %v1481 = vpop.f32.mrb[0].mxu0
      %v1482 = vadd.f32 0.0, %v1481
      %v1483 = vpop.f32.mrb[0].mxu0
      %1484 = vmatprep.mubr.f32.mxu0 0.0
      %1485 = vmatmul.mubr.f32.gmra.mrb[0].mxu0 %v1307
      %v1486 = vpop.f32.mrb[0].mxu0
      %v1487 = vadd.f32 0.0, %v1486
      %v1488 = vpop.f32.mrb[0].mxu0
      %1489 = vmatprep.mubr.f32.mxu0 0.0
      %1490 = vmatmul.mubr.f32.gmra.mrb[0].mxu0 %v1308
      %v1491 = vpop.f32.mrb[0].mxu0
      %v1492 = vadd.f32 0.0, %v1491
      %v1493 = vpop.f32.mrb[0].mxu0
      %1494 = vmatprep.mubr.f32.mxu0 0.0
      %1495 = vmatmul.mubr.f32.gmra.mrb[0].mxu0 %v1309
      %v1496 = vpop.f32.mrb[0].mxu0
      %v1497 = vadd.f32 0.0, %v1496
      %v1498 = vpop.f32.mrb[0].mxu0
      %1499 = vmatprep.mubr.f32.mxu0 0.0
      %1500 = vmatmul.mubr.f32.gmra.mrb[0].mxu0 %v1310
      %v1501 = vpop.f32.mrb[0].mxu0
      %v1502 = vadd.f32 0.0, %v1501
      %v1503 = vpop.f32.mrb[0].mxu0
      %1504 = vmatprep.mubr.f32.mxu0 0.0
      %1505 = vmatmul.mubr.f32.gmra.mrb[0].mxu0 %v1311
      %v1506 = vpop.f32.mrb[0].mxu0
      %v1507 = vadd.f32 0.0, %v1506
      %v1508 = vpop.f32.mrb[0].mxu0
      %1509 = vmatprep.mubr.f32.mxu0 0.0
      %1510 = vmatmul.mubr.f32.gmra.mrb[0].mxu0 %v1312
      %v1511 = vpop.f32.mrb[0].mxu0
      %v1512 = vadd.f32 0.0, %v1511
      %v1513 = vpop.f32.mrb[0].mxu0
      %1514 = vmatprep.mubr.f32.mxu0 0.0
      %1515 = vmatmul.mubr.f32.gmra.mrb[0].mxu0 %v1313
      %v1516 = vpop.f32.mrb[0].mxu0
      %v1517 = vadd.f32 0.0, %v1516
      %v1518 = vpop.f32.mrb[0].mxu0
      %1519 = vmatprep.mubr.f32.mxu0 0.0
      %1520 = vmatmul.mubr.f32.gmra.mrb[0].mxu0 %v1314
      %v1521 = vpop.f32.mrb[0].mxu0
      %v1522 = vadd.f32 0.0, %v1521
      %v1523 = vpop.f32.mrb[0].mxu0
      %1524 = vmatprep.mubr.f32.mxu0 0.0
      %1525 = vmatmul.mubr.f32.gmra.mrb[0].mxu0 %v1315
      %v1526 = vpop.f32.mrb[0].mxu0
      %v1527 = vadd.f32 0.0, %v1526
      %v1528 = vpop.f32.mrb[0].mxu0
      %1529 = vmatprep.mubr.f32.mxu0 0.0
      %1530 = vmatmul.mubr.f32.gmra.mrb[0].mxu0 %v1316
      %v1531 = vpop.f32.mrb[0].mxu0
      %v1532 = vadd.f32 0.0, %v1531
      %v1533 = vpop.f32.mrb[0].mxu0
      %1534 = vmatprep.mubr.f32.mxu0 0.0
      %1535 = vmatmul.mubr.f32.gmra.mrb[0].mxu0 %v1317
      %v1536 = vpop.f32.mrb[0].mxu0
      %v1537 = vadd.f32 0.0, %v1536
      %v1538 = vpop.f32.mrb[0].mxu0
      %1539 = vmatprep.mubr.f32.mxu0 0.0
      %1540 = vmatmul.mubr.f32.gmra.mrb[0].mxu0 %v1318
      %v1541 = vpop.f32.mrb[0].mxu0
      %v1542 = vadd.f32 0.0, %v1541
      %v1543 = vpop.f32.mrb[0].mxu0
      %1544 = vmatprep.mubr.f32.mxu0 0.0
      %1545 = vmatmul.mubr.f32.gmra.mrb[0].mxu0 %v1319
      %v1546 = vpop.f32.mrb[0].mxu0
      %v1547 = vadd.f32 0.0, %v1546
      %v1548 = vpop.f32.mrb[0].mxu0
      %1549 = vmatprep.mubr.f32.mxu0 0.0
      %1550 = vmatmul.mubr.f32.gmra.mrb[0].mxu0 %v1320
      %v1551 = vpop.f32.mrb[0].mxu0
      %v1552 = vadd.f32 0.0, %v1551
      %v1553 = vpop.f32.mrb[0].mxu0
      %1554 = vmatprep.mubr.f32.mxu0 0.0
      %1555 = vmatmul.mubr.f32.gmra.mrb[0].mxu0 %v1321
      %v1556 = vpop.f32.mrb[0].mxu0
      %v1557 = vadd.f32 0.0, %v1556
      %v1558 = vpop.f32.mrb[0].mxu0
      %1559 = vmatprep.mubr.f32.mxu0 0.0
      %1560 = vmatmul.mubr.f32.gmra.mrb[0].mxu0 %v1322
      %v1561 = vpop.f32.mrb[0].mxu0
      %v1562 = vadd.f32 0.0, %v1561
      %v1563 = vpop.f32.mrb[0].mxu0
      %1564 = vdwg.mxu0
      %v1565 = vadd.f32 %v1259, %v1407
      %v1566 = vadd.f32 %v1260, %v1412
      %v1567 = vadd.f32 %v1261, %v1417
      %v1568 = vadd.f32 %v1262, %v1422
      %v1569 = vadd.f32 %v1263, %v1427
      %v1570 = vadd.f32 %v1264, %v1432
      %v1571 = vadd.f32 %v1265, %v1437
      %v1572 = vadd.f32 %v1266, %v1442
      %v1573 = vadd.f32 %v1267, %v1447
      %v1574 = vadd.f32 %v1268, %v1452
      %v1575 = vadd.f32 %v1269, %v1457
      %v1576 = vadd.f32 %v1270, %v1462
      %v1577 = vadd.f32 %v1271, %v1467
      %v1578 = vadd.f32 %v1272, %v1472
      %v1579 = vadd.f32 %v1273, %v1477
      %v1580 = vadd.f32 %v1274, %v1482
      %v1581 = vadd.f32 %v1275, %v1487
      %v1582 = vadd.f32 %v1276, %v1492
      %v1583 = vadd.f32 %v1277, %v1497
      %v1584 = vadd.f32 %v1278, %v1502
      %v1585 = vadd.f32 %v1279, %v1507
      %v1586 = vadd.f32 %v1280, %v1512
      %v1587 = vadd.f32 %v1281, %v1517
      %v1588 = vadd.f32 %v1282, %v1522
      %v1589 = vadd.f32 %v1283, %v1527
      %v1590 = vadd.f32 %v1284, %v1532
      %v1591 = vadd.f32 %v1285, %v1537
      %v1592 = vadd.f32 %v1286, %v1542
      %v1593 = vadd.f32 %v1287, %v1547
      %v1594 = vadd.f32 %v1288, %v1552
      %v1595 = vadd.f32 %v1289, %v1557
      %v1596 = vadd.f32 %v1290, %v1562
      %v1597 = vld [vmem:[%s405 + $0x1] sm:$0xff]
      %v1598 = vld [vmem:[%s405 + $0x9] sm:$0xff]
      %v1599 = vld [vmem:[%s405 + $0x19] sm:$0xff]
      %v1600 = vld [vmem:[%s405 + $0x21] sm:$0xff]
      %v1601 = vld [vmem:[%s405 + $0x31] sm:$0xff]
      %v1602 = vld [vmem:[%s405 + $0x39] sm:$0xff]
      %v1603 = vld [vmem:[%s405 + $0x49] sm:$0xff]
      %v1604 = vld [vmem:[%s405 + $0x51] sm:$0xff]
      %v1605 = vld [vmem:[%s405 + $0x61] sm:$0xff]
      %v1606 = vld [vmem:[%s405 + $0x69] sm:$0xff]
      %v1607 = vld [vmem:[%s405 + $0x79] sm:$0xff]
      %v1608 = vld [vmem:[%s405 + $0x81] sm:$0xff]
      %v1609 = vld [vmem:[%s405 + $0x91] sm:$0xff]
      %v1610 = vld [vmem:[%s405 + $0x99] sm:$0xff]
      %v1611 = vld [vmem:[%s405 + $0xa9] sm:$0xff]
      %v1612 = vld [vmem:[%s405 + $0xb1] sm:$0xff]
      %v1613 = vld [vmem:[%s405 + $0xc1] sm:$0xff]
      %v1614 = vld [vmem:[%s405 + $0xc9] sm:$0xff]
      %v1615 = vld [vmem:[%s405 + $0xd9] sm:$0xff]
      %v1616 = vld [vmem:[%s405 + $0xe1] sm:$0xff]
      %v1617 = vld [vmem:[%s405 + $0xf1] sm:$0xff]
      %v1618 = vld [vmem:[%s405 + $0xf9] sm:$0xff]
      %v1619 = vld [vmem:[%s405 + $0x109] sm:$0xff]
      %v1620 = vld [vmem:[%s405 + $0x111] sm:$0xff]
      %v1621 = vld [vmem:[%s405 + $0x121] sm:$0xff]
      %v1622 = vld [vmem:[%s405 + $0x129] sm:$0xff]
      %v1623 = vld [vmem:[%s405 + $0x139] sm:$0xff]
      %v1624 = vld [vmem:[%s405 + $0x141] sm:$0xff]
      %v1625 = vld [vmem:[%s405 + $0x151] sm:$0xff]
      %v1626 = vld [vmem:[%s405 + $0x159] sm:$0xff]
      %v1627 = vld [vmem:[%s405 + $0x169] sm:$0xff]
      %v1628 = vld [vmem:[%s405 + $0x171] sm:$0xff]
      %s1629 = scalar_lea.vmem %s2, 512
      %v1630 = vld [vmem:[%s1629] sm:$0xff]
      %v1631 = vld [vmem:[%s1629 + $0x8] sm:$0xff]
      %v1632 = vld [vmem:[%s1629 + $0x10] sm:$0xff]
      %v1633 = vld [vmem:[%s1629 + $0x18] sm:$0xff]
      %v1634 = vld [vmem:[%s1629 + $0x20] sm:$0xff]
      %v1635 = vld [vmem:[%s1629 + $0x28] sm:$0xff]
      %v1636 = vld [vmem:[%s1629 + $0x30] sm:$0xff]
      %v1637 = vld [vmem:[%s1629 + $0x38] sm:$0xff]
      %v1638 = vld [vmem:[%s1629 + $0x40] sm:$0xff]
      %v1639 = vld [vmem:[%s1629 + $0x48] sm:$0xff]
      %v1640 = vld [vmem:[%s1629 + $0x50] sm:$0xff]
      %v1641 = vld [vmem:[%s1629 + $0x58] sm:$0xff]
      %v1642 = vld [vmem:[%s1629 + $0x60] sm:$0xff]
      %v1643 = vld [vmem:[%s1629 + $0x68] sm:$0xff]
      %v1644 = vld [vmem:[%s1629 + $0x70] sm:$0xff]
      %v1645 = vld [vmem:[%s1629 + $0x78] sm:$0xff]
      %1646 = vmatprep.subr.mxu0 0.0
      %1647 = vmatpush1.msra.mxu0 %v1630
      %1648 = vmatprep.subr.mxu0 0.0
      %1649 = vmatpush1.msra.mxu0 %v1631
      %1650 = vmatprep.subr.mxu0 0.0
      %1651 = vmatpush1.msra.mxu0 %v1632
      %1652 = vmatprep.subr.mxu0 0.0
      %1653 = vmatpush1.msra.mxu0 %v1633
      %1654 = vmatprep.subr.mxu0 0.0
      %1655 = vmatpush1.msra.mxu0 %v1634
      %1656 = vmatprep.subr.mxu0 0.0
      %1657 = vmatpush1.msra.mxu0 %v1635
      %1658 = vmatprep.subr.mxu0 0.0
      %1659 = vmatpush1.msra.mxu0 %v1636
      %1660 = vmatprep.subr.mxu0 0.0
      %1661 = vmatpush1.msra.mxu0 %v1637
      %1662 = vmatprep.subr.mxu0 0.0
      %1663 = vmatpush1.msra.mxu0 %v1638
      %1664 = vmatprep.subr.mxu0 0.0
      %1665 = vmatpush1.msra.mxu0 %v1639
      %1666 = vmatprep.subr.mxu0 0.0
      %1667 = vmatpush1.msra.mxu0 %v1640
      %1668 = vmatprep.subr.mxu0 0.0
      %1669 = vmatpush1.msra.mxu0 %v1641
      %1670 = vmatprep.subr.mxu0 0.0
      %1671 = vmatpush1.msra.mxu0 %v1642
      %1672 = vmatprep.subr.mxu0 0.0
      %1673 = vmatpush1.msra.mxu0 %v1643
      %1674 = vmatprep.subr.mxu0 0.0
      %1675 = vmatpush1.msra.mxu0 %v1644
      %1676 = vmatprep.subr.mxu0 0.0
      %1677 = vmatpush1.msra.mxu0 %v1645
      %1678 = vmatprep.subr.mxu0 0.0
      %1679 = vmatpush1.msra.mxu0 0.0
      %1680 = vmatprep.subr.mxu0 0.0
      %1681 = vmatpush1.msra.mxu0 0.0
      %1682 = vmatprep.subr.mxu0 0.0
      %1683 = vmatpush1.msra.mxu0 0.0
      %1684 = vmatprep.subr.mxu0 0.0
      %1685 = vmatpush1.msra.mxu0 0.0
      %1686 = vmatprep.subr.mxu0 0.0
      %1687 = vmatpush1.msra.mxu0 0.0
      %1688 = vmatprep.subr.mxu0 0.0
      %1689 = vmatpush1.msra.mxu0 0.0
      %1690 = vmatprep.subr.mxu0 0.0
      %1691 = vmatpush1.msra.mxu0 0.0
      %1692 = vmatprep.subr.mxu0 0.0
      %1693 = vmatpush1.msra.mxu0 0.0
      %1694 = vmatprep.subr.mxu0 0.0
      %1695 = vmatpush1.msra.mxu0 0.0
      %1696 = vmatprep.subr.mxu0 0.0
      %1697 = vmatpush1.msra.mxu0 0.0
      %1698 = vmatprep.subr.mxu0 0.0
      %1699 = vmatpush1.msra.mxu0 0.0
      %1700 = vmatprep.subr.mxu0 0.0
      %1701 = vmatpush1.msra.mxu0 0.0
      %1702 = vmatprep.subr.mxu0 0.0
      %1703 = vmatpush1.msra.mxu0 0.0
      %1704 = vmatprep.subr.mxu0 0.0
      %1705 = vmatpush1.msra.mxu0 0.0
      %1706 = vmatprep.subr.mxu0 0.0
      %1707 = vmatpush1.msra.mxu0 0.0
      %1708 = vmatprep.subr.mxu0 0.0
      %1709 = vmatpush1.msra.mxu0 0.0
      %1710 = vmatprep.mubr.f32.mxu0 0.0
      %1711 = vmatmul.mubr.f32.gmra.mrb[0].mxu0 %v1597
      %v1712 = vpop.f32.mrb[0].mxu0
      %v1713 = vadd.f32 0.0, %v1712
      %v1714 = vpop.f32.mrb[0].mxu0
      %1715 = vmatprep.mubr.f32.mxu0 0.0
      %1716 = vmatmul.mubr.f32.gmra.mrb[0].mxu0 %v1598
      %v1717 = vpop.f32.mrb[0].mxu0
      %v1718 = vadd.f32 0.0, %v1717
      %v1719 = vpop.f32.mrb[0].mxu0
      %1720 = vmatprep.mubr.f32.mxu0 0.0
      %1721 = vmatmul.mubr.f32.gmra.mrb[0].mxu0 %v1599
      %v1722 = vpop.f32.mrb[0].mxu0
      %v1723 = vadd.f32 0.0, %v1722
      %v1724 = vpop.f32.mrb[0].mxu0
      %1725 = vmatprep.mubr.f32.mxu0 0.0
      %1726 = vmatmul.mubr.f32.gmra.mrb[0].mxu0 %v1600
      %v1727 = vpop.f32.mrb[0].mxu0
      %v1728 = vadd.f32 0.0, %v1727
      %v1729 = vpop.f32.mrb[0].mxu0
      %1730 = vmatprep.mubr.f32.mxu0 0.0
      %1731 = vmatmul.mubr.f32.gmra.mrb[0].mxu0 %v1601
      %v1732 = vpop.f32.mrb[0].mxu0
      %v1733 = vadd.f32 0.0, %v1732
      %v1734 = vpop.f32.mrb[0].mxu0
      %1735 = vmatprep.mubr.f32.mxu0 0.0
      %1736 = vmatmul.mubr.f32.gmra.mrb[0].mxu0 %v1602
      %v1737 = vpop.f32.mrb[0].mxu0
      %v1738 = vadd.f32 0.0, %v1737
      %v1739 = vpop.f32.mrb[0].mxu0
      %1740 = vmatprep.mubr.f32.mxu0 0.0
      %1741 = vmatmul.mubr.f32.gmra.mrb[0].mxu0 %v1603
      %v1742 = vpop.f32.mrb[0].mxu0
      %v1743 = vadd.f32 0.0, %v1742
      %v1744 = vpop.f32.mrb[0].mxu0
      %1745 = vmatprep.mubr.f32.mxu0 0.0
      %1746 = vmatmul.mubr.f32.gmra.mrb[0].mxu0 %v1604
      %v1747 = vpop.f32.mrb[0].mxu0
      %v1748 = vadd.f32 0.0, %v1747
      %v1749 = vpop.f32.mrb[0].mxu0
      %1750 = vmatprep.mubr.f32.mxu0 0.0
      %1751 = vmatmul.mubr.f32.gmra.mrb[0].mxu0 %v1605
      %v1752 = vpop.f32.mrb[0].mxu0
      %v1753 = vadd.f32 0.0, %v1752
      %v1754 = vpop.f32.mrb[0].mxu0
      %1755 = vmatprep.mubr.f32.mxu0 0.0
      %1756 = vmatmul.mubr.f32.gmra.mrb[0].mxu0 %v1606
      %v1757 = vpop.f32.mrb[0].mxu0
      %v1758 = vadd.f32 0.0, %v1757
      %v1759 = vpop.f32.mrb[0].mxu0
      %1760 = vmatprep.mubr.f32.mxu0 0.0
      %1761 = vmatmul.mubr.f32.gmra.mrb[0].mxu0 %v1607
      %v1762 = vpop.f32.mrb[0].mxu0
      %v1763 = vadd.f32 0.0, %v1762
      %v1764 = vpop.f32.mrb[0].mxu0
      %1765 = vmatprep.mubr.f32.mxu0 0.0
      %1766 = vmatmul.mubr.f32.gmra.mrb[0].mxu0 %v1608
      %v1767 = vpop.f32.mrb[0].mxu0
      %v1768 = vadd.f32 0.0, %v1767
      %v1769 = vpop.f32.mrb[0].mxu0
      %1770 = vmatprep.mubr.f32.mxu0 0.0
      %1771 = vmatmul.mubr.f32.gmra.mrb[0].mxu0 %v1609
      %v1772 = vpop.f32.mrb[0].mxu0
      %v1773 = vadd.f32 0.0, %v1772
      %v1774 = vpop.f32.mrb[0].mxu0
      %1775 = vmatprep.mubr.f32.mxu0 0.0
      %1776 = vmatmul.mubr.f32.gmra.mrb[0].mxu0 %v1610
      %v1777 = vpop.f32.mrb[0].mxu0
      %v1778 = vadd.f32 0.0, %v1777
      %v1779 = vpop.f32.mrb[0].mxu0
      %1780 = vmatprep.mubr.f32.mxu0 0.0
      %1781 = vmatmul.mubr.f32.gmra.mrb[0].mxu0 %v1611
      %v1782 = vpop.f32.mrb[0].mxu0
      %v1783 = vadd.f32 0.0, %v1782
      %v1784 = vpop.f32.mrb[0].mxu0
      %1785 = vmatprep.mubr.f32.mxu0 0.0
      %1786 = vmatmul.mubr.f32.gmra.mrb[0].mxu0 %v1612
      %v1787 = vpop.f32.mrb[0].mxu0
      %v1788 = vadd.f32 0.0, %v1787
      %v1789 = vpop.f32.mrb[0].mxu0
      %1790 = vmatprep.mubr.f32.mxu0 0.0
      %1791 = vmatmul.mubr.f32.gmra.mrb[0].mxu0 %v1613
      %v1792 = vpop.f32.mrb[0].mxu0
      %v1793 = vadd.f32 0.0, %v1792
      %v1794 = vpop.f32.mrb[0].mxu0
      %1795 = vmatprep.mubr.f32.mxu0 0.0
      %1796 = vmatmul.mubr.f32.gmra.mrb[0].mxu0 %v1614
      %v1797 = vpop.f32.mrb[0].mxu0
      %v1798 = vadd.f32 0.0, %v1797
      %v1799 = vpop.f32.mrb[0].mxu0
      %1800 = vmatprep.mubr.f32.mxu0 0.0
      %1801 = vmatmul.mubr.f32.gmra.mrb[0].mxu0 %v1615
      %v1802 = vpop.f32.mrb[0].mxu0
      %v1803 = vadd.f32 0.0, %v1802
      %v1804 = vpop.f32.mrb[0].mxu0
      %1805 = vmatprep.mubr.f32.mxu0 0.0
      %1806 = vmatmul.mubr.f32.gmra.mrb[0].mxu0 %v1616
      %v1807 = vpop.f32.mrb[0].mxu0
      %v1808 = vadd.f32 0.0, %v1807
      %v1809 = vpop.f32.mrb[0].mxu0
      %1810 = vmatprep.mubr.f32.mxu0 0.0
      %1811 = vmatmul.mubr.f32.gmra.mrb[0].mxu0 %v1617
      %v1812 = vpop.f32.mrb[0].mxu0
      %v1813 = vadd.f32 0.0, %v1812
      %v1814 = vpop.f32.mrb[0].mxu0
      %1815 = vmatprep.mubr.f32.mxu0 0.0
      %1816 = vmatmul.mubr.f32.gmra.mrb[0].mxu0 %v1618
      %v1817 = vpop.f32.mrb[0].mxu0
      %v1818 = vadd.f32 0.0, %v1817
      %v1819 = vpop.f32.mrb[0].mxu0
      %1820 = vmatprep.mubr.f32.mxu0 0.0
      %1821 = vmatmul.mubr.f32.gmra.mrb[0].mxu0 %v1619
      %v1822 = vpop.f32.mrb[0].mxu0
      %v1823 = vadd.f32 0.0, %v1822
      %v1824 = vpop.f32.mrb[0].mxu0
      %1825 = vmatprep.mubr.f32.mxu0 0.0
      %1826 = vmatmul.mubr.f32.gmra.mrb[0].mxu0 %v1620
      %v1827 = vpop.f32.mrb[0].mxu0
      %v1828 = vadd.f32 0.0, %v1827
      %v1829 = vpop.f32.mrb[0].mxu0
      %1830 = vmatprep.mubr.f32.mxu0 0.0
      %1831 = vmatmul.mubr.f32.gmra.mrb[0].mxu0 %v1621
      %v1832 = vpop.f32.mrb[0].mxu0
      %v1833 = vadd.f32 0.0, %v1832
      %v1834 = vpop.f32.mrb[0].mxu0
      %1835 = vmatprep.mubr.f32.mxu0 0.0
      %1836 = vmatmul.mubr.f32.gmra.mrb[0].mxu0 %v1622
      %v1837 = vpop.f32.mrb[0].mxu0
      %v1838 = vadd.f32 0.0, %v1837
      %v1839 = vpop.f32.mrb[0].mxu0
      %1840 = vmatprep.mubr.f32.mxu0 0.0
      %1841 = vmatmul.mubr.f32.gmra.mrb[0].mxu0 %v1623
      %v1842 = vpop.f32.mrb[0].mxu0
      %v1843 = vadd.f32 0.0, %v1842
      %v1844 = vpop.f32.mrb[0].mxu0
      %1845 = vmatprep.mubr.f32.mxu0 0.0
      %1846 = vmatmul.mubr.f32.gmra.mrb[0].mxu0 %v1624
      %v1847 = vpop.f32.mrb[0].mxu0
      %v1848 = vadd.f32 0.0, %v1847
      %v1849 = vpop.f32.mrb[0].mxu0
      %1850 = vmatprep.mubr.f32.mxu0 0.0
      %1851 = vmatmul.mubr.f32.gmra.mrb[0].mxu0 %v1625
      %v1852 = vpop.f32.mrb[0].mxu0
      %v1853 = vadd.f32 0.0, %v1852
      %v1854 = vpop.f32.mrb[0].mxu0
      %1855 = vmatprep.mubr.f32.mxu0 0.0
      %1856 = vmatmul.mubr.f32.gmra.mrb[0].mxu0 %v1626
      %v1857 = vpop.f32.mrb[0].mxu0
      %v1858 = vadd.f32 0.0, %v1857
      %v1859 = vpop.f32.mrb[0].mxu0
      %1860 = vmatprep.mubr.f32.mxu0 0.0
      %1861 = vmatmul.mubr.f32.gmra.mrb[0].mxu0 %v1627
      %v1862 = vpop.f32.mrb[0].mxu0
      %v1863 = vadd.f32 0.0, %v1862
      %v1864 = vpop.f32.mrb[0].mxu0
      %1865 = vmatprep.mubr.f32.mxu0 0.0
      %1866 = vmatmul.mubr.f32.gmra.mrb[0].mxu0 %v1628
      %v1867 = vpop.f32.mrb[0].mxu0
      %v1868 = vadd.f32 0.0, %v1867
      %v1869 = vpop.f32.mrb[0].mxu0
      %1870 = vdwg.mxu0
      %v1871 = vadd.f32 %v1565, %v1713
      %v1872 = vadd.f32 %v1566, %v1718
      %v1873 = vadd.f32 %v1567, %v1723
      %v1874 = vadd.f32 %v1568, %v1728
      %v1875 = vadd.f32 %v1569, %v1733
      %v1876 = vadd.f32 %v1570, %v1738
      %v1877 = vadd.f32 %v1571, %v1743
      %v1878 = vadd.f32 %v1572, %v1748
      %v1879 = vadd.f32 %v1573, %v1753
      %v1880 = vadd.f32 %v1574, %v1758
      %v1881 = vadd.f32 %v1575, %v1763
      %v1882 = vadd.f32 %v1576, %v1768
      %v1883 = vadd.f32 %v1577, %v1773
      %v1884 = vadd.f32 %v1578, %v1778
      %v1885 = vadd.f32 %v1579, %v1783
      %v1886 = vadd.f32 %v1580, %v1788
      %v1887 = vadd.f32 %v1581, %v1793
      %v1888 = vadd.f32 %v1582, %v1798
      %v1889 = vadd.f32 %v1583, %v1803
      %v1890 = vadd.f32 %v1584, %v1808
      %v1891 = vadd.f32 %v1585, %v1813
      %v1892 = vadd.f32 %v1586, %v1818
      %v1893 = vadd.f32 %v1587, %v1823
      %v1894 = vadd.f32 %v1588, %v1828
      %v1895 = vadd.f32 %v1589, %v1833
      %v1896 = vadd.f32 %v1590, %v1838
      %v1897 = vadd.f32 %v1591, %v1843
      %v1898 = vadd.f32 %v1592, %v1848
      %v1899 = vadd.f32 %v1593, %v1853
      %v1900 = vadd.f32 %v1594, %v1858
      %v1901 = vadd.f32 %v1595, %v1863
      %v1902 = vadd.f32 %v1596, %v1868
      %v1903 = vld [vmem:[%s405 + $0x2] sm:$0xff]
      %v1904 = vld [vmem:[%s405 + $0xa] sm:$0xff]
      %v1905 = vld [vmem:[%s405 + $0x1a] sm:$0xff]
      %v1906 = vld [vmem:[%s405 + $0x22] sm:$0xff]
      %v1907 = vld [vmem:[%s405 + $0x32] sm:$0xff]
      %v1908 = vld [vmem:[%s405 + $0x3a] sm:$0xff]
      %v1909 = vld [vmem:[%s405 + $0x4a] sm:$0xff]
      %v1910 = vld [vmem:[%s405 + $0x52] sm:$0xff]
      %v1911 = vld [vmem:[%s405 + $0x62] sm:$0xff]
      %v1912 = vld [vmem:[%s405 + $0x6a] sm:$0xff]
      %v1913 = vld [vmem:[%s405 + $0x7a] sm:$0xff]
      %v1914 = vld [vmem:[%s405 + $0x82] sm:$0xff]
      %v1915 = vld [vmem:[%s405 + $0x92] sm:$0xff]
      %v1916 = vld [vmem:[%s405 + $0x9a] sm:$0xff]
      %v1917 = vld [vmem:[%s405 + $0xaa] sm:$0xff]
      %v1918 = vld [vmem:[%s405 + $0xb2] sm:$0xff]
      %v1919 = vld [vmem:[%s405 + $0xc2] sm:$0xff]
      %v1920 = vld [vmem:[%s405 + $0xca] sm:$0xff]
      %v1921 = vld [vmem:[%s405 + $0xda] sm:$0xff]
      %v1922 = vld [vmem:[%s405 + $0xe2] sm:$0xff]
      %v1923 = vld [vmem:[%s405 + $0xf2] sm:$0xff]
      %v1924 = vld [vmem:[%s405 + $0xfa] sm:$0xff]
      %v1925 = vld [vmem:[%s405 + $0x10a] sm:$0xff]
      %v1926 = vld [vmem:[%s405 + $0x112] sm:$0xff]
      %v1927 = vld [vmem:[%s405 + $0x122] sm:$0xff]
      %v1928 = vld [vmem:[%s405 + $0x12a] sm:$0xff]
      %v1929 = vld [vmem:[%s405 + $0x13a] sm:$0xff]
      %v1930 = vld [vmem:[%s405 + $0x142] sm:$0xff]
      %v1931 = vld [vmem:[%s405 + $0x152] sm:$0xff]
      %v1932 = vld [vmem:[%s405 + $0x15a] sm:$0xff]
      %v1933 = vld [vmem:[%s405 + $0x16a] sm:$0xff]
      %v1934 = vld [vmem:[%s405 + $0x172] sm:$0xff]
      %s1935 = scalar_lea.vmem %s2, 640
      %v1936 = vld [vmem:[%s1935] sm:$0xff]
      %v1937 = vld [vmem:[%s1935 + $0x8] sm:$0xff]
      %v1938 = vld [vmem:[%s1935 + $0x10] sm:$0xff]
      %v1939 = vld [vmem:[%s1935 + $0x18] sm:$0xff]
      %v1940 = vld [vmem:[%s1935 + $0x20] sm:$0xff]
      %v1941 = vld [vmem:[%s1935 + $0x28] sm:$0xff]
      %v1942 = vld [vmem:[%s1935 + $0x30] sm:$0xff]
      %v1943 = vld [vmem:[%s1935 + $0x38] sm:$0xff]
      %v1944 = vld [vmem:[%s1935 + $0x40] sm:$0xff]
      %v1945 = vld [vmem:[%s1935 + $0x48] sm:$0xff]
      %v1946 = vld [vmem:[%s1935 + $0x50] sm:$0xff]
      %v1947 = vld [vmem:[%s1935 + $0x58] sm:$0xff]
      %v1948 = vld [vmem:[%s1935 + $0x60] sm:$0xff]
      %v1949 = vld [vmem:[%s1935 + $0x68] sm:$0xff]
      %v1950 = vld [vmem:[%s1935 + $0x70] sm:$0xff]
      %v1951 = vld [vmem:[%s1935 + $0x78] sm:$0xff]
      %1952 = vmatprep.subr.mxu0 0.0
      %1953 = vmatpush1.msra.mxu0 %v1936
      %1954 = vmatprep.subr.mxu0 0.0
      %1955 = vmatpush1.msra.mxu0 %v1937
      %1956 = vmatprep.subr.mxu0 0.0
      %1957 = vmatpush1.msra.mxu0 %v1938
      %1958 = vmatprep.subr.mxu0 0.0
      %1959 = vmatpush1.msra.mxu0 %v1939
      %1960 = vmatprep.subr.mxu0 0.0
      %1961 = vmatpush1.msra.mxu0 %v1940
      %1962 = vmatprep.subr.mxu0 0.0
      %1963 = vmatpush1.msra.mxu0 %v1941
      %1964 = vmatprep.subr.mxu0 0.0
      %1965 = vmatpush1.msra.mxu0 %v1942
      %1966 = vmatprep.subr.mxu0 0.0
      %1967 = vmatpush1.msra.mxu0 %v1943
      %1968 = vmatprep.subr.mxu0 0.0
      %1969 = vmatpush1.msra.mxu0 %v1944
      %1970 = vmatprep.subr.mxu0 0.0
      %1971 = vmatpush1.msra.mxu0 %v1945
      %1972 = vmatprep.subr.mxu0 0.0
      %1973 = vmatpush1.msra.mxu0 %v1946
      %1974 = vmatprep.subr.mxu0 0.0
      %1975 = vmatpush1.msra.mxu0 %v1947
      %1976 = vmatprep.subr.mxu0 0.0
      %1977 = vmatpush1.msra.mxu0 %v1948
      %1978 = vmatprep.subr.mxu0 0.0
      %1979 = vmatpush1.msra.mxu0 %v1949
      %1980 = vmatprep.subr.mxu0 0.0
      %1981 = vmatpush1.msra.mxu0 %v1950
      %1982 = vmatprep.subr.mxu0 0.0
      %1983 = vmatpush1.msra.mxu0 %v1951
      %1984 = vmatprep.subr.mxu0 0.0
      %1985 = vmatpush1.msra.mxu0 0.0
      %1986 = vmatprep.subr.mxu0 0.0
      %1987 = vmatpush1.msra.mxu0 0.0
      %1988 = vmatprep.subr.mxu0 0.0
      %1989 = vmatpush1.msra.mxu0 0.0
      %1990 = vmatprep.subr.mxu0 0.0
      %1991 = vmatpush1.msra.mxu0 0.0
      %1992 = vmatprep.subr.mxu0 0.0
      %1993 = vmatpush1.msra.mxu0 0.0
      %1994 = vmatprep.subr.mxu0 0.0
      %1995 = vmatpush1.msra.mxu0 0.0
      %1996 = vmatprep.subr.mxu0 0.0
      %1997 = vmatpush1.msra.mxu0 0.0
      %1998 = vmatprep.subr.mxu0 0.0
      %1999 = vmatpush1.msra.mxu0 0.0
      %2000 = vmatprep.subr.mxu0 0.0
      %2001 = vmatpush1.msra.mxu0 0.0
      %2002 = vmatprep.subr.mxu0 0.0
      %2003 = vmatpush1.msra.mxu0 0.0
      %2004 = vmatprep.subr.mxu0 0.0
      %2005 = vmatpush1.msra.mxu0 0.0
      %2006 = vmatprep.subr.mxu0 0.0
      %2007 = vmatpush1.msra.mxu0 0.0
      %2008 = vmatprep.subr.mxu0 0.0
      %2009 = vmatpush1.msra.mxu0 0.0
      %2010 = vmatprep.subr.mxu0 0.0
      %2011 = vmatpush1.msra.mxu0 0.0
      %2012 = vmatprep.subr.mxu0 0.0
      %2013 = vmatpush1.msra.mxu0 0.0
      %2014 = vmatprep.subr.mxu0 0.0
      %2015 = vmatpush1.msra.mxu0 0.0
      %2016 = vmatprep.mubr.f32.mxu0 0.0
      %2017 = vmatmul.mubr.f32.gmra.mrb[0].mxu0 %v1903
      %v2018 = vpop.f32.mrb[0].mxu0
      %v2019 = vadd.f32 0.0, %v2018
      %v2020 = vpop.f32.mrb[0].mxu0
      %2021 = vmatprep.mubr.f32.mxu0 0.0
      %2022 = vmatmul.mubr.f32.gmra.mrb[0].mxu0 %v1904
      %v2023 = vpop.f32.mrb[0].mxu0
      %v2024 = vadd.f32 0.0, %v2023
      %v2025 = vpop.f32.mrb[0].mxu0
      %2026 = vmatprep.mubr.f32.mxu0 0.0
      %2027 = vmatmul.mubr.f32.gmra.mrb[0].mxu0 %v1905
      %v2028 = vpop.f32.mrb[0].mxu0
      %v2029 = vadd.f32 0.0, %v2028
      %v2030 = vpop.f32.mrb[0].mxu0
      %2031 = vmatprep.mubr.f32.mxu0 0.0
      %2032 = vmatmul.mubr.f32.gmra.mrb[0].mxu0 %v1906
      %v2033 = vpop.f32.mrb[0].mxu0
      %v2034 = vadd.f32 0.0, %v2033
      %v2035 = vpop.f32.mrb[0].mxu0
      %2036 = vmatprep.mubr.f32.mxu0 0.0
      %2037 = vmatmul.mubr.f32.gmra.mrb[0].mxu0 %v1907
      %v2038 = vpop.f32.mrb[0].mxu0
      %v2039 = vadd.f32 0.0, %v2038
      %v2040 = vpop.f32.mrb[0].mxu0
      %2041 = vmatprep.mubr.f32.mxu0 0.0
      %2042 = vmatmul.mubr.f32.gmra.mrb[0].mxu0 %v1908
      %v2043 = vpop.f32.mrb[0].mxu0
      %v2044 = vadd.f32 0.0, %v2043
      %v2045 = vpop.f32.mrb[0].mxu0
      %2046 = vmatprep.mubr.f32.mxu0 0.0
      %2047 = vmatmul.mubr.f32.gmra.mrb[0].mxu0 %v1909
      %v2048 = vpop.f32.mrb[0].mxu0
      %v2049 = vadd.f32 0.0, %v2048
      %v2050 = vpop.f32.mrb[0].mxu0
      %2051 = vmatprep.mubr.f32.mxu0 0.0
      %2052 = vmatmul.mubr.f32.gmra.mrb[0].mxu0 %v1910
      %v2053 = vpop.f32.mrb[0].mxu0
      %v2054 = vadd.f32 0.0, %v2053
      %v2055 = vpop.f32.mrb[0].mxu0
      %2056 = vmatprep.mubr.f32.mxu0 0.0
      %2057 = vmatmul.mubr.f32.gmra.mrb[0].mxu0 %v1911
      %v2058 = vpop.f32.mrb[0].mxu0
      %v2059 = vadd.f32 0.0, %v2058
      %v2060 = vpop.f32.mrb[0].mxu0
      %2061 = vmatprep.mubr.f32.mxu0 0.0
      %2062 = vmatmul.mubr.f32.gmra.mrb[0].mxu0 %v1912
      %v2063 = vpop.f32.mrb[0].mxu0
      %v2064 = vadd.f32 0.0, %v2063
      %v2065 = vpop.f32.mrb[0].mxu0
      %2066 = vmatprep.mubr.f32.mxu0 0.0
      %2067 = vmatmul.mubr.f32.gmra.mrb[0].mxu0 %v1913
      %v2068 = vpop.f32.mrb[0].mxu0
      %v2069 = vadd.f32 0.0, %v2068
      %v2070 = vpop.f32.mrb[0].mxu0
      %2071 = vmatprep.mubr.f32.mxu0 0.0
      %2072 = vmatmul.mubr.f32.gmra.mrb[0].mxu0 %v1914
      %v2073 = vpop.f32.mrb[0].mxu0
      %v2074 = vadd.f32 0.0, %v2073
      %v2075 = vpop.f32.mrb[0].mxu0
      %2076 = vmatprep.mubr.f32.mxu0 0.0
      %2077 = vmatmul.mubr.f32.gmra.mrb[0].mxu0 %v1915
      %v2078 = vpop.f32.mrb[0].mxu0
      %v2079 = vadd.f32 0.0, %v2078
      %v2080 = vpop.f32.mrb[0].mxu0
      %2081 = vmatprep.mubr.f32.mxu0 0.0
      %2082 = vmatmul.mubr.f32.gmra.mrb[0].mxu0 %v1916
      %v2083 = vpop.f32.mrb[0].mxu0
      %v2084 = vadd.f32 0.0, %v2083
      %v2085 = vpop.f32.mrb[0].mxu0
      %2086 = vmatprep.mubr.f32.mxu0 0.0
      %2087 = vmatmul.mubr.f32.gmra.mrb[0].mxu0 %v1917
      %v2088 = vpop.f32.mrb[0].mxu0
      %v2089 = vadd.f32 0.0, %v2088
      %v2090 = vpop.f32.mrb[0].mxu0
      %2091 = vmatprep.mubr.f32.mxu0 0.0
      %2092 = vmatmul.mubr.f32.gmra.mrb[0].mxu0 %v1918
      %v2093 = vpop.f32.mrb[0].mxu0
      %v2094 = vadd.f32 0.0, %v2093
      %v2095 = vpop.f32.mrb[0].mxu0
      %2096 = vmatprep.mubr.f32.mxu0 0.0
      %2097 = vmatmul.mubr.f32.gmra.mrb[0].mxu0 %v1919
      %v2098 = vpop.f32.mrb[0].mxu0
      %v2099 = vadd.f32 0.0, %v2098
      %v2100 = vpop.f32.mrb[0].mxu0
      %2101 = vmatprep.mubr.f32.mxu0 0.0
      %2102 = vmatmul.mubr.f32.gmra.mrb[0].mxu0 %v1920
      %v2103 = vpop.f32.mrb[0].mxu0
      %v2104 = vadd.f32 0.0, %v2103
      %v2105 = vpop.f32.mrb[0].mxu0
      %2106 = vmatprep.mubr.f32.mxu0 0.0
      %2107 = vmatmul.mubr.f32.gmra.mrb[0].mxu0 %v1921
      %v2108 = vpop.f32.mrb[0].mxu0
      %v2109 = vadd.f32 0.0, %v2108
      %v2110 = vpop.f32.mrb[0].mxu0
      %2111 = vmatprep.mubr.f32.mxu0 0.0
      %2112 = vmatmul.mubr.f32.gmra.mrb[0].mxu0 %v1922
      %v2113 = vpop.f32.mrb[0].mxu0
      %v2114 = vadd.f32 0.0, %v2113
      %v2115 = vpop.f32.mrb[0].mxu0
      %2116 = vmatprep.mubr.f32.mxu0 0.0
      %2117 = vmatmul.mubr.f32.gmra.mrb[0].mxu0 %v1923
      %v2118 = vpop.f32.mrb[0].mxu0
      %v2119 = vadd.f32 0.0, %v2118
      %v2120 = vpop.f32.mrb[0].mxu0
      %2121 = vmatprep.mubr.f32.mxu0 0.0
      %2122 = vmatmul.mubr.f32.gmra.mrb[0].mxu0 %v1924
      %v2123 = vpop.f32.mrb[0].mxu0
      %v2124 = vadd.f32 0.0, %v2123
      %v2125 = vpop.f32.mrb[0].mxu0
      %2126 = vmatprep.mubr.f32.mxu0 0.0
      %2127 = vmatmul.mubr.f32.gmra.mrb[0].mxu0 %v1925
      %v2128 = vpop.f32.mrb[0].mxu0
      %v2129 = vadd.f32 0.0, %v2128
      %v2130 = vpop.f32.mrb[0].mxu0
      %2131 = vmatprep.mubr.f32.mxu0 0.0
      %2132 = vmatmul.mubr.f32.gmra.mrb[0].mxu0 %v1926
      %v2133 = vpop.f32.mrb[0].mxu0
      %v2134 = vadd.f32 0.0, %v2133
      %v2135 = vpop.f32.mrb[0].mxu0
      %2136 = vmatprep.mubr.f32.mxu0 0.0
      %2137 = vmatmul.mubr.f32.gmra.mrb[0].mxu0 %v1927
      %v2138 = vpop.f32.mrb[0].mxu0
      %v2139 = vadd.f32 0.0, %v2138
      %v2140 = vpop.f32.mrb[0].mxu0
      %2141 = vmatprep.mubr.f32.mxu0 0.0
      %2142 = vmatmul.mubr.f32.gmra.mrb[0].mxu0 %v1928
      %v2143 = vpop.f32.mrb[0].mxu0
      %v2144 = vadd.f32 0.0, %v2143
      %v2145 = vpop.f32.mrb[0].mxu0
      %2146 = vmatprep.mubr.f32.mxu0 0.0
      %2147 = vmatmul.mubr.f32.gmra.mrb[0].mxu0 %v1929
      %v2148 = vpop.f32.mrb[0].mxu0
      %v2149 = vadd.f32 0.0, %v2148
      %v2150 = vpop.f32.mrb[0].mxu0
      %2151 = vmatprep.mubr.f32.mxu0 0.0
      %2152 = vmatmul.mubr.f32.gmra.mrb[0].mxu0 %v1930
      %v2153 = vpop.f32.mrb[0].mxu0
      %v2154 = vadd.f32 0.0, %v2153
      %v2155 = vpop.f32.mrb[0].mxu0
      %2156 = vmatprep.mubr.f32.mxu0 0.0
      %2157 = vmatmul.mubr.f32.gmra.mrb[0].mxu0 %v1931
      %v2158 = vpop.f32.mrb[0].mxu0
      %v2159 = vadd.f32 0.0, %v2158
      %v2160 = vpop.f32.mrb[0].mxu0
      %2161 = vmatprep.mubr.f32.mxu0 0.0
      %2162 = vmatmul.mubr.f32.gmra.mrb[0].mxu0 %v1932
      %v2163 = vpop.f32.mrb[0].mxu0
      %v2164 = vadd.f32 0.0, %v2163
      %v2165 = vpop.f32.mrb[0].mxu0
      %2166 = vmatprep.mubr.f32.mxu0 0.0
      %2167 = vmatmul.mubr.f32.gmra.mrb[0].mxu0 %v1933
      %v2168 = vpop.f32.mrb[0].mxu0
      %v2169 = vadd.f32 0.0, %v2168
      %v2170 = vpop.f32.mrb[0].mxu0
      %2171 = vmatprep.mubr.f32.mxu0 0.0
      %2172 = vmatmul.mubr.f32.gmra.mrb[0].mxu0 %v1934
      %v2173 = vpop.f32.mrb[0].mxu0
      %v2174 = vadd.f32 0.0, %v2173
      %v2175 = vpop.f32.mrb[0].mxu0
      %2176 = vdwg.mxu0
      %v2177 = vadd.f32 %v1871, %v2019
      %v2178 = vadd.f32 %v1872, %v2024
      %v2179 = vadd.f32 %v1873, %v2029
      %v2180 = vadd.f32 %v1874, %v2034
      %v2181 = vadd.f32 %v1875, %v2039
      %v2182 = vadd.f32 %v1876, %v2044
      %v2183 = vadd.f32 %v1877, %v2049
      %v2184 = vadd.f32 %v1878, %v2054
      %v2185 = vadd.f32 %v1879, %v2059
      %v2186 = vadd.f32 %v1880, %v2064
      %v2187 = vadd.f32 %v1881, %v2069
      %v2188 = vadd.f32 %v1882, %v2074
      %v2189 = vadd.f32 %v1883, %v2079
      %v2190 = vadd.f32 %v1884, %v2084
      %v2191 = vadd.f32 %v1885, %v2089
      %v2192 = vadd.f32 %v1886, %v2094
      %v2193 = vadd.f32 %v1887, %v2099
      %v2194 = vadd.f32 %v1888, %v2104
      %v2195 = vadd.f32 %v1889, %v2109
      %v2196 = vadd.f32 %v1890, %v2114
      %v2197 = vadd.f32 %v1891, %v2119
      %v2198 = vadd.f32 %v1892, %v2124
      %v2199 = vadd.f32 %v1893, %v2129
      %v2200 = vadd.f32 %v1894, %v2134
      %v2201 = vadd.f32 %v1895, %v2139
      %v2202 = vadd.f32 %v1896, %v2144
      %v2203 = vadd.f32 %v1897, %v2149
      %v2204 = vadd.f32 %v1898, %v2154
      %v2205 = vadd.f32 %v1899, %v2159
      %v2206 = vadd.f32 %v1900, %v2164
      %v2207 = vadd.f32 %v1901, %v2169
      %v2208 = vadd.f32 %v1902, %v2174
      %s2209 = scalar_lea.vmem [#allocation2], 48
      %v2210 = vld [vmem:[%s2209] sm:$0xff]
      %v2211 = vld [vmem:[%s2209 + $0x8] sm:$0xff]
      %v2212 = vld [vmem:[%s2209 + $0x18] sm:$0xff]
      %v2213 = vld [vmem:[%s2209 + $0x20] sm:$0xff]
      %v2214 = vld [vmem:[%s2209 + $0x30] sm:$0xff]
      %v2215 = vld [vmem:[%s2209 + $0x38] sm:$0xff]
      %v2216 = vld [vmem:[%s2209 + $0x48] sm:$0xff]
      %v2217 = vld [vmem:[%s2209 + $0x50] sm:$0xff]
      %v2218 = vld [vmem:[%s2209 + $0x60] sm:$0xff]
      %v2219 = vld [vmem:[%s2209 + $0x68] sm:$0xff]
      %v2220 = vld [vmem:[%s2209 + $0x78] sm:$0xff]
      %v2221 = vld [vmem:[%s2209 + $0x80] sm:$0xff]
      %v2222 = vld [vmem:[%s2209 + $0x90] sm:$0xff]
      %v2223 = vld [vmem:[%s2209 + $0x98] sm:$0xff]
      %v2224 = vld [vmem:[%s2209 + $0xa8] sm:$0xff]
      %v2225 = vld [vmem:[%s2209 + $0xb0] sm:$0xff]
      %v2226 = vld [vmem:[%s2209 + $0xc0] sm:$0xff]
      %v2227 = vld [vmem:[%s2209 + $0xc8] sm:$0xff]
      %v2228 = vld [vmem:[%s2209 + $0xd8] sm:$0xff]
      %v2229 = vld [vmem:[%s2209 + $0xe0] sm:$0xff]
      %v2230 = vld [vmem:[%s2209 + $0xf0] sm:$0xff]
      %v2231 = vld [vmem:[%s2209 + $0xf8] sm:$0xff]
      %v2232 = vld [vmem:[%s2209 + $0x108] sm:$0xff]
      %v2233 = vld [vmem:[%s2209 + $0x110] sm:$0xff]
      %v2234 = vld [vmem:[%s2209 + $0x120] sm:$0xff]
      %v2235 = vld [vmem:[%s2209 + $0x128] sm:$0xff]
      %v2236 = vld [vmem:[%s2209 + $0x138] sm:$0xff]
      %v2237 = vld [vmem:[%s2209 + $0x140] sm:$0xff]
      %v2238 = vld [vmem:[%s2209 + $0x150] sm:$0xff]
      %v2239 = vld [vmem:[%s2209 + $0x158] sm:$0xff]
      %v2240 = vld [vmem:[%s2209 + $0x168] sm:$0xff]
      %v2241 = vld [vmem:[%s2209 + $0x170] sm:$0xff]
      %s2242 = scalar_lea.vmem %s2, 768
      %v2243 = vld [vmem:[%s2242] sm:$0xff]
      %v2244 = vld [vmem:[%s2242 + $0x8] sm:$0xff]
      %v2245 = vld [vmem:[%s2242 + $0x10] sm:$0xff]
      %v2246 = vld [vmem:[%s2242 + $0x18] sm:$0xff]
      %v2247 = vld [vmem:[%s2242 + $0x20] sm:$0xff]
      %v2248 = vld [vmem:[%s2242 + $0x28] sm:$0xff]
      %v2249 = vld [vmem:[%s2242 + $0x30] sm:$0xff]
      %v2250 = vld [vmem:[%s2242 + $0x38] sm:$0xff]
      %v2251 = vld [vmem:[%s2242 + $0x40] sm:$0xff]
      %v2252 = vld [vmem:[%s2242 + $0x48] sm:$0xff]
      %v2253 = vld [vmem:[%s2242 + $0x50] sm:$0xff]
      %v2254 = vld [vmem:[%s2242 + $0x58] sm:$0xff]
      %v2255 = vld [vmem:[%s2242 + $0x60] sm:$0xff]
      %v2256 = vld [vmem:[%s2242 + $0x68] sm:$0xff]
      %v2257 = vld [vmem:[%s2242 + $0x70] sm:$0xff]
      %v2258 = vld [vmem:[%s2242 + $0x78] sm:$0xff]
      %2259 = vmatprep.subr.mxu0 0.0
      %2260 = vmatpush1.msra.mxu0 %v2243
      %2261 = vmatprep.subr.mxu0 0.0
      %2262 = vmatpush1.msra.mxu0 %v2244
      %2263 = vmatprep.subr.mxu0 0.0
      %2264 = vmatpush1.msra.mxu0 %v2245
      %2265 = vmatprep.subr.mxu0 0.0
      %2266 = vmatpush1.msra.mxu0 %v2246
      %2267 = vmatprep.subr.mxu0 0.0
      %2268 = vmatpush1.msra.mxu0 %v2247
      %2269 = vmatprep.subr.mxu0 0.0
      %2270 = vmatpush1.msra.mxu0 %v2248
      %2271 = vmatprep.subr.mxu0 0.0
      %2272 = vmatpush1.msra.mxu0 %v2249
      %2273 = vmatprep.subr.mxu0 0.0
      %2274 = vmatpush1.msra.mxu0 %v2250
      %2275 = vmatprep.subr.mxu0 0.0
      %2276 = vmatpush1.msra.mxu0 %v2251
      %2277 = vmatprep.subr.mxu0 0.0
      %2278 = vmatpush1.msra.mxu0 %v2252
      %2279 = vmatprep.subr.mxu0 0.0
      %2280 = vmatpush1.msra.mxu0 %v2253
      %2281 = vmatprep.subr.mxu0 0.0
      %2282 = vmatpush1.msra.mxu0 %v2254
      %2283 = vmatprep.subr.mxu0 0.0
      %2284 = vmatpush1.msra.mxu0 %v2255
      %2285 = vmatprep.subr.mxu0 0.0
      %2286 = vmatpush1.msra.mxu0 %v2256
      %2287 = vmatprep.subr.mxu0 0.0
      %2288 = vmatpush1.msra.mxu0 %v2257
      %2289 = vmatprep.subr.mxu0 0.0
      %2290 = vmatpush1.msra.mxu0 %v2258
      %2291 = vmatprep.subr.mxu0 0.0
      %2292 = vmatpush1.msra.mxu0 0.0
      %2293 = vmatprep.subr.mxu0 0.0
      %2294 = vmatpush1.msra.mxu0 0.0
      %2295 = vmatprep.subr.mxu0 0.0
      %2296 = vmatpush1.msra.mxu0 0.0
      %2297 = vmatprep.subr.mxu0 0.0
      %2298 = vmatpush1.msra.mxu0 0.0
      %2299 = vmatprep.subr.mxu0 0.0
      %2300 = vmatpush1.msra.mxu0 0.0
      %2301 = vmatprep.subr.mxu0 0.0
      %2302 = vmatpush1.msra.mxu0 0.0
      %2303 = vmatprep.subr.mxu0 0.0
      %2304 = vmatpush1.msra.mxu0 0.0
      %2305 = vmatprep.subr.mxu0 0.0
      %2306 = vmatpush1.msra.mxu0 0.0
      %2307 = vmatprep.subr.mxu0 0.0
      %2308 = vmatpush1.msra.mxu0 0.0
      %2309 = vmatprep.subr.mxu0 0.0
      %2310 = vmatpush1.msra.mxu0 0.0
      %2311 = vmatprep.subr.mxu0 0.0
      %2312 = vmatpush1.msra.mxu0 0.0
      %2313 = vmatprep.subr.mxu0 0.0
      %2314 = vmatpush1.msra.mxu0 0.0
      %2315 = vmatprep.subr.mxu0 0.0
      %2316 = vmatpush1.msra.mxu0 0.0
      %2317 = vmatprep.subr.mxu0 0.0
      %2318 = vmatpush1.msra.mxu0 0.0
      %2319 = vmatprep.subr.mxu0 0.0
      %2320 = vmatpush1.msra.mxu0 0.0
      %2321 = vmatprep.subr.mxu0 0.0
      %2322 = vmatpush1.msra.mxu0 0.0
      %2323 = vmatprep.mubr.f32.mxu0 0.0
      %2324 = vmatmul.mubr.f32.gmra.mrb[0].mxu0 %v2210
      %v2325 = vpop.f32.mrb[0].mxu0
      %v2326 = vadd.f32 0.0, %v2325
      %v2327 = vpop.f32.mrb[0].mxu0
      %2328 = vmatprep.mubr.f32.mxu0 0.0
      %2329 = vmatmul.mubr.f32.gmra.mrb[0].mxu0 %v2211
      %v2330 = vpop.f32.mrb[0].mxu0
      %v2331 = vadd.f32 0.0, %v2330
      %v2332 = vpop.f32.mrb[0].mxu0
      %2333 = vmatprep.mubr.f32.mxu0 0.0
      %2334 = vmatmul.mubr.f32.gmra.mrb[0].mxu0 %v2212
      %v2335 = vpop.f32.mrb[0].mxu0
      %v2336 = vadd.f32 0.0, %v2335
      %v2337 = vpop.f32.mrb[0].mxu0
      %2338 = vmatprep.mubr.f32.mxu0 0.0
      %2339 = vmatmul.mubr.f32.gmra.mrb[0].mxu0 %v2213
      %v2340 = vpop.f32.mrb[0].mxu0
      %v2341 = vadd.f32 0.0, %v2340
      %v2342 = vpop.f32.mrb[0].mxu0
      %2343 = vmatprep.mubr.f32.mxu0 0.0
      %2344 = vmatmul.mubr.f32.gmra.mrb[0].mxu0 %v2214
      %v2345 = vpop.f32.mrb[0].mxu0
      %v2346 = vadd.f32 0.0, %v2345
      %v2347 = vpop.f32.mrb[0].mxu0
      %2348 = vmatprep.mubr.f32.mxu0 0.0
      %2349 = vmatmul.mubr.f32.gmra.mrb[0].mxu0 %v2215
      %v2350 = vpop.f32.mrb[0].mxu0
      %v2351 = vadd.f32 0.0, %v2350
      %v2352 = vpop.f32.mrb[0].mxu0
      %2353 = vmatprep.mubr.f32.mxu0 0.0
      %2354 = vmatmul.mubr.f32.gmra.mrb[0].mxu0 %v2216
      %v2355 = vpop.f32.mrb[0].mxu0
      %v2356 = vadd.f32 0.0, %v2355
      %v2357 = vpop.f32.mrb[0].mxu0
      %2358 = vmatprep.mubr.f32.mxu0 0.0
      %2359 = vmatmul.mubr.f32.gmra.mrb[0].mxu0 %v2217
      %v2360 = vpop.f32.mrb[0].mxu0
      %v2361 = vadd.f32 0.0, %v2360
      %v2362 = vpop.f32.mrb[0].mxu0
      %2363 = vmatprep.mubr.f32.mxu0 0.0
      %2364 = vmatmul.mubr.f32.gmra.mrb[0].mxu0 %v2218
      %v2365 = vpop.f32.mrb[0].mxu0
      %v2366 = vadd.f32 0.0, %v2365
      %v2367 = vpop.f32.mrb[0].mxu0
      %2368 = vmatprep.mubr.f32.mxu0 0.0
      %2369 = vmatmul.mubr.f32.gmra.mrb[0].mxu0 %v2219
      %v2370 = vpop.f32.mrb[0].mxu0
      %v2371 = vadd.f32 0.0, %v2370
      %v2372 = vpop.f32.mrb[0].mxu0
      %2373 = vmatprep.mubr.f32.mxu0 0.0
      %2374 = vmatmul.mubr.f32.gmra.mrb[0].mxu0 %v2220
      %v2375 = vpop.f32.mrb[0].mxu0
      %v2376 = vadd.f32 0.0, %v2375
      %v2377 = vpop.f32.mrb[0].mxu0
      %2378 = vmatprep.mubr.f32.mxu0 0.0
      %2379 = vmatmul.mubr.f32.gmra.mrb[0].mxu0 %v2221
      %v2380 = vpop.f32.mrb[0].mxu0
      %v2381 = vadd.f32 0.0, %v2380
      %v2382 = vpop.f32.mrb[0].mxu0
      %2383 = vmatprep.mubr.f32.mxu0 0.0
      %2384 = vmatmul.mubr.f32.gmra.mrb[0].mxu0 %v2222
      %v2385 = vpop.f32.mrb[0].mxu0
      %v2386 = vadd.f32 0.0, %v2385
      %v2387 = vpop.f32.mrb[0].mxu0
      %2388 = vmatprep.mubr.f32.mxu0 0.0
      %2389 = vmatmul.mubr.f32.gmra.mrb[0].mxu0 %v2223
      %v2390 = vpop.f32.mrb[0].mxu0
      %v2391 = vadd.f32 0.0, %v2390
      %v2392 = vpop.f32.mrb[0].mxu0
      %2393 = vmatprep.mubr.f32.mxu0 0.0
      %2394 = vmatmul.mubr.f32.gmra.mrb[0].mxu0 %v2224
      %v2395 = vpop.f32.mrb[0].mxu0
      %v2396 = vadd.f32 0.0, %v2395
      %v2397 = vpop.f32.mrb[0].mxu0
      %2398 = vmatprep.mubr.f32.mxu0 0.0
      %2399 = vmatmul.mubr.f32.gmra.mrb[0].mxu0 %v2225
      %v2400 = vpop.f32.mrb[0].mxu0
      %v2401 = vadd.f32 0.0, %v2400
      %v2402 = vpop.f32.mrb[0].mxu0
      %2403 = vmatprep.mubr.f32.mxu0 0.0
      %2404 = vmatmul.mubr.f32.gmra.mrb[0].mxu0 %v2226
      %v2405 = vpop.f32.mrb[0].mxu0
      %v2406 = vadd.f32 0.0, %v2405
      %v2407 = vpop.f32.mrb[0].mxu0
      %2408 = vmatprep.mubr.f32.mxu0 0.0
      %2409 = vmatmul.mubr.f32.gmra.mrb[0].mxu0 %v2227
      %v2410 = vpop.f32.mrb[0].mxu0
      %v2411 = vadd.f32 0.0, %v2410
      %v2412 = vpop.f32.mrb[0].mxu0
      %2413 = vmatprep.mubr.f32.mxu0 0.0
      %2414 = vmatmul.mubr.f32.gmra.mrb[0].mxu0 %v2228
      %v2415 = vpop.f32.mrb[0].mxu0
      %v2416 = vadd.f32 0.0, %v2415
      %v2417 = vpop.f32.mrb[0].mxu0
      %2418 = vmatprep.mubr.f32.mxu0 0.0
      %2419 = vmatmul.mubr.f32.gmra.mrb[0].mxu0 %v2229
      %v2420 = vpop.f32.mrb[0].mxu0
      %v2421 = vadd.f32 0.0, %v2420
      %v2422 = vpop.f32.mrb[0].mxu0
      %2423 = vmatprep.mubr.f32.mxu0 0.0
      %2424 = vmatmul.mubr.f32.gmra.mrb[0].mxu0 %v2230
      %v2425 = vpop.f32.mrb[0].mxu0
      %v2426 = vadd.f32 0.0, %v2425
      %v2427 = vpop.f32.mrb[0].mxu0
      %2428 = vmatprep.mubr.f32.mxu0 0.0
      %2429 = vmatmul.mubr.f32.gmra.mrb[0].mxu0 %v2231
      %v2430 = vpop.f32.mrb[0].mxu0
      %v2431 = vadd.f32 0.0, %v2430
      %v2432 = vpop.f32.mrb[0].mxu0
      %2433 = vmatprep.mubr.f32.mxu0 0.0
      %2434 = vmatmul.mubr.f32.gmra.mrb[0].mxu0 %v2232
      %v2435 = vpop.f32.mrb[0].mxu0
      %v2436 = vadd.f32 0.0, %v2435
      %v2437 = vpop.f32.mrb[0].mxu0
      %2438 = vmatprep.mubr.f32.mxu0 0.0
      %2439 = vmatmul.mubr.f32.gmra.mrb[0].mxu0 %v2233
      %v2440 = vpop.f32.mrb[0].mxu0
      %v2441 = vadd.f32 0.0, %v2440
      %v2442 = vpop.f32.mrb[0].mxu0
      %2443 = vmatprep.mubr.f32.mxu0 0.0
      %2444 = vmatmul.mubr.f32.gmra.mrb[0].mxu0 %v2234
      %v2445 = vpop.f32.mrb[0].mxu0
      %v2446 = vadd.f32 0.0, %v2445
      %v2447 = vpop.f32.mrb[0].mxu0
      %2448 = vmatprep.mubr.f32.mxu0 0.0
      %2449 = vmatmul.mubr.f32.gmra.mrb[0].mxu0 %v2235
      %v2450 = vpop.f32.mrb[0].mxu0
      %v2451 = vadd.f32 0.0, %v2450
      %v2452 = vpop.f32.mrb[0].mxu0
      %2453 = vmatprep.mubr.f32.mxu0 0.0
      %2454 = vmatmul.mubr.f32.gmra.mrb[0].mxu0 %v2236
      %v2455 = vpop.f32.mrb[0].mxu0
      %v2456 = vadd.f32 0.0, %v2455
      %v2457 = vpop.f32.mrb[0].mxu0
      %2458 = vmatprep.mubr.f32.mxu0 0.0
      %2459 = vmatmul.mubr.f32.gmra.mrb[0].mxu0 %v2237
      %v2460 = vpop.f32.mrb[0].mxu0
      %v2461 = vadd.f32 0.0, %v2460
      %v2462 = vpop.f32.mrb[0].mxu0
      %2463 = vmatprep.mubr.f32.mxu0 0.0
      %2464 = vmatmul.mubr.f32.gmra.mrb[0].mxu0 %v2238
      %v2465 = vpop.f32.mrb[0].mxu0
      %v2466 = vadd.f32 0.0, %v2465
      %v2467 = vpop.f32.mrb[0].mxu0
      %2468 = vmatprep.mubr.f32.mxu0 0.0
      %2469 = vmatmul.mubr.f32.gmra.mrb[0].mxu0 %v2239
      %v2470 = vpop.f32.mrb[0].mxu0
      %v2471 = vadd.f32 0.0, %v2470
      %v2472 = vpop.f32.mrb[0].mxu0
      %2473 = vmatprep.mubr.f32.mxu0 0.0
      %2474 = vmatmul.mubr.f32.gmra.mrb[0].mxu0 %v2240
      %v2475 = vpop.f32.mrb[0].mxu0
      %v2476 = vadd.f32 0.0, %v2475
      %v2477 = vpop.f32.mrb[0].mxu0
      %2478 = vmatprep.mubr.f32.mxu0 0.0
      %2479 = vmatmul.mubr.f32.gmra.mrb[0].mxu0 %v2241
      %v2480 = vpop.f32.mrb[0].mxu0
      %v2481 = vadd.f32 0.0, %v2480
      %v2482 = vpop.f32.mrb[0].mxu0
      %2483 = vdwg.mxu0
      %v2484 = vadd.f32 %v2177, %v2326
      %v2485 = vadd.f32 %v2178, %v2331
      %v2486 = vadd.f32 %v2179, %v2336
      %v2487 = vadd.f32 %v2180, %v2341
      %v2488 = vadd.f32 %v2181, %v2346
      %v2489 = vadd.f32 %v2182, %v2351
      %v2490 = vadd.f32 %v2183, %v2356
      %v2491 = vadd.f32 %v2184, %v2361
      %v2492 = vadd.f32 %v2185, %v2366
      %v2493 = vadd.f32 %v2186, %v2371
      %v2494 = vadd.f32 %v2187, %v2376
      %v2495 = vadd.f32 %v2188, %v2381
      %v2496 = vadd.f32 %v2189, %v2386
      %v2497 = vadd.f32 %v2190, %v2391
      %v2498 = vadd.f32 %v2191, %v2396
      %v2499 = vadd.f32 %v2192, %v2401
      %v2500 = vadd.f32 %v2193, %v2406
      %v2501 = vadd.f32 %v2194, %v2411
      %v2502 = vadd.f32 %v2195, %v2416
      %v2503 = vadd.f32 %v2196, %v2421
      %v2504 = vadd.f32 %v2197, %v2426
      %v2505 = vadd.f32 %v2198, %v2431
      %v2506 = vadd.f32 %v2199, %v2436
      %v2507 = vadd.f32 %v2200, %v2441
      %v2508 = vadd.f32 %v2201, %v2446
      %v2509 = vadd.f32 %v2202, %v2451
      %v2510 = vadd.f32 %v2203, %v2456
      %v2511 = vadd.f32 %v2204, %v2461
      %v2512 = vadd.f32 %v2205, %v2466
      %v2513 = vadd.f32 %v2206, %v2471
      %v2514 = vadd.f32 %v2207, %v2476
      %v2515 = vadd.f32 %v2208, %v2481
      %v2516 = vld [vmem:[%s2209 + $0x1] sm:$0xff]
      %v2517 = vld [vmem:[%s2209 + $0x9] sm:$0xff]
      %v2518 = vld [vmem:[%s2209 + $0x19] sm:$0xff]
      %v2519 = vld [vmem:[%s2209 + $0x21] sm:$0xff]
      %v2520 = vld [vmem:[%s2209 + $0x31] sm:$0xff]
      %v2521 = vld [vmem:[%s2209 + $0x39] sm:$0xff]
      %v2522 = vld [vmem:[%s2209 + $0x49] sm:$0xff]
      %v2523 = vld [vmem:[%s2209 + $0x51] sm:$0xff]
      %v2524 = vld [vmem:[%s2209 + $0x61] sm:$0xff]
      %v2525 = vld [vmem:[%s2209 + $0x69] sm:$0xff]
      %v2526 = vld [vmem:[%s2209 + $0x79] sm:$0xff]
      %v2527 = vld [vmem:[%s2209 + $0x81] sm:$0xff]
      %v2528 = vld [vmem:[%s2209 + $0x91] sm:$0xff]
      %v2529 = vld [vmem:[%s2209 + $0x99] sm:$0xff]
      %v2530 = vld [vmem:[%s2209 + $0xa9] sm:$0xff]
      %v2531 = vld [vmem:[%s2209 + $0xb1] sm:$0xff]
      %v2532 = vld [vmem:[%s2209 + $0xc1] sm:$0xff]
      %v2533 = vld [vmem:[%s2209 + $0xc9] sm:$0xff]
      %v2534 = vld [vmem:[%s2209 + $0xd9] sm:$0xff]
      %v2535 = vld [vmem:[%s2209 + $0xe1] sm:$0xff]
      %v2536 = vld [vmem:[%s2209 + $0xf1] sm:$0xff]
      %v2537 = vld [vmem:[%s2209 + $0xf9] sm:$0xff]
      %v2538 = vld [vmem:[%s2209 + $0x109] sm:$0xff]
      %v2539 = vld [vmem:[%s2209 + $0x111] sm:$0xff]
      %v2540 = vld [vmem:[%s2209 + $0x121] sm:$0xff]
      %v2541 = vld [vmem:[%s2209 + $0x129] sm:$0xff]
      %v2542 = vld [vmem:[%s2209 + $0x139] sm:$0xff]
      %v2543 = vld [vmem:[%s2209 + $0x141] sm:$0xff]
      %v2544 = vld [vmem:[%s2209 + $0x151] sm:$0xff]
      %v2545 = vld [vmem:[%s2209 + $0x159] sm:$0xff]
      %v2546 = vld [vmem:[%s2209 + $0x169] sm:$0xff]
      %v2547 = vld [vmem:[%s2209 + $0x171] sm:$0xff]
      %s2548 = scalar_lea.vmem %s2, 896
      %v2549 = vld [vmem:[%s2548] sm:$0xff]
      %v2550 = vld [vmem:[%s2548 + $0x8] sm:$0xff]
      %v2551 = vld [vmem:[%s2548 + $0x10] sm:$0xff]
      %v2552 = vld [vmem:[%s2548 + $0x18] sm:$0xff]
      %v2553 = vld [vmem:[%s2548 + $0x20] sm:$0xff]
      %v2554 = vld [vmem:[%s2548 + $0x28] sm:$0xff]
      %v2555 = vld [vmem:[%s2548 + $0x30] sm:$0xff]
      %v2556 = vld [vmem:[%s2548 + $0x38] sm:$0xff]
      %v2557 = vld [vmem:[%s2548 + $0x40] sm:$0xff]
      %v2558 = vld [vmem:[%s2548 + $0x48] sm:$0xff]
      %v2559 = vld [vmem:[%s2548 + $0x50] sm:$0xff]
      %v2560 = vld [vmem:[%s2548 + $0x58] sm:$0xff]
      %v2561 = vld [vmem:[%s2548 + $0x60] sm:$0xff]
      %v2562 = vld [vmem:[%s2548 + $0x68] sm:$0xff]
      %v2563 = vld [vmem:[%s2548 + $0x70] sm:$0xff]
      %v2564 = vld [vmem:[%s2548 + $0x78] sm:$0xff]
      %2565 = vmatprep.subr.mxu0 0.0
      %2566 = vmatpush1.msra.mxu0 %v2549
      %2567 = vmatprep.subr.mxu0 0.0
      %2568 = vmatpush1.msra.mxu0 %v2550
      %2569 = vmatprep.subr.mxu0 0.0
      %2570 = vmatpush1.msra.mxu0 %v2551
      %2571 = vmatprep.subr.mxu0 0.0
      %2572 = vmatpush1.msra.mxu0 %v2552
      %2573 = vmatprep.subr.mxu0 0.0
      %2574 = vmatpush1.msra.mxu0 %v2553
      %2575 = vmatprep.subr.mxu0 0.0
      %2576 = vmatpush1.msra.mxu0 %v2554
      %2577 = vmatprep.subr.mxu0 0.0
      %2578 = vmatpush1.msra.mxu0 %v2555
      %2579 = vmatprep.subr.mxu0 0.0
      %2580 = vmatpush1.msra.mxu0 %v2556
      %2581 = vmatprep.subr.mxu0 0.0
      %2582 = vmatpush1.msra.mxu0 %v2557
      %2583 = vmatprep.subr.mxu0 0.0
      %2584 = vmatpush1.msra.mxu0 %v2558
      %2585 = vmatprep.subr.mxu0 0.0
      %2586 = vmatpush1.msra.mxu0 %v2559
      %2587 = vmatprep.subr.mxu0 0.0
      %2588 = vmatpush1.msra.mxu0 %v2560
      %2589 = vmatprep.subr.mxu0 0.0
      %2590 = vmatpush1.msra.mxu0 %v2561
      %2591 = vmatprep.subr.mxu0 0.0
      %2592 = vmatpush1.msra.mxu0 %v2562
      %2593 = vmatprep.subr.mxu0 0.0
      %2594 = vmatpush1.msra.mxu0 %v2563
      %2595 = vmatprep.subr.mxu0 0.0
      %2596 = vmatpush1.msra.mxu0 %v2564
      %2597 = vmatprep.subr.mxu0 0.0
      %2598 = vmatpush1.msra.mxu0 0.0
      %2599 = vmatprep.subr.mxu0 0.0
      %2600 = vmatpush1.msra.mxu0 0.0
      %2601 = vmatprep.subr.mxu0 0.0
      %2602 = vmatpush1.msra.mxu0 0.0
      %2603 = vmatprep.subr.mxu0 0.0
      %2604 = vmatpush1.msra.mxu0 0.0
      %2605 = vmatprep.subr.mxu0 0.0
      %2606 = vmatpush1.msra.mxu0 0.0
      %2607 = vmatprep.subr.mxu0 0.0
      %2608 = vmatpush1.msra.mxu0 0.0
      %2609 = vmatprep.subr.mxu0 0.0
      %2610 = vmatpush1.msra.mxu0 0.0
      %2611 = vmatprep.subr.mxu0 0.0
      %2612 = vmatpush1.msra.mxu0 0.0
      %2613 = vmatprep.subr.mxu0 0.0
      %2614 = vmatpush1.msra.mxu0 0.0
      %2615 = vmatprep.subr.mxu0 0.0
      %2616 = vmatpush1.msra.mxu0 0.0
      %2617 = vmatprep.subr.mxu0 0.0
      %2618 = vmatpush1.msra.mxu0 0.0
      %2619 = vmatprep.subr.mxu0 0.0
      %2620 = vmatpush1.msra.mxu0 0.0
      %2621 = vmatprep.subr.mxu0 0.0
      %2622 = vmatpush1.msra.mxu0 0.0
      %2623 = vmatprep.subr.mxu0 0.0
      %2624 = vmatpush1.msra.mxu0 0.0
      %2625 = vmatprep.subr.mxu0 0.0
      %2626 = vmatpush1.msra.mxu0 0.0
      %2627 = vmatprep.subr.mxu0 0.0
      %2628 = vmatpush1.msra.mxu0 0.0
      %2629 = vmatprep.mubr.f32.mxu0 0.0
      %2630 = vmatmul.mubr.f32.gmra.mrb[0].mxu0 %v2516
      %v2631 = vpop.f32.mrb[0].mxu0
      %v2632 = vadd.f32 0.0, %v2631
      %v2633 = vpop.f32.mrb[0].mxu0
      %2634 = vmatprep.mubr.f32.mxu0 0.0
      %2635 = vmatmul.mubr.f32.gmra.mrb[0].mxu0 %v2517
      %v2636 = vpop.f32.mrb[0].mxu0
      %v2637 = vadd.f32 0.0, %v2636
      %v2638 = vpop.f32.mrb[0].mxu0
      %2639 = vmatprep.mubr.f32.mxu0 0.0
      %2640 = vmatmul.mubr.f32.gmra.mrb[0].mxu0 %v2518
      %v2641 = vpop.f32.mrb[0].mxu0
      %v2642 = vadd.f32 0.0, %v2641
      %v2643 = vpop.f32.mrb[0].mxu0
      %2644 = vmatprep.mubr.f32.mxu0 0.0
      %2645 = vmatmul.mubr.f32.gmra.mrb[0].mxu0 %v2519
      %v2646 = vpop.f32.mrb[0].mxu0
      %v2647 = vadd.f32 0.0, %v2646
      %v2648 = vpop.f32.mrb[0].mxu0
      %2649 = vmatprep.mubr.f32.mxu0 0.0
      %2650 = vmatmul.mubr.f32.gmra.mrb[0].mxu0 %v2520
      %v2651 = vpop.f32.mrb[0].mxu0
      %v2652 = vadd.f32 0.0, %v2651
      %v2653 = vpop.f32.mrb[0].mxu0
      %2654 = vmatprep.mubr.f32.mxu0 0.0
      %2655 = vmatmul.mubr.f32.gmra.mrb[0].mxu0 %v2521
      %v2656 = vpop.f32.mrb[0].mxu0
      %v2657 = vadd.f32 0.0, %v2656
      %v2658 = vpop.f32.mrb[0].mxu0
      %2659 = vmatprep.mubr.f32.mxu0 0.0
      %2660 = vmatmul.mubr.f32.gmra.mrb[0].mxu0 %v2522
      %v2661 = vpop.f32.mrb[0].mxu0
      %v2662 = vadd.f32 0.0, %v2661
      %v2663 = vpop.f32.mrb[0].mxu0
      %2664 = vmatprep.mubr.f32.mxu0 0.0
      %2665 = vmatmul.mubr.f32.gmra.mrb[0].mxu0 %v2523
      %v2666 = vpop.f32.mrb[0].mxu0
      %v2667 = vadd.f32 0.0, %v2666
      %v2668 = vpop.f32.mrb[0].mxu0
      %2669 = vmatprep.mubr.f32.mxu0 0.0
      %2670 = vmatmul.mubr.f32.gmra.mrb[0].mxu0 %v2524
      %v2671 = vpop.f32.mrb[0].mxu0
      %v2672 = vadd.f32 0.0, %v2671
      %v2673 = vpop.f32.mrb[0].mxu0
      %2674 = vmatprep.mubr.f32.mxu0 0.0
      %2675 = vmatmul.mubr.f32.gmra.mrb[0].mxu0 %v2525
      %v2676 = vpop.f32.mrb[0].mxu0
      %v2677 = vadd.f32 0.0, %v2676
      %v2678 = vpop.f32.mrb[0].mxu0
      %2679 = vmatprep.mubr.f32.mxu0 0.0
      %2680 = vmatmul.mubr.f32.gmra.mrb[0].mxu0 %v2526
      %v2681 = vpop.f32.mrb[0].mxu0
      %v2682 = vadd.f32 0.0, %v2681
      %v2683 = vpop.f32.mrb[0].mxu0
      %2684 = vmatprep.mubr.f32.mxu0 0.0
      %2685 = vmatmul.mubr.f32.gmra.mrb[0].mxu0 %v2527
      %v2686 = vpop.f32.mrb[0].mxu0
      %v2687 = vadd.f32 0.0, %v2686
      %v2688 = vpop.f32.mrb[0].mxu0
      %2689 = vmatprep.mubr.f32.mxu0 0.0
      %2690 = vmatmul.mubr.f32.gmra.mrb[0].mxu0 %v2528
      %v2691 = vpop.f32.mrb[0].mxu0
      %v2692 = vadd.f32 0.0, %v2691
      %v2693 = vpop.f32.mrb[0].mxu0
      %2694 = vmatprep.mubr.f32.mxu0 0.0
      %2695 = vmatmul.mubr.f32.gmra.mrb[0].mxu0 %v2529
      %v2696 = vpop.f32.mrb[0].mxu0
      %v2697 = vadd.f32 0.0, %v2696
      %v2698 = vpop.f32.mrb[0].mxu0
      %2699 = vmatprep.mubr.f32.mxu0 0.0
      %2700 = vmatmul.mubr.f32.gmra.mrb[0].mxu0 %v2530
      %v2701 = vpop.f32.mrb[0].mxu0
      %v2702 = vadd.f32 0.0, %v2701
      %v2703 = vpop.f32.mrb[0].mxu0
      %2704 = vmatprep.mubr.f32.mxu0 0.0
      %2705 = vmatmul.mubr.f32.gmra.mrb[0].mxu0 %v2531
      %v2706 = vpop.f32.mrb[0].mxu0
      %v2707 = vadd.f32 0.0, %v2706
      %v2708 = vpop.f32.mrb[0].mxu0
      %2709 = vmatprep.mubr.f32.mxu0 0.0
      %2710 = vmatmul.mubr.f32.gmra.mrb[0].mxu0 %v2532
      %v2711 = vpop.f32.mrb[0].mxu0
      %v2712 = vadd.f32 0.0, %v2711
      %v2713 = vpop.f32.mrb[0].mxu0
      %2714 = vmatprep.mubr.f32.mxu0 0.0
      %2715 = vmatmul.mubr.f32.gmra.mrb[0].mxu0 %v2533
      %v2716 = vpop.f32.mrb[0].mxu0
      %v2717 = vadd.f32 0.0, %v2716
      %v2718 = vpop.f32.mrb[0].mxu0
      %2719 = vmatprep.mubr.f32.mxu0 0.0
      %2720 = vmatmul.mubr.f32.gmra.mrb[0].mxu0 %v2534
      %v2721 = vpop.f32.mrb[0].mxu0
      %v2722 = vadd.f32 0.0, %v2721
      %v2723 = vpop.f32.mrb[0].mxu0
      %2724 = vmatprep.mubr.f32.mxu0 0.0
      %2725 = vmatmul.mubr.f32.gmra.mrb[0].mxu0 %v2535
      %v2726 = vpop.f32.mrb[0].mxu0
      %v2727 = vadd.f32 0.0, %v2726
      %v2728 = vpop.f32.mrb[0].mxu0
      %2729 = vmatprep.mubr.f32.mxu0 0.0
      %2730 = vmatmul.mubr.f32.gmra.mrb[0].mxu0 %v2536
      %v2731 = vpop.f32.mrb[0].mxu0
      %v2732 = vadd.f32 0.0, %v2731
      %v2733 = vpop.f32.mrb[0].mxu0
      %2734 = vmatprep.mubr.f32.mxu0 0.0
      %2735 = vmatmul.mubr.f32.gmra.mrb[0].mxu0 %v2537
      %v2736 = vpop.f32.mrb[0].mxu0
      %v2737 = vadd.f32 0.0, %v2736
      %v2738 = vpop.f32.mrb[0].mxu0
      %2739 = vmatprep.mubr.f32.mxu0 0.0
      %2740 = vmatmul.mubr.f32.gmra.mrb[0].mxu0 %v2538
      %v2741 = vpop.f32.mrb[0].mxu0
      %v2742 = vadd.f32 0.0, %v2741
      %v2743 = vpop.f32.mrb[0].mxu0
      %2744 = vmatprep.mubr.f32.mxu0 0.0
      %2745 = vmatmul.mubr.f32.gmra.mrb[0].mxu0 %v2539
      %v2746 = vpop.f32.mrb[0].mxu0
      %v2747 = vadd.f32 0.0, %v2746
      %v2748 = vpop.f32.mrb[0].mxu0
      %2749 = vmatprep.mubr.f32.mxu0 0.0
      %2750 = vmatmul.mubr.f32.gmra.mrb[0].mxu0 %v2540
      %v2751 = vpop.f32.mrb[0].mxu0
      %v2752 = vadd.f32 0.0, %v2751
      %v2753 = vpop.f32.mrb[0].mxu0
      %2754 = vmatprep.mubr.f32.mxu0 0.0
      %2755 = vmatmul.mubr.f32.gmra.mrb[0].mxu0 %v2541
      %v2756 = vpop.f32.mrb[0].mxu0
      %v2757 = vadd.f32 0.0, %v2756
      %v2758 = vpop.f32.mrb[0].mxu0
      %2759 = vmatprep.mubr.f32.mxu0 0.0
      %2760 = vmatmul.mubr.f32.gmra.mrb[0].mxu0 %v2542
      %v2761 = vpop.f32.mrb[0].mxu0
      %v2762 = vadd.f32 0.0, %v2761
      %v2763 = vpop.f32.mrb[0].mxu0
      %2764 = vmatprep.mubr.f32.mxu0 0.0
      %2765 = vmatmul.mubr.f32.gmra.mrb[0].mxu0 %v2543
      %v2766 = vpop.f32.mrb[0].mxu0
      %v2767 = vadd.f32 0.0, %v2766
      %v2768 = vpop.f32.mrb[0].mxu0
      %2769 = vmatprep.mubr.f32.mxu0 0.0
      %2770 = vmatmul.mubr.f32.gmra.mrb[0].mxu0 %v2544
      %v2771 = vpop.f32.mrb[0].mxu0
      %v2772 = vadd.f32 0.0, %v2771
      %v2773 = vpop.f32.mrb[0].mxu0
      %2774 = vmatprep.mubr.f32.mxu0 0.0
      %2775 = vmatmul.mubr.f32.gmra.mrb[0].mxu0 %v2545
      %v2776 = vpop.f32.mrb[0].mxu0
      %v2777 = vadd.f32 0.0, %v2776
      %v2778 = vpop.f32.mrb[0].mxu0
      %2779 = vmatprep.mubr.f32.mxu0 0.0
      %2780 = vmatmul.mubr.f32.gmra.mrb[0].mxu0 %v2546
      %v2781 = vpop.f32.mrb[0].mxu0
      %v2782 = vadd.f32 0.0, %v2781
      %v2783 = vpop.f32.mrb[0].mxu0
      %2784 = vmatprep.mubr.f32.mxu0 0.0
      %2785 = vmatmul.mubr.f32.gmra.mrb[0].mxu0 %v2547
      %v2786 = vpop.f32.mrb[0].mxu0
      %v2787 = vadd.f32 0.0, %v2786
      %v2788 = vpop.f32.mrb[0].mxu0
      %2789 = vdwg.mxu0
      %v2790 = vadd.f32 %v2484, %v2632
      %v2791 = vadd.f32 %v2485, %v2637
      %v2792 = vadd.f32 %v2486, %v2642
      %v2793 = vadd.f32 %v2487, %v2647
      %v2794 = vadd.f32 %v2488, %v2652
      %v2795 = vadd.f32 %v2489, %v2657
      %v2796 = vadd.f32 %v2490, %v2662
      %v2797 = vadd.f32 %v2491, %v2667
      %v2798 = vadd.f32 %v2492, %v2672
      %v2799 = vadd.f32 %v2493, %v2677
      %v2800 = vadd.f32 %v2494, %v2682
      %v2801 = vadd.f32 %v2495, %v2687
      %v2802 = vadd.f32 %v2496, %v2692
      %v2803 = vadd.f32 %v2497, %v2697
      %v2804 = vadd.f32 %v2498, %v2702
      %v2805 = vadd.f32 %v2499, %v2707
      %v2806 = vadd.f32 %v2500, %v2712
      %v2807 = vadd.f32 %v2501, %v2717
      %v2808 = vadd.f32 %v2502, %v2722
      %v2809 = vadd.f32 %v2503, %v2727
      %v2810 = vadd.f32 %v2504, %v2732
      %v2811 = vadd.f32 %v2505, %v2737
      %v2812 = vadd.f32 %v2506, %v2742
      %v2813 = vadd.f32 %v2507, %v2747
      %v2814 = vadd.f32 %v2508, %v2752
      %v2815 = vadd.f32 %v2509, %v2757
      %v2816 = vadd.f32 %v2510, %v2762
      %v2817 = vadd.f32 %v2511, %v2767
      %v2818 = vadd.f32 %v2512, %v2772
      %v2819 = vadd.f32 %v2513, %v2777
      %v2820 = vadd.f32 %v2514, %v2782
      %v2821 = vadd.f32 %v2515, %v2787
      %v2822 = vld [vmem:[%s2209 + $0x2] sm:$0xff]
      %v2823 = vld [vmem:[%s2209 + $0xa] sm:$0xff]
      %v2824 = vld [vmem:[%s2209 + $0x1a] sm:$0xff]
      %v2825 = vld [vmem:[%s2209 + $0x22] sm:$0xff]
      %v2826 = vld [vmem:[%s2209 + $0x32] sm:$0xff]
      %v2827 = vld [vmem:[%s2209 + $0x3a] sm:$0xff]
      %v2828 = vld [vmem:[%s2209 + $0x4a] sm:$0xff]
      %v2829 = vld [vmem:[%s2209 + $0x52] sm:$0xff]
      %v2830 = vld [vmem:[%s2209 + $0x62] sm:$0xff]
      %v2831 = vld [vmem:[%s2209 + $0x6a] sm:$0xff]
      %v2832 = vld [vmem:[%s2209 + $0x7a] sm:$0xff]
      %v2833 = vld [vmem:[%s2209 + $0x82] sm:$0xff]
      %v2834 = vld [vmem:[%s2209 + $0x92] sm:$0xff]
      %v2835 = vld [vmem:[%s2209 + $0x9a] sm:$0xff]
      %v2836 = vld [vmem:[%s2209 + $0xaa] sm:$0xff]
      %v2837 = vld [vmem:[%s2209 + $0xb2] sm:$0xff]
      %v2838 = vld [vmem:[%s2209 + $0xc2] sm:$0xff]
      %v2839 = vld [vmem:[%s2209 + $0xca] sm:$0xff]
      %v2840 = vld [vmem:[%s2209 + $0xda] sm:$0xff]
      %v2841 = vld [vmem:[%s2209 + $0xe2] sm:$0xff]
      %v2842 = vld [vmem:[%s2209 + $0xf2] sm:$0xff]
      %v2843 = vld [vmem:[%s2209 + $0xfa] sm:$0xff]
      %v2844 = vld [vmem:[%s2209 + $0x10a] sm:$0xff]
      %v2845 = vld [vmem:[%s2209 + $0x112] sm:$0xff]
      %v2846 = vld [vmem:[%s2209 + $0x122] sm:$0xff]
      %v2847 = vld [vmem:[%s2209 + $0x12a] sm:$0xff]
      %v2848 = vld [vmem:[%s2209 + $0x13a] sm:$0xff]
      %v2849 = vld [vmem:[%s2209 + $0x142] sm:$0xff]
      %v2850 = vld [vmem:[%s2209 + $0x152] sm:$0xff]
      %v2851 = vld [vmem:[%s2209 + $0x15a] sm:$0xff]
      %v2852 = vld [vmem:[%s2209 + $0x16a] sm:$0xff]
      %v2853 = vld [vmem:[%s2209 + $0x172] sm:$0xff]
      %s2854 = scalar_lea.vmem %s2, 1024
      %v2855 = vld [vmem:[%s2854] sm:$0xff]
      %v2856 = vld [vmem:[%s2854 + $0x8] sm:$0xff]
      %v2857 = vld [vmem:[%s2854 + $0x10] sm:$0xff]
      %v2858 = vld [vmem:[%s2854 + $0x18] sm:$0xff]
      %v2859 = vld [vmem:[%s2854 + $0x20] sm:$0xff]
      %v2860 = vld [vmem:[%s2854 + $0x28] sm:$0xff]
      %v2861 = vld [vmem:[%s2854 + $0x30] sm:$0xff]
      %v2862 = vld [vmem:[%s2854 + $0x38] sm:$0xff]
      %v2863 = vld [vmem:[%s2854 + $0x40] sm:$0xff]
      %v2864 = vld [vmem:[%s2854 + $0x48] sm:$0xff]
      %v2865 = vld [vmem:[%s2854 + $0x50] sm:$0xff]
      %v2866 = vld [vmem:[%s2854 + $0x58] sm:$0xff]
      %v2867 = vld [vmem:[%s2854 + $0x60] sm:$0xff]
      %v2868 = vld [vmem:[%s2854 + $0x68] sm:$0xff]
      %v2869 = vld [vmem:[%s2854 + $0x70] sm:$0xff]
      %v2870 = vld [vmem:[%s2854 + $0x78] sm:$0xff]
      %2871 = vmatprep.subr.mxu0 0.0
      %2872 = vmatpush1.msra.mxu0 %v2855
      %2873 = vmatprep.subr.mxu0 0.0
      %2874 = vmatpush1.msra.mxu0 %v2856
      %2875 = vmatprep.subr.mxu0 0.0
      %2876 = vmatpush1.msra.mxu0 %v2857
      %2877 = vmatprep.subr.mxu0 0.0
      %2878 = vmatpush1.msra.mxu0 %v2858
      %2879 = vmatprep.subr.mxu0 0.0
      %2880 = vmatpush1.msra.mxu0 %v2859
      %2881 = vmatprep.subr.mxu0 0.0
      %2882 = vmatpush1.msra.mxu0 %v2860
      %2883 = vmatprep.subr.mxu0 0.0
      %2884 = vmatpush1.msra.mxu0 %v2861
      %2885 = vmatprep.subr.mxu0 0.0
      %2886 = vmatpush1.msra.mxu0 %v2862
      %2887 = vmatprep.subr.mxu0 0.0
      %2888 = vmatpush1.msra.mxu0 %v2863
      %2889 = vmatprep.subr.mxu0 0.0
      %2890 = vmatpush1.msra.mxu0 %v2864
      %2891 = vmatprep.subr.mxu0 0.0
      %2892 = vmatpush1.msra.mxu0 %v2865
      %2893 = vmatprep.subr.mxu0 0.0
      %2894 = vmatpush1.msra.mxu0 %v2866
      %2895 = vmatprep.subr.mxu0 0.0
      %2896 = vmatpush1.msra.mxu0 %v2867
      %2897 = vmatprep.subr.mxu0 0.0
      %2898 = vmatpush1.msra.mxu0 %v2868
      %2899 = vmatprep.subr.mxu0 0.0
      %2900 = vmatpush1.msra.mxu0 %v2869
      %2901 = vmatprep.subr.mxu0 0.0
      %2902 = vmatpush1.msra.mxu0 %v2870
      %2903 = vmatprep.subr.mxu0 0.0
      %2904 = vmatpush1.msra.mxu0 0.0
      %2905 = vmatprep.subr.mxu0 0.0
      %2906 = vmatpush1.msra.mxu0 0.0
      %2907 = vmatprep.subr.mxu0 0.0
      %2908 = vmatpush1.msra.mxu0 0.0
      %2909 = vmatprep.subr.mxu0 0.0
      %2910 = vmatpush1.msra.mxu0 0.0
      %2911 = vmatprep.subr.mxu0 0.0
      %2912 = vmatpush1.msra.mxu0 0.0
      %2913 = vmatprep.subr.mxu0 0.0
      %2914 = vmatpush1.msra.mxu0 0.0
      %2915 = vmatprep.subr.mxu0 0.0
      %2916 = vmatpush1.msra.mxu0 0.0
      %2917 = vmatprep.subr.mxu0 0.0
      %2918 = vmatpush1.msra.mxu0 0.0
      %2919 = vmatprep.subr.mxu0 0.0
      %2920 = vmatpush1.msra.mxu0 0.0
      %2921 = vmatprep.subr.mxu0 0.0
      %2922 = vmatpush1.msra.mxu0 0.0
      %2923 = vmatprep.subr.mxu0 0.0
      %2924 = vmatpush1.msra.mxu0 0.0
      %2925 = vmatprep.subr.mxu0 0.0
      %2926 = vmatpush1.msra.mxu0 0.0
      %2927 = vmatprep.subr.mxu0 0.0
      %2928 = vmatpush1.msra.mxu0 0.0
      %2929 = vmatprep.subr.mxu0 0.0
      %2930 = vmatpush1.msra.mxu0 0.0
      %2931 = vmatprep.subr.mxu0 0.0
      %2932 = vmatpush1.msra.mxu0 0.0
      %2933 = vmatprep.subr.mxu0 0.0
      %2934 = vmatpush1.msra.mxu0 0.0
      %2935 = vmatprep.mubr.f32.mxu0 0.0
      %2936 = vmatmul.mubr.f32.gmra.mrb[0].mxu0 %v2822
      %v2937 = vpop.f32.mrb[0].mxu0
      %v2938 = vadd.f32 0.0, %v2937
      %v2939 = vpop.f32.mrb[0].mxu0
      %2940 = vmatprep.mubr.f32.mxu0 0.0
      %2941 = vmatmul.mubr.f32.gmra.mrb[0].mxu0 %v2823
      %v2942 = vpop.f32.mrb[0].mxu0
      %v2943 = vadd.f32 0.0, %v2942
      %v2944 = vpop.f32.mrb[0].mxu0
      %2945 = vmatprep.mubr.f32.mxu0 0.0
      %2946 = vmatmul.mubr.f32.gmra.mrb[0].mxu0 %v2824
      %v2947 = vpop.f32.mrb[0].mxu0
      %v2948 = vadd.f32 0.0, %v2947
      %v2949 = vpop.f32.mrb[0].mxu0
      %2950 = vmatprep.mubr.f32.mxu0 0.0
      %2951 = vmatmul.mubr.f32.gmra.mrb[0].mxu0 %v2825
      %v2952 = vpop.f32.mrb[0].mxu0
      %v2953 = vadd.f32 0.0, %v2952
      %v2954 = vpop.f32.mrb[0].mxu0
      %2955 = vmatprep.mubr.f32.mxu0 0.0
      %2956 = vmatmul.mubr.f32.gmra.mrb[0].mxu0 %v2826
      %v2957 = vpop.f32.mrb[0].mxu0
      %v2958 = vadd.f32 0.0, %v2957
      %v2959 = vpop.f32.mrb[0].mxu0
      %2960 = vmatprep.mubr.f32.mxu0 0.0
      %2961 = vmatmul.mubr.f32.gmra.mrb[0].mxu0 %v2827
      %v2962 = vpop.f32.mrb[0].mxu0
      %v2963 = vadd.f32 0.0, %v2962
      %v2964 = vpop.f32.mrb[0].mxu0
      %2965 = vmatprep.mubr.f32.mxu0 0.0
      %2966 = vmatmul.mubr.f32.gmra.mrb[0].mxu0 %v2828
      %v2967 = vpop.f32.mrb[0].mxu0
      %v2968 = vadd.f32 0.0, %v2967
      %v2969 = vpop.f32.mrb[0].mxu0
      %2970 = vmatprep.mubr.f32.mxu0 0.0
      %2971 = vmatmul.mubr.f32.gmra.mrb[0].mxu0 %v2829
      %v2972 = vpop.f32.mrb[0].mxu0
      %v2973 = vadd.f32 0.0, %v2972
      %v2974 = vpop.f32.mrb[0].mxu0
      %2975 = vmatprep.mubr.f32.mxu0 0.0
      %2976 = vmatmul.mubr.f32.gmra.mrb[0].mxu0 %v2830
      %v2977 = vpop.f32.mrb[0].mxu0
      %v2978 = vadd.f32 0.0, %v2977
      %v2979 = vpop.f32.mrb[0].mxu0
      %2980 = vmatprep.mubr.f32.mxu0 0.0
      %2981 = vmatmul.mubr.f32.gmra.mrb[0].mxu0 %v2831
      %v2982 = vpop.f32.mrb[0].mxu0
      %v2983 = vadd.f32 0.0, %v2982
      %v2984 = vpop.f32.mrb[0].mxu0
      %2985 = vmatprep.mubr.f32.mxu0 0.0
      %2986 = vmatmul.mubr.f32.gmra.mrb[0].mxu0 %v2832
      %v2987 = vpop.f32.mrb[0].mxu0
      %v2988 = vadd.f32 0.0, %v2987
      %v2989 = vpop.f32.mrb[0].mxu0
      %2990 = vmatprep.mubr.f32.mxu0 0.0
      %2991 = vmatmul.mubr.f32.gmra.mrb[0].mxu0 %v2833
      %v2992 = vpop.f32.mrb[0].mxu0
      %v2993 = vadd.f32 0.0, %v2992
      %v2994 = vpop.f32.mrb[0].mxu0
      %2995 = vmatprep.mubr.f32.mxu0 0.0
      %2996 = vmatmul.mubr.f32.gmra.mrb[0].mxu0 %v2834
      %v2997 = vpop.f32.mrb[0].mxu0
      %v2998 = vadd.f32 0.0, %v2997
      %v2999 = vpop.f32.mrb[0].mxu0
      %3000 = vmatprep.mubr.f32.mxu0 0.0
      %3001 = vmatmul.mubr.f32.gmra.mrb[0].mxu0 %v2835
      %v3002 = vpop.f32.mrb[0].mxu0
      %v3003 = vadd.f32 0.0, %v3002
      %v3004 = vpop.f32.mrb[0].mxu0
      %3005 = vmatprep.mubr.f32.mxu0 0.0
      %3006 = vmatmul.mubr.f32.gmra.mrb[0].mxu0 %v2836
      %v3007 = vpop.f32.mrb[0].mxu0
      %v3008 = vadd.f32 0.0, %v3007
      %v3009 = vpop.f32.mrb[0].mxu0
      %3010 = vmatprep.mubr.f32.mxu0 0.0
      %3011 = vmatmul.mubr.f32.gmra.mrb[0].mxu0 %v2837
      %v3012 = vpop.f32.mrb[0].mxu0
      %v3013 = vadd.f32 0.0, %v3012
      %v3014 = vpop.f32.mrb[0].mxu0
      %3015 = vmatprep.mubr.f32.mxu0 0.0
      %3016 = vmatmul.mubr.f32.gmra.mrb[0].mxu0 %v2838
      %v3017 = vpop.f32.mrb[0].mxu0
      %v3018 = vadd.f32 0.0, %v3017
      %v3019 = vpop.f32.mrb[0].mxu0
      %3020 = vmatprep.mubr.f32.mxu0 0.0
      %3021 = vmatmul.mubr.f32.gmra.mrb[0].mxu0 %v2839
      %v3022 = vpop.f32.mrb[0].mxu0
      %v3023 = vadd.f32 0.0, %v3022
      %v3024 = vpop.f32.mrb[0].mxu0
      %3025 = vmatprep.mubr.f32.mxu0 0.0
      %3026 = vmatmul.mubr.f32.gmra.mrb[0].mxu0 %v2840
      %v3027 = vpop.f32.mrb[0].mxu0
      %v3028 = vadd.f32 0.0, %v3027
      %v3029 = vpop.f32.mrb[0].mxu0
      %3030 = vmatprep.mubr.f32.mxu0 0.0
      %3031 = vmatmul.mubr.f32.gmra.mrb[0].mxu0 %v2841
      %v3032 = vpop.f32.mrb[0].mxu0
      %v3033 = vadd.f32 0.0, %v3032
      %v3034 = vpop.f32.mrb[0].mxu0
      %3035 = vmatprep.mubr.f32.mxu0 0.0
      %3036 = vmatmul.mubr.f32.gmra.mrb[0].mxu0 %v2842
      %v3037 = vpop.f32.mrb[0].mxu0
      %v3038 = vadd.f32 0.0, %v3037
      %v3039 = vpop.f32.mrb[0].mxu0
      %3040 = vmatprep.mubr.f32.mxu0 0.0
      %3041 = vmatmul.mubr.f32.gmra.mrb[0].mxu0 %v2843
      %v3042 = vpop.f32.mrb[0].mxu0
      %v3043 = vadd.f32 0.0, %v3042
      %v3044 = vpop.f32.mrb[0].mxu0
      %3045 = vmatprep.mubr.f32.mxu0 0.0
      %3046 = vmatmul.mubr.f32.gmra.mrb[0].mxu0 %v2844
      %v3047 = vpop.f32.mrb[0].mxu0
      %v3048 = vadd.f32 0.0, %v3047
      %v3049 = vpop.f32.mrb[0].mxu0
      %3050 = vmatprep.mubr.f32.mxu0 0.0
      %3051 = vmatmul.mubr.f32.gmra.mrb[0].mxu0 %v2845
      %v3052 = vpop.f32.mrb[0].mxu0
      %v3053 = vadd.f32 0.0, %v3052
      %v3054 = vpop.f32.mrb[0].mxu0
      %3055 = vmatprep.mubr.f32.mxu0 0.0
      %3056 = vmatmul.mubr.f32.gmra.mrb[0].mxu0 %v2846
      %v3057 = vpop.f32.mrb[0].mxu0
      %v3058 = vadd.f32 0.0, %v3057
      %v3059 = vpop.f32.mrb[0].mxu0
      %3060 = vmatprep.mubr.f32.mxu0 0.0
      %3061 = vmatmul.mubr.f32.gmra.mrb[0].mxu0 %v2847
      %v3062 = vpop.f32.mrb[0].mxu0
      %v3063 = vadd.f32 0.0, %v3062
      %v3064 = vpop.f32.mrb[0].mxu0
      %3065 = vmatprep.mubr.f32.mxu0 0.0
      %3066 = vmatmul.mubr.f32.gmra.mrb[0].mxu0 %v2848
      %v3067 = vpop.f32.mrb[0].mxu0
      %v3068 = vadd.f32 0.0, %v3067
      %v3069 = vpop.f32.mrb[0].mxu0
      %3070 = vmatprep.mubr.f32.mxu0 0.0
      %3071 = vmatmul.mubr.f32.gmra.mrb[0].mxu0 %v2849
      %v3072 = vpop.f32.mrb[0].mxu0
      %v3073 = vadd.f32 0.0, %v3072
      %v3074 = vpop.f32.mrb[0].mxu0
      %3075 = vmatprep.mubr.f32.mxu0 0.0
      %3076 = vmatmul.mubr.f32.gmra.mrb[0].mxu0 %v2850
      %v3077 = vpop.f32.mrb[0].mxu0
      %v3078 = vadd.f32 0.0, %v3077
      %v3079 = vpop.f32.mrb[0].mxu0
      %3080 = vmatprep.mubr.f32.mxu0 0.0
      %3081 = vmatmul.mubr.f32.gmra.mrb[0].mxu0 %v2851
      %v3082 = vpop.f32.mrb[0].mxu0
      %v3083 = vadd.f32 0.0, %v3082
      %v3084 = vpop.f32.mrb[0].mxu0
      %3085 = vmatprep.mubr.f32.mxu0 0.0
      %3086 = vmatmul.mubr.f32.gmra.mrb[0].mxu0 %v2852
      %v3087 = vpop.f32.mrb[0].mxu0
      %v3088 = vadd.f32 0.0, %v3087
      %v3089 = vpop.f32.mrb[0].mxu0
      %3090 = vmatprep.mubr.f32.mxu0 0.0
      %3091 = vmatmul.mubr.f32.gmra.mrb[0].mxu0 %v2853
      %v3092 = vpop.f32.mrb[0].mxu0
      %v3093 = vadd.f32 0.0, %v3092
      %v3094 = vpop.f32.mrb[0].mxu0
      %3095 = vdwg.mxu0
      %v3096 = vadd.f32 %v2790, %v2938
      %v3097 = vadd.f32 %v2791, %v2943
      %v3098 = vadd.f32 %v2792, %v2948
      %v3099 = vadd.f32 %v2793, %v2953
      %v3100 = vadd.f32 %v2794, %v2958
      %v3101 = vadd.f32 %v2795, %v2963
      %v3102 = vadd.f32 %v2796, %v2968
      %v3103 = vadd.f32 %v2797, %v2973
      %v3104 = vadd.f32 %v2798, %v2978
      %v3105 = vadd.f32 %v2799, %v2983
      %v3106 = vadd.f32 %v2800, %v2988
      %v3107 = vadd.f32 %v2801, %v2993
      %v3108 = vadd.f32 %v2802, %v2998
      %v3109 = vadd.f32 %v2803, %v3003
      %v3110 = vadd.f32 %v2804, %v3008
      %v3111 = vadd.f32 %v2805, %v3013
      %v3112 = vadd.f32 %v2806, %v3018
      %v3113 = vadd.f32 %v2807, %v3023
      %v3114 = vadd.f32 %v2808, %v3028
      %v3115 = vadd.f32 %v2809, %v3033
      %v3116 = vadd.f32 %v2810, %v3038
      %v3117 = vadd.f32 %v2811, %v3043
      %v3118 = vadd.f32 %v2812, %v3048
      %v3119 = vadd.f32 %v2813, %v3053
      %v3120 = vadd.f32 %v2814, %v3058
      %v3121 = vadd.f32 %v2815, %v3063
      %v3122 = vadd.f32 %v2816, %v3068
      %v3123 = vadd.f32 %v2817, %v3073
      %v3124 = vadd.f32 %v2818, %v3078
      %v3125 = vadd.f32 %v2819, %v3083
      %v3126 = vadd.f32 %v2820, %v3088
      %v3127 = vadd.f32 %v2821, %v3093
      %3128 = vst [vmem:[%s204] sm:$0xff] %v3096
      %3129 = vst [vmem:[%s204 + $0x8] sm:$0xff] %v3097
      %3130 = vst [vmem:[%s204 + $0x10] sm:$0xff] %v3098
      %3131 = vst [vmem:[%s204 + $0x18] sm:$0xff] %v3099
      %3132 = vst [vmem:[%s204 + $0x20] sm:$0xff] %v3100
      %3133 = vst [vmem:[%s204 + $0x28] sm:$0xff] %v3101
      %3134 = vst [vmem:[%s204 + $0x30] sm:$0xff] %v3102
      %3135 = vst [vmem:[%s204 + $0x38] sm:$0xff] %v3103
      %3136 = vst [vmem:[%s204 + $0x40] sm:$0xff] %v3104
      %3137 = vst [vmem:[%s204 + $0x48] sm:$0xff] %v3105
      %3138 = vst [vmem:[%s204 + $0x50] sm:$0xff] %v3106
      %3139 = vst [vmem:[%s204 + $0x58] sm:$0xff] %v3107
      %3140 = vst [vmem:[%s204 + $0x60] sm:$0xff] %v3108
      %3141 = vst [vmem:[%s204 + $0x68] sm:$0xff] %v3109
      %3142 = vst [vmem:[%s204 + $0x70] sm:$0xff] %v3110
      %3143 = vst [vmem:[%s204 + $0x78] sm:$0xff] %v3111
      %3144 = vst [vmem:[%s204 + $0x80] sm:$0xff] %v3112
      %3145 = vst [vmem:[%s204 + $0x88] sm:$0xff] %v3113
      %3146 = vst [vmem:[%s204 + $0x90] sm:$0xff] %v3114
      %3147 = vst [vmem:[%s204 + $0x98] sm:$0xff] %v3115
      %3148 = vst [vmem:[%s204 + $0xa0] sm:$0xff] %v3116
      %3149 = vst [vmem:[%s204 + $0xa8] sm:$0xff] %v3117
      %3150 = vst [vmem:[%s204 + $0xb0] sm:$0xff] %v3118
      %3151 = vst [vmem:[%s204 + $0xb8] sm:$0xff] %v3119
      %3152 = vst [vmem:[%s204 + $0xc0] sm:$0xff] %v3120
      %3153 = vst [vmem:[%s204 + $0xc8] sm:$0xff] %v3121
      %3154 = vst [vmem:[%s204 + $0xd0] sm:$0xff] %v3122
      %3155 = vst [vmem:[%s204 + $0xd8] sm:$0xff] %v3123
      %3156 = vst [vmem:[%s204 + $0xe0] sm:$0xff] %v3124
      %3157 = vst [vmem:[%s204 + $0xe8] sm:$0xff] %v3125
      %3158 = vst [vmem:[%s204 + $0xf0] sm:$0xff] %v3126
      %3159 = vst [vmem:[%s204 + $0xf8] sm:$0xff] %v3127
      %v3160 = vadd.f32 %v3096, %v3097
      %v3161 = vadd.f32 %v3160, %v3098
      %v3162 = vadd.f32 %v3161, %v3099
      %v3163 = vadd.f32 %v3162, %v3100
      %v3164 = vadd.f32 %v3163, %v3101
      %v3165 = vadd.f32 %v3164, %v3102
      %v3166 = vadd.f32 %v3165, %v3103
      %v3167 = vadd.f32 %v3166, %v3104
      %v3168 = vadd.f32 %v3167, %v3105
      %v3169 = vadd.f32 %v3168, %v3106
      %v3170 = vadd.f32 %v3169, %v3107
      %v3171 = vadd.f32 %v3170, %v3108
      %v3172 = vadd.f32 %v3171, %v3109
      %v3173 = vadd.f32 %v3172, %v3110
      %v3174 = vadd.f32 %v3173, %v3111
      %v3175 = vadd.f32 %v3174, %v3112
      %v3176 = vadd.f32 %v3175, %v3113
      %v3177 = vadd.f32 %v3176, %v3114
      %v3178 = vadd.f32 %v3177, %v3115
      %v3179 = vadd.f32 %v3178, %v3116
      %v3180 = vadd.f32 %v3179, %v3117
      %v3181 = vadd.f32 %v3180, %v3118
      %v3182 = vadd.f32 %v3181, %v3119
      %v3183 = vadd.f32 %v3182, %v3120
      %v3184 = vadd.f32 %v3183, %v3121
      %v3185 = vadd.f32 %v3184, %v3122
      %v3186 = vadd.f32 %v3185, %v3123
      %v3187 = vadd.f32 %v3186, %v3124
      %v3188 = vadd.f32 %v3187, %v3125
      %v3189 = vadd.f32 %v3188, %v3126
      %v3190 = vadd.f32 %v3189, %v3127
      %v3191 = vrot.slane %v3190, 4
      %v3192 = vadd.f32 %v3190, %v3191
      %v3193 = vrot.slane %v3192, 2
      %v3194 = vadd.f32 %v3192, %v3193
      %v3195 = vrot.slane %v3194, 1
      %v3196 = vadd.f32 %v3194, %v3195
      %v3197 = vmul.f32 %v3096, %v3096
      %v3198 = vmul.f32 %v3097, %v3097
      %v3199 = vmul.f32 %v3098, %v3098
      %v3200 = vmul.f32 %v3099, %v3099
      %v3201 = vmul.f32 %v3100, %v3100
      %v3202 = vmul.f32 %v3101, %v3101
      %v3203 = vmul.f32 %v3102, %v3102
      %v3204 = vmul.f32 %v3103, %v3103
      %v3205 = vmul.f32 %v3104, %v3104
      %v3206 = vmul.f32 %v3105, %v3105
      %v3207 = vmul.f32 %v3106, %v3106
      %v3208 = vmul.f32 %v3107, %v3107
      %v3209 = vmul.f32 %v3108, %v3108
      %v3210 = vmul.f32 %v3109, %v3109
      %v3211 = vmul.f32 %v3110, %v3110
      %v3212 = vmul.f32 %v3111, %v3111
      %v3213 = vmul.f32 %v3112, %v3112
      %v3214 = vmul.f32 %v3113, %v3113
      %v3215 = vmul.f32 %v3114, %v3114
      %v3216 = vmul.f32 %v3115, %v3115
      %v3217 = vmul.f32 %v3116, %v3116
      %v3218 = vmul.f32 %v3117, %v3117
      %v3219 = vmul.f32 %v3118, %v3118
      %v3220 = vmul.f32 %v3119, %v3119
      %v3221 = vmul.f32 %v3120, %v3120
      %v3222 = vmul.f32 %v3121, %v3121
      %v3223 = vmul.f32 %v3122, %v3122
      %v3224 = vmul.f32 %v3123, %v3123
      %v3225 = vmul.f32 %v3124, %v3124
      %v3226 = vmul.f32 %v3125, %v3125
      %v3227 = vmul.f32 %v3126, %v3126
      %v3228 = vmul.f32 %v3127, %v3127
      %v3229 = vadd.f32 %v3197, %v3198
      %v3230 = vadd.f32 %v3229, %v3199
      %v3231 = vadd.f32 %v3230, %v3200
      %v3232 = vadd.f32 %v3231, %v3201
      %v3233 = vadd.f32 %v3232, %v3202
      %v3234 = vadd.f32 %v3233, %v3203
      %v3235 = vadd.f32 %v3234, %v3204
      %v3236 = vadd.f32 %v3235, %v3205
      %v3237 = vadd.f32 %v3236, %v3206
      %v3238 = vadd.f32 %v3237, %v3207
      %v3239 = vadd.f32 %v3238, %v3208
      %v3240 = vadd.f32 %v3239, %v3209
      %v3241 = vadd.f32 %v3240, %v3210
      %v3242 = vadd.f32 %v3241, %v3211
      %v3243 = vadd.f32 %v3242, %v3212
      %v3244 = vadd.f32 %v3243, %v3213
      %v3245 = vadd.f32 %v3244, %v3214
      %v3246 = vadd.f32 %v3245, %v3215
      %v3247 = vadd.f32 %v3246, %v3216
      %v3248 = vadd.f32 %v3247, %v3217
      %v3249 = vadd.f32 %v3248, %v3218
      %v3250 = vadd.f32 %v3249, %v3219
      %v3251 = vadd.f32 %v3250, %v3220
      %v3252 = vadd.f32 %v3251, %v3221
      %v3253 = vadd.f32 %v3252, %v3222
      %v3254 = vadd.f32 %v3253, %v3223
      %v3255 = vadd.f32 %v3254, %v3224
      %v3256 = vadd.f32 %v3255, %v3225
      %v3257 = vadd.f32 %v3256, %v3226
      %v3258 = vadd.f32 %v3257, %v3227
      %v3259 = vadd.f32 %v3258, %v3228
      %v3260 = vrot.slane %v3259, 4
      %v3261 = vadd.f32 %v3259, %v3260
      %v3262 = vrot.slane %v3261, 2
      %v3263 = vadd.f32 %v3261, %v3262
      %v3264 = vrot.slane %v3263, 1
      %v3265 = vadd.f32 %v3263, %v3264
      %vm3266 = vcmask 1040384
      %v3267 = vsel %vm3266, %v3196, %v3265
      %3268 = vst [vmem:[%s208] sm:$0x3] %v3267
      %p3269 = scmp.lt.s32.totalorder %s16, 1
      %s3270 = scalar_select %p3269, %s16, 1
      %s3271 = smul.addr %s3270, 32
      %s3272 = smul.addr %s3271, 8
      %s3273 = scalar_lea.vmem %s3, %s3272
      %p3274 = scmp.lt.s32.totalorder %s16, 1
      %s3275 = scalar_select %p3274, %s16, 1
      %s3276 = smul.addr %s3275, 2
      %s3277 = scalar_lea.vmem %s4, %s3276
      // Predicated region
      $region37: #{conv_block_forward.4} parent=31 // pred_check
        %p3278 = pneg %p102
      $region38: #{conv_block_forward.4} parent=31 // pred_check_branch
        %3280 = sbr.rel (%p3278) target = $region40
      $region39: #{conv_block_forward.4} parent=31 // pred_region
        _
      $region40: #{conv_block_forward.4} parent=31 // pred_fallthru
        _
      // Predicated region
      $region41: #{conv_block_forward.4} parent=31 // pred_check
        %p3281 = pneg %p128
      $region42: #{conv_block_forward.4} parent=31 // pred_check_branch
        %3283 = sbr.rel (%p3281) target = $region44
      $region43: #{conv_block_forward.4} parent=31 // pred_region
        _
      $region44: #{conv_block_forward.4} parent=31 // pred_fallthru
        _
    $region32: #{conv_block_forward.4} parent=5 // pred_fallthru
      _
    %p3284 = scmp.le.s32.totalorder 2, %s11
    // Predicated region
    $region45: #{conv_block_forward.4} parent=5 // pred_check
      %p3285 = pneg %p3284
    $region46: #{conv_block_forward.4} parent=5 // pred_check_branch
      %3287 = sbr.rel (%p3285) target = $region48
    $region47: #{conv_block_forward.4} parent=5 // pred_region
      %s3288 = ssub.s32 %s11, 2
      // Predicated region
      $region49: #{conv_block_forward.4} parent=47 // pred_check
        %p3289 = pneg %p108
      $region50: #{conv_block_forward.4} parent=47 // pred_check_branch
        %3291 = sbr.rel (%p3289) target = $region52
      $region51: #{conv_block_forward.4} parent=47 // pred_region
        %p3292 = scmp.lt.s32.totalorder %s17, 1
        %s3293 = scalar_select %p3292, %s17, 1
        %s3294 = smul.addr %s3293, 32
        %s3295 = smul.addr %s3294, 8
        %s3296 = scalar_lea.vmem %s3, %s3295
      $region52: #{conv_block_forward.4} parent=47 // pred_fallthru
        _
      // Predicated region
      $region53: #{conv_block_forward.4} parent=47 // pred_check
        %p3297 = pneg %p134
      $region54: #{conv_block_forward.4} parent=47 // pred_check_branch
        %3299 = sbr.rel (%p3297) target = $region56
      $region55: #{conv_block_forward.4} parent=47 // pred_region
        %p3300 = scmp.lt.s32.totalorder %s17, 1
        %s3301 = scalar_select %p3300, %s17, 1
        %s3302 = smul.addr %s3301, 2
        %s3303 = scalar_lea.vmem %s4, %s3302
      $region56: #{conv_block_forward.4} parent=47 // pred_fallthru
        _
    $region48: #{conv_block_forward.4} parent=5 // pred_fallthru
      _
  $region6: #{conv_block_forward.4} parent=0 // loop_footer
    %s15 = sadd.s32 1, %s11
  $region7: #{conv_block_forward.4} parent=0 // loop_footer_branch
    %10 = sbr.rel target = $region3
  $region8: #{conv_block_forward.4} parent=0 // loop_exit
    _

</llo_original>
